<compile_context>
chip_gen: v7x
topology: tpu7x:2x2x1
jax: 0.10.0
libtpu: 0.0.40
codegen_flags: <defaults>
</compile_context>

<pallas_src>
import functools
import numpy as np
import jax
import jax.numpy as jnp
from jax.experimental import pallas as pl
from jax.experimental.pallas import tpu as pltpu

LANE = 128                       # lane-dense padding target for all feature dims
COMPUTE_DTYPE = jnp.bfloat16     # matmul-operand dtype (f32 accumulation everywhere)

_VMEM = pl.BlockSpec(memory_space=pltpu.MemorySpace.VMEM)


# ----------------------------- fused Pallas kernel ---------------------------

def _actor_fused_kernel(*refs, n_pad, feat_dim, oh0, ow0, num_rest, fh, fw):
    """Whole Actor forward in one kernel.

    refs = (patches0, dyn, w0, b0, [w_i, b_i]*num_rest,
            wfc, bfc, ln_g, ln_b, t1e, t1d, tb1, t2, tb2, t3, tb3,
            out, fc_buf_scratch)

    Activation rows are ordered (spatial_row, spatial_col, batch) with batch
    padded to n_pad (multiple of 16) so every slab slice is tile-aligned;
    channels sit on the (128-padded) lane axis.
    """
    p1_ref, dyn_ref, w0_ref, b0_ref = refs[:4]
    conv_refs = [(refs[4 + 2 * i], refs[5 + 2 * i]) for i in range(num_rest)]
    (wfc_ref, bfc_ref, g_ref, beta_ref,
     t1e_ref, t1d_ref, tb1_ref, t2_ref, tb2_ref, t3_ref, tb3_ref,
     o_ref, fcbuf_ref) = refs[4 + 2 * num_rest:]

    f32 = jnp.float32
    cdt = w0_ref.dtype                     # bf16 matmul operands
    lane = o_ref.shape[-1]                 # 128

    # ---- conv layer 0 (3x3, stride 2): one patches x weights matmul (MXU) ----
    a32 = jnp.dot(p1_ref[...], w0_ref[...], preferred_element_type=f32)
    a = jnp.maximum(a32 + b0_ref[...], 0.0).astype(cdt)   # bf16 once per layer
    rows = a.shape[0]                      # oh0*ow0*n_pad + 2*n_pad*num_rest

    # ---- stride-1 conv layers: 9 shifted whole-slab matmuls per layer --------
    # Output row (r, c, b) reads input rows (r+kh, c+kw, b) = a[idx + shift]
    # with shift = (kh*ow0 + kw)*n_pad.  The tail zero rows of conv0's patch
    # matrix guarantee every shifted slice is in bounds; wrapped/garbage
    # positions are finite and never feed a valid position of the next layer.
    for (w_ref, b_ref) in conv_refs:
        rows_out = rows - (2 * ow0 + 2) * n_pad
        accs = []
        for kh in range(3):                                 # independent chains
            acc = jnp.zeros((rows_out, lane), f32)
            for kw in range(3):
                shift = (kh * ow0 + kw) * n_pad             # multiple of 16
                acc = acc + jnp.dot(a[shift:shift + rows_out, :],
                                    w_ref[kh * 3 + kw],
                                    preferred_element_type=f32)
            accs.append(acc)
        out = jnp.maximum(accs[0] + accs[1] + accs[2] + b_ref[...], 0.0)
        a = out.astype(cdt)                                 # bf16 once per layer
        rows = rows_out
    # here rows == fh * ow0 * n_pad exactly

    # ---- flatten -> encoder fc, K-folded into ONE matmul ---------------------
    # Relayout the fh*fw valid spatial positions into (n_pad, fh*fw*128), then
    # a single (n_pad, fh*fw*128) x (fh*fw*128, 128) matmul.
    for r in range(fh):
        for c in range(fw):
            k = r * fw + c
            src = (r * ow0 + c) * n_pad
            fcbuf_ref[:, k * lane:(k + 1) * lane] = a[src:src + n_pad, :]
    feat_pre = jnp.dot(fcbuf_ref[...], wfc_ref[...], preferred_element_type=f32)
    y = feat_pre + bfc_ref[...]            # padded lanes are exactly zero

    # ---- encoder head: LayerNorm over the first feat_dim lanes, then tanh ----
    lane_idx = jax.lax.broadcasted_iota(jnp.int32, y.shape, 1)
    mask = lane_idx < feat_dim
    mean = jnp.sum(y, axis=-1, keepdims=True) / feat_dim
    cent = jnp.where(mask, y - mean, 0.0)
    var = jnp.sum(cent * cent, axis=-1, keepdims=True) / feat_dim
    feat = jnp.tanh(cent * jax.lax.rsqrt(var + 1e-5) * g_ref[...] + beta_ref[...])

    # ---- trunk MLP; the [feat, dyn] concat is folded into two matmuls --------
    h = jnp.dot(feat.astype(cdt), t1e_ref[...], preferred_element_type=f32)
    h = h + jnp.dot(dyn_ref[...], t1d_ref[...], preferred_element_type=f32)
    h = jnp.maximum(h + tb1_ref[...], 0.0)
    h = jnp.maximum(
        jnp.dot(h.astype(cdt), t2_ref[...], preferred_element_type=f32) + tb2_ref[...],
        0.0)
    mu = jnp.tanh(
        jnp.dot(h.astype(cdt), t3_ref[...], preferred_element_type=f32) + tb3_ref[...])
    o_ref[...] = mu.astype(o_ref.dtype)    # (n_pad, 128) lane-dense store


# --------------------------------- wrapper -----------------------------------

def actor_forward(packed, obs_nchw, dyn_feat):
    """Actor.forward: encoder(obs) -> [feat, dyn_feat] -> trunk -> mu."""
    g = packed["geom"]
    N = obs_nchw.shape[0]
    oh0, ow0, cin = g["oh0"], g["ow0"], g["cin"]
    num_rest, fh, fw, k0 = g["num_rest"], g["fh"], g["fw"], g["k0"]
    n_pad = ((N + 15) // 16) * 16          # align batch to bf16 sublane pack

    # Layout glue only (no compute): NCHW -> (H, W, N, C), then the 3x3/stride-2
    # patch matrix for the first conv; rows ordered (oh, ow, batch-padded),
    # columns ((kh*3+kw), cin) padded to k0; /255 is folded into w0.
    # TODO(synk): at 84x84 scale fuse this extraction into the kernel (strided
    # DMA) instead of a separate HBM-bound XLA pass.
    x = jnp.transpose(obs_nchw, (2, 3, 0, 1)).astype(jnp.float32)
    taps = [x[kh:kh + 2 * oh0:2, kw:kw + 2 * ow0:2, :, :]
            for kh in range(3) for kw in range(3)]
    p = jnp.stack(taps, axis=3).reshape(oh0 * ow0, N, 9 * cin)
    p = jnp.pad(p, ((0, 0), (0, n_pad - N), (0, k0 - 9 * cin)))
    p1 = p.reshape(oh0 * ow0 * n_pad, k0)
    tail = 2 * n_pad * num_rest            # zero tail rows for the slab shifts
    p1 = jnp.pad(p1, ((0, tail), (0, 0))).astype(COMPUTE_DTYPE)

    dyn = jnp.pad(dyn_feat.astype(jnp.float32),
                  ((0, n_pad - N), (0, LANE - g["dyn_dim"]))).astype(COMPUTE_DTYPE)

    args = [p1, dyn, packed["w0"], packed["b0"]]
    for (w, b) in packed["rest"]:
        args.extend([w, b])
    args.extend([packed["wfc"], packed["bfc"], packed["ln_g"], packed["ln_b"],
                 packed["t1e"], packed["t1d"], packed["tb1"],
                 packed["t2"], packed["tb2"], packed["t3"], packed["tb3"]])

    kernel = functools.partial(
        _actor_fused_kernel, n_pad=n_pad, feat_dim=g["feat_dim"],
        oh0=oh0, ow0=ow0, num_rest=num_rest, fh=fh, fw=fw)

    out = pl.pallas_call(
        kernel,
        out_shape=jax.ShapeDtypeStruct((n_pad, LANE), jnp.float32),
        in_specs=[_VMEM] * len(args),
        out_specs=_VMEM,
        scratch_shapes=[pltpu.VMEM((n_pad, fh * fw * LANE), COMPUTE_DTYPE)],
        compiler_params=pltpu.CompilerParams(vmem_limit_bytes=64 * 1024 * 1024),
    )(*args)
    return out[:N, :g["action_dim"]]


# ------------------------- parameter init / packing --------------------------

def _orthogonal(rng, rows, cols, gain=1.0):
    """numpy mirror of torch.nn.init.orthogonal_ (QR with sign correction)."""
    a = rng.standard_normal((max(rows, cols), min(rows, cols))).astype(np.float32)
    q, r = np.linalg.qr(a)
    d = np.sign(np.diag(r))
    d[d == 0] = 1.0
    q = q * d[None, :]
    if rows < cols:
        q = q.T
    return (gain * q[:rows, :cols]).astype(np.float32)


def init_params(obs_shape, action_shape, dynamics_output_shape, hidden_dim,
                encoder_feature_dim, num_layers, num_filters, seed=0):
    """Torch-layout parameters following Actor.apply(weight_init)."""
    rng = np.random.default_rng(seed)
    C, H, W = obs_shape
    relu_gain = float(np.sqrt(2.0))  # calculate_gain('relu')

    convs = []
    in_c, h, w = C, H, W
    for li in range(num_layers):
        stride = 2 if li == 0 else 1
        wt = np.zeros((num_filters, in_c, 3, 3), dtype=np.float32)
        wt[:, :, 1, 1] = _orthogonal(rng, num_filters, in_c, gain=relu_gain)
        convs.append((wt, np.zeros((num_filters,), np.float32)))
        h = (h - 3) // stride + 1
        w = (w - 3) // stride + 1
        in_c = num_filters
    flat_dim = num_filters * h * w

    def linear(out_f, in_f):
        return _orthogonal(rng, out_f, in_f, gain=1.0), np.zeros((out_f,), np.float32)

    fc_w, fc_b = linear(encoder_feature_dim, flat_dim)
    ln_g = np.ones((encoder_feature_dim,), np.float32)
    ln_b = np.zeros((encoder_feature_dim,), np.float32)
    in_feat = encoder_feature_dim + dynamics_output_shape
    t1_w, t1_b = linear(hidden_dim, in_feat)
    t2_w, t2_b = linear(hidden_dim, hidden_dim)
    t3_w, t3_b = linear(action_shape[0], hidden_dim)
    return dict(convs=convs, fc_w=fc_w, fc_b=fc_b, ln_g=ln_g, ln_b=ln_b,
                t1_w=t1_w, t1_b=t1_b, t2_w=t2_w, t2_b=t2_b, t3_w=t3_w, t3_b=t3_b)


def densify_convs(raw, seed=1):
    """Replace delta-orthogonal conv weights with dense random ones (validation
    only): catches (kh,kw) / OIHW->HWIO permutation bugs the delta init hides."""
    rng = np.random.default_rng(seed)
    new = dict(raw)
    convs = []
    for (w, b) in raw["convs"]:
        fan_in = w.shape[1] * w.shape[2] * w.shape[3]
        wd = (rng.standard_normal(w.shape) / np.sqrt(fan_in)).astype(np.float32)
        bd = (0.05 * rng.standard_normal(b.shape)).astype(np.float32)
        convs.append((wd, bd))
    new["convs"] = convs
    return new


def pack_params(raw, obs_shape, action_dim, dyn_dim):
    """One-time host-side re-layout: pad lanes to 128, fold /255, permute for
    the NCHW flatten, K-fold the fc weight, split trunk layer-1 for the concat."""
    C, H, W = obs_shape
    convs = raw["convs"]
    num_layers = len(convs)
    assert num_layers >= 2, "fused kernel expects >= 2 conv layers (SAC-AE style)"
    nf = convs[0][0].shape[0]
    feat_dim = raw["fc_w"].shape[0]
    hid = raw["t1_w"].shape[0]
    assert max(nf, feat_dim, hid, action_dim, dyn_dim) <= LANE

    oh0 = (H - 3) // 2 + 1
    ow0 = (W - 3) // 2 + 1
    num_rest = num_layers - 1
    fh = oh0 - 2 * num_rest
    fw = ow0 - 2 * num_rest
    assert fh >= 1 and fw >= 1
    k0 = ((9 * C + LANE - 1) // LANE) * LANE       # conv0 K padded to 128-multiple

    # conv layer 0: /255 preprocessing folded into weights, K and Cout padded
    w0, b0 = convs[0]
    w0p = np.zeros((k0, LANE), np.float32)
    w0p[:9 * C, :nf] = np.transpose(w0 / 255.0, (2, 3, 1, 0)).reshape(9 * C, nf)
    b0p = np.zeros((1, LANE), np.float32); b0p[0, :nf] = b0

    rest = []
    for (w, b) in convs[1:]:
        wp = np.zeros((9, LANE, LANE), np.float32)
        wp[:, :nf, :nf] = np.transpose(w, (2, 3, 1, 0)).reshape(9, nf, nf)
        bp = np.zeros((1, LANE), np.float32); bp[0, :nf] = b
        rest.append((jnp.asarray(wp, COMPUTE_DTYPE), jnp.asarray(bp)))

    # encoder fc, K-folded: rows ordered (spatial position k = r*fw+c, channel)
    wfc = raw["fc_w"].reshape(feat_dim, nf, fh, fw)
    wfcp = np.zeros((fh * fw, LANE, LANE), np.float32)
    wfcp[:, :nf, :feat_dim] = np.transpose(wfc, (2, 3, 1, 0)).reshape(fh * fw, nf, feat_dim)
    wfc_big = wfcp.reshape(fh * fw * LANE, LANE)
    bfcp = np.zeros((1, LANE), np.float32); bfcp[0, :feat_dim] = raw["fc_b"]
    gp = np.zeros((1, LANE), np.float32); gp[0, :feat_dim] = raw["ln_g"]
    betap = np.zeros((1, LANE), np.float32); betap[0, :feat_dim] = raw["ln_b"]

    # trunk: layer 1 split into encoder-feature part and (128-padded) dyn part
    t1 = raw["t1_w"]
    t1e = np.zeros((LANE, LANE), np.float32); t1e[:feat_dim, :hid] = t1[:, :feat_dim].T
    t1d = np.zeros((LANE, LANE), np.float32); t1d[:dyn_dim, :hid] = t1[:, feat_dim:].T
    tb1 = np.zeros((1, LANE), np.float32); tb1[0, :hid] = raw["t1_b"]
    t2 = np.zeros((LANE, LANE), np.float32); t2[:hid, :hid] = raw["t2_w"].T
    tb2 = np.zeros((1, LANE), np.float32); tb2[0, :hid] = raw["t2_b"]
    t3 = np.zeros((LANE, LANE), np.float32); t3[:hid, :action_dim] = raw["t3_w"].T
    tb3 = np.zeros((1, LANE), np.float32); tb3[0, :action_dim] = raw["t3_b"]

    geom = dict(cin=C, oh0=oh0, ow0=ow0, num_rest=num_rest, fh=fh, fw=fw, k0=k0,
                feat_dim=feat_dim, action_dim=action_dim, dyn_dim=dyn_dim)
    return dict(
        geom=geom,
        w0=jnp.asarray(w0p, COMPUTE_DTYPE), b0=jnp.asarray(b0p),
        rest=rest,
        wfc=jnp.asarray(wfc_big, COMPUTE_DTYPE), bfc=jnp.asarray(bfcp),
        ln_g=jnp.asarray(gp), ln_b=jnp.asarray(betap),
        t1e=jnp.asarray(t1e, COMPUTE_DTYPE), t1d=jnp.asarray(t1d, COMPUTE_DTYPE),
        tb1=jnp.asarray(tb1),
        t2=jnp.asarray(t2, COMPUTE_DTYPE), tb2=jnp.asarray(tb2),
        t3=jnp.asarray(t3, COMPUTE_DTYPE), tb3=jnp.asarray(tb3),
    )


# ------------------------- pure-JAX reference (f32) --------------------------

def reference_forward(raw, obs, dyn):
    x = obs / 255.0
    for li, (w, b) in enumerate(raw["convs"]):
        stride = 2 if li == 0 else 1
        x = jax.lax.conv_general_dilated(
            x, jnp.asarray(w), (stride, stride), "VALID",
            dimension_numbers=("NCHW", "OIHW", "NCHW"))
        x = jax.nn.relu(x + jnp.asarray(b)[None, :, None, None])
    h = x.reshape(x.shape[0], -1)
    y = h @ jnp.asarray(raw["fc_w"]).T + jnp.asarray(raw["fc_b"])
    mean = y.mean(-1, keepdims=True)
    var = ((y - mean) ** 2).mean(-1, keepdims=True)
    y = (y - mean) / jnp.sqrt(var + 1e-5) * jnp.asarray(raw["ln_g"]) + jnp.asarray(raw["ln_b"])
    feat = jnp.tanh(y)
    j = jnp.concatenate([feat, dyn], axis=1)
    h1 = jax.nn.relu(j @ jnp.asarray(raw["t1_w"]).T + jnp.asarray(raw["t1_b"]))
    h2 = jax.nn.relu(h1 @ jnp.asarray(raw["t2_w"]).T + jnp.asarray(raw["t2_b"]))
    return jnp.tanh(h2 @ jnp.asarray(raw["t3_w"]).T + jnp.asarray(raw["t3_b"]))


# ----------------------------------- main -------------------------------------

if __name__ == "__main__":
    batch = 2
    obs_shape = (4, 16, 16)            # (C, H, W)
    action_shape = (6,)
    dynamics_output_shape = 8
    hidden_dim = 32
    encoder_feature_dim = 32
    num_filters = 8

    key = jax.random.PRNGKey(0)
    k_obs, k_dyn = jax.random.split(key)
    obs = jax.random.uniform(k_obs, (batch,) + obs_shape,
                             minval=0.0, maxval=255.0, dtype=jnp.float32)
    dyn_feat = jax.random.normal(k_dyn, (batch, dynamics_output_shape),
                                 dtype=jnp.float32)

    # (num_layers, dense_random_convs): the dense-random cases validate the
    # conv tap / layout packing that the delta-orthogonal init cannot exercise.
    for num_layers, dense in [(2, False), (2, True), (3, True)]:
        raw = init_params(obs_shape, action_shape, dynamics_output_shape,
                          hidden_dim, encoder_feature_dim, num_layers,
                          num_filters, seed=0)
        if dense:
            raw = densify_convs(raw, seed=1 + num_layers)
        packed = pack_params(raw, obs_shape, action_shape[0],
                             dynamics_output_shape)

        fwd = jax.jit(functools.partial(actor_forward, packed))
        mu = jax.block_until_ready(fwd(obs, dyn_feat))

        assert mu.shape == (batch, action_shape[0])
        assert bool(jnp.all(jnp.isfinite(mu)))
        assert bool(jnp.all(jnp.abs(mu) <= 1.0))   # tanh output

        ref = jax.block_until_ready(reference_forward(raw, obs, dyn_feat))
        err = float(jnp.max(jnp.abs(mu - ref)))
        assert err < 0.06, f"num_layers={num_layers} dense={dense} max|err|={err}"

    print("KERNEL_OK")
</pallas_src>

<mosaic_0001>
module attributes {stable_mosaic.version = 11 : i64} {
  func.func @_actor_fused_kernel(%arg0: memref<816x128xbf16, #tpu.memory_space<vmem>>, %arg1: memref<16x128xbf16, #tpu.memory_space<vmem>>, %arg2: memref<128x128xbf16, #tpu.memory_space<vmem>>, %arg3: memref<1x128xf32, #tpu.memory_space<vmem>>, %arg4: memref<9x128x128xbf16, #tpu.memory_space<vmem>>, %arg5: memref<1x128xf32, #tpu.memory_space<vmem>>, %arg6: memref<3200x128xbf16, #tpu.memory_space<vmem>>, %arg7: memref<1x128xf32, #tpu.memory_space<vmem>>, %arg8: memref<1x128xf32, #tpu.memory_space<vmem>>, %arg9: memref<1x128xf32, #tpu.memory_space<vmem>>, %arg10: memref<128x128xbf16, #tpu.memory_space<vmem>>, %arg11: memref<128x128xbf16, #tpu.memory_space<vmem>>, %arg12: memref<1x128xf32, #tpu.memory_space<vmem>>, %arg13: memref<128x128xbf16, #tpu.memory_space<vmem>>, %arg14: memref<1x128xf32, #tpu.memory_space<vmem>>, %arg15: memref<128x128xbf16, #tpu.memory_space<vmem>>, %arg16: memref<1x128xf32, #tpu.memory_space<vmem>>, %arg17: memref<16x128xf32, #tpu.memory_space<vmem>>, %arg18: memref<16x3200xbf16, #tpu.memory_space<vmem>>) attributes {dimension_semantics = [], scalar_prefetch = 0 : i64, scratch_operands = 1 : i64, tpu.core_type = #tpu.core_type<tc>} {
    %c0 = arith.constant 0 : index
    %c0_0 = arith.constant 0 : index
    %0 = vector.load %arg0[%c0, %c0_0] : memref<816x128xbf16, #tpu.memory_space<vmem>>, vector<816x128xbf16>
    %c0_1 = arith.constant 0 : index
    %c0_2 = arith.constant 0 : index
    %1 = vector.load %arg2[%c0_1, %c0_2] : memref<128x128xbf16, #tpu.memory_space<vmem>>, vector<128x128xbf16>
    %cst = arith.constant dense<0.000000e+00> : vector<816x128xf32>
    %2 = tpu.matmul %0, %1, %cst {dimension_numbers = #tpu.dot_dimension_numbers<[1], [0], [0], [1], [0, 0, 1, 1], [], []>} : vector<816x128xbf16>, vector<128x128xbf16>, vector<816x128xf32> -> vector<816x128xf32>
    %c0_3 = arith.constant 0 : index
    %c0_4 = arith.constant 0 : index
    %3 = vector.load %arg3[%c0_3, %c0_4] : memref<1x128xf32, #tpu.memory_space<vmem>>, vector<1x128xf32>
    %4 = vector.broadcast %3 : vector<1x128xf32> to vector<816x128xf32>
    %5 = arith.addf %2, %4 : vector<816x128xf32>
    %cst_5 = arith.constant 0.000000e+00 : f32
    %6 = vector.broadcast %cst_5 : f32 to vector<816x128xf32>
    %7 = arith.maximumf %5, %6 : vector<816x128xf32>
    %8 = arith.truncf %7 : vector<816x128xf32> to vector<816x128xbf16>
    %cst_6 = arith.constant 0.000000e+00 : f32
    %9 = vector.broadcast %cst_6 : f32 to vector<560x128xf32>
    %10 = vector.extract_strided_slice %8 {offsets = [0, 0], sizes = [560, 128], strides = [1, 1]} : vector<816x128xbf16> to vector<560x128xbf16>
    %c0_7 = arith.constant 0 : index
    %c0_8 = arith.constant 0 : index
    %c0_9 = arith.constant 0 : index
    %11 = vector.load %arg4[%c0_7, %c0_8, %c0_9] : memref<9x128x128xbf16, #tpu.memory_space<vmem>>, vector<1x128x128xbf16>
    %12 = vector.shape_cast %11 : vector<1x128x128xbf16> to vector<128x128xbf16>
    %cst_10 = arith.constant dense<0.000000e+00> : vector<560x128xf32>
    %13 = tpu.matmul %10, %12, %cst_10 {dimension_numbers = #tpu.dot_dimension_numbers<[1], [0], [0], [1], [0, 0, 1, 1], [], []>} : vector<560x128xbf16>, vector<128x128xbf16>, vector<560x128xf32> -> vector<560x128xf32>
    %14 = arith.addf %9, %13 : vector<560x128xf32>
    %15 = vector.extract_strided_slice %8 {offsets = [16, 0], sizes = [560, 128], strides = [1, 1]} : vector<816x128xbf16> to vector<560x128xbf16>
    %c1 = arith.constant 1 : index
    %c0_11 = arith.constant 0 : index
    %c0_12 = arith.constant 0 : index
    %16 = vector.load %arg4[%c1, %c0_11, %c0_12] : memref<9x128x128xbf16, #tpu.memory_space<vmem>>, vector<1x128x128xbf16>
    %17 = vector.shape_cast %16 : vector<1x128x128xbf16> to vector<128x128xbf16>
    %cst_13 = arith.constant dense<0.000000e+00> : vector<560x128xf32>
    %18 = tpu.matmul %15, %17, %cst_13 {dimension_numbers = #tpu.dot_dimension_numbers<[1], [0], [0], [1], [0, 0, 1, 1], [], []>} : vector<560x128xbf16>, vector<128x128xbf16>, vector<560x128xf32> -> vector<560x128xf32>
    %19 = arith.addf %14, %18 : vector<560x128xf32>
    %20 = vector.extract_strided_slice %8 {offsets = [32, 0], sizes = [560, 128], strides = [1, 1]} : vector<816x128xbf16> to vector<560x128xbf16>
    %c2 = arith.constant 2 : index
    %c0_14 = arith.constant 0 : index
    %c0_15 = arith.constant 0 : index
    %21 = vector.load %arg4[%c2, %c0_14, %c0_15] : memref<9x128x128xbf16, #tpu.memory_space<vmem>>, vector<1x128x128xbf16>
    %22 = vector.shape_cast %21 : vector<1x128x128xbf16> to vector<128x128xbf16>
    %cst_16 = arith.constant dense<0.000000e+00> : vector<560x128xf32>
    %23 = tpu.matmul %20, %22, %cst_16 {dimension_numbers = #tpu.dot_dimension_numbers<[1], [0], [0], [1], [0, 0, 1, 1], [], []>} : vector<560x128xbf16>, vector<128x128xbf16>, vector<560x128xf32> -> vector<560x128xf32>
    %24 = arith.addf %19, %23 : vector<560x128xf32>
    %cst_17 = arith.constant 0.000000e+00 : f32
    %25 = vector.broadcast %cst_17 : f32 to vector<560x128xf32>
    %26 = vector.extract_strided_slice %8 {offsets = [112, 0], sizes = [560, 128], strides = [1, 1]} : vector<816x128xbf16> to vector<560x128xbf16>
    %c3 = arith.constant 3 : index
    %c0_18 = arith.constant 0 : index
    %c0_19 = arith.constant 0 : index
    %27 = vector.load %arg4[%c3, %c0_18, %c0_19] : memref<9x128x128xbf16, #tpu.memory_space<vmem>>, vector<1x128x128xbf16>
    %28 = vector.shape_cast %27 : vector<1x128x128xbf16> to vector<128x128xbf16>
    %cst_20 = arith.constant dense<0.000000e+00> : vector<560x128xf32>
    %29 = tpu.matmul %26, %28, %cst_20 {dimension_numbers = #tpu.dot_dimension_numbers<[1], [0], [0], [1], [0, 0, 1, 1], [], []>} : vector<560x128xbf16>, vector<128x128xbf16>, vector<560x128xf32> -> vector<560x128xf32>
    %30 = arith.addf %25, %29 : vector<560x128xf32>
    %31 = vector.extract_strided_slice %8 {offsets = [128, 0], sizes = [560, 128], strides = [1, 1]} : vector<816x128xbf16> to vector<560x128xbf16>
    %c4 = arith.constant 4 : index
    %c0_21 = arith.constant 0 : index
    %c0_22 = arith.constant 0 : index
    %32 = vector.load %arg4[%c4, %c0_21, %c0_22] : memref<9x128x128xbf16, #tpu.memory_space<vmem>>, vector<1x128x128xbf16>
    %33 = vector.shape_cast %32 : vector<1x128x128xbf16> to vector<128x128xbf16>
    %cst_23 = arith.constant dense<0.000000e+00> : vector<560x128xf32>
    %34 = tpu.matmul %31, %33, %cst_23 {dimension_numbers = #tpu.dot_dimension_numbers<[1], [0], [0], [1], [0, 0, 1, 1], [], []>} : vector<560x128xbf16>, vector<128x128xbf16>, vector<560x128xf32> -> vector<560x128xf32>
    %35 = arith.addf %30, %34 : vector<560x128xf32>
    %36 = vector.extract_strided_slice %8 {offsets = [144, 0], sizes = [560, 128], strides = [1, 1]} : vector<816x128xbf16> to vector<560x128xbf16>
    %c5 = arith.constant 5 : index
    %c0_24 = arith.constant 0 : index
    %c0_25 = arith.constant 0 : index
    %37 = vector.load %arg4[%c5, %c0_24, %c0_25] : memref<9x128x128xbf16, #tpu.memory_space<vmem>>, vector<1x128x128xbf16>
    %38 = vector.shape_cast %37 : vector<1x128x128xbf16> to vector<128x128xbf16>
    %cst_26 = arith.constant dense<0.000000e+00> : vector<560x128xf32>
    %39 = tpu.matmul %36, %38, %cst_26 {dimension_numbers = #tpu.dot_dimension_numbers<[1], [0], [0], [1], [0, 0, 1, 1], [], []>} : vector<560x128xbf16>, vector<128x128xbf16>, vector<560x128xf32> -> vector<560x128xf32>
    %40 = arith.addf %35, %39 : vector<560x128xf32>
    %cst_27 = arith.constant 0.000000e+00 : f32
    %41 = vector.broadcast %cst_27 : f32 to vector<560x128xf32>
    %42 = vector.extract_strided_slice %8 {offsets = [224, 0], sizes = [560, 128], strides = [1, 1]} : vector<816x128xbf16> to vector<560x128xbf16>
    %c6 = arith.constant 6 : index
    %c0_28 = arith.constant 0 : index
    %c0_29 = arith.constant 0 : index
    %43 = vector.load %arg4[%c6, %c0_28, %c0_29] : memref<9x128x128xbf16, #tpu.memory_space<vmem>>, vector<1x128x128xbf16>
    %44 = vector.shape_cast %43 : vector<1x128x128xbf16> to vector<128x128xbf16>
    %cst_30 = arith.constant dense<0.000000e+00> : vector<560x128xf32>
    %45 = tpu.matmul %42, %44, %cst_30 {dimension_numbers = #tpu.dot_dimension_numbers<[1], [0], [0], [1], [0, 0, 1, 1], [], []>} : vector<560x128xbf16>, vector<128x128xbf16>, vector<560x128xf32> -> vector<560x128xf32>
    %46 = arith.addf %41, %45 : vector<560x128xf32>
    %47 = vector.extract_strided_slice %8 {offsets = [240, 0], sizes = [560, 128], strides = [1, 1]} : vector<816x128xbf16> to vector<560x128xbf16>
    %c7 = arith.constant 7 : index
    %c0_31 = arith.constant 0 : index
    %c0_32 = arith.constant 0 : index
    %48 = vector.load %arg4[%c7, %c0_31, %c0_32] : memref<9x128x128xbf16, #tpu.memory_space<vmem>>, vector<1x128x128xbf16>
    %49 = vector.shape_cast %48 : vector<1x128x128xbf16> to vector<128x128xbf16>
    %cst_33 = arith.constant dense<0.000000e+00> : vector<560x128xf32>
    %50 = tpu.matmul %47, %49, %cst_33 {dimension_numbers = #tpu.dot_dimension_numbers<[1], [0], [0], [1], [0, 0, 1, 1], [], []>} : vector<560x128xbf16>, vector<128x128xbf16>, vector<560x128xf32> -> vector<560x128xf32>
    %51 = arith.addf %46, %50 : vector<560x128xf32>
    %52 = vector.extract_strided_slice %8 {offsets = [256, 0], sizes = [560, 128], strides = [1, 1]} : vector<816x128xbf16> to vector<560x128xbf16>
    %c8 = arith.constant 8 : index
    %c0_34 = arith.constant 0 : index
    %c0_35 = arith.constant 0 : index
    %53 = vector.load %arg4[%c8, %c0_34, %c0_35] : memref<9x128x128xbf16, #tpu.memory_space<vmem>>, vector<1x128x128xbf16>
    %54 = vector.shape_cast %53 : vector<1x128x128xbf16> to vector<128x128xbf16>
    %cst_36 = arith.constant dense<0.000000e+00> : vector<560x128xf32>
    %55 = tpu.matmul %52, %54, %cst_36 {dimension_numbers = #tpu.dot_dimension_numbers<[1], [0], [0], [1], [0, 0, 1, 1], [], []>} : vector<560x128xbf16>, vector<128x128xbf16>, vector<560x128xf32> -> vector<560x128xf32>
    %56 = arith.addf %51, %55 : vector<560x128xf32>
    %57 = arith.addf %24, %40 : vector<560x128xf32>
    %58 = arith.addf %57, %56 : vector<560x128xf32>
    %c0_37 = arith.constant 0 : index
    %c0_38 = arith.constant 0 : index
    %59 = vector.load %arg5[%c0_37, %c0_38] : memref<1x128xf32, #tpu.memory_space<vmem>>, vector<1x128xf32>
    %60 = vector.broadcast %59 : vector<1x128xf32> to vector<560x128xf32>
    %61 = arith.addf %58, %60 : vector<560x128xf32>
    %cst_39 = arith.constant 0.000000e+00 : f32
    %62 = vector.broadcast %cst_39 : f32 to vector<560x128xf32>
    %63 = arith.maximumf %61, %62 : vector<560x128xf32>
    %64 = arith.truncf %63 : vector<560x128xf32> to vector<560x128xbf16>
    %65 = vector.extract_strided_slice %64 {offsets = [0, 0], sizes = [16, 128], strides = [1, 1]} : vector<560x128xbf16> to vector<16x128xbf16>
    %c0_40 = arith.constant 0 : index
    %c0_41 = arith.constant 0 : index
    %66 = vector.load %arg18[%c0_40, %c0_41] : memref<16x3200xbf16, #tpu.memory_space<vmem>>, vector<16x128xbf16>
    tpu.vector_store %arg18[%c0_40, %c0_41], %65 {strides = array<i32>} : memref<16x3200xbf16, #tpu.memory_space<vmem>>, vector<16x128xbf16>,
    %67 = vector.extract_strided_slice %64 {offsets = [16, 0], sizes = [16, 128], strides = [1, 1]} : vector<560x128xbf16> to vector<16x128xbf16>
    %c0_42 = arith.constant 0 : index
    %c128 = arith.constant 128 : index
    %68 = vector.load %arg18[%c0_42, %c128] : memref<16x3200xbf16, #tpu.memory_space<vmem>>, vector<16x128xbf16>
    tpu.vector_store %arg18[%c0_42, %c128], %67 {strides = array<i32>} : memref<16x3200xbf16, #tpu.memory_space<vmem>>, vector<16x128xbf16>,
    %69 = vector.extract_strided_slice %64 {offsets = [32, 0], sizes = [16, 128], strides = [1, 1]} : vector<560x128xbf16> to vector<16x128xbf16>
    %c0_43 = arith.constant 0 : index
    %c256 = arith.constant 256 : index
    %70 = vector.load %arg18[%c0_43, %c256] : memref<16x3200xbf16, #tpu.memory_space<vmem>>, vector<16x128xbf16>
    tpu.vector_store %arg18[%c0_43, %c256], %69 {strides = array<i32>} : memref<16x3200xbf16, #tpu.memory_space<vmem>>, vector<16x128xbf16>,
    %71 = vector.extract_strided_slice %64 {offsets = [48, 0], sizes = [16, 128], strides = [1, 1]} : vector<560x128xbf16> to vector<16x128xbf16>
    %c0_44 = arith.constant 0 : index
    %c384 = arith.constant 384 : index
    %72 = vector.load %arg18[%c0_44, %c384] : memref<16x3200xbf16, #tpu.memory_space<vmem>>, vector<16x128xbf16>
    tpu.vector_store %arg18[%c0_44, %c384], %71 {strides = array<i32>} : memref<16x3200xbf16, #tpu.memory_space<vmem>>, vector<16x128xbf16>,
    %73 = vector.extract_strided_slice %64 {offsets = [64, 0], sizes = [16, 128], strides = [1, 1]} : vector<560x128xbf16> to vector<16x128xbf16>
    %c0_45 = arith.constant 0 : index
    %c512 = arith.constant 512 : index
    %74 = vector.load %arg18[%c0_45, %c512] : memref<16x3200xbf16, #tpu.memory_space<vmem>>, vector<16x128xbf16>
    tpu.vector_store %arg18[%c0_45, %c512], %73 {strides = array<i32>} : memref<16x3200xbf16, #tpu.memory_space<vmem>>, vector<16x128xbf16>,
    %75 = vector.extract_strided_slice %64 {offsets = [112, 0], sizes = [16, 128], strides = [1, 1]} : vector<560x128xbf16> to vector<16x128xbf16>
    %c0_46 = arith.constant 0 : index
    %c640 = arith.constant 640 : index
    %76 = vector.load %arg18[%c0_46, %c640] : memref<16x3200xbf16, #tpu.memory_space<vmem>>, vector<16x128xbf16>
    tpu.vector_store %arg18[%c0_46, %c640], %75 {strides = array<i32>} : memref<16x3200xbf16, #tpu.memory_space<vmem>>, vector<16x128xbf16>,
    %77 = vector.extract_strided_slice %64 {offsets = [128, 0], sizes = [16, 128], strides = [1, 1]} : vector<560x128xbf16> to vector<16x128xbf16>
    %c0_47 = arith.constant 0 : index
    %c768 = arith.constant 768 : index
    %78 = vector.load %arg18[%c0_47, %c768] : memref<16x3200xbf16, #tpu.memory_space<vmem>>, vector<16x128xbf16>
    tpu.vector_store %arg18[%c0_47, %c768], %77 {strides = array<i32>} : memref<16x3200xbf16, #tpu.memory_space<vmem>>, vector<16x128xbf16>,
    %79 = vector.extract_strided_slice %64 {offsets = [144, 0], sizes = [16, 128], strides = [1, 1]} : vector<560x128xbf16> to vector<16x128xbf16>
    %c0_48 = arith.constant 0 : index
    %c896 = arith.constant 896 : index
    %80 = vector.load %arg18[%c0_48, %c896] : memref<16x3200xbf16, #tpu.memory_space<vmem>>, vector<16x128xbf16>
    tpu.vector_store %arg18[%c0_48, %c896], %79 {strides = array<i32>} : memref<16x3200xbf16, #tpu.memory_space<vmem>>, vector<16x128xbf16>,
    %81 = vector.extract_strided_slice %64 {offsets = [160, 0], sizes = [16, 128], strides = [1, 1]} : vector<560x128xbf16> to vector<16x128xbf16>
    %c0_49 = arith.constant 0 : index
    %c1024 = arith.constant 1024 : index
    %82 = vector.load %arg18[%c0_49, %c1024] : memref<16x3200xbf16, #tpu.memory_space<vmem>>, vector<16x128xbf16>
    tpu.vector_store %arg18[%c0_49, %c1024], %81 {strides = array<i32>} : memref<16x3200xbf16, #tpu.memory_space<vmem>>, vector<16x128xbf16>,
    %83 = vector.extract_strided_slice %64 {offsets = [176, 0], sizes = [16, 128], strides = [1, 1]} : vector<560x128xbf16> to vector<16x128xbf16>
    %c0_50 = arith.constant 0 : index
    %c1152 = arith.constant 1152 : index
    %84 = vector.load %arg18[%c0_50, %c1152] : memref<16x3200xbf16, #tpu.memory_space<vmem>>, vector<16x128xbf16>
    tpu.vector_store %arg18[%c0_50, %c1152], %83 {strides = array<i32>} : memref<16x3200xbf16, #tpu.memory_space<vmem>>, vector<16x128xbf16>,
    %85 = vector.extract_strided_slice %64 {offsets = [224, 0], sizes = [16, 128], strides = [1, 1]} : vector<560x128xbf16> to vector<16x128xbf16>
    %c0_51 = arith.constant 0 : index
    %c1280 = arith.constant 1280 : index
    %86 = vector.load %arg18[%c0_51, %c1280] : memref<16x3200xbf16, #tpu.memory_space<vmem>>, vector<16x128xbf16>
    tpu.vector_store %arg18[%c0_51, %c1280], %85 {strides = array<i32>} : memref<16x3200xbf16, #tpu.memory_space<vmem>>, vector<16x128xbf16>,
    %87 = vector.extract_strided_slice %64 {offsets = [240, 0], sizes = [16, 128], strides = [1, 1]} : vector<560x128xbf16> to vector<16x128xbf16>
    %c0_52 = arith.constant 0 : index
    %c1408 = arith.constant 1408 : index
    %88 = vector.load %arg18[%c0_52, %c1408] : memref<16x3200xbf16, #tpu.memory_space<vmem>>, vector<16x128xbf16>
    tpu.vector_store %arg18[%c0_52, %c1408], %87 {strides = array<i32>} : memref<16x3200xbf16, #tpu.memory_space<vmem>>, vector<16x128xbf16>,
    %89 = vector.extract_strided_slice %64 {offsets = [256, 0], sizes = [16, 128], strides = [1, 1]} : vector<560x128xbf16> to vector<16x128xbf16>
    %c0_53 = arith.constant 0 : index
    %c1536 = arith.constant 1536 : index
    %90 = vector.load %arg18[%c0_53, %c1536] : memref<16x3200xbf16, #tpu.memory_space<vmem>>, vector<16x128xbf16>
    tpu.vector_store %arg18[%c0_53, %c1536], %89 {strides = array<i32>} : memref<16x3200xbf16, #tpu.memory_space<vmem>>, vector<16x128xbf16>,
    %91 = vector.extract_strided_slice %64 {offsets = [272, 0], sizes = [16, 128], strides = [1, 1]} : vector<560x128xbf16> to vector<16x128xbf16>
    %c0_54 = arith.constant 0 : index
    %c1664 = arith.constant 1664 : index
    %92 = vector.load %arg18[%c0_54, %c1664] : memref<16x3200xbf16, #tpu.memory_space<vmem>>, vector<16x128xbf16>
    tpu.vector_store %arg18[%c0_54, %c1664], %91 {strides = array<i32>} : memref<16x3200xbf16, #tpu.memory_space<vmem>>, vector<16x128xbf16>,
    %93 = vector.extract_strided_slice %64 {offsets = [288, 0], sizes = [16, 128], strides = [1, 1]} : vector<560x128xbf16> to vector<16x128xbf16>
    %c0_55 = arith.constant 0 : index
    %c1792 = arith.constant 1792 : index
    %94 = vector.load %arg18[%c0_55, %c1792] : memref<16x3200xbf16, #tpu.memory_space<vmem>>, vector<16x128xbf16>
    tpu.vector_store %arg18[%c0_55, %c1792], %93 {strides = array<i32>} : memref<16x3200xbf16, #tpu.memory_space<vmem>>, vector<16x128xbf16>,
    %95 = vector.extract_strided_slice %64 {offsets = [336, 0], sizes = [16, 128], strides = [1, 1]} : vector<560x128xbf16> to vector<16x128xbf16>
    %c0_56 = arith.constant 0 : index
    %c1920 = arith.constant 1920 : index
    %96 = vector.load %arg18[%c0_56, %c1920] : memref<16x3200xbf16, #tpu.memory_space<vmem>>, vector<16x128xbf16>
    tpu.vector_store %arg18[%c0_56, %c1920], %95 {strides = array<i32>} : memref<16x3200xbf16, #tpu.memory_space<vmem>>, vector<16x128xbf16>,
    %97 = vector.extract_strided_slice %64 {offsets = [352, 0], sizes = [16, 128], strides = [1, 1]} : vector<560x128xbf16> to vector<16x128xbf16>
    %c0_57 = arith.constant 0 : index
    %c2048 = arith.constant 2048 : index
    %98 = vector.load %arg18[%c0_57, %c2048] : memref<16x3200xbf16, #tpu.memory_space<vmem>>, vector<16x128xbf16>
    tpu.vector_store %arg18[%c0_57, %c2048], %97 {strides = array<i32>} : memref<16x3200xbf16, #tpu.memory_space<vmem>>, vector<16x128xbf16>,
    %99 = vector.extract_strided_slice %64 {offsets = [368, 0], sizes = [16, 128], strides = [1, 1]} : vector<560x128xbf16> to vector<16x128xbf16>
    %c0_58 = arith.constant 0 : index
    %c2176 = arith.constant 2176 : index
    %100 = vector.load %arg18[%c0_58, %c2176] : memref<16x3200xbf16, #tpu.memory_space<vmem>>, vector<16x128xbf16>
    tpu.vector_store %arg18[%c0_58, %c2176], %99 {strides = array<i32>} : memref<16x3200xbf16, #tpu.memory_space<vmem>>, vector<16x128xbf16>,
    %101 = vector.extract_strided_slice %64 {offsets = [384, 0], sizes = [16, 128], strides = [1, 1]} : vector<560x128xbf16> to vector<16x128xbf16>
    %c0_59 = arith.constant 0 : index
    %c2304 = arith.constant 2304 : index
    %102 = vector.load %arg18[%c0_59, %c2304] : memref<16x3200xbf16, #tpu.memory_space<vmem>>, vector<16x128xbf16>
    tpu.vector_store %arg18[%c0_59, %c2304], %101 {strides = array<i32>} : memref<16x3200xbf16, #tpu.memory_space<vmem>>, vector<16x128xbf16>,
    %103 = vector.extract_strided_slice %64 {offsets = [400, 0], sizes = [16, 128], strides = [1, 1]} : vector<560x128xbf16> to vector<16x128xbf16>
    %c0_60 = arith.constant 0 : index
    %c2432 = arith.constant 2432 : index
    %104 = vector.load %arg18[%c0_60, %c2432] : memref<16x3200xbf16, #tpu.memory_space<vmem>>, vector<16x128xbf16>
    tpu.vector_store %arg18[%c0_60, %c2432], %103 {strides = array<i32>} : memref<16x3200xbf16, #tpu.memory_space<vmem>>, vector<16x128xbf16>,
    %105 = vector.extract_strided_slice %64 {offsets = [448, 0], sizes = [16, 128], strides = [1, 1]} : vector<560x128xbf16> to vector<16x128xbf16>
    %c0_61 = arith.constant 0 : index
    %c2560 = arith.constant 2560 : index
    %106 = vector.load %arg18[%c0_61, %c2560] : memref<16x3200xbf16, #tpu.memory_space<vmem>>, vector<16x128xbf16>
    tpu.vector_store %arg18[%c0_61, %c2560], %105 {strides = array<i32>} : memref<16x3200xbf16, #tpu.memory_space<vmem>>, vector<16x128xbf16>,
    %107 = vector.extract_strided_slice %64 {offsets = [464, 0], sizes = [16, 128], strides = [1, 1]} : vector<560x128xbf16> to vector<16x128xbf16>
    %c0_62 = arith.constant 0 : index
    %c2688 = arith.constant 2688 : index
    %108 = vector.load %arg18[%c0_62, %c2688] : memref<16x3200xbf16, #tpu.memory_space<vmem>>, vector<16x128xbf16>
    tpu.vector_store %arg18[%c0_62, %c2688], %107 {strides = array<i32>} : memref<16x3200xbf16, #tpu.memory_space<vmem>>, vector<16x128xbf16>,
    %109 = vector.extract_strided_slice %64 {offsets = [480, 0], sizes = [16, 128], strides = [1, 1]} : vector<560x128xbf16> to vector<16x128xbf16>
    %c0_63 = arith.constant 0 : index
    %c2816 = arith.constant 2816 : index
    %110 = vector.load %arg18[%c0_63, %c2816] : memref<16x3200xbf16, #tpu.memory_space<vmem>>, vector<16x128xbf16>
    tpu.vector_store %arg18[%c0_63, %c2816], %109 {strides = array<i32>} : memref<16x3200xbf16, #tpu.memory_space<vmem>>, vector<16x128xbf16>,
    %111 = vector.extract_strided_slice %64 {offsets = [496, 0], sizes = [16, 128], strides = [1, 1]} : vector<560x128xbf16> to vector<16x128xbf16>
    %c0_64 = arith.constant 0 : index
    %c2944 = arith.constant 2944 : index
    %112 = vector.load %arg18[%c0_64, %c2944] : memref<16x3200xbf16, #tpu.memory_space<vmem>>, vector<16x128xbf16>
    tpu.vector_store %arg18[%c0_64, %c2944], %111 {strides = array<i32>} : memref<16x3200xbf16, #tpu.memory_space<vmem>>, vector<16x128xbf16>,
    %113 = vector.extract_strided_slice %64 {offsets = [512, 0], sizes = [16, 128], strides = [1, 1]} : vector<560x128xbf16> to vector<16x128xbf16>
    %c0_65 = arith.constant 0 : index
    %c3072 = arith.constant 3072 : index
    %114 = vector.load %arg18[%c0_65, %c3072] : memref<16x3200xbf16, #tpu.memory_space<vmem>>, vector<16x128xbf16>
    tpu.vector_store %arg18[%c0_65, %c3072], %113 {strides = array<i32>} : memref<16x3200xbf16, #tpu.memory_space<vmem>>, vector<16x128xbf16>,
    %c0_66 = arith.constant 0 : index
    %c0_67 = arith.constant 0 : index
    %115 = vector.load %arg18[%c0_66, %c0_67] : memref<16x3200xbf16, #tpu.memory_space<vmem>>, vector<16x3200xbf16>
    %c0_68 = arith.constant 0 : index
    %c0_69 = arith.constant 0 : index
    %116 = vector.load %arg6[%c0_68, %c0_69] : memref<3200x128xbf16, #tpu.memory_space<vmem>>, vector<3200x128xbf16>
    %cst_70 = arith.constant dense<0.000000e+00> : vector<16x128xf32>
    %117 = tpu.matmul %115, %116, %cst_70 {dimension_numbers = #tpu.dot_dimension_numbers<[1], [0], [0], [1], [0, 0, 1, 1], [], []>} : vector<16x3200xbf16>, vector<3200x128xbf16>, vector<16x128xf32> -> vector<16x128xf32>
    %c0_71 = arith.constant 0 : index
    %c0_72 = arith.constant 0 : index
    %118 = vector.load %arg7[%c0_71, %c0_72] : memref<1x128xf32, #tpu.memory_space<vmem>>, vector<1x128xf32>
    %119 = vector.broadcast %118 : vector<1x128xf32> to vector<16x128xf32>
    %120 = arith.addf %117, %119 : vector<16x128xf32>
    %121 = tpu.iota {dimensions = array<i32: 1>} : vector<16x128xi32>
    %c32_i32 = arith.constant 32 : i32
    %122 = vector.broadcast %c32_i32 : i32 to vector<16x128xi32>
    %123 = arith.cmpi slt, %121, %122 : vector<16x128xi32>
    %cst_73 = arith.constant dense<0.000000e+00> : vector<16xf32>
    %124 = vector.multi_reduction <add>, %120, %cst_73 [1] : vector<16x128xf32> to vector<16xf32>
    %125 = vector.shape_cast %124 : vector<16xf32> to vector<16x1xf32>
    %cst_74 = arith.constant 3.200000e+01 : f32
    %126 = vector.broadcast %cst_74 : f32 to vector<16x1xf32>
    %127 = arith.divf %125, %126 : vector<16x1xf32>
    %128 = vector.broadcast %127 : vector<16x1xf32> to vector<16x128xf32>
    %129 = arith.subf %120, %128 : vector<16x128xf32>
    %cst_75 = arith.constant 0.000000e+00 : f32
    %130 = vector.broadcast %cst_75 : f32 to vector<16x128xf32>
    %131 = arith.select %123, %129, %130 : vector<16x128xi1>, vector<16x128xf32>
    %132 = arith.mulf %131, %131 : vector<16x128xf32>
    %cst_76 = arith.constant dense<0.000000e+00> : vector<16xf32>
    %133 = vector.multi_reduction <add>, %132, %cst_76 [1] : vector<16x128xf32> to vector<16xf32>
    %134 = vector.shape_cast %133 : vector<16xf32> to vector<16x1xf32>
    %cst_77 = arith.constant 3.200000e+01 : f32
    %135 = vector.broadcast %cst_77 : f32 to vector<16x1xf32>
    %136 = arith.divf %134, %135 : vector<16x1xf32>
    %cst_78 = arith.constant 9.99999974E-6 : f32
    %137 = vector.broadcast %cst_78 : f32 to vector<16x1xf32>
    %138 = arith.addf %136, %137 : vector<16x1xf32>
    %139 = math.rsqrt %138 : vector<16x1xf32>
    %140 = vector.broadcast %139 : vector<16x1xf32> to vector<16x128xf32>
    %141 = arith.mulf %131, %140 : vector<16x128xf32>
    %c0_79 = arith.constant 0 : index
    %c0_80 = arith.constant 0 : index
    %142 = vector.load %arg8[%c0_79, %c0_80] : memref<1x128xf32, #tpu.memory_space<vmem>>, vector<1x128xf32>
    %143 = vector.broadcast %142 : vector<1x128xf32> to vector<16x128xf32>
    %144 = arith.mulf %141, %143 : vector<16x128xf32>
    %c0_81 = arith.constant 0 : index
    %c0_82 = arith.constant 0 : index
    %145 = vector.load %arg9[%c0_81, %c0_82] : memref<1x128xf32, #tpu.memory_space<vmem>>, vector<1x128xf32>
    %146 = vector.broadcast %145 : vector<1x128xf32> to vector<16x128xf32>
    %147 = arith.addf %144, %146 : vector<16x128xf32>
    %148 = math.tanh %147 : vector<16x128xf32>
    %149 = arith.truncf %148 : vector<16x128xf32> to vector<16x128xbf16>
    %c0_83 = arith.constant 0 : index
    %c0_84 = arith.constant 0 : index
    %150 = vector.load %arg10[%c0_83, %c0_84] : memref<128x128xbf16, #tpu.memory_space<vmem>>, vector<128x128xbf16>
    %cst_85 = arith.constant dense<0.000000e+00> : vector<16x128xf32>
    %151 = tpu.matmul %149, %150, %cst_85 {dimension_numbers = #tpu.dot_dimension_numbers<[1], [0], [0], [1], [0, 0, 1, 1], [], []>} : vector<16x128xbf16>, vector<128x128xbf16>, vector<16x128xf32> -> vector<16x128xf32>
    %c0_86 = arith.constant 0 : index
    %c0_87 = arith.constant 0 : index
    %152 = vector.load %arg1[%c0_86, %c0_87] : memref<16x128xbf16, #tpu.memory_space<vmem>>, vector<16x128xbf16>
    %c0_88 = arith.constant 0 : index
    %c0_89 = arith.constant 0 : index
    %153 = vector.load %arg11[%c0_88, %c0_89] : memref<128x128xbf16, #tpu.memory_space<vmem>>, vector<128x128xbf16>
    %cst_90 = arith.constant dense<0.000000e+00> : vector<16x128xf32>
    %154 = tpu.matmul %152, %153, %cst_90 {dimension_numbers = #tpu.dot_dimension_numbers<[1], [0], [0], [1], [0, 0, 1, 1], [], []>} : vector<16x128xbf16>, vector<128x128xbf16>, vector<16x128xf32> -> vector<16x128xf32>
    %155 = arith.addf %151, %154 : vector<16x128xf32>
    %c0_91 = arith.constant 0 : index
    %c0_92 = arith.constant 0 : index
    %156 = vector.load %arg12[%c0_91, %c0_92] : memref<1x128xf32, #tpu.memory_space<vmem>>, vector<1x128xf32>
    %157 = vector.broadcast %156 : vector<1x128xf32> to vector<16x128xf32>
    %158 = arith.addf %155, %157 : vector<16x128xf32>
    %cst_93 = arith.constant 0.000000e+00 : f32
    %159 = vector.broadcast %cst_93 : f32 to vector<16x128xf32>
    %160 = arith.maximumf %158, %159 : vector<16x128xf32>
    %161 = arith.truncf %160 : vector<16x128xf32> to vector<16x128xbf16>
    %c0_94 = arith.constant 0 : index
    %c0_95 = arith.constant 0 : index
    %162 = vector.load %arg13[%c0_94, %c0_95] : memref<128x128xbf16, #tpu.memory_space<vmem>>, vector<128x128xbf16>
    %cst_96 = arith.constant dense<0.000000e+00> : vector<16x128xf32>
    %163 = tpu.matmul %161, %162, %cst_96 {dimension_numbers = #tpu.dot_dimension_numbers<[1], [0], [0], [1], [0, 0, 1, 1], [], []>} : vector<16x128xbf16>, vector<128x128xbf16>, vector<16x128xf32> -> vector<16x128xf32>
    %c0_97 = arith.constant 0 : index
    %c0_98 = arith.constant 0 : index
    %164 = vector.load %arg14[%c0_97, %c0_98] : memref<1x128xf32, #tpu.memory_space<vmem>>, vector<1x128xf32>
    %165 = vector.broadcast %164 : vector<1x128xf32> to vector<16x128xf32>
    %166 = arith.addf %163, %165 : vector<16x128xf32>
    %cst_99 = arith.constant 0.000000e+00 : f32
    %167 = vector.broadcast %cst_99 : f32 to vector<16x128xf32>
    %168 = arith.maximumf %166, %167 : vector<16x128xf32>
    %169 = arith.truncf %168 : vector<16x128xf32> to vector<16x128xbf16>
    %c0_100 = arith.constant 0 : index
    %c0_101 = arith.constant 0 : index
    %170 = vector.load %arg15[%c0_100, %c0_101] : memref<128x128xbf16, #tpu.memory_space<vmem>>, vector<128x128xbf16>
    %cst_102 = arith.constant dense<0.000000e+00> : vector<16x128xf32>
    %171 = tpu.matmul %169, %170, %cst_102 {dimension_numbers = #tpu.dot_dimension_numbers<[1], [0], [0], [1], [0, 0, 1, 1], [], []>} : vector<16x128xbf16>, vector<128x128xbf16>, vector<16x128xf32> -> vector<16x128xf32>
    %c0_103 = arith.constant 0 : index
    %c0_104 = arith.constant 0 : index
    %172 = vector.load %arg16[%c0_103, %c0_104] : memref<1x128xf32, #tpu.memory_space<vmem>>, vector<1x128xf32>
    %173 = vector.broadcast %172 : vector<1x128xf32> to vector<16x128xf32>
    %174 = arith.addf %171, %173 : vector<16x128xf32>
    %175 = math.tanh %174 : vector<16x128xf32>
    %c0_105 = arith.constant 0 : index
    %c0_106 = arith.constant 0 : index
    %176 = vector.load %arg17[%c0_105, %c0_106] : memref<16x128xf32, #tpu.memory_space<vmem>>, vector<16x128xf32>
    tpu.vector_store %arg17[%c0_105, %c0_106], %175 {strides = array<i32>} : memref<16x128xf32, #tpu.memory_space<vmem>>, vector<16x128xf32>,
    return
  }
}

</mosaic_0001>

<llo_original>
// kernel: actor_forward.1
$region0: #{actor_forward.1}
  #allocation0 [shape = 'u32[]', space=smem, size = 0x4, offset = 0x4, fixed_abs, tag = 'smem constant byte address 0x4 - core index']
  #allocation1 [shape = 'u32[144,128]{1,0:T(1,128)}', space=vmem, size = 0x12000, scoped, tag = 'internal scratch']
  #allocation2 [shape = 'bf16[16,3200]{1,0:T(16,128)(2,1)}', space=vmem, size = 0x19000, scoped, tag = 'scratch operand']
  %s0 = inlined_call_operand.hbm [shape: bf16[816,128], index: 0, kind: input, shape index: {}]
  %s1 = inlined_call_operand.hbm [shape: bf16[16,128], index: 1, kind: input, shape index: {}]
  %s2 = inlined_call_operand.hbm [shape: bf16[128,128], index: 2, kind: input, shape index: {}]
  %s3 = inlined_call_operand.hbm [shape: f32[1,128], index: 3, kind: input, shape index: {}, may-alias: {3,5,7,9,12,14,16}]
  %s4 = inlined_call_operand.hbm [shape: bf16[9,128,128], index: 4, kind: input, shape index: {}]
  %s5 = inlined_call_operand.hbm [shape: f32[1,128], index: 5, kind: input, shape index: {}, may-alias: {3,5,7,9,12,14,16}]
  %s6 = inlined_call_operand.hbm [shape: bf16[3200,128], index: 6, kind: input, shape index: {}]
  %s7 = inlined_call_operand.hbm [shape: f32[1,128], index: 7, kind: input, shape index: {}, may-alias: {3,5,7,9,12,14,16}]
  %s8 = inlined_call_operand.hbm [shape: f32[1,128], index: 8, kind: input, shape index: {}]
  %s9 = inlined_call_operand.hbm [shape: f32[1,128], index: 9, kind: input, shape index: {}, may-alias: {3,5,7,9,12,14,16}]
  %s10 = inlined_call_operand.hbm [shape: bf16[128,128], index: 10, kind: input, shape index: {}]
  %s11 = inlined_call_operand.hbm [shape: bf16[128,128], index: 11, kind: input, shape index: {}]
  %s12 = inlined_call_operand.hbm [shape: f32[1,128], index: 12, kind: input, shape index: {}, may-alias: {3,5,7,9,12,14,16}]
  %s13 = inlined_call_operand.hbm [shape: bf16[128,128], index: 13, kind: input, shape index: {}]
  %s14 = inlined_call_operand.hbm [shape: f32[1,128], index: 14, kind: input, shape index: {}, may-alias: {3,5,7,9,12,14,16}]
  %s15 = inlined_call_operand.hbm [shape: bf16[128,128], index: 15, kind: input, shape index: {}]
  %s16 = inlined_call_operand.hbm [shape: f32[1,128], index: 16, kind: input, shape index: {}, may-alias: {3,5,7,9,12,14,16}]
  %s17 = inlined_call_operand.hbm [shape: f32[16,128], index: 17, kind: output, shape index: {}]
  %s18 = sld [smem:[#allocation0]]
  $region146: #{actor_forward.1} parent=0
    _
  %s20 = ssub.s32 1, %s18
  %s21 = scalar_select 0, %s20, %s18
  $region1: #{actor_forward.1} parent=0
    #allocation3 [shape = 'u8[208896]{0}', space=vmem, size = 0x33000, scoped, tag = 'input window, operand 0, single buffered']
    #allocation4 [shape = 's32[1]{0}', space=sflag, size = 0x4, scoped, tag = 'scoped memory for actor_forward.1']
    #allocation5 [shape = 's32[1]{0}', space=sflag, size = 0x4, scoped, tag = 'scoped memory for actor_forward.1']
    #allocation6 [shape = 'u8[4096]{0}', space=vmem, size = 0x1000, scoped, tag = 'input window, operand 1, single buffered']
    #allocation7 [shape = 's32[1]{0}', space=sflag, size = 0x4, scoped, tag = 'scoped memory for actor_forward.1']
    #allocation8 [shape = 'u8[32768]{0}', space=vmem, size = 0x8000, scoped, tag = 'input window, operand 2, single buffered']
    #allocation9 [shape = 'u8[512]{0}', space=vmem, size = 0x400, scoped, tag = 'input window, operand 3, single buffered']
    #allocation10 [shape = 's32[1]{0}', space=sflag, size = 0x4, scoped, tag = 'scoped memory for actor_forward.1']
    #allocation11 [shape = 'u8[294912]{0}', space=vmem, size = 0x48000, scoped, tag = 'input window, operand 4, single buffered']
    #allocation12 [shape = 'u8[512]{0}', space=vmem, size = 0x400, scoped, tag = 'input window, operand 5, single buffered']
    #allocation13 [shape = 's32[1]{0}', space=sflag, size = 0x4, scoped, tag = 'scoped memory for actor_forward.1']
    #allocation14 [shape = 'u8[819200]{0}', space=vmem, size = 0xc8000, scoped, tag = 'input window, operand 6, single buffered']
    #allocation15 [shape = 'u8[512]{0}', space=vmem, size = 0x400, scoped, tag = 'input window, operand 7, single buffered']
    #allocation16 [shape = 's32[1]{0}', space=sflag, size = 0x4, scoped, tag = 'scoped memory for actor_forward.1']
    #allocation17 [shape = 'u8[512]{0}', space=vmem, size = 0x400, scoped, tag = 'input window, operand 8, single buffered']
    #allocation18 [shape = 'u8[512]{0}', space=vmem, size = 0x400, scoped, tag = 'input window, operand 9, single buffered']
    #allocation19 [shape = 's32[1]{0}', space=sflag, size = 0x4, scoped, tag = 'scoped memory for actor_forward.1']
    #allocation20 [shape = 'u8[32768]{0}', space=vmem, size = 0x8000, scoped, tag = 'input window, operand 10, single buffered']
    #allocation21 [shape = 'u8[32768]{0}', space=vmem, size = 0x8000, scoped, tag = 'input window, operand 11, single buffered']
    #allocation22 [shape = 's32[1]{0}', space=sflag, size = 0x4, scoped, tag = 'scoped memory for actor_forward.1']
    #allocation23 [shape = 'u8[512]{0}', space=vmem, size = 0x400, scoped, tag = 'input window, operand 12, single buffered']
    #allocation24 [shape = 'u8[32768]{0}', space=vmem, size = 0x8000, scoped, tag = 'input window, operand 13, single buffered']
    #allocation25 [shape = 's32[1]{0}', space=sflag, size = 0x4, scoped, tag = 'scoped memory for actor_forward.1']
    #allocation26 [shape = 'u8[512]{0}', space=vmem, size = 0x400, scoped, tag = 'input window, operand 14, single buffered']
    #allocation27 [shape = 'u8[32768]{0}', space=vmem, size = 0x8000, scoped, tag = 'input window, operand 15, single buffered']
    #allocation28 [shape = 's32[1]{0}', space=sflag, size = 0x4, scoped, tag = 'scoped memory for actor_forward.1']
    #allocation29 [shape = 'u8[512]{0}', space=vmem, size = 0x400, scoped, tag = 'input window, operand 16, single buffered']
    #allocation30 [shape = 'u8[8192]{0}', space=vmem, size = 0x2000, scoped, tag = 'output window, operand 0, single buffered']
    %22 = vsyncpa [#allocation4], 0
    %23 = vsyncpa [#allocation7], 0
    %24 = vsyncpa [#allocation10], 0
    %25 = vsyncpa [#allocation13], 0
    %26 = vsyncpa [#allocation16], 0
    %27 = vsyncpa [#allocation19], 0
    %28 = vsyncpa [#allocation22], 0
    %29 = vsyncpa [#allocation25], 0
    %30 = vsyncpa [#allocation28], 0
    %31 = vsyncpa [#allocation5], 0
    // Predicated region
    $region2: #{actor_forward.1} parent=1 // pred_check
      _
    $region3: #{actor_forward.1} parent=1 // pred_check_branch
      %33 = sbr.rel (0) target = $region5
    $region4: #{actor_forward.1} parent=1 // pred_region
      %s35 = ssub.s32 6528, 6528
      %36 = vsyncadd [#allocation4], %s35
      %s37 = sshll.u32 [#allocation3], 4
      %s38 = int_to_ptr.vmem [resolvable:$true] %s37
      %43 = dma.hbm_to_vmem [thread:$0]  %s0, 6528, %s38, [#allocation4], 64, 64, 4
    $region5: #{actor_forward.1} parent=1 // pred_fallthru
      _
    // Predicated region
    $region6: #{actor_forward.1} parent=1 // pred_check
      _
    $region7: #{actor_forward.1} parent=1 // pred_check_branch
      %45 = sbr.rel (0) target = $region9
    $region8: #{actor_forward.1} parent=1 // pred_region
      %s47 = ssub.s32 128, 128
      %48 = vsyncadd [#allocation7], %s47
      %s49 = sshll.u32 [#allocation6], 4
      %s50 = int_to_ptr.vmem [resolvable:$true] %s49
      %55 = dma.hbm_to_vmem [thread:$0]  %s1, 128, %s50, [#allocation7], 64, 64, 4
    $region9: #{actor_forward.1} parent=1 // pred_fallthru
      _
    // Predicated region
    $region10: #{actor_forward.1} parent=1 // pred_check
      _
    $region11: #{actor_forward.1} parent=1 // pred_check_branch
      %57 = sbr.rel (0) target = $region13
    $region12: #{actor_forward.1} parent=1 // pred_region
      %s59 = ssub.s32 1024, 1024
      %60 = vsyncadd [#allocation7], %s59
      %s61 = sshll.u32 [#allocation8], 4
      %s62 = int_to_ptr.vmem [resolvable:$true] %s61
      %67 = dma.hbm_to_vmem [thread:$0]  %s2, 1024, %s62, [#allocation7], 64, 64, 4
    $region13: #{actor_forward.1} parent=1 // pred_fallthru
      _
    // Predicated region
    $region14: #{actor_forward.1} parent=1 // pred_check
      _
    $region15: #{actor_forward.1} parent=1 // pred_check_branch
      %69 = sbr.rel (0) target = $region17
    $region16: #{actor_forward.1} parent=1 // pred_region
      %s71 = ssub.s32 16, 16
      %72 = vsyncadd [#allocation10], %s71
      %s74 = sshll.u32 [#allocation9], 4
      %s75 = int_to_ptr.vmem [resolvable:$true] %s74
      %77 = dma.hbm_to_vmem [thread:$0]  %s3, 16, %s75, [#allocation10]
    $region17: #{actor_forward.1} parent=1 // pred_fallthru
      _
    // Predicated region
    $region18: #{actor_forward.1} parent=1 // pred_check
      _
    $region19: #{actor_forward.1} parent=1 // pred_check_branch
      %79 = sbr.rel (0) target = $region21
    $region20: #{actor_forward.1} parent=1 // pred_region
      %s81 = ssub.s32 9216, 9216
      %82 = vsyncadd [#allocation10], %s81
      %s83 = sshll.u32 [#allocation11], 4
      %s84 = int_to_ptr.vmem [resolvable:$true] %s83
      %89 = dma.hbm_to_vmem [thread:$0]  %s4, 9216, %s84, [#allocation10], 64, 64, 4
    $region21: #{actor_forward.1} parent=1 // pred_fallthru
      _
    // Predicated region
    $region22: #{actor_forward.1} parent=1 // pred_check
      _
    $region23: #{actor_forward.1} parent=1 // pred_check_branch
      %91 = sbr.rel (0) target = $region25
    $region24: #{actor_forward.1} parent=1 // pred_region
      %s93 = ssub.s32 16, 16
      %94 = vsyncadd [#allocation13], %s93
      %s96 = sshll.u32 [#allocation12], 4
      %s97 = int_to_ptr.vmem [resolvable:$true] %s96
      %99 = dma.hbm_to_vmem [thread:$0]  %s5, 16, %s97, [#allocation13]
    $region25: #{actor_forward.1} parent=1 // pred_fallthru
      _
    // Predicated region
    $region26: #{actor_forward.1} parent=1 // pred_check
      _
    $region27: #{actor_forward.1} parent=1 // pred_check_branch
      %101 = sbr.rel (0) target = $region29
    $region28: #{actor_forward.1} parent=1 // pred_region
      %s103 = ssub.s32 25600, 25600
      %104 = vsyncadd [#allocation13], %s103
      %s105 = sshll.u32 [#allocation14], 4
      %s106 = int_to_ptr.vmem [resolvable:$true] %s105
      %111 = dma.hbm_to_vmem [thread:$0]  %s6, 25600, %s106, [#allocation13], 64, 64, 4
    $region29: #{actor_forward.1} parent=1 // pred_fallthru
      _
    // Predicated region
    $region30: #{actor_forward.1} parent=1 // pred_check
      _
    $region31: #{actor_forward.1} parent=1 // pred_check_branch
      %113 = sbr.rel (0) target = $region33
    $region32: #{actor_forward.1} parent=1 // pred_region
      %s115 = ssub.s32 16, 16
      %116 = vsyncadd [#allocation16], %s115
      %s118 = sshll.u32 [#allocation15], 4
      %s119 = int_to_ptr.vmem [resolvable:$true] %s118
      %121 = dma.hbm_to_vmem [thread:$0]  %s7, 16, %s119, [#allocation16]
    $region33: #{actor_forward.1} parent=1 // pred_fallthru
      _
    // Predicated region
    $region34: #{actor_forward.1} parent=1 // pred_check
      _
    $region35: #{actor_forward.1} parent=1 // pred_check_branch
      %123 = sbr.rel (0) target = $region37
    $region36: #{actor_forward.1} parent=1 // pred_region
      %s125 = ssub.s32 16, 16
      %126 = vsyncadd [#allocation16], %s125
      %s128 = sshll.u32 [#allocation17], 4
      %s129 = int_to_ptr.vmem [resolvable:$true] %s128
      %131 = dma.hbm_to_vmem [thread:$0]  %s8, 16, %s129, [#allocation16]
    $region37: #{actor_forward.1} parent=1 // pred_fallthru
      _
    // Predicated region
    $region38: #{actor_forward.1} parent=1 // pred_check
      _
    $region39: #{actor_forward.1} parent=1 // pred_check_branch
      %133 = sbr.rel (0) target = $region41
    $region40: #{actor_forward.1} parent=1 // pred_region
      %s135 = ssub.s32 16, 16
      %136 = vsyncadd [#allocation19], %s135
      %s138 = sshll.u32 [#allocation18], 4
      %s139 = int_to_ptr.vmem [resolvable:$true] %s138
      %141 = dma.hbm_to_vmem [thread:$0]  %s9, 16, %s139, [#allocation19]
    $region41: #{actor_forward.1} parent=1 // pred_fallthru
      _
    // Predicated region
    $region42: #{actor_forward.1} parent=1 // pred_check
      _
    $region43: #{actor_forward.1} parent=1 // pred_check_branch
      %143 = sbr.rel (0) target = $region45
    $region44: #{actor_forward.1} parent=1 // pred_region
      %s145 = ssub.s32 1024, 1024
      %146 = vsyncadd [#allocation19], %s145
      %s147 = sshll.u32 [#allocation20], 4
      %s148 = int_to_ptr.vmem [resolvable:$true] %s147
      %153 = dma.hbm_to_vmem [thread:$0]  %s10, 1024, %s148, [#allocation19], 64, 64, 4
    $region45: #{actor_forward.1} parent=1 // pred_fallthru
      _
    // Predicated region
    $region46: #{actor_forward.1} parent=1 // pred_check
      _
    $region47: #{actor_forward.1} parent=1 // pred_check_branch
      %155 = sbr.rel (0) target = $region49
    $region48: #{actor_forward.1} parent=1 // pred_region
      %s157 = ssub.s32 1024, 1024
      %158 = vsyncadd [#allocation22], %s157
      %s159 = sshll.u32 [#allocation21], 4
      %s160 = int_to_ptr.vmem [resolvable:$true] %s159
      %165 = dma.hbm_to_vmem [thread:$0]  %s11, 1024, %s160, [#allocation22], 64, 64, 4
    $region49: #{actor_forward.1} parent=1 // pred_fallthru
      _
    // Predicated region
    $region50: #{actor_forward.1} parent=1 // pred_check
      _
    $region51: #{actor_forward.1} parent=1 // pred_check_branch
      %167 = sbr.rel (0) target = $region53
    $region52: #{actor_forward.1} parent=1 // pred_region
      %s169 = ssub.s32 16, 16
      %170 = vsyncadd [#allocation22], %s169
      %s172 = sshll.u32 [#allocation23], 4
      %s173 = int_to_ptr.vmem [resolvable:$true] %s172
      %175 = dma.hbm_to_vmem [thread:$0]  %s12, 16, %s173, [#allocation22]
    $region53: #{actor_forward.1} parent=1 // pred_fallthru
      _
    // Predicated region
    $region54: #{actor_forward.1} parent=1 // pred_check
      _
    $region55: #{actor_forward.1} parent=1 // pred_check_branch
      %177 = sbr.rel (0) target = $region57
    $region56: #{actor_forward.1} parent=1 // pred_region
      %s179 = ssub.s32 1024, 1024
      %180 = vsyncadd [#allocation25], %s179
      %s181 = sshll.u32 [#allocation24], 4
      %s182 = int_to_ptr.vmem [resolvable:$true] %s181
      %187 = dma.hbm_to_vmem [thread:$0]  %s13, 1024, %s182, [#allocation25], 64, 64, 4
    $region57: #{actor_forward.1} parent=1 // pred_fallthru
      _
    // Predicated region
    $region58: #{actor_forward.1} parent=1 // pred_check
      _
    $region59: #{actor_forward.1} parent=1 // pred_check_branch
      %189 = sbr.rel (0) target = $region61
    $region60: #{actor_forward.1} parent=1 // pred_region
      %s191 = ssub.s32 16, 16
      %192 = vsyncadd [#allocation25], %s191
      %s194 = sshll.u32 [#allocation26], 4
      %s195 = int_to_ptr.vmem [resolvable:$true] %s194
      %197 = dma.hbm_to_vmem [thread:$0]  %s14, 16, %s195, [#allocation25]
    $region61: #{actor_forward.1} parent=1 // pred_fallthru
      _
    // Predicated region
    $region62: #{actor_forward.1} parent=1 // pred_check
      _
    $region63: #{actor_forward.1} parent=1 // pred_check_branch
      %199 = sbr.rel (0) target = $region65
    $region64: #{actor_forward.1} parent=1 // pred_region
      %s201 = ssub.s32 1024, 1024
      %202 = vsyncadd [#allocation28], %s201
      %s203 = sshll.u32 [#allocation27], 4
      %s204 = int_to_ptr.vmem [resolvable:$true] %s203
      %209 = dma.hbm_to_vmem [thread:$0]  %s15, 1024, %s204, [#allocation28], 64, 64, 4
    $region65: #{actor_forward.1} parent=1 // pred_fallthru
      _
    // Predicated region
    $region66: #{actor_forward.1} parent=1 // pred_check
      _
    $region67: #{actor_forward.1} parent=1 // pred_check_branch
      %211 = sbr.rel (0) target = $region69
    $region68: #{actor_forward.1} parent=1 // pred_region
      %s213 = ssub.s32 16, 16
      %214 = vsyncadd [#allocation28], %s213
      %s216 = sshll.u32 [#allocation29], 4
      %s217 = int_to_ptr.vmem [resolvable:$true] %s216
      %219 = dma.hbm_to_vmem [thread:$0]  %s16, 16, %s217, [#allocation28]
    $region69: #{actor_forward.1} parent=1 // pred_fallthru
      _
    // Predicated region
    $region70: #{actor_forward.1} parent=1 // pred_check
      _
    $region71: #{actor_forward.1} parent=1 // pred_check_branch
      %221 = sbr.rel (0) target = $region73
    $region72: #{actor_forward.1} parent=1 // pred_region
      %222 = dma.done [#allocation4], 6528
    $region73: #{actor_forward.1} parent=1 // pred_fallthru
      _
    // Predicated region
    $region74: #{actor_forward.1} parent=1 // pred_check
      _
    $region75: #{actor_forward.1} parent=1 // pred_check_branch
      %224 = sbr.rel (0) target = $region77
    $region76: #{actor_forward.1} parent=1 // pred_region
      %225 = dma.done [#allocation7], 128
    $region77: #{actor_forward.1} parent=1 // pred_fallthru
      _
    // Predicated region
    $region78: #{actor_forward.1} parent=1 // pred_check
      _
    $region79: #{actor_forward.1} parent=1 // pred_check_branch
      %227 = sbr.rel (0) target = $region81
    $region80: #{actor_forward.1} parent=1 // pred_region
      %228 = dma.done [#allocation7], 1024
    $region81: #{actor_forward.1} parent=1 // pred_fallthru
      _
    // Predicated region
    $region82: #{actor_forward.1} parent=1 // pred_check
      _
    $region83: #{actor_forward.1} parent=1 // pred_check_branch
      %230 = sbr.rel (0) target = $region85
    $region84: #{actor_forward.1} parent=1 // pred_region
      %231 = dma.done [#allocation10], 16
    $region85: #{actor_forward.1} parent=1 // pred_fallthru
      _
    // Predicated region
    $region86: #{actor_forward.1} parent=1 // pred_check
      _
    $region87: #{actor_forward.1} parent=1 // pred_check_branch
      %233 = sbr.rel (0) target = $region89
    $region88: #{actor_forward.1} parent=1 // pred_region
      %234 = dma.done [#allocation10], 9216
    $region89: #{actor_forward.1} parent=1 // pred_fallthru
      _
    // Predicated region
    $region90: #{actor_forward.1} parent=1 // pred_check
      _
    $region91: #{actor_forward.1} parent=1 // pred_check_branch
      %236 = sbr.rel (0) target = $region93
    $region92: #{actor_forward.1} parent=1 // pred_region
      %237 = dma.done [#allocation13], 16
    $region93: #{actor_forward.1} parent=1 // pred_fallthru
      _
    // Predicated region
    $region94: #{actor_forward.1} parent=1 // pred_check
      _
    $region95: #{actor_forward.1} parent=1 // pred_check_branch
      %239 = sbr.rel (0) target = $region97
    $region96: #{actor_forward.1} parent=1 // pred_region
      %240 = dma.done [#allocation13], 25600
    $region97: #{actor_forward.1} parent=1 // pred_fallthru
      _
    // Predicated region
    $region98: #{actor_forward.1} parent=1 // pred_check
      _
    $region99: #{actor_forward.1} parent=1 // pred_check_branch
      %242 = sbr.rel (0) target = $region101
    $region100: #{actor_forward.1} parent=1 // pred_region
      %243 = dma.done [#allocation16], 16
    $region101: #{actor_forward.1} parent=1 // pred_fallthru
      _
    // Predicated region
    $region102: #{actor_forward.1} parent=1 // pred_check
      _
    $region103: #{actor_forward.1} parent=1 // pred_check_branch
      %245 = sbr.rel (0) target = $region105
    $region104: #{actor_forward.1} parent=1 // pred_region
      %246 = dma.done [#allocation16], 16
    $region105: #{actor_forward.1} parent=1 // pred_fallthru
      _
    // Predicated region
    $region106: #{actor_forward.1} parent=1 // pred_check
      _
    $region107: #{actor_forward.1} parent=1 // pred_check_branch
      %248 = sbr.rel (0) target = $region109
    $region108: #{actor_forward.1} parent=1 // pred_region
      %249 = dma.done [#allocation19], 16
    $region109: #{actor_forward.1} parent=1 // pred_fallthru
      _
    // Predicated region
    $region110: #{actor_forward.1} parent=1 // pred_check
      _
    $region111: #{actor_forward.1} parent=1 // pred_check_branch
      %251 = sbr.rel (0) target = $region113
    $region112: #{actor_forward.1} parent=1 // pred_region
      %252 = dma.done [#allocation19], 1024
    $region113: #{actor_forward.1} parent=1 // pred_fallthru
      _
    // Predicated region
    $region114: #{actor_forward.1} parent=1 // pred_check
      _
    $region115: #{actor_forward.1} parent=1 // pred_check_branch
      %254 = sbr.rel (0) target = $region117
    $region116: #{actor_forward.1} parent=1 // pred_region
      %255 = dma.done [#allocation22], 1024
    $region117: #{actor_forward.1} parent=1 // pred_fallthru
      _
    // Predicated region
    $region118: #{actor_forward.1} parent=1 // pred_check
      _
    $region119: #{actor_forward.1} parent=1 // pred_check_branch
      %257 = sbr.rel (0) target = $region121
    $region120: #{actor_forward.1} parent=1 // pred_region
      %258 = dma.done [#allocation22], 16
    $region121: #{actor_forward.1} parent=1 // pred_fallthru
      _
    // Predicated region
    $region122: #{actor_forward.1} parent=1 // pred_check
      _
    $region123: #{actor_forward.1} parent=1 // pred_check_branch
      %260 = sbr.rel (0) target = $region125
    $region124: #{actor_forward.1} parent=1 // pred_region
      %261 = dma.done [#allocation25], 1024
    $region125: #{actor_forward.1} parent=1 // pred_fallthru
      _
    // Predicated region
    $region126: #{actor_forward.1} parent=1 // pred_check
      _
    $region127: #{actor_forward.1} parent=1 // pred_check_branch
      %263 = sbr.rel (0) target = $region129
    $region128: #{actor_forward.1} parent=1 // pred_region
      %264 = dma.done [#allocation25], 16
    $region129: #{actor_forward.1} parent=1 // pred_fallthru
      _
    // Predicated region
    $region130: #{actor_forward.1} parent=1 // pred_check
      _
    $region131: #{actor_forward.1} parent=1 // pred_check_branch
      %266 = sbr.rel (0) target = $region133
    $region132: #{actor_forward.1} parent=1 // pred_region
      %267 = dma.done [#allocation28], 1024
    $region133: #{actor_forward.1} parent=1 // pred_fallthru
      _
    // Predicated region
    $region134: #{actor_forward.1} parent=1 // pred_check
      _
    $region135: #{actor_forward.1} parent=1 // pred_check_branch
      %269 = sbr.rel (0) target = $region137
    $region136: #{actor_forward.1} parent=1 // pred_region
      %270 = dma.done [#allocation28], 16
    $region137: #{actor_forward.1} parent=1 // pred_fallthru
      _
    %v272 = vld [vmem:[#allocation3] sm:$0xf]
    %v273 = vld [vmem:[#allocation3 + $0x4] sm:$0xf]
    %v274 = vld [vmem:[#allocation3 + $0x8] sm:$0xf]
    %v275 = vld [vmem:[#allocation3 + $0xc] sm:$0xf]
    %v276 = vld [vmem:[#allocation3 + $0x10] sm:$0xf]
    %v277 = vld [vmem:[#allocation3 + $0x14] sm:$0xf]
    %v278 = vld [vmem:[#allocation3 + $0x18] sm:$0xf]
    %v279 = vld [vmem:[#allocation3 + $0x1c] sm:$0xf]
    %v280 = vld [vmem:[#allocation3 + $0x20] sm:$0xf]
    %v281 = vld [vmem:[#allocation3 + $0x24] sm:$0xf]
    %v282 = vld [vmem:[#allocation3 + $0x28] sm:$0xf]
    %v283 = vld [vmem:[#allocation3 + $0x2c] sm:$0xf]
    %v284 = vld [vmem:[#allocation3 + $0x30] sm:$0xf]
    %v285 = vld [vmem:[#allocation3 + $0x34] sm:$0xf]
    %v286 = vld [vmem:[#allocation3 + $0x38] sm:$0xf]
    %v287 = vld [vmem:[#allocation3 + $0x3c] sm:$0xf]
    %v288 = vld [vmem:[#allocation3 + $0x40] sm:$0xf]
    %v289 = vld [vmem:[#allocation3 + $0x44] sm:$0xf]
    %v290 = vld [vmem:[#allocation3 + $0x48] sm:$0xf]
    %v291 = vld [vmem:[#allocation3 + $0x4c] sm:$0xf]
    %v292 = vld [vmem:[#allocation3 + $0x50] sm:$0xf]
    %v293 = vld [vmem:[#allocation3 + $0x54] sm:$0xf]
    %v294 = vld [vmem:[#allocation3 + $0x58] sm:$0xf]
    %v295 = vld [vmem:[#allocation3 + $0x5c] sm:$0xf]
    %v296 = vld [vmem:[#allocation3 + $0x60] sm:$0xf]
    %v297 = vld [vmem:[#allocation3 + $0x64] sm:$0xf]
    %v298 = vld [vmem:[#allocation3 + $0x68] sm:$0xf]
    %v299 = vld [vmem:[#allocation3 + $0x6c] sm:$0xf]
    %v300 = vld [vmem:[#allocation3 + $0x70] sm:$0xf]
    %v301 = vld [vmem:[#allocation3 + $0x74] sm:$0xf]
    %v302 = vld [vmem:[#allocation3 + $0x78] sm:$0xf]
    %v303 = vld [vmem:[#allocation3 + $0x7c] sm:$0xf]
    %v304 = vld [vmem:[#allocation3 + $0x80] sm:$0xf]
    %v305 = vld [vmem:[#allocation3 + $0x84] sm:$0xf]
    %v306 = vld [vmem:[#allocation3 + $0x88] sm:$0xf]
    %v307 = vld [vmem:[#allocation3 + $0x8c] sm:$0xf]
    %v308 = vld [vmem:[#allocation3 + $0x90] sm:$0xf]
    %v309 = vld [vmem:[#allocation3 + $0x94] sm:$0xf]
    %v310 = vld [vmem:[#allocation3 + $0x98] sm:$0xf]
    %v311 = vld [vmem:[#allocation3 + $0x9c] sm:$0xf]
    %v312 = vld [vmem:[#allocation3 + $0xa0] sm:$0xf]
    %v313 = vld [vmem:[#allocation3 + $0xa4] sm:$0xf]
    %v314 = vld [vmem:[#allocation3 + $0xa8] sm:$0xf]
    %v315 = vld [vmem:[#allocation3 + $0xac] sm:$0xf]
    %v316 = vld [vmem:[#allocation3 + $0xb0] sm:$0xf]
    %v317 = vld [vmem:[#allocation3 + $0xb4] sm:$0xf]
    %v318 = vld [vmem:[#allocation3 + $0xb8] sm:$0xf]
    %v319 = vld [vmem:[#allocation3 + $0xbc] sm:$0xf]
    %v320 = vld [vmem:[#allocation3 + $0xc0] sm:$0xf]
    %v321 = vld [vmem:[#allocation3 + $0xc4] sm:$0xf]
    %v322 = vld [vmem:[#allocation3 + $0xc8] sm:$0xf]
    %v323 = vld [vmem:[#allocation3 + $0xcc] sm:$0xf]
    %v324 = vld [vmem:[#allocation3 + $0xd0] sm:$0xf]
    %v325 = vld [vmem:[#allocation3 + $0xd4] sm:$0xf]
    %v326 = vld [vmem:[#allocation3 + $0xd8] sm:$0xf]
    %v327 = vld [vmem:[#allocation3 + $0xdc] sm:$0xf]
    %v328 = vld [vmem:[#allocation3 + $0xe0] sm:$0xf]
    %v329 = vld [vmem:[#allocation3 + $0xe4] sm:$0xf]
    %v330 = vld [vmem:[#allocation3 + $0xe8] sm:$0xf]
    %v331 = vld [vmem:[#allocation3 + $0xec] sm:$0xf]
    %v332 = vld [vmem:[#allocation3 + $0xf0] sm:$0xf]
    %v333 = vld [vmem:[#allocation3 + $0xf4] sm:$0xf]
    %v334 = vld [vmem:[#allocation3 + $0xf8] sm:$0xf]
    %v335 = vld [vmem:[#allocation3 + $0xfc] sm:$0xf]
    %v336 = vld [vmem:[#allocation3 + $0x100] sm:$0xf]
    %v337 = vld [vmem:[#allocation3 + $0x104] sm:$0xf]
    %v338 = vld [vmem:[#allocation3 + $0x108] sm:$0xf]
    %v339 = vld [vmem:[#allocation3 + $0x10c] sm:$0xf]
    %v340 = vld [vmem:[#allocation3 + $0x110] sm:$0xf]
    %v341 = vld [vmem:[#allocation3 + $0x114] sm:$0xf]
    %v342 = vld [vmem:[#allocation3 + $0x118] sm:$0xf]
    %v343 = vld [vmem:[#allocation3 + $0x11c] sm:$0xf]
    %v344 = vld [vmem:[#allocation3 + $0x120] sm:$0xf]
    %v345 = vld [vmem:[#allocation3 + $0x124] sm:$0xf]
    %v346 = vld [vmem:[#allocation3 + $0x128] sm:$0xf]
    %v347 = vld [vmem:[#allocation3 + $0x12c] sm:$0xf]
    %v348 = vld [vmem:[#allocation3 + $0x130] sm:$0xf]
    %v349 = vld [vmem:[#allocation3 + $0x134] sm:$0xf]
    %v350 = vld [vmem:[#allocation3 + $0x138] sm:$0xf]
    %v351 = vld [vmem:[#allocation3 + $0x13c] sm:$0xf]
    %v352 = vld [vmem:[#allocation3 + $0x140] sm:$0xf]
    %v353 = vld [vmem:[#allocation3 + $0x144] sm:$0xf]
    %v354 = vld [vmem:[#allocation3 + $0x148] sm:$0xf]
    %v355 = vld [vmem:[#allocation3 + $0x14c] sm:$0xf]
    %v356 = vld [vmem:[#allocation3 + $0x150] sm:$0xf]
    %v357 = vld [vmem:[#allocation3 + $0x154] sm:$0xf]
    %v358 = vld [vmem:[#allocation3 + $0x158] sm:$0xf]
    %v359 = vld [vmem:[#allocation3 + $0x15c] sm:$0xf]
    %v360 = vld [vmem:[#allocation3 + $0x160] sm:$0xf]
    %v361 = vld [vmem:[#allocation3 + $0x164] sm:$0xf]
    %v362 = vld [vmem:[#allocation3 + $0x168] sm:$0xf]
    %v363 = vld [vmem:[#allocation3 + $0x16c] sm:$0xf]
    %v364 = vld [vmem:[#allocation3 + $0x170] sm:$0xf]
    %v365 = vld [vmem:[#allocation3 + $0x174] sm:$0xf]
    %v366 = vld [vmem:[#allocation3 + $0x178] sm:$0xf]
    %v367 = vld [vmem:[#allocation3 + $0x17c] sm:$0xf]
    %v368 = vld [vmem:[#allocation3 + $0x180] sm:$0xf]
    %v369 = vld [vmem:[#allocation3 + $0x184] sm:$0xf]
    %v370 = vld [vmem:[#allocation3 + $0x188] sm:$0xf]
    %v371 = vld [vmem:[#allocation3 + $0x18c] sm:$0xf]
    %v372 = vld [vmem:[#allocation3 + $0x190] sm:$0xf]
    %v373 = vld [vmem:[#allocation3 + $0x194] sm:$0xf]
    %v374 = vld [vmem:[#allocation8] sm:$0xf]
    %v375 = vld [vmem:[#allocation8 + $0x4] sm:$0xf]
    %v376 = vld [vmem:[#allocation8 + $0x8] sm:$0xf]
    %v377 = vld [vmem:[#allocation8 + $0xc] sm:$0xf]
    %v378 = vld [vmem:[#allocation8 + $0x10] sm:$0xf]
    %v379 = vld [vmem:[#allocation8 + $0x14] sm:$0xf]
    %v380 = vld [vmem:[#allocation8 + $0x18] sm:$0xf]
    %v381 = vld [vmem:[#allocation8 + $0x1c] sm:$0xf]
    %v382 = vld [vmem:[#allocation8 + $0x20] sm:$0xf]
    %v383 = vld [vmem:[#allocation8 + $0x24] sm:$0xf]
    %v384 = vld [vmem:[#allocation8 + $0x28] sm:$0xf]
    %v385 = vld [vmem:[#allocation8 + $0x2c] sm:$0xf]
    %v386 = vld [vmem:[#allocation8 + $0x30] sm:$0xf]
    %v387 = vld [vmem:[#allocation8 + $0x34] sm:$0xf]
    %v388 = vld [vmem:[#allocation8 + $0x38] sm:$0xf]
    %v389 = vld [vmem:[#allocation8 + $0x3c] sm:$0xf]
    %v390 = vld [vmem:[#allocation9] sm:$0x1]
    %v392 = vlaneseq
    %v393 = vshrl.u32 %v392, 7
    %v394 = vsub.s32 0, %v393
    %v395 = vrot.slane %v390, %v394
    %v499 = vunpack.c.l.b16 %v272
    %v500 = vunpack.c.l.b16 %v273
    %v501 = vunpack.c.l.b16 %v274
    %v502 = vunpack.c.l.b16 %v275
    %v503 = vunpack.c.l.b16 %v276
    %v504 = vunpack.c.l.b16 %v277
    %v505 = vunpack.c.l.b16 %v278
    %v506 = vunpack.c.l.b16 %v279
    %v507 = vunpack.c.l.b16 %v280
    %v508 = vunpack.c.l.b16 %v281
    %v509 = vunpack.c.l.b16 %v282
    %v510 = vunpack.c.l.b16 %v283
    %v511 = vunpack.c.l.b16 %v284
    %v512 = vunpack.c.l.b16 %v285
    %v513 = vunpack.c.l.b16 %v286
    %v514 = vunpack.c.l.b16 %v287
    %v515 = vunpack.c.l.b16 %v288
    %v516 = vunpack.c.l.b16 %v289
    %v517 = vunpack.c.l.b16 %v290
    %v518 = vunpack.c.l.b16 %v291
    %v519 = vunpack.c.l.b16 %v292
    %v520 = vunpack.c.l.b16 %v293
    %v521 = vunpack.c.l.b16 %v294
    %v522 = vunpack.c.l.b16 %v295
    %v523 = vunpack.c.l.b16 %v296
    %v524 = vunpack.c.l.b16 %v297
    %v525 = vunpack.c.l.b16 %v298
    %v526 = vunpack.c.l.b16 %v299
    %v527 = vunpack.c.l.b16 %v300
    %v528 = vunpack.c.l.b16 %v301
    %v529 = vunpack.c.l.b16 %v302
    %v530 = vunpack.c.l.b16 %v303
    %v531 = vunpack.c.l.b16 %v304
    %v532 = vunpack.c.l.b16 %v305
    %v533 = vunpack.c.l.b16 %v306
    %v534 = vunpack.c.l.b16 %v307
    %v535 = vunpack.c.l.b16 %v308
    %v536 = vunpack.c.l.b16 %v309
    %v537 = vunpack.c.l.b16 %v310
    %v538 = vunpack.c.l.b16 %v311
    %v539 = vunpack.c.l.b16 %v312
    %v540 = vunpack.c.l.b16 %v313
    %v541 = vunpack.c.l.b16 %v314
    %v542 = vunpack.c.l.b16 %v315
    %v543 = vunpack.c.l.b16 %v316
    %v544 = vunpack.c.l.b16 %v317
    %v545 = vunpack.c.l.b16 %v318
    %v546 = vunpack.c.l.b16 %v319
    %v547 = vunpack.c.l.b16 %v320
    %v548 = vunpack.c.l.b16 %v321
    %v549 = vunpack.c.l.b16 %v322
    %v550 = vunpack.c.l.b16 %v323
    %v551 = vunpack.c.l.b16 %v324
    %v552 = vunpack.c.l.b16 %v325
    %v553 = vunpack.c.l.b16 %v326
    %v554 = vunpack.c.l.b16 %v327
    %v555 = vunpack.c.l.b16 %v328
    %v556 = vunpack.c.l.b16 %v329
    %v557 = vunpack.c.l.b16 %v330
    %v558 = vunpack.c.l.b16 %v331
    %v559 = vunpack.c.l.b16 %v332
    %v560 = vunpack.c.l.b16 %v333
    %v561 = vunpack.c.l.b16 %v334
    %v562 = vunpack.c.l.b16 %v335
    %v563 = vunpack.c.l.b16 %v336
    %v564 = vunpack.c.l.b16 %v337
    %v565 = vunpack.c.l.b16 %v338
    %v566 = vunpack.c.l.b16 %v339
    %v567 = vunpack.c.l.b16 %v340
    %v568 = vunpack.c.l.b16 %v341
    %v569 = vunpack.c.l.b16 %v342
    %v570 = vunpack.c.l.b16 %v343
    %v571 = vunpack.c.l.b16 %v344
    %v572 = vunpack.c.l.b16 %v345
    %v573 = vunpack.c.l.b16 %v346
    %v574 = vunpack.c.l.b16 %v347
    %v575 = vunpack.c.l.b16 %v348
    %v576 = vunpack.c.l.b16 %v349
    %v577 = vunpack.c.l.b16 %v350
    %v578 = vunpack.c.l.b16 %v351
    %v579 = vunpack.c.l.b16 %v352
    %v580 = vunpack.c.l.b16 %v353
    %v581 = vunpack.c.l.b16 %v354
    %v582 = vunpack.c.l.b16 %v355
    %v583 = vunpack.c.l.b16 %v356
    %v584 = vunpack.c.l.b16 %v357
    %v585 = vunpack.c.l.b16 %v358
    %v586 = vunpack.c.l.b16 %v359
    %v587 = vunpack.c.l.b16 %v360
    %v588 = vunpack.c.l.b16 %v361
    %v589 = vunpack.c.l.b16 %v362
    %v590 = vunpack.c.l.b16 %v363
    %v591 = vunpack.c.l.b16 %v364
    %v592 = vunpack.c.l.b16 %v365
    %v593 = vunpack.c.l.b16 %v366
    %v594 = vunpack.c.l.b16 %v367
    %v595 = vunpack.c.l.b16 %v368
    %v596 = vunpack.c.l.b16 %v369
    %v597 = vunpack.c.l.b16 %v370
    %v598 = vunpack.c.l.b16 %v371
    %v599 = vunpack.c.l.b16 %v372
    %v600 = vunpack.c.l.b16 %v373
    %v601 = vpack.c.b16 %v500, %v499
    %v602 = vpack.c.b16 %v502, %v501
    %v603 = vpack.c.b16 %v504, %v503
    %v604 = vpack.c.b16 %v506, %v505
    %v605 = vpack.c.b16 %v508, %v507
    %v606 = vpack.c.b16 %v510, %v509
    %v607 = vpack.c.b16 %v512, %v511
    %v608 = vpack.c.b16 %v514, %v513
    %v609 = vpack.c.b16 %v516, %v515
    %v610 = vpack.c.b16 %v518, %v517
    %v611 = vpack.c.b16 %v520, %v519
    %v612 = vpack.c.b16 %v522, %v521
    %v613 = vpack.c.b16 %v524, %v523
    %v614 = vpack.c.b16 %v526, %v525
    %v615 = vpack.c.b16 %v528, %v527
    %v616 = vpack.c.b16 %v530, %v529
    %v617 = vpack.c.b16 %v532, %v531
    %v618 = vpack.c.b16 %v534, %v533
    %v619 = vpack.c.b16 %v536, %v535
    %v620 = vpack.c.b16 %v538, %v537
    %v621 = vpack.c.b16 %v540, %v539
    %v622 = vpack.c.b16 %v542, %v541
    %v623 = vpack.c.b16 %v544, %v543
    %v624 = vpack.c.b16 %v546, %v545
    %v625 = vpack.c.b16 %v548, %v547
    %v626 = vpack.c.b16 %v550, %v549
    %v627 = vpack.c.b16 %v552, %v551
    %v628 = vpack.c.b16 %v554, %v553
    %v629 = vpack.c.b16 %v556, %v555
    %v630 = vpack.c.b16 %v558, %v557
    %v631 = vpack.c.b16 %v560, %v559
    %v632 = vpack.c.b16 %v562, %v561
    %v633 = vpack.c.b16 %v564, %v563
    %v634 = vpack.c.b16 %v566, %v565
    %v635 = vpack.c.b16 %v568, %v567
    %v636 = vpack.c.b16 %v570, %v569
    %v637 = vpack.c.b16 %v572, %v571
    %v638 = vpack.c.b16 %v574, %v573
    %v639 = vpack.c.b16 %v576, %v575
    %v640 = vpack.c.b16 %v578, %v577
    %v641 = vpack.c.b16 %v580, %v579
    %v642 = vpack.c.b16 %v582, %v581
    %v643 = vpack.c.b16 %v584, %v583
    %v644 = vpack.c.b16 %v586, %v585
    %v645 = vpack.c.b16 %v588, %v587
    %v646 = vpack.c.b16 %v590, %v589
    %v647 = vpack.c.b16 %v592, %v591
    %v648 = vpack.c.b16 %v594, %v593
    %v649 = vpack.c.b16 %v596, %v595
    %v650 = vpack.c.b16 %v598, %v597
    %v651 = vpack.c.b16 %v600, %v599
    %v719 = vunpack.c.l.b16 %v374
    %v720 = vunpack.c.l.b16 %v375
    %v721 = vunpack.c.l.b16 %v376
    %v722 = vunpack.c.l.b16 %v377
    %v723 = vunpack.c.l.b16 %v378
    %v724 = vunpack.c.l.b16 %v379
    %v725 = vunpack.c.l.b16 %v380
    %v726 = vunpack.c.l.b16 %v381
    %v727 = vunpack.c.l.b16 %v382
    %v728 = vunpack.c.l.b16 %v383
    %v729 = vunpack.c.l.b16 %v384
    %v730 = vunpack.c.l.b16 %v385
    %v731 = vunpack.c.l.b16 %v386
    %v732 = vunpack.c.l.b16 %v387
    %v733 = vunpack.c.l.b16 %v388
    %v734 = vunpack.c.l.b16 %v389
    %v735 = vpack.c.b16 %v720, %v719
    %v736 = vpack.c.b16 %v722, %v721
    %v737 = vpack.c.b16 %v724, %v723
    %v738 = vpack.c.b16 %v726, %v725
    %v739 = vpack.c.b16 %v728, %v727
    %v740 = vpack.c.b16 %v730, %v729
    %v741 = vpack.c.b16 %v732, %v731
    %v742 = vpack.c.b16 %v734, %v733
    %751 = vmatprep.subr.bf16.mxu0 0
    %752 = vmatpush1.bf16.msra.mxu0 %v735
    %753 = vmatprep.subr.bf16.mxu0 0
    %754 = vmatpush1.bf16.msra.mxu0 %v736
    %755 = vmatprep.subr.bf16.mxu0 0
    %756 = vmatpush1.bf16.msra.mxu0 %v737
    %757 = vmatprep.subr.bf16.mxu0 0
    %758 = vmatpush1.bf16.msra.mxu0 %v738
    %759 = vmatprep.subr.bf16.mxu0 0
    %760 = vmatpush1.bf16.msra.mxu0 %v739
    %761 = vmatprep.subr.bf16.mxu0 0
    %762 = vmatpush1.bf16.msra.mxu0 %v740
    %763 = vmatprep.subr.bf16.mxu0 0
    %764 = vmatpush1.bf16.msra.mxu0 %v741
    %765 = vmatprep.subr.bf16.mxu0 0
    %766 = vmatpush1.bf16.msra.mxu0 %v742
    %767 = vmatprep.subr.bf16.mxu0 0
    %768 = vmatpush1.bf16.msra.mxu0 0
    %769 = vmatprep.subr.bf16.mxu0 0
    %770 = vmatpush1.bf16.msra.mxu0 0
    %771 = vmatprep.subr.bf16.mxu0 0
    %772 = vmatpush1.bf16.msra.mxu0 0
    %773 = vmatprep.subr.bf16.mxu0 0
    %774 = vmatpush1.bf16.msra.mxu0 0
    %775 = vmatprep.subr.bf16.mxu0 0
    %776 = vmatpush1.bf16.msra.mxu0 0
    %777 = vmatprep.subr.bf16.mxu0 0
    %778 = vmatpush1.bf16.msra.mxu0 0
    %779 = vmatprep.subr.bf16.mxu0 0
    %780 = vmatpush1.bf16.msra.mxu0 0
    %781 = vmatprep.subr.bf16.mxu0 0
    %782 = vmatpush1.bf16.msra.mxu0 0
    %783 = vmatprep.mubr.bf16.mxu0 0
    %784 = vmatmul.mubr.bf16.gmra.mrb[0].mxu0 %v601
    %v785 = vpop.f32.mrb[0].mxu0
    %v786 = vadd.f32 %v395, %v785
    %v787 = vpop.f32.mrb[0].mxu0
    %v788 = vpop.f32.mrb[0].mxu0
    %v789 = vadd.f32 %v395, %v788
    %v790 = vpop.f32.mrb[0].mxu0
    %791 = vmatprep.mubr.bf16.mxu0 0
    %792 = vmatmul.mubr.bf16.gmra.mrb[0].mxu0 %v602
    %v793 = vpop.f32.mrb[0].mxu0
    %v794 = vadd.f32 %v395, %v793
    %v795 = vpop.f32.mrb[0].mxu0
    %v796 = vpop.f32.mrb[0].mxu0
    %v797 = vadd.f32 %v395, %v796
    %v798 = vpop.f32.mrb[0].mxu0
    %799 = vmatprep.mubr.bf16.mxu0 0
    %800 = vmatmul.mubr.bf16.gmra.mrb[0].mxu0 %v603
    %v801 = vpop.f32.mrb[0].mxu0
    %v802 = vadd.f32 %v395, %v801
    %v803 = vpop.f32.mrb[0].mxu0
    %v804 = vpop.f32.mrb[0].mxu0
    %v805 = vadd.f32 %v395, %v804
    %v806 = vpop.f32.mrb[0].mxu0
    %807 = vmatprep.mubr.bf16.mxu0 0
    %808 = vmatmul.mubr.bf16.gmra.mrb[0].mxu0 %v604
    %v809 = vpop.f32.mrb[0].mxu0
    %v810 = vadd.f32 %v395, %v809
    %v811 = vpop.f32.mrb[0].mxu0
    %v812 = vpop.f32.mrb[0].mxu0
    %v813 = vadd.f32 %v395, %v812
    %v814 = vpop.f32.mrb[0].mxu0
    %815 = vmatprep.mubr.bf16.mxu0 0
    %816 = vmatmul.mubr.bf16.gmra.mrb[0].mxu0 %v605
    %v817 = vpop.f32.mrb[0].mxu0
    %v818 = vadd.f32 %v395, %v817
    %v819 = vpop.f32.mrb[0].mxu0
    %v820 = vpop.f32.mrb[0].mxu0
    %v821 = vadd.f32 %v395, %v820
    %v822 = vpop.f32.mrb[0].mxu0
    %823 = vmatprep.mubr.bf16.mxu0 0
    %824 = vmatmul.mubr.bf16.gmra.mrb[0].mxu0 %v606
    %v825 = vpop.f32.mrb[0].mxu0
    %v826 = vadd.f32 %v395, %v825
    %v827 = vpop.f32.mrb[0].mxu0
    %v828 = vpop.f32.mrb[0].mxu0
    %v829 = vadd.f32 %v395, %v828
    %v830 = vpop.f32.mrb[0].mxu0
    %831 = vmatprep.mubr.bf16.mxu0 0
    %832 = vmatmul.mubr.bf16.gmra.mrb[0].mxu0 %v607
    %v833 = vpop.f32.mrb[0].mxu0
    %v834 = vadd.f32 %v395, %v833
    %v835 = vpop.f32.mrb[0].mxu0
    %v836 = vpop.f32.mrb[0].mxu0
    %v837 = vadd.f32 %v395, %v836
    %v838 = vpop.f32.mrb[0].mxu0
    %839 = vmatprep.mubr.bf16.mxu0 0
    %840 = vmatmul.mubr.bf16.gmra.mrb[0].mxu0 %v608
    %v841 = vpop.f32.mrb[0].mxu0
    %v842 = vadd.f32 %v395, %v841
    %v843 = vpop.f32.mrb[0].mxu0
    %v844 = vpop.f32.mrb[0].mxu0
    %v845 = vadd.f32 %v395, %v844
    %v846 = vpop.f32.mrb[0].mxu0
    %847 = vmatprep.mubr.bf16.mxu0 0
    %848 = vmatmul.mubr.bf16.gmra.mrb[0].mxu0 %v609
    %v849 = vpop.f32.mrb[0].mxu0
    %v850 = vadd.f32 %v395, %v849
    %v851 = vpop.f32.mrb[0].mxu0
    %v852 = vpop.f32.mrb[0].mxu0
    %v853 = vadd.f32 %v395, %v852
    %v854 = vpop.f32.mrb[0].mxu0
    %855 = vmatprep.mubr.bf16.mxu0 0
    %856 = vmatmul.mubr.bf16.gmra.mrb[0].mxu0 %v610
    %v857 = vpop.f32.mrb[0].mxu0
    %v858 = vadd.f32 %v395, %v857
    %v859 = vpop.f32.mrb[0].mxu0
    %v860 = vpop.f32.mrb[0].mxu0
    %v861 = vadd.f32 %v395, %v860
    %v862 = vpop.f32.mrb[0].mxu0
    %863 = vmatprep.mubr.bf16.mxu0 0
    %864 = vmatmul.mubr.bf16.gmra.mrb[0].mxu0 %v611
    %v865 = vpop.f32.mrb[0].mxu0
    %v866 = vadd.f32 %v395, %v865
    %v867 = vpop.f32.mrb[0].mxu0
    %v868 = vpop.f32.mrb[0].mxu0
    %v869 = vadd.f32 %v395, %v868
    %v870 = vpop.f32.mrb[0].mxu0
    %871 = vmatprep.mubr.bf16.mxu0 0
    %872 = vmatmul.mubr.bf16.gmra.mrb[0].mxu0 %v612
    %v873 = vpop.f32.mrb[0].mxu0
    %v874 = vadd.f32 %v395, %v873
    %v875 = vpop.f32.mrb[0].mxu0
    %v876 = vpop.f32.mrb[0].mxu0
    %v877 = vadd.f32 %v395, %v876
    %v878 = vpop.f32.mrb[0].mxu0
    %879 = vmatprep.mubr.bf16.mxu0 0
    %880 = vmatmul.mubr.bf16.gmra.mrb[0].mxu0 %v613
    %v881 = vpop.f32.mrb[0].mxu0
    %v882 = vadd.f32 %v395, %v881
    %v883 = vpop.f32.mrb[0].mxu0
    %v884 = vpop.f32.mrb[0].mxu0
    %v885 = vadd.f32 %v395, %v884
    %v886 = vpop.f32.mrb[0].mxu0
    %887 = vmatprep.mubr.bf16.mxu0 0
    %888 = vmatmul.mubr.bf16.gmra.mrb[0].mxu0 %v614
    %v889 = vpop.f32.mrb[0].mxu0
    %v890 = vadd.f32 %v395, %v889
    %v891 = vpop.f32.mrb[0].mxu0
    %v892 = vpop.f32.mrb[0].mxu0
    %v893 = vadd.f32 %v395, %v892
    %v894 = vpop.f32.mrb[0].mxu0
    %895 = vmatprep.mubr.bf16.mxu0 0
    %896 = vmatmul.mubr.bf16.gmra.mrb[0].mxu0 %v615
    %v897 = vpop.f32.mrb[0].mxu0
    %v898 = vadd.f32 %v395, %v897
    %v899 = vpop.f32.mrb[0].mxu0
    %v900 = vpop.f32.mrb[0].mxu0
    %v901 = vadd.f32 %v395, %v900
    %v902 = vpop.f32.mrb[0].mxu0
    %903 = vmatprep.mubr.bf16.mxu0 0
    %904 = vmatmul.mubr.bf16.gmra.mrb[0].mxu0 %v616
    %v905 = vpop.f32.mrb[0].mxu0
    %v906 = vadd.f32 %v395, %v905
    %v907 = vpop.f32.mrb[0].mxu0
    %v908 = vpop.f32.mrb[0].mxu0
    %v909 = vadd.f32 %v395, %v908
    %v910 = vpop.f32.mrb[0].mxu0
    %911 = vmatprep.mubr.bf16.mxu0 0
    %912 = vmatmul.mubr.bf16.gmra.mrb[0].mxu0 %v617
    %v913 = vpop.f32.mrb[0].mxu0
    %v914 = vadd.f32 %v395, %v913
    %v915 = vpop.f32.mrb[0].mxu0
    %v916 = vpop.f32.mrb[0].mxu0
    %v917 = vadd.f32 %v395, %v916
    %v918 = vpop.f32.mrb[0].mxu0
    %919 = vmatprep.mubr.bf16.mxu0 0
    %920 = vmatmul.mubr.bf16.gmra.mrb[0].mxu0 %v618
    %v921 = vpop.f32.mrb[0].mxu0
    %v922 = vadd.f32 %v395, %v921
    %v923 = vpop.f32.mrb[0].mxu0
    %v924 = vpop.f32.mrb[0].mxu0
    %v925 = vadd.f32 %v395, %v924
    %v926 = vpop.f32.mrb[0].mxu0
    %927 = vmatprep.mubr.bf16.mxu0 0
    %928 = vmatmul.mubr.bf16.gmra.mrb[0].mxu0 %v619
    %v929 = vpop.f32.mrb[0].mxu0
    %v930 = vadd.f32 %v395, %v929
    %v931 = vpop.f32.mrb[0].mxu0
    %v932 = vpop.f32.mrb[0].mxu0
    %v933 = vadd.f32 %v395, %v932
    %v934 = vpop.f32.mrb[0].mxu0
    %935 = vmatprep.mubr.bf16.mxu0 0
    %936 = vmatmul.mubr.bf16.gmra.mrb[0].mxu0 %v620
    %v937 = vpop.f32.mrb[0].mxu0
    %v938 = vadd.f32 %v395, %v937
    %v939 = vpop.f32.mrb[0].mxu0
    %v940 = vpop.f32.mrb[0].mxu0
    %v941 = vadd.f32 %v395, %v940
    %v942 = vpop.f32.mrb[0].mxu0
    %943 = vmatprep.mubr.bf16.mxu0 0
    %944 = vmatmul.mubr.bf16.gmra.mrb[0].mxu0 %v621
    %v945 = vpop.f32.mrb[0].mxu0
    %v946 = vadd.f32 %v395, %v945
    %v947 = vpop.f32.mrb[0].mxu0
    %v948 = vpop.f32.mrb[0].mxu0
    %v949 = vadd.f32 %v395, %v948
    %v950 = vpop.f32.mrb[0].mxu0
    %951 = vmatprep.mubr.bf16.mxu0 0
    %952 = vmatmul.mubr.bf16.gmra.mrb[0].mxu0 %v622
    %v953 = vpop.f32.mrb[0].mxu0
    %v954 = vadd.f32 %v395, %v953
    %v955 = vpop.f32.mrb[0].mxu0
    %v956 = vpop.f32.mrb[0].mxu0
    %v957 = vadd.f32 %v395, %v956
    %v958 = vpop.f32.mrb[0].mxu0
    %959 = vmatprep.mubr.bf16.mxu0 0
    %960 = vmatmul.mubr.bf16.gmra.mrb[0].mxu0 %v623
    %v961 = vpop.f32.mrb[0].mxu0
    %v962 = vadd.f32 %v395, %v961
    %v963 = vpop.f32.mrb[0].mxu0
    %v964 = vpop.f32.mrb[0].mxu0
    %v965 = vadd.f32 %v395, %v964
    %v966 = vpop.f32.mrb[0].mxu0
    %967 = vmatprep.mubr.bf16.mxu0 0
    %968 = vmatmul.mubr.bf16.gmra.mrb[0].mxu0 %v624
    %v969 = vpop.f32.mrb[0].mxu0
    %v970 = vadd.f32 %v395, %v969
    %v971 = vpop.f32.mrb[0].mxu0
    %v972 = vpop.f32.mrb[0].mxu0
    %v973 = vadd.f32 %v395, %v972
    %v974 = vpop.f32.mrb[0].mxu0
    %975 = vmatprep.mubr.bf16.mxu0 0
    %976 = vmatmul.mubr.bf16.gmra.mrb[0].mxu0 %v625
    %v977 = vpop.f32.mrb[0].mxu0
    %v978 = vadd.f32 %v395, %v977
    %v979 = vpop.f32.mrb[0].mxu0
    %v980 = vpop.f32.mrb[0].mxu0
    %v981 = vadd.f32 %v395, %v980
    %v982 = vpop.f32.mrb[0].mxu0
    %983 = vmatprep.mubr.bf16.mxu0 0
    %984 = vmatmul.mubr.bf16.gmra.mrb[0].mxu0 %v626
    %v985 = vpop.f32.mrb[0].mxu0
    %v986 = vadd.f32 %v395, %v985
    %v987 = vpop.f32.mrb[0].mxu0
    %v988 = vpop.f32.mrb[0].mxu0
    %v989 = vadd.f32 %v395, %v988
    %v990 = vpop.f32.mrb[0].mxu0
    %991 = vmatprep.mubr.bf16.mxu0 0
    %992 = vmatmul.mubr.bf16.gmra.mrb[0].mxu0 %v627
    %v993 = vpop.f32.mrb[0].mxu0
    %v994 = vadd.f32 %v395, %v993
    %v995 = vpop.f32.mrb[0].mxu0
    %v996 = vpop.f32.mrb[0].mxu0
    %v997 = vadd.f32 %v395, %v996
    %v998 = vpop.f32.mrb[0].mxu0
    %999 = vmatprep.mubr.bf16.mxu0 0
    %1000 = vmatmul.mubr.bf16.gmra.mrb[0].mxu0 %v628
    %v1001 = vpop.f32.mrb[0].mxu0
    %v1002 = vadd.f32 %v395, %v1001
    %v1003 = vpop.f32.mrb[0].mxu0
    %v1004 = vpop.f32.mrb[0].mxu0
    %v1005 = vadd.f32 %v395, %v1004
    %v1006 = vpop.f32.mrb[0].mxu0
    %1007 = vmatprep.mubr.bf16.mxu0 0
    %1008 = vmatmul.mubr.bf16.gmra.mrb[0].mxu0 %v629
    %v1009 = vpop.f32.mrb[0].mxu0
    %v1010 = vadd.f32 %v395, %v1009
    %v1011 = vpop.f32.mrb[0].mxu0
    %v1012 = vpop.f32.mrb[0].mxu0
    %v1013 = vadd.f32 %v395, %v1012
    %v1014 = vpop.f32.mrb[0].mxu0
    %1015 = vmatprep.mubr.bf16.mxu0 0
    %1016 = vmatmul.mubr.bf16.gmra.mrb[0].mxu0 %v630
    %v1017 = vpop.f32.mrb[0].mxu0
    %v1018 = vadd.f32 %v395, %v1017
    %v1019 = vpop.f32.mrb[0].mxu0
    %v1020 = vpop.f32.mrb[0].mxu0
    %v1021 = vadd.f32 %v395, %v1020
    %v1022 = vpop.f32.mrb[0].mxu0
    %1023 = vmatprep.mubr.bf16.mxu0 0
    %1024 = vmatmul.mubr.bf16.gmra.mrb[0].mxu0 %v631
    %v1025 = vpop.f32.mrb[0].mxu0
    %v1026 = vadd.f32 %v395, %v1025
    %v1027 = vpop.f32.mrb[0].mxu0
    %v1028 = vpop.f32.mrb[0].mxu0
    %v1029 = vadd.f32 %v395, %v1028
    %v1030 = vpop.f32.mrb[0].mxu0
    %1031 = vmatprep.mubr.bf16.mxu0 0
    %1032 = vmatmul.mubr.bf16.gmra.mrb[0].mxu0 %v632
    %v1033 = vpop.f32.mrb[0].mxu0
    %v1034 = vadd.f32 %v395, %v1033
    %v1035 = vpop.f32.mrb[0].mxu0
    %v1036 = vpop.f32.mrb[0].mxu0
    %v1037 = vadd.f32 %v395, %v1036
    %v1038 = vpop.f32.mrb[0].mxu0
    %1039 = vmatprep.mubr.bf16.mxu0 0
    %1040 = vmatmul.mubr.bf16.gmra.mrb[0].mxu0 %v633
    %v1041 = vpop.f32.mrb[0].mxu0
    %v1042 = vadd.f32 %v395, %v1041
    %v1043 = vpop.f32.mrb[0].mxu0
    %v1044 = vpop.f32.mrb[0].mxu0
    %v1045 = vadd.f32 %v395, %v1044
    %v1046 = vpop.f32.mrb[0].mxu0
    %1047 = vmatprep.mubr.bf16.mxu0 0
    %1048 = vmatmul.mubr.bf16.gmra.mrb[0].mxu0 %v634
    %v1049 = vpop.f32.mrb[0].mxu0
    %v1050 = vadd.f32 %v395, %v1049
    %v1051 = vpop.f32.mrb[0].mxu0
    %v1052 = vpop.f32.mrb[0].mxu0
    %v1053 = vadd.f32 %v395, %v1052
    %v1054 = vpop.f32.mrb[0].mxu0
    %1055 = vmatprep.mubr.bf16.mxu0 0
    %1056 = vmatmul.mubr.bf16.gmra.mrb[0].mxu0 %v635
    %v1057 = vpop.f32.mrb[0].mxu0
    %v1058 = vadd.f32 %v395, %v1057
    %v1059 = vpop.f32.mrb[0].mxu0
    %v1060 = vpop.f32.mrb[0].mxu0
    %v1061 = vadd.f32 %v395, %v1060
    %v1062 = vpop.f32.mrb[0].mxu0
    %1063 = vmatprep.mubr.bf16.mxu0 0
    %1064 = vmatmul.mubr.bf16.gmra.mrb[0].mxu0 %v636
    %v1065 = vpop.f32.mrb[0].mxu0
    %v1066 = vadd.f32 %v395, %v1065
    %v1067 = vpop.f32.mrb[0].mxu0
    %v1068 = vpop.f32.mrb[0].mxu0
    %v1069 = vadd.f32 %v395, %v1068
    %v1070 = vpop.f32.mrb[0].mxu0
    %1071 = vmatprep.mubr.bf16.mxu0 0
    %1072 = vmatmul.mubr.bf16.gmra.mrb[0].mxu0 %v637
    %v1073 = vpop.f32.mrb[0].mxu0
    %v1074 = vadd.f32 %v395, %v1073
    %v1075 = vpop.f32.mrb[0].mxu0
    %v1076 = vpop.f32.mrb[0].mxu0
    %v1077 = vadd.f32 %v395, %v1076
    %v1078 = vpop.f32.mrb[0].mxu0
    %1079 = vmatprep.mubr.bf16.mxu0 0
    %1080 = vmatmul.mubr.bf16.gmra.mrb[0].mxu0 %v638
    %v1081 = vpop.f32.mrb[0].mxu0
    %v1082 = vadd.f32 %v395, %v1081
    %v1083 = vpop.f32.mrb[0].mxu0
    %v1084 = vpop.f32.mrb[0].mxu0
    %v1085 = vadd.f32 %v395, %v1084
    %v1086 = vpop.f32.mrb[0].mxu0
    %1087 = vmatprep.mubr.bf16.mxu0 0
    %1088 = vmatmul.mubr.bf16.gmra.mrb[0].mxu0 %v639
    %v1089 = vpop.f32.mrb[0].mxu0
    %v1090 = vadd.f32 %v395, %v1089
    %v1091 = vpop.f32.mrb[0].mxu0
    %v1092 = vpop.f32.mrb[0].mxu0
    %v1093 = vadd.f32 %v395, %v1092
    %v1094 = vpop.f32.mrb[0].mxu0
    %1095 = vmatprep.mubr.bf16.mxu0 0
    %1096 = vmatmul.mubr.bf16.gmra.mrb[0].mxu0 %v640
    %v1097 = vpop.f32.mrb[0].mxu0
    %v1098 = vadd.f32 %v395, %v1097
    %v1099 = vpop.f32.mrb[0].mxu0
    %v1100 = vpop.f32.mrb[0].mxu0
    %v1101 = vadd.f32 %v395, %v1100
    %v1102 = vpop.f32.mrb[0].mxu0
    %1103 = vmatprep.mubr.bf16.mxu0 0
    %1104 = vmatmul.mubr.bf16.gmra.mrb[0].mxu0 %v641
    %v1105 = vpop.f32.mrb[0].mxu0
    %v1106 = vadd.f32 %v395, %v1105
    %v1107 = vpop.f32.mrb[0].mxu0
    %v1108 = vpop.f32.mrb[0].mxu0
    %v1109 = vadd.f32 %v395, %v1108
    %v1110 = vpop.f32.mrb[0].mxu0
    %1111 = vmatprep.mubr.bf16.mxu0 0
    %1112 = vmatmul.mubr.bf16.gmra.mrb[0].mxu0 %v642
    %v1113 = vpop.f32.mrb[0].mxu0
    %v1114 = vadd.f32 %v395, %v1113
    %v1115 = vpop.f32.mrb[0].mxu0
    %v1116 = vpop.f32.mrb[0].mxu0
    %v1117 = vadd.f32 %v395, %v1116
    %v1118 = vpop.f32.mrb[0].mxu0
    %1119 = vmatprep.mubr.bf16.mxu0 0
    %1120 = vmatmul.mubr.bf16.gmra.mrb[0].mxu0 %v643
    %v1121 = vpop.f32.mrb[0].mxu0
    %v1122 = vadd.f32 %v395, %v1121
    %v1123 = vpop.f32.mrb[0].mxu0
    %v1124 = vpop.f32.mrb[0].mxu0
    %v1125 = vadd.f32 %v395, %v1124
    %v1126 = vpop.f32.mrb[0].mxu0
    %1127 = vmatprep.mubr.bf16.mxu0 0
    %1128 = vmatmul.mubr.bf16.gmra.mrb[0].mxu0 %v644
    %v1129 = vpop.f32.mrb[0].mxu0
    %v1130 = vadd.f32 %v395, %v1129
    %v1131 = vpop.f32.mrb[0].mxu0
    %v1132 = vpop.f32.mrb[0].mxu0
    %v1133 = vadd.f32 %v395, %v1132
    %v1134 = vpop.f32.mrb[0].mxu0
    %1135 = vmatprep.mubr.bf16.mxu0 0
    %1136 = vmatmul.mubr.bf16.gmra.mrb[0].mxu0 %v645
    %v1137 = vpop.f32.mrb[0].mxu0
    %v1138 = vadd.f32 %v395, %v1137
    %v1139 = vpop.f32.mrb[0].mxu0
    %v1140 = vpop.f32.mrb[0].mxu0
    %v1141 = vadd.f32 %v395, %v1140
    %v1142 = vpop.f32.mrb[0].mxu0
    %1143 = vmatprep.mubr.bf16.mxu0 0
    %1144 = vmatmul.mubr.bf16.gmra.mrb[0].mxu0 %v646
    %v1145 = vpop.f32.mrb[0].mxu0
    %v1146 = vadd.f32 %v395, %v1145
    %v1147 = vpop.f32.mrb[0].mxu0
    %v1148 = vpop.f32.mrb[0].mxu0
    %v1149 = vadd.f32 %v395, %v1148
    %v1150 = vpop.f32.mrb[0].mxu0
    %1151 = vmatprep.mubr.bf16.mxu0 0
    %1152 = vmatmul.mubr.bf16.gmra.mrb[0].mxu0 %v647
    %v1153 = vpop.f32.mrb[0].mxu0
    %v1154 = vadd.f32 %v395, %v1153
    %v1155 = vpop.f32.mrb[0].mxu0
    %v1156 = vpop.f32.mrb[0].mxu0
    %v1157 = vadd.f32 %v395, %v1156
    %v1158 = vpop.f32.mrb[0].mxu0
    %1159 = vmatprep.mubr.bf16.mxu0 0
    %1160 = vmatmul.mubr.bf16.gmra.mrb[0].mxu0 %v648
    %v1161 = vpop.f32.mrb[0].mxu0
    %v1162 = vadd.f32 %v395, %v1161
    %v1163 = vpop.f32.mrb[0].mxu0
    %v1164 = vpop.f32.mrb[0].mxu0
    %v1165 = vadd.f32 %v395, %v1164
    %v1166 = vpop.f32.mrb[0].mxu0
    %1167 = vmatprep.mubr.bf16.mxu0 0
    %1168 = vmatmul.mubr.bf16.gmra.mrb[0].mxu0 %v649
    %v1169 = vpop.f32.mrb[0].mxu0
    %v1170 = vadd.f32 %v395, %v1169
    %v1171 = vpop.f32.mrb[0].mxu0
    %v1172 = vpop.f32.mrb[0].mxu0
    %v1173 = vadd.f32 %v395, %v1172
    %v1174 = vpop.f32.mrb[0].mxu0
    %1175 = vmatprep.mubr.bf16.mxu0 0
    %1176 = vmatmul.mubr.bf16.gmra.mrb[0].mxu0 %v650
    %v1177 = vpop.f32.mrb[0].mxu0
    %v1178 = vadd.f32 %v395, %v1177
    %v1179 = vpop.f32.mrb[0].mxu0
    %v1180 = vpop.f32.mrb[0].mxu0
    %v1181 = vadd.f32 %v395, %v1180
    %v1182 = vpop.f32.mrb[0].mxu0
    %1183 = vmatprep.mubr.bf16.mxu0 0
    %1184 = vmatmul.mubr.bf16.gmra.mrb[0].mxu0 %v651
    %v1185 = vpop.f32.mrb[0].mxu0
    %v1186 = vadd.f32 %v395, %v1185
    %v1187 = vpop.f32.mrb[0].mxu0
    %v1188 = vpop.f32.mrb[0].mxu0
    %v1189 = vadd.f32 %v395, %v1188
    %v1190 = vpop.f32.mrb[0].mxu0
    %1191 = vdwg.mxu0
    %v1192 = vmax.f32 %v786, 0.0
    %v1193 = vmax.f32 %v789, 0.0
    %v1194 = vmax.f32 %v794, 0.0
    %v1195 = vmax.f32 %v797, 0.0
    %v1196 = vmax.f32 %v802, 0.0
    %v1197 = vmax.f32 %v805, 0.0
    %v1198 = vmax.f32 %v810, 0.0
    %v1199 = vmax.f32 %v813, 0.0
    %v1200 = vmax.f32 %v818, 0.0
    %v1201 = vmax.f32 %v821, 0.0
    %v1202 = vmax.f32 %v826, 0.0
    %v1203 = vmax.f32 %v829, 0.0
    %v1204 = vmax.f32 %v834, 0.0
    %v1205 = vmax.f32 %v837, 0.0
    %v1206 = vmax.f32 %v842, 0.0
    %v1207 = vmax.f32 %v845, 0.0
    %v1208 = vmax.f32 %v850, 0.0
    %v1209 = vmax.f32 %v853, 0.0
    %v1210 = vmax.f32 %v858, 0.0
    %v1211 = vmax.f32 %v861, 0.0
    %v1212 = vmax.f32 %v866, 0.0
    %v1213 = vmax.f32 %v869, 0.0
    %v1214 = vmax.f32 %v874, 0.0
    %v1215 = vmax.f32 %v877, 0.0
    %v1216 = vmax.f32 %v882, 0.0
    %v1217 = vmax.f32 %v885, 0.0
    %v1218 = vmax.f32 %v890, 0.0
    %v1219 = vmax.f32 %v893, 0.0
    %v1220 = vmax.f32 %v898, 0.0
    %v1221 = vmax.f32 %v901, 0.0
    %v1222 = vmax.f32 %v906, 0.0
    %v1223 = vmax.f32 %v909, 0.0
    %v1224 = vmax.f32 %v914, 0.0
    %v1225 = vmax.f32 %v917, 0.0
    %v1226 = vmax.f32 %v922, 0.0
    %v1227 = vmax.f32 %v925, 0.0
    %v1228 = vmax.f32 %v930, 0.0
    %v1229 = vmax.f32 %v933, 0.0
    %v1230 = vmax.f32 %v938, 0.0
    %v1231 = vmax.f32 %v941, 0.0
    %v1232 = vmax.f32 %v946, 0.0
    %v1233 = vmax.f32 %v949, 0.0
    %v1234 = vmax.f32 %v954, 0.0
    %v1235 = vmax.f32 %v957, 0.0
    %v1236 = vmax.f32 %v962, 0.0
    %v1237 = vmax.f32 %v965, 0.0
    %v1238 = vmax.f32 %v970, 0.0
    %v1239 = vmax.f32 %v973, 0.0
    %v1240 = vmax.f32 %v978, 0.0
    %v1241 = vmax.f32 %v981, 0.0
    %v1242 = vmax.f32 %v986, 0.0
    %v1243 = vmax.f32 %v989, 0.0
    %v1244 = vmax.f32 %v994, 0.0
    %v1245 = vmax.f32 %v997, 0.0
    %v1246 = vmax.f32 %v1002, 0.0
    %v1247 = vmax.f32 %v1005, 0.0
    %v1248 = vmax.f32 %v1010, 0.0
    %v1249 = vmax.f32 %v1013, 0.0
    %v1250 = vmax.f32 %v1018, 0.0
    %v1251 = vmax.f32 %v1021, 0.0
    %v1252 = vmax.f32 %v1026, 0.0
    %v1253 = vmax.f32 %v1029, 0.0
    %v1254 = vmax.f32 %v1034, 0.0
    %v1255 = vmax.f32 %v1037, 0.0
    %v1256 = vmax.f32 %v1042, 0.0
    %v1257 = vmax.f32 %v1045, 0.0
    %v1258 = vmax.f32 %v1050, 0.0
    %v1259 = vmax.f32 %v1053, 0.0
    %v1260 = vmax.f32 %v1058, 0.0
    %v1261 = vmax.f32 %v1061, 0.0
    %v1262 = vmax.f32 %v1066, 0.0
    %v1263 = vmax.f32 %v1069, 0.0
    %v1264 = vmax.f32 %v1074, 0.0
    %v1265 = vmax.f32 %v1077, 0.0
    %v1266 = vmax.f32 %v1082, 0.0
    %v1267 = vmax.f32 %v1085, 0.0
    %v1268 = vmax.f32 %v1090, 0.0
    %v1269 = vmax.f32 %v1093, 0.0
    %v1270 = vmax.f32 %v1098, 0.0
    %v1271 = vmax.f32 %v1101, 0.0
    %v1272 = vmax.f32 %v1106, 0.0
    %v1273 = vmax.f32 %v1109, 0.0
    %v1274 = vmax.f32 %v1114, 0.0
    %v1275 = vmax.f32 %v1117, 0.0
    %v1276 = vmax.f32 %v1122, 0.0
    %v1277 = vmax.f32 %v1125, 0.0
    %v1278 = vmax.f32 %v1130, 0.0
    %v1279 = vmax.f32 %v1133, 0.0
    %v1280 = vmax.f32 %v1138, 0.0
    %v1281 = vmax.f32 %v1141, 0.0
    %v1282 = vmax.f32 %v1146, 0.0
    %v1283 = vmax.f32 %v1149, 0.0
    %v1284 = vmax.f32 %v1154, 0.0
    %v1285 = vmax.f32 %v1157, 0.0
    %v1286 = vmax.f32 %v1162, 0.0
    %v1287 = vmax.f32 %v1165, 0.0
    %v1288 = vmax.f32 %v1170, 0.0
    %v1289 = vmax.f32 %v1173, 0.0
    %v1290 = vmax.f32 %v1178, 0.0
    %v1291 = vmax.f32 %v1181, 0.0
    %v1292 = vmax.f32 %v1186, 0.0
    %v1293 = vmax.f32 %v1189, 0.0
    %v1294 = vpack.c.bf16 %v1193, %v1192
    %v1295 = vpack.c.bf16 %v1195, %v1194
    %v1296 = vpack.c.bf16 %v1197, %v1196
    %v1297 = vpack.c.bf16 %v1199, %v1198
    %v1298 = vpack.c.bf16 %v1201, %v1200
    %v1299 = vpack.c.bf16 %v1203, %v1202
    %v1300 = vpack.c.bf16 %v1205, %v1204
    %v1301 = vpack.c.bf16 %v1207, %v1206
    %v1302 = vpack.c.bf16 %v1209, %v1208
    %v1303 = vpack.c.bf16 %v1211, %v1210
    %v1304 = vpack.c.bf16 %v1213, %v1212
    %v1305 = vpack.c.bf16 %v1215, %v1214
    %v1306 = vpack.c.bf16 %v1217, %v1216
    %v1307 = vpack.c.bf16 %v1219, %v1218
    %v1308 = vpack.c.bf16 %v1221, %v1220
    %v1309 = vpack.c.bf16 %v1223, %v1222
    %v1310 = vpack.c.bf16 %v1225, %v1224
    %v1311 = vpack.c.bf16 %v1227, %v1226
    %v1312 = vpack.c.bf16 %v1229, %v1228
    %v1313 = vpack.c.bf16 %v1231, %v1230
    %v1314 = vpack.c.bf16 %v1233, %v1232
    %v1315 = vpack.c.bf16 %v1235, %v1234
    %v1316 = vpack.c.bf16 %v1237, %v1236
    %v1317 = vpack.c.bf16 %v1239, %v1238
    %v1318 = vpack.c.bf16 %v1241, %v1240
    %v1319 = vpack.c.bf16 %v1243, %v1242
    %v1320 = vpack.c.bf16 %v1245, %v1244
    %v1321 = vpack.c.bf16 %v1247, %v1246
    %v1322 = vpack.c.bf16 %v1249, %v1248
    %v1323 = vpack.c.bf16 %v1251, %v1250
    %v1324 = vpack.c.bf16 %v1253, %v1252
    %v1325 = vpack.c.bf16 %v1255, %v1254
    %v1326 = vpack.c.bf16 %v1257, %v1256
    %v1327 = vpack.c.bf16 %v1259, %v1258
    %v1328 = vpack.c.bf16 %v1261, %v1260
    %v1329 = vpack.c.bf16 %v1263, %v1262
    %v1330 = vpack.c.bf16 %v1265, %v1264
    %v1331 = vpack.c.bf16 %v1267, %v1266
    %v1332 = vpack.c.bf16 %v1269, %v1268
    %v1333 = vpack.c.bf16 %v1271, %v1270
    %v1334 = vpack.c.bf16 %v1273, %v1272
    %v1335 = vpack.c.bf16 %v1275, %v1274
    %v1336 = vpack.c.bf16 %v1277, %v1276
    %v1337 = vpack.c.bf16 %v1279, %v1278
    %v1338 = vpack.c.bf16 %v1281, %v1280
    %v1339 = vpack.c.bf16 %v1283, %v1282
    %v1340 = vpack.c.bf16 %v1285, %v1284
    %v1341 = vpack.c.bf16 %v1287, %v1286
    %v1342 = vpack.c.bf16 %v1289, %v1288
    %v1343 = vpack.c.bf16 %v1291, %v1290
    %v1344 = vpack.c.bf16 %v1293, %v1292
    %v1345 = vld [vmem:[#allocation11] sm:$0xf]
    %v1346 = vld [vmem:[#allocation11 + $0x4] sm:$0xf]
    %v1347 = vld [vmem:[#allocation11 + $0x8] sm:$0xf]
    %v1348 = vld [vmem:[#allocation11 + $0xc] sm:$0xf]
    %v1349 = vld [vmem:[#allocation11 + $0x10] sm:$0xf]
    %v1350 = vld [vmem:[#allocation11 + $0x14] sm:$0xf]
    %v1351 = vld [vmem:[#allocation11 + $0x18] sm:$0xf]
    %v1352 = vld [vmem:[#allocation11 + $0x1c] sm:$0xf]
    %v1353 = vld [vmem:[#allocation11 + $0x20] sm:$0xf]
    %v1354 = vld [vmem:[#allocation11 + $0x24] sm:$0xf]
    %v1355 = vld [vmem:[#allocation11 + $0x28] sm:$0xf]
    %v1356 = vld [vmem:[#allocation11 + $0x2c] sm:$0xf]
    %v1357 = vld [vmem:[#allocation11 + $0x30] sm:$0xf]
    %v1358 = vld [vmem:[#allocation11 + $0x34] sm:$0xf]
    %v1359 = vld [vmem:[#allocation11 + $0x38] sm:$0xf]
    %v1360 = vld [vmem:[#allocation11 + $0x3c] sm:$0xf]
    %s1361 = scalar_lea.vmem [#allocation11], 64
    %v1362 = vld [vmem:[%s1361] sm:$0xf]
    %v1363 = vld [vmem:[%s1361 + $0x4] sm:$0xf]
    %v1364 = vld [vmem:[%s1361 + $0x8] sm:$0xf]
    %v1365 = vld [vmem:[%s1361 + $0xc] sm:$0xf]
    %v1366 = vld [vmem:[%s1361 + $0x10] sm:$0xf]
    %v1367 = vld [vmem:[%s1361 + $0x14] sm:$0xf]
    %v1368 = vld [vmem:[%s1361 + $0x18] sm:$0xf]
    %v1369 = vld [vmem:[%s1361 + $0x1c] sm:$0xf]
    %v1370 = vld [vmem:[%s1361 + $0x20] sm:$0xf]
    %v1371 = vld [vmem:[%s1361 + $0x24] sm:$0xf]
    %v1372 = vld [vmem:[%s1361 + $0x28] sm:$0xf]
    %v1373 = vld [vmem:[%s1361 + $0x2c] sm:$0xf]
    %v1374 = vld [vmem:[%s1361 + $0x30] sm:$0xf]
    %v1375 = vld [vmem:[%s1361 + $0x34] sm:$0xf]
    %v1376 = vld [vmem:[%s1361 + $0x38] sm:$0xf]
    %v1377 = vld [vmem:[%s1361 + $0x3c] sm:$0xf]
    %v1394 = vunpack.c.l.b16 %v1362
    %v1395 = vunpack.c.l.b16 %v1363
    %v1396 = vunpack.c.l.b16 %v1364
    %v1397 = vunpack.c.l.b16 %v1365
    %v1398 = vunpack.c.l.b16 %v1366
    %v1399 = vunpack.c.l.b16 %v1367
    %v1400 = vunpack.c.l.b16 %v1368
    %v1401 = vunpack.c.l.b16 %v1369
    %v1402 = vunpack.c.l.b16 %v1370
    %v1403 = vunpack.c.l.b16 %v1371
    %v1404 = vunpack.c.l.b16 %v1372
    %v1405 = vunpack.c.l.b16 %v1373
    %v1406 = vunpack.c.l.b16 %v1374
    %v1407 = vunpack.c.l.b16 %v1375
    %v1408 = vunpack.c.l.b16 %v1376
    %v1409 = vunpack.c.l.b16 %v1377
    %v1410 = vpack.c.b16 %v1395, %v1394
    %v1411 = vpack.c.b16 %v1397, %v1396
    %v1412 = vpack.c.b16 %v1399, %v1398
    %v1413 = vpack.c.b16 %v1401, %v1400
    %v1414 = vpack.c.b16 %v1403, %v1402
    %v1415 = vpack.c.b16 %v1405, %v1404
    %v1416 = vpack.c.b16 %v1407, %v1406
    %v1417 = vpack.c.b16 %v1409, %v1408
    %1426 = vmatprep.subr.bf16.mxu0 0
    %1427 = vmatpush1.bf16.msra.mxu0 %v1410
    %1428 = vmatprep.subr.bf16.mxu0 0
    %1429 = vmatpush1.bf16.msra.mxu0 %v1411
    %1430 = vmatprep.subr.bf16.mxu0 0
    %1431 = vmatpush1.bf16.msra.mxu0 %v1412
    %1432 = vmatprep.subr.bf16.mxu0 0
    %1433 = vmatpush1.bf16.msra.mxu0 %v1413
    %1434 = vmatprep.subr.bf16.mxu0 0
    %1435 = vmatpush1.bf16.msra.mxu0 %v1414
    %1436 = vmatprep.subr.bf16.mxu0 0
    %1437 = vmatpush1.bf16.msra.mxu0 %v1415
    %1438 = vmatprep.subr.bf16.mxu0 0
    %1439 = vmatpush1.bf16.msra.mxu0 %v1416
    %1440 = vmatprep.subr.bf16.mxu0 0
    %1441 = vmatpush1.bf16.msra.mxu0 %v1417
    %1442 = vmatprep.subr.bf16.mxu0 0
    %1443 = vmatpush1.bf16.msra.mxu0 0
    %1444 = vmatprep.subr.bf16.mxu0 0
    %1445 = vmatpush1.bf16.msra.mxu0 0
    %1446 = vmatprep.subr.bf16.mxu0 0
    %1447 = vmatpush1.bf16.msra.mxu0 0
    %1448 = vmatprep.subr.bf16.mxu0 0
    %1449 = vmatpush1.bf16.msra.mxu0 0
    %1450 = vmatprep.subr.bf16.mxu0 0
    %1451 = vmatpush1.bf16.msra.mxu0 0
    %1452 = vmatprep.subr.bf16.mxu0 0
    %1453 = vmatpush1.bf16.msra.mxu0 0
    %1454 = vmatprep.subr.bf16.mxu0 0
    %1455 = vmatpush1.bf16.msra.mxu0 0
    %1456 = vmatprep.subr.bf16.mxu0 0
    %1457 = vmatpush1.bf16.msra.mxu0 0
    %1458 = vmatprep.mubr.bf16.mxu0 0
    %1459 = vmatmul.mubr.bf16.gmra.mrb[0].mxu0 %v1295
    %v1460 = vpop.f32.mrb[0].mxu0
    %v1461 = vadd.f32 0.0, %v1460
    %v1462 = vpop.f32.mrb[0].mxu0
    %v1463 = vpop.f32.mrb[0].mxu0
    %v1464 = vadd.f32 0.0, %v1463
    %v1465 = vpop.f32.mrb[0].mxu0
    %1466 = vmatprep.mubr.bf16.mxu0 0
    %1467 = vmatmul.mubr.bf16.gmra.mrb[0].mxu0 %v1296
    %v1468 = vpop.f32.mrb[0].mxu0
    %v1469 = vadd.f32 0.0, %v1468
    %v1470 = vpop.f32.mrb[0].mxu0
    %v1471 = vpop.f32.mrb[0].mxu0
    %v1472 = vadd.f32 0.0, %v1471
    %v1473 = vpop.f32.mrb[0].mxu0
    %1474 = vmatprep.mubr.bf16.mxu0 0
    %1475 = vmatmul.mubr.bf16.gmra.mrb[0].mxu0 %v1297
    %v1476 = vpop.f32.mrb[0].mxu0
    %v1477 = vadd.f32 0.0, %v1476
    %v1478 = vpop.f32.mrb[0].mxu0
    %v1479 = vpop.f32.mrb[0].mxu0
    %v1480 = vadd.f32 0.0, %v1479
    %v1481 = vpop.f32.mrb[0].mxu0
    %1482 = vmatprep.mubr.bf16.mxu0 0
    %1483 = vmatmul.mubr.bf16.gmra.mrb[0].mxu0 %v1298
    %v1484 = vpop.f32.mrb[0].mxu0
    %v1485 = vadd.f32 0.0, %v1484
    %v1486 = vpop.f32.mrb[0].mxu0
    %v1487 = vpop.f32.mrb[0].mxu0
    %v1488 = vadd.f32 0.0, %v1487
    %v1489 = vpop.f32.mrb[0].mxu0
    %1490 = vmatprep.mubr.bf16.mxu0 0
    %1491 = vmatmul.mubr.bf16.gmra.mrb[0].mxu0 %v1299
    %v1492 = vpop.f32.mrb[0].mxu0
    %v1493 = vadd.f32 0.0, %v1492
    %v1494 = vpop.f32.mrb[0].mxu0
    %v1495 = vpop.f32.mrb[0].mxu0
    %v1496 = vadd.f32 0.0, %v1495
    %v1497 = vpop.f32.mrb[0].mxu0
    %1498 = vmatprep.mubr.bf16.mxu0 0
    %1499 = vmatmul.mubr.bf16.gmra.mrb[0].mxu0 %v1300
    %v1500 = vpop.f32.mrb[0].mxu0
    %v1501 = vpop.f32.mrb[0].mxu0
    %v1502 = vpop.f32.mrb[0].mxu0
    %v1503 = vpop.f32.mrb[0].mxu0
    %1504 = vmatprep.mubr.bf16.mxu0 0
    %1505 = vmatmul.mubr.bf16.gmra.mrb[0].mxu0 %v1301
    %v1506 = vpop.f32.mrb[0].mxu0
    %v1507 = vpop.f32.mrb[0].mxu0
    %v1508 = vpop.f32.mrb[0].mxu0
    %v1509 = vpop.f32.mrb[0].mxu0
    %1510 = vmatprep.mubr.bf16.mxu0 0
    %1511 = vmatmul.mubr.bf16.gmra.mrb[0].mxu0 %v1302
    %v1512 = vpop.f32.mrb[0].mxu0
    %v1513 = vadd.f32 0.0, %v1512
    %v1514 = vpop.f32.mrb[0].mxu0
    %v1515 = vpop.f32.mrb[0].mxu0
    %v1516 = vadd.f32 0.0, %v1515
    %v1517 = vpop.f32.mrb[0].mxu0
    %1518 = vmatprep.mubr.bf16.mxu0 0
    %1519 = vmatmul.mubr.bf16.gmra.mrb[0].mxu0 %v1303
    %v1520 = vpop.f32.mrb[0].mxu0
    %v1521 = vadd.f32 0.0, %v1520
    %v1522 = vpop.f32.mrb[0].mxu0
    %v1523 = vpop.f32.mrb[0].mxu0
    %v1524 = vadd.f32 0.0, %v1523
    %v1525 = vpop.f32.mrb[0].mxu0
    %1526 = vmatprep.mubr.bf16.mxu0 0
    %1527 = vmatmul.mubr.bf16.gmra.mrb[0].mxu0 %v1304
    %v1528 = vpop.f32.mrb[0].mxu0
    %v1529 = vadd.f32 0.0, %v1528
    %v1530 = vpop.f32.mrb[0].mxu0
    %v1531 = vpop.f32.mrb[0].mxu0
    %v1532 = vadd.f32 0.0, %v1531
    %v1533 = vpop.f32.mrb[0].mxu0
    %1534 = vmatprep.mubr.bf16.mxu0 0
    %1535 = vmatmul.mubr.bf16.gmra.mrb[0].mxu0 %v1305
    %v1536 = vpop.f32.mrb[0].mxu0
    %v1537 = vadd.f32 0.0, %v1536
    %v1538 = vpop.f32.mrb[0].mxu0
    %v1539 = vpop.f32.mrb[0].mxu0
    %v1540 = vadd.f32 0.0, %v1539
    %v1541 = vpop.f32.mrb[0].mxu0
    %1542 = vmatprep.mubr.bf16.mxu0 0
    %1543 = vmatmul.mubr.bf16.gmra.mrb[0].mxu0 %v1306
    %v1544 = vpop.f32.mrb[0].mxu0
    %v1545 = vadd.f32 0.0, %v1544
    %v1546 = vpop.f32.mrb[0].mxu0
    %v1547 = vpop.f32.mrb[0].mxu0
    %v1548 = vadd.f32 0.0, %v1547
    %v1549 = vpop.f32.mrb[0].mxu0
    %1550 = vmatprep.mubr.bf16.mxu0 0
    %1551 = vmatmul.mubr.bf16.gmra.mrb[0].mxu0 %v1307
    %v1552 = vpop.f32.mrb[0].mxu0
    %v1553 = vpop.f32.mrb[0].mxu0
    %v1554 = vpop.f32.mrb[0].mxu0
    %v1555 = vpop.f32.mrb[0].mxu0
    %1556 = vmatprep.mubr.bf16.mxu0 0
    %1557 = vmatmul.mubr.bf16.gmra.mrb[0].mxu0 %v1308
    %v1558 = vpop.f32.mrb[0].mxu0
    %v1559 = vpop.f32.mrb[0].mxu0
    %v1560 = vpop.f32.mrb[0].mxu0
    %v1561 = vpop.f32.mrb[0].mxu0
    %1562 = vmatprep.mubr.bf16.mxu0 0
    %1563 = vmatmul.mubr.bf16.gmra.mrb[0].mxu0 %v1309
    %v1564 = vpop.f32.mrb[0].mxu0
    %v1565 = vadd.f32 0.0, %v1564
    %v1566 = vpop.f32.mrb[0].mxu0
    %v1567 = vpop.f32.mrb[0].mxu0
    %v1568 = vadd.f32 0.0, %v1567
    %v1569 = vpop.f32.mrb[0].mxu0
    %1570 = vmatprep.mubr.bf16.mxu0 0
    %1571 = vmatmul.mubr.bf16.gmra.mrb[0].mxu0 %v1310
    %v1572 = vpop.f32.mrb[0].mxu0
    %v1573 = vadd.f32 0.0, %v1572
    %v1574 = vpop.f32.mrb[0].mxu0
    %v1575 = vpop.f32.mrb[0].mxu0
    %v1576 = vadd.f32 0.0, %v1575
    %v1577 = vpop.f32.mrb[0].mxu0
    %1578 = vmatprep.mubr.bf16.mxu0 0
    %1579 = vmatmul.mubr.bf16.gmra.mrb[0].mxu0 %v1311
    %v1580 = vpop.f32.mrb[0].mxu0
    %v1581 = vadd.f32 0.0, %v1580
    %v1582 = vpop.f32.mrb[0].mxu0
    %v1583 = vpop.f32.mrb[0].mxu0
    %v1584 = vadd.f32 0.0, %v1583
    %v1585 = vpop.f32.mrb[0].mxu0
    %1586 = vmatprep.mubr.bf16.mxu0 0
    %1587 = vmatmul.mubr.bf16.gmra.mrb[0].mxu0 %v1312
    %v1588 = vpop.f32.mrb[0].mxu0
    %v1589 = vadd.f32 0.0, %v1588
    %v1590 = vpop.f32.mrb[0].mxu0
    %v1591 = vpop.f32.mrb[0].mxu0
    %v1592 = vadd.f32 0.0, %v1591
    %v1593 = vpop.f32.mrb[0].mxu0
    %1594 = vmatprep.mubr.bf16.mxu0 0
    %1595 = vmatmul.mubr.bf16.gmra.mrb[0].mxu0 %v1313
    %v1596 = vpop.f32.mrb[0].mxu0
    %v1597 = vadd.f32 0.0, %v1596
    %v1598 = vpop.f32.mrb[0].mxu0
    %v1599 = vpop.f32.mrb[0].mxu0
    %v1600 = vadd.f32 0.0, %v1599
    %v1601 = vpop.f32.mrb[0].mxu0
    %1602 = vmatprep.mubr.bf16.mxu0 0
    %1603 = vmatmul.mubr.bf16.gmra.mrb[0].mxu0 %v1314
    %v1604 = vpop.f32.mrb[0].mxu0
    %v1605 = vpop.f32.mrb[0].mxu0
    %v1606 = vpop.f32.mrb[0].mxu0
    %v1607 = vpop.f32.mrb[0].mxu0
    %1608 = vmatprep.mubr.bf16.mxu0 0
    %1609 = vmatmul.mubr.bf16.gmra.mrb[0].mxu0 %v1315
    %v1610 = vpop.f32.mrb[0].mxu0
    %v1611 = vpop.f32.mrb[0].mxu0
    %v1612 = vpop.f32.mrb[0].mxu0
    %v1613 = vpop.f32.mrb[0].mxu0
    %1614 = vmatprep.mubr.bf16.mxu0 0
    %1615 = vmatmul.mubr.bf16.gmra.mrb[0].mxu0 %v1316
    %v1616 = vpop.f32.mrb[0].mxu0
    %v1617 = vadd.f32 0.0, %v1616
    %v1618 = vpop.f32.mrb[0].mxu0
    %v1619 = vpop.f32.mrb[0].mxu0
    %v1620 = vadd.f32 0.0, %v1619
    %v1621 = vpop.f32.mrb[0].mxu0
    %1622 = vmatprep.mubr.bf16.mxu0 0
    %1623 = vmatmul.mubr.bf16.gmra.mrb[0].mxu0 %v1317
    %v1624 = vpop.f32.mrb[0].mxu0
    %v1625 = vadd.f32 0.0, %v1624
    %v1626 = vpop.f32.mrb[0].mxu0
    %v1627 = vpop.f32.mrb[0].mxu0
    %v1628 = vadd.f32 0.0, %v1627
    %v1629 = vpop.f32.mrb[0].mxu0
    %1630 = vmatprep.mubr.bf16.mxu0 0
    %1631 = vmatmul.mubr.bf16.gmra.mrb[0].mxu0 %v1318
    %v1632 = vpop.f32.mrb[0].mxu0
    %v1633 = vadd.f32 0.0, %v1632
    %v1634 = vpop.f32.mrb[0].mxu0
    %v1635 = vpop.f32.mrb[0].mxu0
    %v1636 = vadd.f32 0.0, %v1635
    %v1637 = vpop.f32.mrb[0].mxu0
    %1638 = vmatprep.mubr.bf16.mxu0 0
    %1639 = vmatmul.mubr.bf16.gmra.mrb[0].mxu0 %v1319
    %v1640 = vpop.f32.mrb[0].mxu0
    %v1641 = vadd.f32 0.0, %v1640
    %v1642 = vpop.f32.mrb[0].mxu0
    %v1643 = vpop.f32.mrb[0].mxu0
    %v1644 = vadd.f32 0.0, %v1643
    %v1645 = vpop.f32.mrb[0].mxu0
    %1646 = vmatprep.mubr.bf16.mxu0 0
    %1647 = vmatmul.mubr.bf16.gmra.mrb[0].mxu0 %v1320
    %v1648 = vpop.f32.mrb[0].mxu0
    %v1649 = vadd.f32 0.0, %v1648
    %v1650 = vpop.f32.mrb[0].mxu0
    %v1651 = vpop.f32.mrb[0].mxu0
    %v1652 = vadd.f32 0.0, %v1651
    %v1653 = vpop.f32.mrb[0].mxu0
    %1654 = vmatprep.mubr.bf16.mxu0 0
    %1655 = vmatmul.mubr.bf16.gmra.mrb[0].mxu0 %v1321
    %v1656 = vpop.f32.mrb[0].mxu0
    %v1657 = vpop.f32.mrb[0].mxu0
    %v1658 = vpop.f32.mrb[0].mxu0
    %v1659 = vpop.f32.mrb[0].mxu0
    %1660 = vmatprep.mubr.bf16.mxu0 0
    %1661 = vmatmul.mubr.bf16.gmra.mrb[0].mxu0 %v1322
    %v1662 = vpop.f32.mrb[0].mxu0
    %v1663 = vpop.f32.mrb[0].mxu0
    %v1664 = vpop.f32.mrb[0].mxu0
    %v1665 = vpop.f32.mrb[0].mxu0
    %1666 = vmatprep.mubr.bf16.mxu0 0
    %1667 = vmatmul.mubr.bf16.gmra.mrb[0].mxu0 %v1323
    %v1668 = vpop.f32.mrb[0].mxu0
    %v1669 = vadd.f32 0.0, %v1668
    %v1670 = vpop.f32.mrb[0].mxu0
    %v1671 = vpop.f32.mrb[0].mxu0
    %v1672 = vadd.f32 0.0, %v1671
    %v1673 = vpop.f32.mrb[0].mxu0
    %1674 = vmatprep.mubr.bf16.mxu0 0
    %1675 = vmatmul.mubr.bf16.gmra.mrb[0].mxu0 %v1324
    %v1676 = vpop.f32.mrb[0].mxu0
    %v1677 = vadd.f32 0.0, %v1676
    %v1678 = vpop.f32.mrb[0].mxu0
    %v1679 = vpop.f32.mrb[0].mxu0
    %v1680 = vadd.f32 0.0, %v1679
    %v1681 = vpop.f32.mrb[0].mxu0
    %1682 = vmatprep.mubr.bf16.mxu0 0
    %1683 = vmatmul.mubr.bf16.gmra.mrb[0].mxu0 %v1325
    %v1684 = vpop.f32.mrb[0].mxu0
    %v1685 = vadd.f32 0.0, %v1684
    %v1686 = vpop.f32.mrb[0].mxu0
    %v1687 = vpop.f32.mrb[0].mxu0
    %v1688 = vadd.f32 0.0, %v1687
    %v1689 = vpop.f32.mrb[0].mxu0
    %1690 = vmatprep.mubr.bf16.mxu0 0
    %1691 = vmatmul.mubr.bf16.gmra.mrb[0].mxu0 %v1326
    %v1692 = vpop.f32.mrb[0].mxu0
    %v1693 = vadd.f32 0.0, %v1692
    %v1694 = vpop.f32.mrb[0].mxu0
    %v1695 = vpop.f32.mrb[0].mxu0
    %v1696 = vadd.f32 0.0, %v1695
    %v1697 = vpop.f32.mrb[0].mxu0
    %1698 = vmatprep.mubr.bf16.mxu0 0
    %1699 = vmatmul.mubr.bf16.gmra.mrb[0].mxu0 %v1327
    %v1700 = vpop.f32.mrb[0].mxu0
    %v1701 = vadd.f32 0.0, %v1700
    %v1702 = vpop.f32.mrb[0].mxu0
    %v1703 = vpop.f32.mrb[0].mxu0
    %v1704 = vadd.f32 0.0, %v1703
    %v1705 = vpop.f32.mrb[0].mxu0
    %1706 = vmatprep.mubr.bf16.mxu0 0
    %1707 = vmatmul.mubr.bf16.gmra.mrb[0].mxu0 %v1328
    %v1708 = vpop.f32.mrb[0].mxu0
    %v1709 = vpop.f32.mrb[0].mxu0
    %v1710 = vpop.f32.mrb[0].mxu0
    %v1711 = vpop.f32.mrb[0].mxu0
    %1712 = vmatprep.mubr.bf16.mxu0 0
    %1713 = vmatmul.mubr.bf16.gmra.mrb[0].mxu0 %v1329
    %v1714 = vpop.f32.mrb[0].mxu0
    %v1715 = vpop.f32.mrb[0].mxu0
    %v1716 = vpop.f32.mrb[0].mxu0
    %v1717 = vpop.f32.mrb[0].mxu0
    %1718 = vdwg.mxu0
    %v1735 = vunpack.c.l.b16 %v1345
    %v1736 = vunpack.c.l.b16 %v1346
    %v1737 = vunpack.c.l.b16 %v1347
    %v1738 = vunpack.c.l.b16 %v1348
    %v1739 = vunpack.c.l.b16 %v1349
    %v1740 = vunpack.c.l.b16 %v1350
    %v1741 = vunpack.c.l.b16 %v1351
    %v1742 = vunpack.c.l.b16 %v1352
    %v1743 = vunpack.c.l.b16 %v1353
    %v1744 = vunpack.c.l.b16 %v1354
    %v1745 = vunpack.c.l.b16 %v1355
    %v1746 = vunpack.c.l.b16 %v1356
    %v1747 = vunpack.c.l.b16 %v1357
    %v1748 = vunpack.c.l.b16 %v1358
    %v1749 = vunpack.c.l.b16 %v1359
    %v1750 = vunpack.c.l.b16 %v1360
    %v1751 = vpack.c.b16 %v1736, %v1735
    %v1752 = vpack.c.b16 %v1738, %v1737
    %v1753 = vpack.c.b16 %v1740, %v1739
    %v1754 = vpack.c.b16 %v1742, %v1741
    %v1755 = vpack.c.b16 %v1744, %v1743
    %v1756 = vpack.c.b16 %v1746, %v1745
    %v1757 = vpack.c.b16 %v1748, %v1747
    %v1758 = vpack.c.b16 %v1750, %v1749
    %1767 = vmatprep.subr.bf16.mxu0 0
    %1768 = vmatpush1.bf16.msra.mxu0 %v1751
    %1769 = vmatprep.subr.bf16.mxu0 0
    %1770 = vmatpush1.bf16.msra.mxu0 %v1752
    %1771 = vmatprep.subr.bf16.mxu0 0
    %1772 = vmatpush1.bf16.msra.mxu0 %v1753
    %1773 = vmatprep.subr.bf16.mxu0 0
    %1774 = vmatpush1.bf16.msra.mxu0 %v1754
    %1775 = vmatprep.subr.bf16.mxu0 0
    %1776 = vmatpush1.bf16.msra.mxu0 %v1755
    %1777 = vmatprep.subr.bf16.mxu0 0
    %1778 = vmatpush1.bf16.msra.mxu0 %v1756
    %1779 = vmatprep.subr.bf16.mxu0 0
    %1780 = vmatpush1.bf16.msra.mxu0 %v1757
    %1781 = vmatprep.subr.bf16.mxu0 0
    %1782 = vmatpush1.bf16.msra.mxu0 %v1758
    %1783 = vmatprep.subr.bf16.mxu0 0
    %1784 = vmatpush1.bf16.msra.mxu0 0
    %1785 = vmatprep.subr.bf16.mxu0 0
    %1786 = vmatpush1.bf16.msra.mxu0 0
    %1787 = vmatprep.subr.bf16.mxu0 0
    %1788 = vmatpush1.bf16.msra.mxu0 0
    %1789 = vmatprep.subr.bf16.mxu0 0
    %1790 = vmatpush1.bf16.msra.mxu0 0
    %1791 = vmatprep.subr.bf16.mxu0 0
    %1792 = vmatpush1.bf16.msra.mxu0 0
    %1793 = vmatprep.subr.bf16.mxu0 0
    %1794 = vmatpush1.bf16.msra.mxu0 0
    %1795 = vmatprep.subr.bf16.mxu0 0
    %1796 = vmatpush1.bf16.msra.mxu0 0
    %1797 = vmatprep.subr.bf16.mxu0 0
    %1798 = vmatpush1.bf16.msra.mxu0 0
    %1799 = vmatprep.mubr.bf16.mxu0 0
    %1800 = vmatmul.mubr.bf16.gmra.mrb[0].mxu0 %v1294
    %v1801 = vpop.f32.mrb[0].mxu0
    %v1802 = vadd.f32 %v1461, %v1801
    %v1803 = vpop.f32.mrb[0].mxu0
    %v1804 = vpop.f32.mrb[0].mxu0
    %v1805 = vadd.f32 %v1464, %v1804
    %v1806 = vpop.f32.mrb[0].mxu0
    %1807 = vmatprep.mubr.bf16.mxu0 0
    %1808 = vmatmul.mubr.bf16.gmra.mrb[0].mxu0 %v1295
    %v1809 = vpop.f32.mrb[0].mxu0
    %v1810 = vadd.f32 %v1469, %v1809
    %v1811 = vpop.f32.mrb[0].mxu0
    %v1812 = vpop.f32.mrb[0].mxu0
    %v1813 = vadd.f32 %v1472, %v1812
    %v1814 = vpop.f32.mrb[0].mxu0
    %1815 = vmatprep.mubr.bf16.mxu0 0
    %1816 = vmatmul.mubr.bf16.gmra.mrb[0].mxu0 %v1296
    %v1817 = vpop.f32.mrb[0].mxu0
    %v1818 = vadd.f32 %v1477, %v1817
    %v1819 = vpop.f32.mrb[0].mxu0
    %v1820 = vpop.f32.mrb[0].mxu0
    %v1821 = vadd.f32 %v1480, %v1820
    %v1822 = vpop.f32.mrb[0].mxu0
    %1823 = vmatprep.mubr.bf16.mxu0 0
    %1824 = vmatmul.mubr.bf16.gmra.mrb[0].mxu0 %v1297
    %v1825 = vpop.f32.mrb[0].mxu0
    %v1826 = vadd.f32 %v1485, %v1825
    %v1827 = vpop.f32.mrb[0].mxu0
    %v1828 = vpop.f32.mrb[0].mxu0
    %v1829 = vadd.f32 %v1488, %v1828
    %v1830 = vpop.f32.mrb[0].mxu0
    %1831 = vmatprep.mubr.bf16.mxu0 0
    %1832 = vmatmul.mubr.bf16.gmra.mrb[0].mxu0 %v1298
    %v1833 = vpop.f32.mrb[0].mxu0
    %v1834 = vadd.f32 %v1493, %v1833
    %v1835 = vpop.f32.mrb[0].mxu0
    %v1836 = vpop.f32.mrb[0].mxu0
    %v1837 = vadd.f32 %v1496, %v1836
    %v1838 = vpop.f32.mrb[0].mxu0
    %1839 = vmatprep.mubr.bf16.mxu0 0
    %1840 = vmatmul.mubr.bf16.gmra.mrb[0].mxu0 %v1299
    %v1841 = vpop.f32.mrb[0].mxu0
    %v1842 = vpop.f32.mrb[0].mxu0
    %v1843 = vpop.f32.mrb[0].mxu0
    %v1844 = vpop.f32.mrb[0].mxu0
    %1845 = vmatprep.mubr.bf16.mxu0 0
    %1846 = vmatmul.mubr.bf16.gmra.mrb[0].mxu0 %v1300
    %v1847 = vpop.f32.mrb[0].mxu0
    %v1848 = vpop.f32.mrb[0].mxu0
    %v1849 = vpop.f32.mrb[0].mxu0
    %v1850 = vpop.f32.mrb[0].mxu0
    %1851 = vmatprep.mubr.bf16.mxu0 0
    %1852 = vmatmul.mubr.bf16.gmra.mrb[0].mxu0 %v1301
    %v1853 = vpop.f32.mrb[0].mxu0
    %v1854 = vadd.f32 %v1513, %v1853
    %v1855 = vpop.f32.mrb[0].mxu0
    %v1856 = vpop.f32.mrb[0].mxu0
    %v1857 = vadd.f32 %v1516, %v1856
    %v1858 = vpop.f32.mrb[0].mxu0
    %1859 = vmatprep.mubr.bf16.mxu0 0
    %1860 = vmatmul.mubr.bf16.gmra.mrb[0].mxu0 %v1302
    %v1861 = vpop.f32.mrb[0].mxu0
    %v1862 = vadd.f32 %v1521, %v1861
    %v1863 = vpop.f32.mrb[0].mxu0
    %v1864 = vpop.f32.mrb[0].mxu0
    %v1865 = vadd.f32 %v1524, %v1864
    %v1866 = vpop.f32.mrb[0].mxu0
    %1867 = vmatprep.mubr.bf16.mxu0 0
    %1868 = vmatmul.mubr.bf16.gmra.mrb[0].mxu0 %v1303
    %v1869 = vpop.f32.mrb[0].mxu0
    %v1870 = vadd.f32 %v1529, %v1869
    %v1871 = vpop.f32.mrb[0].mxu0
    %v1872 = vpop.f32.mrb[0].mxu0
    %v1873 = vadd.f32 %v1532, %v1872
    %v1874 = vpop.f32.mrb[0].mxu0
    %1875 = vmatprep.mubr.bf16.mxu0 0
    %1876 = vmatmul.mubr.bf16.gmra.mrb[0].mxu0 %v1304
    %v1877 = vpop.f32.mrb[0].mxu0
    %v1878 = vadd.f32 %v1537, %v1877
    %v1879 = vpop.f32.mrb[0].mxu0
    %v1880 = vpop.f32.mrb[0].mxu0
    %v1881 = vadd.f32 %v1540, %v1880
    %v1882 = vpop.f32.mrb[0].mxu0
    %1883 = vmatprep.mubr.bf16.mxu0 0
    %1884 = vmatmul.mubr.bf16.gmra.mrb[0].mxu0 %v1305
    %v1885 = vpop.f32.mrb[0].mxu0
    %v1886 = vadd.f32 %v1545, %v1885
    %v1887 = vpop.f32.mrb[0].mxu0
    %v1888 = vpop.f32.mrb[0].mxu0
    %v1889 = vadd.f32 %v1548, %v1888
    %v1890 = vpop.f32.mrb[0].mxu0
    %1891 = vmatprep.mubr.bf16.mxu0 0
    %1892 = vmatmul.mubr.bf16.gmra.mrb[0].mxu0 %v1306
    %v1893 = vpop.f32.mrb[0].mxu0
    %v1894 = vpop.f32.mrb[0].mxu0
    %v1895 = vpop.f32.mrb[0].mxu0
    %v1896 = vpop.f32.mrb[0].mxu0
    %1897 = vmatprep.mubr.bf16.mxu0 0
    %1898 = vmatmul.mubr.bf16.gmra.mrb[0].mxu0 %v1307
    %v1899 = vpop.f32.mrb[0].mxu0
    %v1900 = vpop.f32.mrb[0].mxu0
    %v1901 = vpop.f32.mrb[0].mxu0
    %v1902 = vpop.f32.mrb[0].mxu0
    %1903 = vmatprep.mubr.bf16.mxu0 0
    %1904 = vmatmul.mubr.bf16.gmra.mrb[0].mxu0 %v1308
    %v1905 = vpop.f32.mrb[0].mxu0
    %v1906 = vadd.f32 %v1565, %v1905
    %v1907 = vpop.f32.mrb[0].mxu0
    %v1908 = vpop.f32.mrb[0].mxu0
    %v1909 = vadd.f32 %v1568, %v1908
    %v1910 = vpop.f32.mrb[0].mxu0
    %1911 = vmatprep.mubr.bf16.mxu0 0
    %1912 = vmatmul.mubr.bf16.gmra.mrb[0].mxu0 %v1309
    %v1913 = vpop.f32.mrb[0].mxu0
    %v1914 = vadd.f32 %v1573, %v1913
    %v1915 = vpop.f32.mrb[0].mxu0
    %v1916 = vpop.f32.mrb[0].mxu0
    %v1917 = vadd.f32 %v1576, %v1916
    %v1918 = vpop.f32.mrb[0].mxu0
    %1919 = vmatprep.mubr.bf16.mxu0 0
    %1920 = vmatmul.mubr.bf16.gmra.mrb[0].mxu0 %v1310
    %v1921 = vpop.f32.mrb[0].mxu0
    %v1922 = vadd.f32 %v1581, %v1921
    %v1923 = vpop.f32.mrb[0].mxu0
    %v1924 = vpop.f32.mrb[0].mxu0
    %v1925 = vadd.f32 %v1584, %v1924
    %v1926 = vpop.f32.mrb[0].mxu0
    %1927 = vmatprep.mubr.bf16.mxu0 0
    %1928 = vmatmul.mubr.bf16.gmra.mrb[0].mxu0 %v1311
    %v1929 = vpop.f32.mrb[0].mxu0
    %v1930 = vadd.f32 %v1589, %v1929
    %v1931 = vpop.f32.mrb[0].mxu0
    %v1932 = vpop.f32.mrb[0].mxu0
    %v1933 = vadd.f32 %v1592, %v1932
    %v1934 = vpop.f32.mrb[0].mxu0
    %1935 = vmatprep.mubr.bf16.mxu0 0
    %1936 = vmatmul.mubr.bf16.gmra.mrb[0].mxu0 %v1312
    %v1937 = vpop.f32.mrb[0].mxu0
    %v1938 = vadd.f32 %v1597, %v1937
    %v1939 = vpop.f32.mrb[0].mxu0
    %v1940 = vpop.f32.mrb[0].mxu0
    %v1941 = vadd.f32 %v1600, %v1940
    %v1942 = vpop.f32.mrb[0].mxu0
    %1943 = vmatprep.mubr.bf16.mxu0 0
    %1944 = vmatmul.mubr.bf16.gmra.mrb[0].mxu0 %v1313
    %v1945 = vpop.f32.mrb[0].mxu0
    %v1946 = vpop.f32.mrb[0].mxu0
    %v1947 = vpop.f32.mrb[0].mxu0
    %v1948 = vpop.f32.mrb[0].mxu0
    %1949 = vmatprep.mubr.bf16.mxu0 0
    %1950 = vmatmul.mubr.bf16.gmra.mrb[0].mxu0 %v1314
    %v1951 = vpop.f32.mrb[0].mxu0
    %v1952 = vpop.f32.mrb[0].mxu0
    %v1953 = vpop.f32.mrb[0].mxu0
    %v1954 = vpop.f32.mrb[0].mxu0
    %1955 = vmatprep.mubr.bf16.mxu0 0
    %1956 = vmatmul.mubr.bf16.gmra.mrb[0].mxu0 %v1315
    %v1957 = vpop.f32.mrb[0].mxu0
    %v1958 = vadd.f32 %v1617, %v1957
    %v1959 = vpop.f32.mrb[0].mxu0
    %v1960 = vpop.f32.mrb[0].mxu0
    %v1961 = vadd.f32 %v1620, %v1960
    %v1962 = vpop.f32.mrb[0].mxu0
    %1963 = vmatprep.mubr.bf16.mxu0 0
    %1964 = vmatmul.mubr.bf16.gmra.mrb[0].mxu0 %v1316
    %v1965 = vpop.f32.mrb[0].mxu0
    %v1966 = vadd.f32 %v1625, %v1965
    %v1967 = vpop.f32.mrb[0].mxu0
    %v1968 = vpop.f32.mrb[0].mxu0
    %v1969 = vadd.f32 %v1628, %v1968
    %v1970 = vpop.f32.mrb[0].mxu0
    %1971 = vmatprep.mubr.bf16.mxu0 0
    %1972 = vmatmul.mubr.bf16.gmra.mrb[0].mxu0 %v1317
    %v1973 = vpop.f32.mrb[0].mxu0
    %v1974 = vadd.f32 %v1633, %v1973
    %v1975 = vpop.f32.mrb[0].mxu0
    %v1976 = vpop.f32.mrb[0].mxu0
    %v1977 = vadd.f32 %v1636, %v1976
    %v1978 = vpop.f32.mrb[0].mxu0
    %1979 = vmatprep.mubr.bf16.mxu0 0
    %1980 = vmatmul.mubr.bf16.gmra.mrb[0].mxu0 %v1318
    %v1981 = vpop.f32.mrb[0].mxu0
    %v1982 = vadd.f32 %v1641, %v1981
    %v1983 = vpop.f32.mrb[0].mxu0
    %v1984 = vpop.f32.mrb[0].mxu0
    %v1985 = vadd.f32 %v1644, %v1984
    %v1986 = vpop.f32.mrb[0].mxu0
    %1987 = vmatprep.mubr.bf16.mxu0 0
    %1988 = vmatmul.mubr.bf16.gmra.mrb[0].mxu0 %v1319
    %v1989 = vpop.f32.mrb[0].mxu0
    %v1990 = vadd.f32 %v1649, %v1989
    %v1991 = vpop.f32.mrb[0].mxu0
    %v1992 = vpop.f32.mrb[0].mxu0
    %v1993 = vadd.f32 %v1652, %v1992
    %v1994 = vpop.f32.mrb[0].mxu0
    %1995 = vmatprep.mubr.bf16.mxu0 0
    %1996 = vmatmul.mubr.bf16.gmra.mrb[0].mxu0 %v1320
    %v1997 = vpop.f32.mrb[0].mxu0
    %v1998 = vpop.f32.mrb[0].mxu0
    %v1999 = vpop.f32.mrb[0].mxu0
    %v2000 = vpop.f32.mrb[0].mxu0
    %2001 = vmatprep.mubr.bf16.mxu0 0
    %2002 = vmatmul.mubr.bf16.gmra.mrb[0].mxu0 %v1321
    %v2003 = vpop.f32.mrb[0].mxu0
    %v2004 = vpop.f32.mrb[0].mxu0
    %v2005 = vpop.f32.mrb[0].mxu0
    %v2006 = vpop.f32.mrb[0].mxu0
    %2007 = vmatprep.mubr.bf16.mxu0 0
    %2008 = vmatmul.mubr.bf16.gmra.mrb[0].mxu0 %v1322
    %v2009 = vpop.f32.mrb[0].mxu0
    %v2010 = vadd.f32 %v1669, %v2009
    %v2011 = vpop.f32.mrb[0].mxu0
    %v2012 = vpop.f32.mrb[0].mxu0
    %v2013 = vadd.f32 %v1672, %v2012
    %v2014 = vpop.f32.mrb[0].mxu0
    %2015 = vmatprep.mubr.bf16.mxu0 0
    %2016 = vmatmul.mubr.bf16.gmra.mrb[0].mxu0 %v1323
    %v2017 = vpop.f32.mrb[0].mxu0
    %v2018 = vadd.f32 %v1677, %v2017
    %v2019 = vpop.f32.mrb[0].mxu0
    %v2020 = vpop.f32.mrb[0].mxu0
    %v2021 = vadd.f32 %v1680, %v2020
    %v2022 = vpop.f32.mrb[0].mxu0
    %2023 = vmatprep.mubr.bf16.mxu0 0
    %2024 = vmatmul.mubr.bf16.gmra.mrb[0].mxu0 %v1324
    %v2025 = vpop.f32.mrb[0].mxu0
    %v2026 = vadd.f32 %v1685, %v2025
    %v2027 = vpop.f32.mrb[0].mxu0
    %v2028 = vpop.f32.mrb[0].mxu0
    %v2029 = vadd.f32 %v1688, %v2028
    %v2030 = vpop.f32.mrb[0].mxu0
    %2031 = vmatprep.mubr.bf16.mxu0 0
    %2032 = vmatmul.mubr.bf16.gmra.mrb[0].mxu0 %v1325
    %v2033 = vpop.f32.mrb[0].mxu0
    %v2034 = vadd.f32 %v1693, %v2033
    %v2035 = vpop.f32.mrb[0].mxu0
    %v2036 = vpop.f32.mrb[0].mxu0
    %v2037 = vadd.f32 %v1696, %v2036
    %v2038 = vpop.f32.mrb[0].mxu0
    %2039 = vmatprep.mubr.bf16.mxu0 0
    %2040 = vmatmul.mubr.bf16.gmra.mrb[0].mxu0 %v1326
    %v2041 = vpop.f32.mrb[0].mxu0
    %v2042 = vadd.f32 %v1701, %v2041
    %v2043 = vpop.f32.mrb[0].mxu0
    %v2044 = vpop.f32.mrb[0].mxu0
    %v2045 = vadd.f32 %v1704, %v2044
    %v2046 = vpop.f32.mrb[0].mxu0
    %2047 = vmatprep.mubr.bf16.mxu0 0
    %2048 = vmatmul.mubr.bf16.gmra.mrb[0].mxu0 %v1327
    %v2049 = vpop.f32.mrb[0].mxu0
    %v2050 = vpop.f32.mrb[0].mxu0
    %v2051 = vpop.f32.mrb[0].mxu0
    %v2052 = vpop.f32.mrb[0].mxu0
    %2053 = vmatprep.mubr.bf16.mxu0 0
    %2054 = vmatmul.mubr.bf16.gmra.mrb[0].mxu0 %v1328
    %v2055 = vpop.f32.mrb[0].mxu0
    %v2056 = vpop.f32.mrb[0].mxu0
    %v2057 = vpop.f32.mrb[0].mxu0
    %v2058 = vpop.f32.mrb[0].mxu0
    %2059 = vdwg.mxu0
    %s2060 = scalar_lea.vmem [#allocation11], 128
    %v2061 = vld [vmem:[%s2060] sm:$0xf]
    %v2062 = vld [vmem:[%s2060 + $0x4] sm:$0xf]
    %v2063 = vld [vmem:[%s2060 + $0x8] sm:$0xf]
    %v2064 = vld [vmem:[%s2060 + $0xc] sm:$0xf]
    %v2065 = vld [vmem:[%s2060 + $0x10] sm:$0xf]
    %v2066 = vld [vmem:[%s2060 + $0x14] sm:$0xf]
    %v2067 = vld [vmem:[%s2060 + $0x18] sm:$0xf]
    %v2068 = vld [vmem:[%s2060 + $0x1c] sm:$0xf]
    %v2069 = vld [vmem:[%s2060 + $0x20] sm:$0xf]
    %v2070 = vld [vmem:[%s2060 + $0x24] sm:$0xf]
    %v2071 = vld [vmem:[%s2060 + $0x28] sm:$0xf]
    %v2072 = vld [vmem:[%s2060 + $0x2c] sm:$0xf]
    %v2073 = vld [vmem:[%s2060 + $0x30] sm:$0xf]
    %v2074 = vld [vmem:[%s2060 + $0x34] sm:$0xf]
    %v2075 = vld [vmem:[%s2060 + $0x38] sm:$0xf]
    %v2076 = vld [vmem:[%s2060 + $0x3c] sm:$0xf]
    %v2093 = vunpack.c.l.b16 %v2061
    %v2094 = vunpack.c.l.b16 %v2062
    %v2095 = vunpack.c.l.b16 %v2063
    %v2096 = vunpack.c.l.b16 %v2064
    %v2097 = vunpack.c.l.b16 %v2065
    %v2098 = vunpack.c.l.b16 %v2066
    %v2099 = vunpack.c.l.b16 %v2067
    %v2100 = vunpack.c.l.b16 %v2068
    %v2101 = vunpack.c.l.b16 %v2069
    %v2102 = vunpack.c.l.b16 %v2070
    %v2103 = vunpack.c.l.b16 %v2071
    %v2104 = vunpack.c.l.b16 %v2072
    %v2105 = vunpack.c.l.b16 %v2073
    %v2106 = vunpack.c.l.b16 %v2074
    %v2107 = vunpack.c.l.b16 %v2075
    %v2108 = vunpack.c.l.b16 %v2076
    %v2109 = vpack.c.b16 %v2094, %v2093
    %v2110 = vpack.c.b16 %v2096, %v2095
    %v2111 = vpack.c.b16 %v2098, %v2097
    %v2112 = vpack.c.b16 %v2100, %v2099
    %v2113 = vpack.c.b16 %v2102, %v2101
    %v2114 = vpack.c.b16 %v2104, %v2103
    %v2115 = vpack.c.b16 %v2106, %v2105
    %v2116 = vpack.c.b16 %v2108, %v2107
    %2125 = vmatprep.subr.bf16.mxu0 0
    %2126 = vmatpush1.bf16.msra.mxu0 %v2109
    %2127 = vmatprep.subr.bf16.mxu0 0
    %2128 = vmatpush1.bf16.msra.mxu0 %v2110
    %2129 = vmatprep.subr.bf16.mxu0 0
    %2130 = vmatpush1.bf16.msra.mxu0 %v2111
    %2131 = vmatprep.subr.bf16.mxu0 0
    %2132 = vmatpush1.bf16.msra.mxu0 %v2112
    %2133 = vmatprep.subr.bf16.mxu0 0
    %2134 = vmatpush1.bf16.msra.mxu0 %v2113
    %2135 = vmatprep.subr.bf16.mxu0 0
    %2136 = vmatpush1.bf16.msra.mxu0 %v2114
    %2137 = vmatprep.subr.bf16.mxu0 0
    %2138 = vmatpush1.bf16.msra.mxu0 %v2115
    %2139 = vmatprep.subr.bf16.mxu0 0
    %2140 = vmatpush1.bf16.msra.mxu0 %v2116
    %2141 = vmatprep.subr.bf16.mxu0 0
    %2142 = vmatpush1.bf16.msra.mxu0 0
    %2143 = vmatprep.subr.bf16.mxu0 0
    %2144 = vmatpush1.bf16.msra.mxu0 0
    %2145 = vmatprep.subr.bf16.mxu0 0
    %2146 = vmatpush1.bf16.msra.mxu0 0
    %2147 = vmatprep.subr.bf16.mxu0 0
    %2148 = vmatpush1.bf16.msra.mxu0 0
    %2149 = vmatprep.subr.bf16.mxu0 0
    %2150 = vmatpush1.bf16.msra.mxu0 0
    %2151 = vmatprep.subr.bf16.mxu0 0
    %2152 = vmatpush1.bf16.msra.mxu0 0
    %2153 = vmatprep.subr.bf16.mxu0 0
    %2154 = vmatpush1.bf16.msra.mxu0 0
    %2155 = vmatprep.subr.bf16.mxu0 0
    %2156 = vmatpush1.bf16.msra.mxu0 0
    %2157 = vmatprep.mubr.bf16.mxu0 0
    %2158 = vmatmul.mubr.bf16.gmra.mrb[0].mxu0 %v1296
    %v2159 = vpop.f32.mrb[0].mxu0
    %v2160 = vadd.f32 0.0, %v2159
    %v2161 = vpop.f32.mrb[0].mxu0
    %v2162 = vpop.f32.mrb[0].mxu0
    %v2163 = vadd.f32 0.0, %v2162
    %v2164 = vpop.f32.mrb[0].mxu0
    %2165 = vmatprep.mubr.bf16.mxu0 0
    %2166 = vmatmul.mubr.bf16.gmra.mrb[0].mxu0 %v1297
    %v2167 = vpop.f32.mrb[0].mxu0
    %v2168 = vadd.f32 0.0, %v2167
    %v2169 = vpop.f32.mrb[0].mxu0
    %v2170 = vpop.f32.mrb[0].mxu0
    %v2171 = vadd.f32 0.0, %v2170
    %v2172 = vpop.f32.mrb[0].mxu0
    %2173 = vmatprep.mubr.bf16.mxu0 0
    %2174 = vmatmul.mubr.bf16.gmra.mrb[0].mxu0 %v1298
    %v2175 = vpop.f32.mrb[0].mxu0
    %v2176 = vadd.f32 0.0, %v2175
    %v2177 = vpop.f32.mrb[0].mxu0
    %v2178 = vpop.f32.mrb[0].mxu0
    %v2179 = vadd.f32 0.0, %v2178
    %v2180 = vpop.f32.mrb[0].mxu0
    %2181 = vmatprep.mubr.bf16.mxu0 0
    %2182 = vmatmul.mubr.bf16.gmra.mrb[0].mxu0 %v1299
    %v2183 = vpop.f32.mrb[0].mxu0
    %v2184 = vadd.f32 0.0, %v2183
    %v2185 = vpop.f32.mrb[0].mxu0
    %v2186 = vpop.f32.mrb[0].mxu0
    %v2187 = vadd.f32 0.0, %v2186
    %v2188 = vpop.f32.mrb[0].mxu0
    %2189 = vmatprep.mubr.bf16.mxu0 0
    %2190 = vmatmul.mubr.bf16.gmra.mrb[0].mxu0 %v1300
    %v2191 = vpop.f32.mrb[0].mxu0
    %v2192 = vadd.f32 0.0, %v2191
    %v2193 = vpop.f32.mrb[0].mxu0
    %v2194 = vpop.f32.mrb[0].mxu0
    %v2195 = vadd.f32 0.0, %v2194
    %v2196 = vpop.f32.mrb[0].mxu0
    %2197 = vmatprep.mubr.bf16.mxu0 0
    %2198 = vmatmul.mubr.bf16.gmra.mrb[0].mxu0 %v1301
    %v2199 = vpop.f32.mrb[0].mxu0
    %v2200 = vpop.f32.mrb[0].mxu0
    %v2201 = vpop.f32.mrb[0].mxu0
    %v2202 = vpop.f32.mrb[0].mxu0
    %2203 = vmatprep.mubr.bf16.mxu0 0
    %2204 = vmatmul.mubr.bf16.gmra.mrb[0].mxu0 %v1302
    %v2205 = vpop.f32.mrb[0].mxu0
    %v2206 = vpop.f32.mrb[0].mxu0
    %v2207 = vpop.f32.mrb[0].mxu0
    %v2208 = vpop.f32.mrb[0].mxu0
    %2209 = vmatprep.mubr.bf16.mxu0 0
    %2210 = vmatmul.mubr.bf16.gmra.mrb[0].mxu0 %v1303
    %v2211 = vpop.f32.mrb[0].mxu0
    %v2212 = vadd.f32 0.0, %v2211
    %v2213 = vpop.f32.mrb[0].mxu0
    %v2214 = vpop.f32.mrb[0].mxu0
    %v2215 = vadd.f32 0.0, %v2214
    %v2216 = vpop.f32.mrb[0].mxu0
    %2217 = vmatprep.mubr.bf16.mxu0 0
    %2218 = vmatmul.mubr.bf16.gmra.mrb[0].mxu0 %v1304
    %v2219 = vpop.f32.mrb[0].mxu0
    %v2220 = vadd.f32 0.0, %v2219
    %v2221 = vpop.f32.mrb[0].mxu0
    %v2222 = vpop.f32.mrb[0].mxu0
    %v2223 = vadd.f32 0.0, %v2222
    %v2224 = vpop.f32.mrb[0].mxu0
    %2225 = vmatprep.mubr.bf16.mxu0 0
    %2226 = vmatmul.mubr.bf16.gmra.mrb[0].mxu0 %v1305
    %v2227 = vpop.f32.mrb[0].mxu0
    %v2228 = vadd.f32 0.0, %v2227
    %v2229 = vpop.f32.mrb[0].mxu0
    %v2230 = vpop.f32.mrb[0].mxu0
    %v2231 = vadd.f32 0.0, %v2230
    %v2232 = vpop.f32.mrb[0].mxu0
    %2233 = vmatprep.mubr.bf16.mxu0 0
    %2234 = vmatmul.mubr.bf16.gmra.mrb[0].mxu0 %v1306
    %v2235 = vpop.f32.mrb[0].mxu0
    %v2236 = vadd.f32 0.0, %v2235
    %v2237 = vpop.f32.mrb[0].mxu0
    %v2238 = vpop.f32.mrb[0].mxu0
    %v2239 = vadd.f32 0.0, %v2238
    %v2240 = vpop.f32.mrb[0].mxu0
    %2241 = vmatprep.mubr.bf16.mxu0 0
    %2242 = vmatmul.mubr.bf16.gmra.mrb[0].mxu0 %v1307
    %v2243 = vpop.f32.mrb[0].mxu0
    %v2244 = vadd.f32 0.0, %v2243
    %v2245 = vpop.f32.mrb[0].mxu0
    %v2246 = vpop.f32.mrb[0].mxu0
    %v2247 = vadd.f32 0.0, %v2246
    %v2248 = vpop.f32.mrb[0].mxu0
    %2249 = vmatprep.mubr.bf16.mxu0 0
    %2250 = vmatmul.mubr.bf16.gmra.mrb[0].mxu0 %v1308
    %v2251 = vpop.f32.mrb[0].mxu0
    %v2252 = vpop.f32.mrb[0].mxu0
    %v2253 = vpop.f32.mrb[0].mxu0
    %v2254 = vpop.f32.mrb[0].mxu0
    %2255 = vmatprep.mubr.bf16.mxu0 0
    %2256 = vmatmul.mubr.bf16.gmra.mrb[0].mxu0 %v1309
    %v2257 = vpop.f32.mrb[0].mxu0
    %v2258 = vpop.f32.mrb[0].mxu0
    %v2259 = vpop.f32.mrb[0].mxu0
    %v2260 = vpop.f32.mrb[0].mxu0
    %2261 = vmatprep.mubr.bf16.mxu0 0
    %2262 = vmatmul.mubr.bf16.gmra.mrb[0].mxu0 %v1310
    %v2263 = vpop.f32.mrb[0].mxu0
    %v2264 = vadd.f32 0.0, %v2263
    %v2265 = vpop.f32.mrb[0].mxu0
    %v2266 = vpop.f32.mrb[0].mxu0
    %v2267 = vadd.f32 0.0, %v2266
    %v2268 = vpop.f32.mrb[0].mxu0
    %2269 = vmatprep.mubr.bf16.mxu0 0
    %2270 = vmatmul.mubr.bf16.gmra.mrb[0].mxu0 %v1311
    %v2271 = vpop.f32.mrb[0].mxu0
    %v2272 = vadd.f32 0.0, %v2271
    %v2273 = vpop.f32.mrb[0].mxu0
    %v2274 = vpop.f32.mrb[0].mxu0
    %v2275 = vadd.f32 0.0, %v2274
    %v2276 = vpop.f32.mrb[0].mxu0
    %2277 = vmatprep.mubr.bf16.mxu0 0
    %2278 = vmatmul.mubr.bf16.gmra.mrb[0].mxu0 %v1312
    %v2279 = vpop.f32.mrb[0].mxu0
    %v2280 = vadd.f32 0.0, %v2279
    %v2281 = vpop.f32.mrb[0].mxu0
    %v2282 = vpop.f32.mrb[0].mxu0
    %v2283 = vadd.f32 0.0, %v2282
    %v2284 = vpop.f32.mrb[0].mxu0
    %2285 = vmatprep.mubr.bf16.mxu0 0
    %2286 = vmatmul.mubr.bf16.gmra.mrb[0].mxu0 %v1313
    %v2287 = vpop.f32.mrb[0].mxu0
    %v2288 = vadd.f32 0.0, %v2287
    %v2289 = vpop.f32.mrb[0].mxu0
    %v2290 = vpop.f32.mrb[0].mxu0
    %v2291 = vadd.f32 0.0, %v2290
    %v2292 = vpop.f32.mrb[0].mxu0
    %2293 = vmatprep.mubr.bf16.mxu0 0
    %2294 = vmatmul.mubr.bf16.gmra.mrb[0].mxu0 %v1314
    %v2295 = vpop.f32.mrb[0].mxu0
    %v2296 = vadd.f32 0.0, %v2295
    %v2297 = vpop.f32.mrb[0].mxu0
    %v2298 = vpop.f32.mrb[0].mxu0
    %v2299 = vadd.f32 0.0, %v2298
    %v2300 = vpop.f32.mrb[0].mxu0
    %2301 = vmatprep.mubr.bf16.mxu0 0
    %2302 = vmatmul.mubr.bf16.gmra.mrb[0].mxu0 %v1315
    %v2303 = vpop.f32.mrb[0].mxu0
    %v2304 = vpop.f32.mrb[0].mxu0
    %v2305 = vpop.f32.mrb[0].mxu0
    %v2306 = vpop.f32.mrb[0].mxu0
    %2307 = vmatprep.mubr.bf16.mxu0 0
    %2308 = vmatmul.mubr.bf16.gmra.mrb[0].mxu0 %v1316
    %v2309 = vpop.f32.mrb[0].mxu0
    %v2310 = vpop.f32.mrb[0].mxu0
    %v2311 = vpop.f32.mrb[0].mxu0
    %v2312 = vpop.f32.mrb[0].mxu0
    %2313 = vmatprep.mubr.bf16.mxu0 0
    %2314 = vmatmul.mubr.bf16.gmra.mrb[0].mxu0 %v1317
    %v2315 = vpop.f32.mrb[0].mxu0
    %v2316 = vadd.f32 0.0, %v2315
    %v2317 = vpop.f32.mrb[0].mxu0
    %v2318 = vpop.f32.mrb[0].mxu0
    %v2319 = vadd.f32 0.0, %v2318
    %v2320 = vpop.f32.mrb[0].mxu0
    %2321 = vmatprep.mubr.bf16.mxu0 0
    %2322 = vmatmul.mubr.bf16.gmra.mrb[0].mxu0 %v1318
    %v2323 = vpop.f32.mrb[0].mxu0
    %v2324 = vadd.f32 0.0, %v2323
    %v2325 = vpop.f32.mrb[0].mxu0
    %v2326 = vpop.f32.mrb[0].mxu0
    %v2327 = vadd.f32 0.0, %v2326
    %v2328 = vpop.f32.mrb[0].mxu0
    %2329 = vmatprep.mubr.bf16.mxu0 0
    %2330 = vmatmul.mubr.bf16.gmra.mrb[0].mxu0 %v1319
    %v2331 = vpop.f32.mrb[0].mxu0
    %v2332 = vadd.f32 0.0, %v2331
    %v2333 = vpop.f32.mrb[0].mxu0
    %v2334 = vpop.f32.mrb[0].mxu0
    %v2335 = vadd.f32 0.0, %v2334
    %v2336 = vpop.f32.mrb[0].mxu0
    %2337 = vmatprep.mubr.bf16.mxu0 0
    %2338 = vmatmul.mubr.bf16.gmra.mrb[0].mxu0 %v1320
    %v2339 = vpop.f32.mrb[0].mxu0
    %v2340 = vadd.f32 0.0, %v2339
    %v2341 = vpop.f32.mrb[0].mxu0
    %v2342 = vpop.f32.mrb[0].mxu0
    %v2343 = vadd.f32 0.0, %v2342
    %v2344 = vpop.f32.mrb[0].mxu0
    %2345 = vmatprep.mubr.bf16.mxu0 0
    %2346 = vmatmul.mubr.bf16.gmra.mrb[0].mxu0 %v1321
    %v2347 = vpop.f32.mrb[0].mxu0
    %v2348 = vadd.f32 0.0, %v2347
    %v2349 = vpop.f32.mrb[0].mxu0
    %v2350 = vpop.f32.mrb[0].mxu0
    %v2351 = vadd.f32 0.0, %v2350
    %v2352 = vpop.f32.mrb[0].mxu0
    %2353 = vmatprep.mubr.bf16.mxu0 0
    %2354 = vmatmul.mubr.bf16.gmra.mrb[0].mxu0 %v1322
    %v2355 = vpop.f32.mrb[0].mxu0
    %v2356 = vpop.f32.mrb[0].mxu0
    %v2357 = vpop.f32.mrb[0].mxu0
    %v2358 = vpop.f32.mrb[0].mxu0
    %2359 = vmatprep.mubr.bf16.mxu0 0
    %2360 = vmatmul.mubr.bf16.gmra.mrb[0].mxu0 %v1323
    %v2361 = vpop.f32.mrb[0].mxu0
    %v2362 = vpop.f32.mrb[0].mxu0
    %v2363 = vpop.f32.mrb[0].mxu0
    %v2364 = vpop.f32.mrb[0].mxu0
    %2365 = vmatprep.mubr.bf16.mxu0 0
    %2366 = vmatmul.mubr.bf16.gmra.mrb[0].mxu0 %v1324
    %v2367 = vpop.f32.mrb[0].mxu0
    %v2368 = vadd.f32 0.0, %v2367
    %v2369 = vpop.f32.mrb[0].mxu0
    %v2370 = vpop.f32.mrb[0].mxu0
    %v2371 = vadd.f32 0.0, %v2370
    %v2372 = vpop.f32.mrb[0].mxu0
    %2373 = vmatprep.mubr.bf16.mxu0 0
    %2374 = vmatmul.mubr.bf16.gmra.mrb[0].mxu0 %v1325
    %v2375 = vpop.f32.mrb[0].mxu0
    %v2376 = vadd.f32 0.0, %v2375
    %v2377 = vpop.f32.mrb[0].mxu0
    %v2378 = vpop.f32.mrb[0].mxu0
    %v2379 = vadd.f32 0.0, %v2378
    %v2380 = vpop.f32.mrb[0].mxu0
    %2381 = vmatprep.mubr.bf16.mxu0 0
    %2382 = vmatmul.mubr.bf16.gmra.mrb[0].mxu0 %v1326
    %v2383 = vpop.f32.mrb[0].mxu0
    %v2384 = vadd.f32 0.0, %v2383
    %v2385 = vpop.f32.mrb[0].mxu0
    %v2386 = vpop.f32.mrb[0].mxu0
    %v2387 = vadd.f32 0.0, %v2386
    %v2388 = vpop.f32.mrb[0].mxu0
    %2389 = vmatprep.mubr.bf16.mxu0 0
    %2390 = vmatmul.mubr.bf16.gmra.mrb[0].mxu0 %v1327
    %v2391 = vpop.f32.mrb[0].mxu0
    %v2392 = vadd.f32 0.0, %v2391
    %v2393 = vpop.f32.mrb[0].mxu0
    %v2394 = vpop.f32.mrb[0].mxu0
    %v2395 = vadd.f32 0.0, %v2394
    %v2396 = vpop.f32.mrb[0].mxu0
    %2397 = vmatprep.mubr.bf16.mxu0 0
    %2398 = vmatmul.mubr.bf16.gmra.mrb[0].mxu0 %v1328
    %v2399 = vpop.f32.mrb[0].mxu0
    %v2400 = vadd.f32 0.0, %v2399
    %v2401 = vpop.f32.mrb[0].mxu0
    %v2402 = vpop.f32.mrb[0].mxu0
    %v2403 = vadd.f32 0.0, %v2402
    %v2404 = vpop.f32.mrb[0].mxu0
    %2405 = vmatprep.mubr.bf16.mxu0 0
    %2406 = vmatmul.mubr.bf16.gmra.mrb[0].mxu0 %v1329
    %v2407 = vpop.f32.mrb[0].mxu0
    %v2408 = vpop.f32.mrb[0].mxu0
    %v2409 = vpop.f32.mrb[0].mxu0
    %v2410 = vpop.f32.mrb[0].mxu0
    %2411 = vmatprep.mubr.bf16.mxu0 0
    %2412 = vmatmul.mubr.bf16.gmra.mrb[0].mxu0 %v1330
    %v2413 = vpop.f32.mrb[0].mxu0
    %v2414 = vpop.f32.mrb[0].mxu0
    %v2415 = vpop.f32.mrb[0].mxu0
    %v2416 = vpop.f32.mrb[0].mxu0
    %2417 = vdwg.mxu0
    %v2418 = vadd.f32 %v1802, %v2160
    %v2419 = vadd.f32 %v1805, %v2163
    %v2420 = vadd.f32 %v1810, %v2168
    %v2421 = vadd.f32 %v1813, %v2171
    %v2422 = vadd.f32 %v1818, %v2176
    %v2423 = vadd.f32 %v1821, %v2179
    %v2424 = vadd.f32 %v1826, %v2184
    %v2425 = vadd.f32 %v1829, %v2187
    %v2426 = vadd.f32 %v1834, %v2192
    %v2427 = vadd.f32 %v1837, %v2195
    %v2428 = vadd.f32 %v1854, %v2212
    %v2429 = vadd.f32 %v1857, %v2215
    %v2430 = vadd.f32 %v1862, %v2220
    %v2431 = vadd.f32 %v1865, %v2223
    %v2432 = vadd.f32 %v1870, %v2228
    %v2433 = vadd.f32 %v1873, %v2231
    %v2434 = vadd.f32 %v1878, %v2236
    %v2435 = vadd.f32 %v1881, %v2239
    %v2436 = vadd.f32 %v1886, %v2244
    %v2437 = vadd.f32 %v1889, %v2247
    %v2438 = vadd.f32 %v1906, %v2264
    %v2439 = vadd.f32 %v1909, %v2267
    %v2440 = vadd.f32 %v1914, %v2272
    %v2441 = vadd.f32 %v1917, %v2275
    %v2442 = vadd.f32 %v1922, %v2280
    %v2443 = vadd.f32 %v1925, %v2283
    %v2444 = vadd.f32 %v1930, %v2288
    %v2445 = vadd.f32 %v1933, %v2291
    %v2446 = vadd.f32 %v1938, %v2296
    %v2447 = vadd.f32 %v1941, %v2299
    %v2448 = vadd.f32 %v1958, %v2316
    %v2449 = vadd.f32 %v1961, %v2319
    %v2450 = vadd.f32 %v1966, %v2324
    %v2451 = vadd.f32 %v1969, %v2327
    %v2452 = vadd.f32 %v1974, %v2332
    %v2453 = vadd.f32 %v1977, %v2335
    %v2454 = vadd.f32 %v1982, %v2340
    %v2455 = vadd.f32 %v1985, %v2343
    %v2456 = vadd.f32 %v1990, %v2348
    %v2457 = vadd.f32 %v1993, %v2351
    %v2458 = vadd.f32 %v2010, %v2368
    %v2459 = vadd.f32 %v2013, %v2371
    %v2460 = vadd.f32 %v2018, %v2376
    %v2461 = vadd.f32 %v2021, %v2379
    %v2462 = vadd.f32 %v2026, %v2384
    %v2463 = vadd.f32 %v2029, %v2387
    %v2464 = vadd.f32 %v2034, %v2392
    %v2465 = vadd.f32 %v2037, %v2395
    %v2466 = vadd.f32 %v2042, %v2400
    %v2467 = vadd.f32 %v2045, %v2403
    %s2468 = scalar_lea.vmem [#allocation11], 192
    %v2469 = vld [vmem:[%s2468] sm:$0xf]
    %v2470 = vld [vmem:[%s2468 + $0x4] sm:$0xf]
    %v2471 = vld [vmem:[%s2468 + $0x8] sm:$0xf]
    %v2472 = vld [vmem:[%s2468 + $0xc] sm:$0xf]
    %v2473 = vld [vmem:[%s2468 + $0x10] sm:$0xf]
    %v2474 = vld [vmem:[%s2468 + $0x14] sm:$0xf]
    %v2475 = vld [vmem:[%s2468 + $0x18] sm:$0xf]
    %v2476 = vld [vmem:[%s2468 + $0x1c] sm:$0xf]
    %v2477 = vld [vmem:[%s2468 + $0x20] sm:$0xf]
    %v2478 = vld [vmem:[%s2468 + $0x24] sm:$0xf]
    %v2479 = vld [vmem:[%s2468 + $0x28] sm:$0xf]
    %v2480 = vld [vmem:[%s2468 + $0x2c] sm:$0xf]
    %v2481 = vld [vmem:[%s2468 + $0x30] sm:$0xf]
    %v2482 = vld [vmem:[%s2468 + $0x34] sm:$0xf]
    %v2483 = vld [vmem:[%s2468 + $0x38] sm:$0xf]
    %v2484 = vld [vmem:[%s2468 + $0x3c] sm:$0xf]
    %s2485 = scalar_lea.vmem [#allocation11], 256
    %v2486 = vld [vmem:[%s2485] sm:$0xf]
    %v2487 = vld [vmem:[%s2485 + $0x4] sm:$0xf]
    %v2488 = vld [vmem:[%s2485 + $0x8] sm:$0xf]
    %v2489 = vld [vmem:[%s2485 + $0xc] sm:$0xf]
    %v2490 = vld [vmem:[%s2485 + $0x10] sm:$0xf]
    %v2491 = vld [vmem:[%s2485 + $0x14] sm:$0xf]
    %v2492 = vld [vmem:[%s2485 + $0x18] sm:$0xf]
    %v2493 = vld [vmem:[%s2485 + $0x1c] sm:$0xf]
    %v2494 = vld [vmem:[%s2485 + $0x20] sm:$0xf]
    %v2495 = vld [vmem:[%s2485 + $0x24] sm:$0xf]
    %v2496 = vld [vmem:[%s2485 + $0x28] sm:$0xf]
    %v2497 = vld [vmem:[%s2485 + $0x2c] sm:$0xf]
    %v2498 = vld [vmem:[%s2485 + $0x30] sm:$0xf]
    %v2499 = vld [vmem:[%s2485 + $0x34] sm:$0xf]
    %v2500 = vld [vmem:[%s2485 + $0x38] sm:$0xf]
    %v2501 = vld [vmem:[%s2485 + $0x3c] sm:$0xf]
    %v2518 = vunpack.c.l.b16 %v2486
    %v2519 = vunpack.c.l.b16 %v2487
    %v2520 = vunpack.c.l.b16 %v2488
    %v2521 = vunpack.c.l.b16 %v2489
    %v2522 = vunpack.c.l.b16 %v2490
    %v2523 = vunpack.c.l.b16 %v2491
    %v2524 = vunpack.c.l.b16 %v2492
    %v2525 = vunpack.c.l.b16 %v2493
    %v2526 = vunpack.c.l.b16 %v2494
    %v2527 = vunpack.c.l.b16 %v2495
    %v2528 = vunpack.c.l.b16 %v2496
    %v2529 = vunpack.c.l.b16 %v2497
    %v2530 = vunpack.c.l.b16 %v2498
    %v2531 = vunpack.c.l.b16 %v2499
    %v2532 = vunpack.c.l.b16 %v2500
    %v2533 = vunpack.c.l.b16 %v2501
    %v2534 = vpack.c.b16 %v2519, %v2518
    %v2535 = vpack.c.b16 %v2521, %v2520
    %v2536 = vpack.c.b16 %v2523, %v2522
    %v2537 = vpack.c.b16 %v2525, %v2524
    %v2538 = vpack.c.b16 %v2527, %v2526
    %v2539 = vpack.c.b16 %v2529, %v2528
    %v2540 = vpack.c.b16 %v2531, %v2530
    %v2541 = vpack.c.b16 %v2533, %v2532
    %2550 = vmatprep.subr.bf16.mxu0 0
    %2551 = vmatpush1.bf16.msra.mxu0 %v2534
    %2552 = vmatprep.subr.bf16.mxu0 0
    %2553 = vmatpush1.bf16.msra.mxu0 %v2535
    %2554 = vmatprep.subr.bf16.mxu0 0
    %2555 = vmatpush1.bf16.msra.mxu0 %v2536
    %2556 = vmatprep.subr.bf16.mxu0 0
    %2557 = vmatpush1.bf16.msra.mxu0 %v2537
    %2558 = vmatprep.subr.bf16.mxu0 0
    %2559 = vmatpush1.bf16.msra.mxu0 %v2538
    %2560 = vmatprep.subr.bf16.mxu0 0
    %2561 = vmatpush1.bf16.msra.mxu0 %v2539
    %2562 = vmatprep.subr.bf16.mxu0 0
    %2563 = vmatpush1.bf16.msra.mxu0 %v2540
    %2564 = vmatprep.subr.bf16.mxu0 0
    %2565 = vmatpush1.bf16.msra.mxu0 %v2541
    %2566 = vmatprep.subr.bf16.mxu0 0
    %2567 = vmatpush1.bf16.msra.mxu0 0
    %2568 = vmatprep.subr.bf16.mxu0 0
    %2569 = vmatpush1.bf16.msra.mxu0 0
    %2570 = vmatprep.subr.bf16.mxu0 0
    %2571 = vmatpush1.bf16.msra.mxu0 0
    %2572 = vmatprep.subr.bf16.mxu0 0
    %2573 = vmatpush1.bf16.msra.mxu0 0
    %2574 = vmatprep.subr.bf16.mxu0 0
    %2575 = vmatpush1.bf16.msra.mxu0 0
    %2576 = vmatprep.subr.bf16.mxu0 0
    %2577 = vmatpush1.bf16.msra.mxu0 0
    %2578 = vmatprep.subr.bf16.mxu0 0
    %2579 = vmatpush1.bf16.msra.mxu0 0
    %2580 = vmatprep.subr.bf16.mxu0 0
    %2581 = vmatpush1.bf16.msra.mxu0 0
    %2582 = vmatprep.mubr.bf16.mxu0 0
    %2583 = vmatmul.mubr.bf16.gmra.mrb[0].mxu0 %v1302
    %v2584 = vpop.f32.mrb[0].mxu0
    %v2585 = vadd.f32 0.0, %v2584
    %v2586 = vpop.f32.mrb[0].mxu0
    %v2587 = vpop.f32.mrb[0].mxu0
    %v2588 = vadd.f32 0.0, %v2587
    %v2589 = vpop.f32.mrb[0].mxu0
    %2590 = vmatprep.mubr.bf16.mxu0 0
    %2591 = vmatmul.mubr.bf16.gmra.mrb[0].mxu0 %v1303
    %v2592 = vpop.f32.mrb[0].mxu0
    %v2593 = vadd.f32 0.0, %v2592
    %v2594 = vpop.f32.mrb[0].mxu0
    %v2595 = vpop.f32.mrb[0].mxu0
    %v2596 = vadd.f32 0.0, %v2595
    %v2597 = vpop.f32.mrb[0].mxu0
    %2598 = vmatprep.mubr.bf16.mxu0 0
    %2599 = vmatmul.mubr.bf16.gmra.mrb[0].mxu0 %v1304
    %v2600 = vpop.f32.mrb[0].mxu0
    %v2601 = vadd.f32 0.0, %v2600
    %v2602 = vpop.f32.mrb[0].mxu0
    %v2603 = vpop.f32.mrb[0].mxu0
    %v2604 = vadd.f32 0.0, %v2603
    %v2605 = vpop.f32.mrb[0].mxu0
    %2606 = vmatprep.mubr.bf16.mxu0 0
    %2607 = vmatmul.mubr.bf16.gmra.mrb[0].mxu0 %v1305
    %v2608 = vpop.f32.mrb[0].mxu0
    %v2609 = vadd.f32 0.0, %v2608
    %v2610 = vpop.f32.mrb[0].mxu0
    %v2611 = vpop.f32.mrb[0].mxu0
    %v2612 = vadd.f32 0.0, %v2611
    %v2613 = vpop.f32.mrb[0].mxu0
    %2614 = vmatprep.mubr.bf16.mxu0 0
    %2615 = vmatmul.mubr.bf16.gmra.mrb[0].mxu0 %v1306
    %v2616 = vpop.f32.mrb[0].mxu0
    %v2617 = vadd.f32 0.0, %v2616
    %v2618 = vpop.f32.mrb[0].mxu0
    %v2619 = vpop.f32.mrb[0].mxu0
    %v2620 = vadd.f32 0.0, %v2619
    %v2621 = vpop.f32.mrb[0].mxu0
    %2622 = vmatprep.mubr.bf16.mxu0 0
    %2623 = vmatmul.mubr.bf16.gmra.mrb[0].mxu0 %v1307
    %v2624 = vpop.f32.mrb[0].mxu0
    %v2625 = vpop.f32.mrb[0].mxu0
    %v2626 = vpop.f32.mrb[0].mxu0
    %v2627 = vpop.f32.mrb[0].mxu0
    %2628 = vmatprep.mubr.bf16.mxu0 0
    %2629 = vmatmul.mubr.bf16.gmra.mrb[0].mxu0 %v1308
    %v2630 = vpop.f32.mrb[0].mxu0
    %v2631 = vpop.f32.mrb[0].mxu0
    %v2632 = vpop.f32.mrb[0].mxu0
    %v2633 = vpop.f32.mrb[0].mxu0
    %2634 = vmatprep.mubr.bf16.mxu0 0
    %2635 = vmatmul.mubr.bf16.gmra.mrb[0].mxu0 %v1309
    %v2636 = vpop.f32.mrb[0].mxu0
    %v2637 = vadd.f32 0.0, %v2636
    %v2638 = vpop.f32.mrb[0].mxu0
    %v2639 = vpop.f32.mrb[0].mxu0
    %v2640 = vadd.f32 0.0, %v2639
    %v2641 = vpop.f32.mrb[0].mxu0
    %2642 = vmatprep.mubr.bf16.mxu0 0
    %2643 = vmatmul.mubr.bf16.gmra.mrb[0].mxu0 %v1310
    %v2644 = vpop.f32.mrb[0].mxu0
    %v2645 = vadd.f32 0.0, %v2644
    %v2646 = vpop.f32.mrb[0].mxu0
    %v2647 = vpop.f32.mrb[0].mxu0
    %v2648 = vadd.f32 0.0, %v2647
    %v2649 = vpop.f32.mrb[0].mxu0
    %2650 = vmatprep.mubr.bf16.mxu0 0
    %2651 = vmatmul.mubr.bf16.gmra.mrb[0].mxu0 %v1311
    %v2652 = vpop.f32.mrb[0].mxu0
    %v2653 = vadd.f32 0.0, %v2652
    %v2654 = vpop.f32.mrb[0].mxu0
    %v2655 = vpop.f32.mrb[0].mxu0
    %v2656 = vadd.f32 0.0, %v2655
    %v2657 = vpop.f32.mrb[0].mxu0
    %2658 = vmatprep.mubr.bf16.mxu0 0
    %2659 = vmatmul.mubr.bf16.gmra.mrb[0].mxu0 %v1312
    %v2660 = vpop.f32.mrb[0].mxu0
    %v2661 = vadd.f32 0.0, %v2660
    %v2662 = vpop.f32.mrb[0].mxu0
    %v2663 = vpop.f32.mrb[0].mxu0
    %v2664 = vadd.f32 0.0, %v2663
    %v2665 = vpop.f32.mrb[0].mxu0
    %2666 = vmatprep.mubr.bf16.mxu0 0
    %2667 = vmatmul.mubr.bf16.gmra.mrb[0].mxu0 %v1313
    %v2668 = vpop.f32.mrb[0].mxu0
    %v2669 = vadd.f32 0.0, %v2668
    %v2670 = vpop.f32.mrb[0].mxu0
    %v2671 = vpop.f32.mrb[0].mxu0
    %v2672 = vadd.f32 0.0, %v2671
    %v2673 = vpop.f32.mrb[0].mxu0
    %2674 = vmatprep.mubr.bf16.mxu0 0
    %2675 = vmatmul.mubr.bf16.gmra.mrb[0].mxu0 %v1314
    %v2676 = vpop.f32.mrb[0].mxu0
    %v2677 = vpop.f32.mrb[0].mxu0
    %v2678 = vpop.f32.mrb[0].mxu0
    %v2679 = vpop.f32.mrb[0].mxu0
    %2680 = vmatprep.mubr.bf16.mxu0 0
    %2681 = vmatmul.mubr.bf16.gmra.mrb[0].mxu0 %v1315
    %v2682 = vpop.f32.mrb[0].mxu0
    %v2683 = vpop.f32.mrb[0].mxu0
    %v2684 = vpop.f32.mrb[0].mxu0
    %v2685 = vpop.f32.mrb[0].mxu0
    %2686 = vmatprep.mubr.bf16.mxu0 0
    %2687 = vmatmul.mubr.bf16.gmra.mrb[0].mxu0 %v1316
    %v2688 = vpop.f32.mrb[0].mxu0
    %v2689 = vadd.f32 0.0, %v2688
    %v2690 = vpop.f32.mrb[0].mxu0
    %v2691 = vpop.f32.mrb[0].mxu0
    %v2692 = vadd.f32 0.0, %v2691
    %v2693 = vpop.f32.mrb[0].mxu0
    %2694 = vmatprep.mubr.bf16.mxu0 0
    %2695 = vmatmul.mubr.bf16.gmra.mrb[0].mxu0 %v1317
    %v2696 = vpop.f32.mrb[0].mxu0
    %v2697 = vadd.f32 0.0, %v2696
    %v2698 = vpop.f32.mrb[0].mxu0
    %v2699 = vpop.f32.mrb[0].mxu0
    %v2700 = vadd.f32 0.0, %v2699
    %v2701 = vpop.f32.mrb[0].mxu0
    %2702 = vmatprep.mubr.bf16.mxu0 0
    %2703 = vmatmul.mubr.bf16.gmra.mrb[0].mxu0 %v1318
    %v2704 = vpop.f32.mrb[0].mxu0
    %v2705 = vadd.f32 0.0, %v2704
    %v2706 = vpop.f32.mrb[0].mxu0
    %v2707 = vpop.f32.mrb[0].mxu0
    %v2708 = vadd.f32 0.0, %v2707
    %v2709 = vpop.f32.mrb[0].mxu0
    %2710 = vmatprep.mubr.bf16.mxu0 0
    %2711 = vmatmul.mubr.bf16.gmra.mrb[0].mxu0 %v1319
    %v2712 = vpop.f32.mrb[0].mxu0
    %v2713 = vadd.f32 0.0, %v2712
    %v2714 = vpop.f32.mrb[0].mxu0
    %v2715 = vpop.f32.mrb[0].mxu0
    %v2716 = vadd.f32 0.0, %v2715
    %v2717 = vpop.f32.mrb[0].mxu0
    %2718 = vmatprep.mubr.bf16.mxu0 0
    %2719 = vmatmul.mubr.bf16.gmra.mrb[0].mxu0 %v1320
    %v2720 = vpop.f32.mrb[0].mxu0
    %v2721 = vadd.f32 0.0, %v2720
    %v2722 = vpop.f32.mrb[0].mxu0
    %v2723 = vpop.f32.mrb[0].mxu0
    %v2724 = vadd.f32 0.0, %v2723
    %v2725 = vpop.f32.mrb[0].mxu0
    %2726 = vmatprep.mubr.bf16.mxu0 0
    %2727 = vmatmul.mubr.bf16.gmra.mrb[0].mxu0 %v1321
    %v2728 = vpop.f32.mrb[0].mxu0
    %v2729 = vpop.f32.mrb[0].mxu0
    %v2730 = vpop.f32.mrb[0].mxu0
    %v2731 = vpop.f32.mrb[0].mxu0
    %2732 = vmatprep.mubr.bf16.mxu0 0
    %2733 = vmatmul.mubr.bf16.gmra.mrb[0].mxu0 %v1322
    %v2734 = vpop.f32.mrb[0].mxu0
    %v2735 = vpop.f32.mrb[0].mxu0
    %v2736 = vpop.f32.mrb[0].mxu0
    %v2737 = vpop.f32.mrb[0].mxu0
    %2738 = vmatprep.mubr.bf16.mxu0 0
    %2739 = vmatmul.mubr.bf16.gmra.mrb[0].mxu0 %v1323
    %v2740 = vpop.f32.mrb[0].mxu0
    %v2741 = vadd.f32 0.0, %v2740
    %v2742 = vpop.f32.mrb[0].mxu0
    %v2743 = vpop.f32.mrb[0].mxu0
    %v2744 = vadd.f32 0.0, %v2743
    %v2745 = vpop.f32.mrb[0].mxu0
    %2746 = vmatprep.mubr.bf16.mxu0 0
    %2747 = vmatmul.mubr.bf16.gmra.mrb[0].mxu0 %v1324
    %v2748 = vpop.f32.mrb[0].mxu0
    %v2749 = vadd.f32 0.0, %v2748
    %v2750 = vpop.f32.mrb[0].mxu0
    %v2751 = vpop.f32.mrb[0].mxu0
    %v2752 = vadd.f32 0.0, %v2751
    %v2753 = vpop.f32.mrb[0].mxu0
    %2754 = vmatprep.mubr.bf16.mxu0 0
    %2755 = vmatmul.mubr.bf16.gmra.mrb[0].mxu0 %v1325
    %v2756 = vpop.f32.mrb[0].mxu0
    %v2757 = vadd.f32 0.0, %v2756
    %v2758 = vpop.f32.mrb[0].mxu0
    %v2759 = vpop.f32.mrb[0].mxu0
    %v2760 = vadd.f32 0.0, %v2759
    %v2761 = vpop.f32.mrb[0].mxu0
    %2762 = vmatprep.mubr.bf16.mxu0 0
    %2763 = vmatmul.mubr.bf16.gmra.mrb[0].mxu0 %v1326
    %v2764 = vpop.f32.mrb[0].mxu0
    %v2765 = vadd.f32 0.0, %v2764
    %v2766 = vpop.f32.mrb[0].mxu0
    %v2767 = vpop.f32.mrb[0].mxu0
    %v2768 = vadd.f32 0.0, %v2767
    %v2769 = vpop.f32.mrb[0].mxu0
    %2770 = vmatprep.mubr.bf16.mxu0 0
    %2771 = vmatmul.mubr.bf16.gmra.mrb[0].mxu0 %v1327
    %v2772 = vpop.f32.mrb[0].mxu0
    %v2773 = vadd.f32 0.0, %v2772
    %v2774 = vpop.f32.mrb[0].mxu0
    %v2775 = vpop.f32.mrb[0].mxu0
    %v2776 = vadd.f32 0.0, %v2775
    %v2777 = vpop.f32.mrb[0].mxu0
    %2778 = vmatprep.mubr.bf16.mxu0 0
    %2779 = vmatmul.mubr.bf16.gmra.mrb[0].mxu0 %v1328
    %v2780 = vpop.f32.mrb[0].mxu0
    %v2781 = vpop.f32.mrb[0].mxu0
    %v2782 = vpop.f32.mrb[0].mxu0
    %v2783 = vpop.f32.mrb[0].mxu0
    %2784 = vmatprep.mubr.bf16.mxu0 0
    %2785 = vmatmul.mubr.bf16.gmra.mrb[0].mxu0 %v1329
    %v2786 = vpop.f32.mrb[0].mxu0
    %v2787 = vpop.f32.mrb[0].mxu0
    %v2788 = vpop.f32.mrb[0].mxu0
    %v2789 = vpop.f32.mrb[0].mxu0
    %2790 = vmatprep.mubr.bf16.mxu0 0
    %2791 = vmatmul.mubr.bf16.gmra.mrb[0].mxu0 %v1330
    %v2792 = vpop.f32.mrb[0].mxu0
    %v2793 = vadd.f32 0.0, %v2792
    %v2794 = vpop.f32.mrb[0].mxu0
    %v2795 = vpop.f32.mrb[0].mxu0
    %v2796 = vadd.f32 0.0, %v2795
    %v2797 = vpop.f32.mrb[0].mxu0
    %2798 = vmatprep.mubr.bf16.mxu0 0
    %2799 = vmatmul.mubr.bf16.gmra.mrb[0].mxu0 %v1331
    %v2800 = vpop.f32.mrb[0].mxu0
    %v2801 = vadd.f32 0.0, %v2800
    %v2802 = vpop.f32.mrb[0].mxu0
    %v2803 = vpop.f32.mrb[0].mxu0
    %v2804 = vadd.f32 0.0, %v2803
    %v2805 = vpop.f32.mrb[0].mxu0
    %2806 = vmatprep.mubr.bf16.mxu0 0
    %2807 = vmatmul.mubr.bf16.gmra.mrb[0].mxu0 %v1332
    %v2808 = vpop.f32.mrb[0].mxu0
    %v2809 = vadd.f32 0.0, %v2808
    %v2810 = vpop.f32.mrb[0].mxu0
    %v2811 = vpop.f32.mrb[0].mxu0
    %v2812 = vadd.f32 0.0, %v2811
    %v2813 = vpop.f32.mrb[0].mxu0
    %2814 = vmatprep.mubr.bf16.mxu0 0
    %2815 = vmatmul.mubr.bf16.gmra.mrb[0].mxu0 %v1333
    %v2816 = vpop.f32.mrb[0].mxu0
    %v2817 = vadd.f32 0.0, %v2816
    %v2818 = vpop.f32.mrb[0].mxu0
    %v2819 = vpop.f32.mrb[0].mxu0
    %v2820 = vadd.f32 0.0, %v2819
    %v2821 = vpop.f32.mrb[0].mxu0
    %2822 = vmatprep.mubr.bf16.mxu0 0
    %2823 = vmatmul.mubr.bf16.gmra.mrb[0].mxu0 %v1334
    %v2824 = vpop.f32.mrb[0].mxu0
    %v2825 = vadd.f32 0.0, %v2824
    %v2826 = vpop.f32.mrb[0].mxu0
    %v2827 = vpop.f32.mrb[0].mxu0
    %v2828 = vadd.f32 0.0, %v2827
    %v2829 = vpop.f32.mrb[0].mxu0
    %2830 = vmatprep.mubr.bf16.mxu0 0
    %2831 = vmatmul.mubr.bf16.gmra.mrb[0].mxu0 %v1335
    %v2832 = vpop.f32.mrb[0].mxu0
    %v2833 = vpop.f32.mrb[0].mxu0
    %v2834 = vpop.f32.mrb[0].mxu0
    %v2835 = vpop.f32.mrb[0].mxu0
    %2836 = vmatprep.mubr.bf16.mxu0 0
    %2837 = vmatmul.mubr.bf16.gmra.mrb[0].mxu0 %v1336
    %v2838 = vpop.f32.mrb[0].mxu0
    %v2839 = vpop.f32.mrb[0].mxu0
    %v2840 = vpop.f32.mrb[0].mxu0
    %v2841 = vpop.f32.mrb[0].mxu0
    %2842 = vdwg.mxu0
    %v2859 = vunpack.c.l.b16 %v2469
    %v2860 = vunpack.c.l.b16 %v2470
    %v2861 = vunpack.c.l.b16 %v2471
    %v2862 = vunpack.c.l.b16 %v2472
    %v2863 = vunpack.c.l.b16 %v2473
    %v2864 = vunpack.c.l.b16 %v2474
    %v2865 = vunpack.c.l.b16 %v2475
    %v2866 = vunpack.c.l.b16 %v2476
    %v2867 = vunpack.c.l.b16 %v2477
    %v2868 = vunpack.c.l.b16 %v2478
    %v2869 = vunpack.c.l.b16 %v2479
    %v2870 = vunpack.c.l.b16 %v2480
    %v2871 = vunpack.c.l.b16 %v2481
    %v2872 = vunpack.c.l.b16 %v2482
    %v2873 = vunpack.c.l.b16 %v2483
    %v2874 = vunpack.c.l.b16 %v2484
    %v2875 = vpack.c.b16 %v2860, %v2859
    %v2876 = vpack.c.b16 %v2862, %v2861
    %v2877 = vpack.c.b16 %v2864, %v2863
    %v2878 = vpack.c.b16 %v2866, %v2865
    %v2879 = vpack.c.b16 %v2868, %v2867
    %v2880 = vpack.c.b16 %v2870, %v2869
    %v2881 = vpack.c.b16 %v2872, %v2871
    %v2882 = vpack.c.b16 %v2874, %v2873
    %2891 = vmatprep.subr.bf16.mxu0 0
    %2892 = vmatpush1.bf16.msra.mxu0 %v2875
    %2893 = vmatprep.subr.bf16.mxu0 0
    %2894 = vmatpush1.bf16.msra.mxu0 %v2876
    %2895 = vmatprep.subr.bf16.mxu0 0
    %2896 = vmatpush1.bf16.msra.mxu0 %v2877
    %2897 = vmatprep.subr.bf16.mxu0 0
    %2898 = vmatpush1.bf16.msra.mxu0 %v2878
    %2899 = vmatprep.subr.bf16.mxu0 0
    %2900 = vmatpush1.bf16.msra.mxu0 %v2879
    %2901 = vmatprep.subr.bf16.mxu0 0
    %2902 = vmatpush1.bf16.msra.mxu0 %v2880
    %2903 = vmatprep.subr.bf16.mxu0 0
    %2904 = vmatpush1.bf16.msra.mxu0 %v2881
    %2905 = vmatprep.subr.bf16.mxu0 0
    %2906 = vmatpush1.bf16.msra.mxu0 %v2882
    %2907 = vmatprep.subr.bf16.mxu0 0
    %2908 = vmatpush1.bf16.msra.mxu0 0
    %2909 = vmatprep.subr.bf16.mxu0 0
    %2910 = vmatpush1.bf16.msra.mxu0 0
    %2911 = vmatprep.subr.bf16.mxu0 0
    %2912 = vmatpush1.bf16.msra.mxu0 0
    %2913 = vmatprep.subr.bf16.mxu0 0
    %2914 = vmatpush1.bf16.msra.mxu0 0
    %2915 = vmatprep.subr.bf16.mxu0 0
    %2916 = vmatpush1.bf16.msra.mxu0 0
    %2917 = vmatprep.subr.bf16.mxu0 0
    %2918 = vmatpush1.bf16.msra.mxu0 0
    %2919 = vmatprep.subr.bf16.mxu0 0
    %2920 = vmatpush1.bf16.msra.mxu0 0
    %2921 = vmatprep.subr.bf16.mxu0 0
    %2922 = vmatpush1.bf16.msra.mxu0 0
    %2923 = vmatprep.mubr.bf16.mxu0 0
    %2924 = vmatmul.mubr.bf16.gmra.mrb[0].mxu0 %v1301
    %v2925 = vpop.f32.mrb[0].mxu0
    %v2926 = vadd.f32 %v2585, %v2925
    %v2927 = vpop.f32.mrb[0].mxu0
    %v2928 = vpop.f32.mrb[0].mxu0
    %v2929 = vadd.f32 %v2588, %v2928
    %v2930 = vpop.f32.mrb[0].mxu0
    %2931 = vmatprep.mubr.bf16.mxu0 0
    %2932 = vmatmul.mubr.bf16.gmra.mrb[0].mxu0 %v1302
    %v2933 = vpop.f32.mrb[0].mxu0
    %v2934 = vadd.f32 %v2593, %v2933
    %v2935 = vpop.f32.mrb[0].mxu0
    %v2936 = vpop.f32.mrb[0].mxu0
    %v2937 = vadd.f32 %v2596, %v2936
    %v2938 = vpop.f32.mrb[0].mxu0
    %2939 = vmatprep.mubr.bf16.mxu0 0
    %2940 = vmatmul.mubr.bf16.gmra.mrb[0].mxu0 %v1303
    %v2941 = vpop.f32.mrb[0].mxu0
    %v2942 = vadd.f32 %v2601, %v2941
    %v2943 = vpop.f32.mrb[0].mxu0
    %v2944 = vpop.f32.mrb[0].mxu0
    %v2945 = vadd.f32 %v2604, %v2944
    %v2946 = vpop.f32.mrb[0].mxu0
    %2947 = vmatprep.mubr.bf16.mxu0 0
    %2948 = vmatmul.mubr.bf16.gmra.mrb[0].mxu0 %v1304
    %v2949 = vpop.f32.mrb[0].mxu0
    %v2950 = vadd.f32 %v2609, %v2949
    %v2951 = vpop.f32.mrb[0].mxu0
    %v2952 = vpop.f32.mrb[0].mxu0
    %v2953 = vadd.f32 %v2612, %v2952
    %v2954 = vpop.f32.mrb[0].mxu0
    %2955 = vmatprep.mubr.bf16.mxu0 0
    %2956 = vmatmul.mubr.bf16.gmra.mrb[0].mxu0 %v1305
    %v2957 = vpop.f32.mrb[0].mxu0
    %v2958 = vadd.f32 %v2617, %v2957
    %v2959 = vpop.f32.mrb[0].mxu0
    %v2960 = vpop.f32.mrb[0].mxu0
    %v2961 = vadd.f32 %v2620, %v2960
    %v2962 = vpop.f32.mrb[0].mxu0
    %2963 = vmatprep.mubr.bf16.mxu0 0
    %2964 = vmatmul.mubr.bf16.gmra.mrb[0].mxu0 %v1306
    %v2965 = vpop.f32.mrb[0].mxu0
    %v2966 = vpop.f32.mrb[0].mxu0
    %v2967 = vpop.f32.mrb[0].mxu0
    %v2968 = vpop.f32.mrb[0].mxu0
    %2969 = vmatprep.mubr.bf16.mxu0 0
    %2970 = vmatmul.mubr.bf16.gmra.mrb[0].mxu0 %v1307
    %v2971 = vpop.f32.mrb[0].mxu0
    %v2972 = vpop.f32.mrb[0].mxu0
    %v2973 = vpop.f32.mrb[0].mxu0
    %v2974 = vpop.f32.mrb[0].mxu0
    %2975 = vmatprep.mubr.bf16.mxu0 0
    %2976 = vmatmul.mubr.bf16.gmra.mrb[0].mxu0 %v1308
    %v2977 = vpop.f32.mrb[0].mxu0
    %v2978 = vadd.f32 %v2637, %v2977
    %v2979 = vpop.f32.mrb[0].mxu0
    %v2980 = vpop.f32.mrb[0].mxu0
    %v2981 = vadd.f32 %v2640, %v2980
    %v2982 = vpop.f32.mrb[0].mxu0
    %2983 = vmatprep.mubr.bf16.mxu0 0
    %2984 = vmatmul.mubr.bf16.gmra.mrb[0].mxu0 %v1309
    %v2985 = vpop.f32.mrb[0].mxu0
    %v2986 = vadd.f32 %v2645, %v2985
    %v2987 = vpop.f32.mrb[0].mxu0
    %v2988 = vpop.f32.mrb[0].mxu0
    %v2989 = vadd.f32 %v2648, %v2988
    %v2990 = vpop.f32.mrb[0].mxu0
    %2991 = vmatprep.mubr.bf16.mxu0 0
    %2992 = vmatmul.mubr.bf16.gmra.mrb[0].mxu0 %v1310
    %v2993 = vpop.f32.mrb[0].mxu0
    %v2994 = vadd.f32 %v2653, %v2993
    %v2995 = vpop.f32.mrb[0].mxu0
    %v2996 = vpop.f32.mrb[0].mxu0
    %v2997 = vadd.f32 %v2656, %v2996
    %v2998 = vpop.f32.mrb[0].mxu0
    %2999 = vmatprep.mubr.bf16.mxu0 0
    %3000 = vmatmul.mubr.bf16.gmra.mrb[0].mxu0 %v1311
    %v3001 = vpop.f32.mrb[0].mxu0
    %v3002 = vadd.f32 %v2661, %v3001
    %v3003 = vpop.f32.mrb[0].mxu0
    %v3004 = vpop.f32.mrb[0].mxu0
    %v3005 = vadd.f32 %v2664, %v3004
    %v3006 = vpop.f32.mrb[0].mxu0
    %3007 = vmatprep.mubr.bf16.mxu0 0
    %3008 = vmatmul.mubr.bf16.gmra.mrb[0].mxu0 %v1312
    %v3009 = vpop.f32.mrb[0].mxu0
    %v3010 = vadd.f32 %v2669, %v3009
    %v3011 = vpop.f32.mrb[0].mxu0
    %v3012 = vpop.f32.mrb[0].mxu0
    %v3013 = vadd.f32 %v2672, %v3012
    %v3014 = vpop.f32.mrb[0].mxu0
    %3015 = vmatprep.mubr.bf16.mxu0 0
    %3016 = vmatmul.mubr.bf16.gmra.mrb[0].mxu0 %v1313
    %v3017 = vpop.f32.mrb[0].mxu0
    %v3018 = vpop.f32.mrb[0].mxu0
    %v3019 = vpop.f32.mrb[0].mxu0
    %v3020 = vpop.f32.mrb[0].mxu0
    %3021 = vmatprep.mubr.bf16.mxu0 0
    %3022 = vmatmul.mubr.bf16.gmra.mrb[0].mxu0 %v1314
    %v3023 = vpop.f32.mrb[0].mxu0
    %v3024 = vpop.f32.mrb[0].mxu0
    %v3025 = vpop.f32.mrb[0].mxu0
    %v3026 = vpop.f32.mrb[0].mxu0
    %3027 = vmatprep.mubr.bf16.mxu0 0
    %3028 = vmatmul.mubr.bf16.gmra.mrb[0].mxu0 %v1315
    %v3029 = vpop.f32.mrb[0].mxu0
    %v3030 = vadd.f32 %v2689, %v3029
    %v3031 = vpop.f32.mrb[0].mxu0
    %v3032 = vpop.f32.mrb[0].mxu0
    %v3033 = vadd.f32 %v2692, %v3032
    %v3034 = vpop.f32.mrb[0].mxu0
    %3035 = vmatprep.mubr.bf16.mxu0 0
    %3036 = vmatmul.mubr.bf16.gmra.mrb[0].mxu0 %v1316
    %v3037 = vpop.f32.mrb[0].mxu0
    %v3038 = vadd.f32 %v2697, %v3037
    %v3039 = vpop.f32.mrb[0].mxu0
    %v3040 = vpop.f32.mrb[0].mxu0
    %v3041 = vadd.f32 %v2700, %v3040
    %v3042 = vpop.f32.mrb[0].mxu0
    %3043 = vmatprep.mubr.bf16.mxu0 0
    %3044 = vmatmul.mubr.bf16.gmra.mrb[0].mxu0 %v1317
    %v3045 = vpop.f32.mrb[0].mxu0
    %v3046 = vadd.f32 %v2705, %v3045
    %v3047 = vpop.f32.mrb[0].mxu0
    %v3048 = vpop.f32.mrb[0].mxu0
    %v3049 = vadd.f32 %v2708, %v3048
    %v3050 = vpop.f32.mrb[0].mxu0
    %3051 = vmatprep.mubr.bf16.mxu0 0
    %3052 = vmatmul.mubr.bf16.gmra.mrb[0].mxu0 %v1318
    %v3053 = vpop.f32.mrb[0].mxu0
    %v3054 = vadd.f32 %v2713, %v3053
    %v3055 = vpop.f32.mrb[0].mxu0
    %v3056 = vpop.f32.mrb[0].mxu0
    %v3057 = vadd.f32 %v2716, %v3056
    %v3058 = vpop.f32.mrb[0].mxu0
    %3059 = vmatprep.mubr.bf16.mxu0 0
    %3060 = vmatmul.mubr.bf16.gmra.mrb[0].mxu0 %v1319
    %v3061 = vpop.f32.mrb[0].mxu0
    %v3062 = vadd.f32 %v2721, %v3061
    %v3063 = vpop.f32.mrb[0].mxu0
    %v3064 = vpop.f32.mrb[0].mxu0
    %v3065 = vadd.f32 %v2724, %v3064
    %v3066 = vpop.f32.mrb[0].mxu0
    %3067 = vmatprep.mubr.bf16.mxu0 0
    %3068 = vmatmul.mubr.bf16.gmra.mrb[0].mxu0 %v1320
    %v3069 = vpop.f32.mrb[0].mxu0
    %v3070 = vpop.f32.mrb[0].mxu0
    %v3071 = vpop.f32.mrb[0].mxu0
    %v3072 = vpop.f32.mrb[0].mxu0
    %3073 = vmatprep.mubr.bf16.mxu0 0
    %3074 = vmatmul.mubr.bf16.gmra.mrb[0].mxu0 %v1321
    %v3075 = vpop.f32.mrb[0].mxu0
    %v3076 = vpop.f32.mrb[0].mxu0
    %v3077 = vpop.f32.mrb[0].mxu0
    %v3078 = vpop.f32.mrb[0].mxu0
    %3079 = vmatprep.mubr.bf16.mxu0 0
    %3080 = vmatmul.mubr.bf16.gmra.mrb[0].mxu0 %v1322
    %v3081 = vpop.f32.mrb[0].mxu0
    %v3082 = vadd.f32 %v2741, %v3081
    %v3083 = vpop.f32.mrb[0].mxu0
    %v3084 = vpop.f32.mrb[0].mxu0
    %v3085 = vadd.f32 %v2744, %v3084
    %v3086 = vpop.f32.mrb[0].mxu0
    %3087 = vmatprep.mubr.bf16.mxu0 0
    %3088 = vmatmul.mubr.bf16.gmra.mrb[0].mxu0 %v1323
    %v3089 = vpop.f32.mrb[0].mxu0
    %v3090 = vadd.f32 %v2749, %v3089
    %v3091 = vpop.f32.mrb[0].mxu0
    %v3092 = vpop.f32.mrb[0].mxu0
    %v3093 = vadd.f32 %v2752, %v3092
    %v3094 = vpop.f32.mrb[0].mxu0
    %3095 = vmatprep.mubr.bf16.mxu0 0
    %3096 = vmatmul.mubr.bf16.gmra.mrb[0].mxu0 %v1324
    %v3097 = vpop.f32.mrb[0].mxu0
    %v3098 = vadd.f32 %v2757, %v3097
    %v3099 = vpop.f32.mrb[0].mxu0
    %v3100 = vpop.f32.mrb[0].mxu0
    %v3101 = vadd.f32 %v2760, %v3100
    %v3102 = vpop.f32.mrb[0].mxu0
    %3103 = vmatprep.mubr.bf16.mxu0 0
    %3104 = vmatmul.mubr.bf16.gmra.mrb[0].mxu0 %v1325
    %v3105 = vpop.f32.mrb[0].mxu0
    %v3106 = vadd.f32 %v2765, %v3105
    %v3107 = vpop.f32.mrb[0].mxu0
    %v3108 = vpop.f32.mrb[0].mxu0
    %v3109 = vadd.f32 %v2768, %v3108
    %v3110 = vpop.f32.mrb[0].mxu0
    %3111 = vmatprep.mubr.bf16.mxu0 0
    %3112 = vmatmul.mubr.bf16.gmra.mrb[0].mxu0 %v1326
    %v3113 = vpop.f32.mrb[0].mxu0
    %v3114 = vadd.f32 %v2773, %v3113
    %v3115 = vpop.f32.mrb[0].mxu0
    %v3116 = vpop.f32.mrb[0].mxu0
    %v3117 = vadd.f32 %v2776, %v3116
    %v3118 = vpop.f32.mrb[0].mxu0
    %3119 = vmatprep.mubr.bf16.mxu0 0
    %3120 = vmatmul.mubr.bf16.gmra.mrb[0].mxu0 %v1327
    %v3121 = vpop.f32.mrb[0].mxu0
    %v3122 = vpop.f32.mrb[0].mxu0
    %v3123 = vpop.f32.mrb[0].mxu0
    %v3124 = vpop.f32.mrb[0].mxu0
    %3125 = vmatprep.mubr.bf16.mxu0 0
    %3126 = vmatmul.mubr.bf16.gmra.mrb[0].mxu0 %v1328
    %v3127 = vpop.f32.mrb[0].mxu0
    %v3128 = vpop.f32.mrb[0].mxu0
    %v3129 = vpop.f32.mrb[0].mxu0
    %v3130 = vpop.f32.mrb[0].mxu0
    %3131 = vmatprep.mubr.bf16.mxu0 0
    %3132 = vmatmul.mubr.bf16.gmra.mrb[0].mxu0 %v1329
    %v3133 = vpop.f32.mrb[0].mxu0
    %v3134 = vadd.f32 %v2793, %v3133
    %v3135 = vpop.f32.mrb[0].mxu0
    %v3136 = vpop.f32.mrb[0].mxu0
    %v3137 = vadd.f32 %v2796, %v3136
    %v3138 = vpop.f32.mrb[0].mxu0
    %3139 = vmatprep.mubr.bf16.mxu0 0
    %3140 = vmatmul.mubr.bf16.gmra.mrb[0].mxu0 %v1330
    %v3141 = vpop.f32.mrb[0].mxu0
    %v3142 = vadd.f32 %v2801, %v3141
    %v3143 = vpop.f32.mrb[0].mxu0
    %v3144 = vpop.f32.mrb[0].mxu0
    %v3145 = vadd.f32 %v2804, %v3144
    %v3146 = vpop.f32.mrb[0].mxu0
    %3147 = vmatprep.mubr.bf16.mxu0 0
    %3148 = vmatmul.mubr.bf16.gmra.mrb[0].mxu0 %v1331
    %v3149 = vpop.f32.mrb[0].mxu0
    %v3150 = vadd.f32 %v2809, %v3149
    %v3151 = vpop.f32.mrb[0].mxu0
    %v3152 = vpop.f32.mrb[0].mxu0
    %v3153 = vadd.f32 %v2812, %v3152
    %v3154 = vpop.f32.mrb[0].mxu0
    %3155 = vmatprep.mubr.bf16.mxu0 0
    %3156 = vmatmul.mubr.bf16.gmra.mrb[0].mxu0 %v1332
    %v3157 = vpop.f32.mrb[0].mxu0
    %v3158 = vadd.f32 %v2817, %v3157
    %v3159 = vpop.f32.mrb[0].mxu0
    %v3160 = vpop.f32.mrb[0].mxu0
    %v3161 = vadd.f32 %v2820, %v3160
    %v3162 = vpop.f32.mrb[0].mxu0
    %3163 = vmatprep.mubr.bf16.mxu0 0
    %3164 = vmatmul.mubr.bf16.gmra.mrb[0].mxu0 %v1333
    %v3165 = vpop.f32.mrb[0].mxu0
    %v3166 = vadd.f32 %v2825, %v3165
    %v3167 = vpop.f32.mrb[0].mxu0
    %v3168 = vpop.f32.mrb[0].mxu0
    %v3169 = vadd.f32 %v2828, %v3168
    %v3170 = vpop.f32.mrb[0].mxu0
    %3171 = vmatprep.mubr.bf16.mxu0 0
    %3172 = vmatmul.mubr.bf16.gmra.mrb[0].mxu0 %v1334
    %v3173 = vpop.f32.mrb[0].mxu0
    %v3174 = vpop.f32.mrb[0].mxu0
    %v3175 = vpop.f32.mrb[0].mxu0
    %v3176 = vpop.f32.mrb[0].mxu0
    %3177 = vmatprep.mubr.bf16.mxu0 0
    %3178 = vmatmul.mubr.bf16.gmra.mrb[0].mxu0 %v1335
    %v3179 = vpop.f32.mrb[0].mxu0
    %v3180 = vpop.f32.mrb[0].mxu0
    %v3181 = vpop.f32.mrb[0].mxu0
    %v3182 = vpop.f32.mrb[0].mxu0
    %3183 = vdwg.mxu0
    %s3184 = scalar_lea.vmem [#allocation11], 320
    %v3185 = vld [vmem:[%s3184] sm:$0xf]
    %v3186 = vld [vmem:[%s3184 + $0x4] sm:$0xf]
    %v3187 = vld [vmem:[%s3184 + $0x8] sm:$0xf]
    %v3188 = vld [vmem:[%s3184 + $0xc] sm:$0xf]
    %v3189 = vld [vmem:[%s3184 + $0x10] sm:$0xf]
    %v3190 = vld [vmem:[%s3184 + $0x14] sm:$0xf]
    %v3191 = vld [vmem:[%s3184 + $0x18] sm:$0xf]
    %v3192 = vld [vmem:[%s3184 + $0x1c] sm:$0xf]
    %v3193 = vld [vmem:[%s3184 + $0x20] sm:$0xf]
    %v3194 = vld [vmem:[%s3184 + $0x24] sm:$0xf]
    %v3195 = vld [vmem:[%s3184 + $0x28] sm:$0xf]
    %v3196 = vld [vmem:[%s3184 + $0x2c] sm:$0xf]
    %v3197 = vld [vmem:[%s3184 + $0x30] sm:$0xf]
    %v3198 = vld [vmem:[%s3184 + $0x34] sm:$0xf]
    %v3199 = vld [vmem:[%s3184 + $0x38] sm:$0xf]
    %v3200 = vld [vmem:[%s3184 + $0x3c] sm:$0xf]
    %v3217 = vunpack.c.l.b16 %v3185
    %v3218 = vunpack.c.l.b16 %v3186
    %v3219 = vunpack.c.l.b16 %v3187
    %v3220 = vunpack.c.l.b16 %v3188
    %v3221 = vunpack.c.l.b16 %v3189
    %v3222 = vunpack.c.l.b16 %v3190
    %v3223 = vunpack.c.l.b16 %v3191
    %v3224 = vunpack.c.l.b16 %v3192
    %v3225 = vunpack.c.l.b16 %v3193
    %v3226 = vunpack.c.l.b16 %v3194
    %v3227 = vunpack.c.l.b16 %v3195
    %v3228 = vunpack.c.l.b16 %v3196
    %v3229 = vunpack.c.l.b16 %v3197
    %v3230 = vunpack.c.l.b16 %v3198
    %v3231 = vunpack.c.l.b16 %v3199
    %v3232 = vunpack.c.l.b16 %v3200
    %v3233 = vpack.c.b16 %v3218, %v3217
    %v3234 = vpack.c.b16 %v3220, %v3219
    %v3235 = vpack.c.b16 %v3222, %v3221
    %v3236 = vpack.c.b16 %v3224, %v3223
    %v3237 = vpack.c.b16 %v3226, %v3225
    %v3238 = vpack.c.b16 %v3228, %v3227
    %v3239 = vpack.c.b16 %v3230, %v3229
    %v3240 = vpack.c.b16 %v3232, %v3231
    %3249 = vmatprep.subr.bf16.mxu0 0
    %3250 = vmatpush1.bf16.msra.mxu0 %v3233
    %3251 = vmatprep.subr.bf16.mxu0 0
    %3252 = vmatpush1.bf16.msra.mxu0 %v3234
    %3253 = vmatprep.subr.bf16.mxu0 0
    %3254 = vmatpush1.bf16.msra.mxu0 %v3235
    %3255 = vmatprep.subr.bf16.mxu0 0
    %3256 = vmatpush1.bf16.msra.mxu0 %v3236
    %3257 = vmatprep.subr.bf16.mxu0 0
    %3258 = vmatpush1.bf16.msra.mxu0 %v3237
    %3259 = vmatprep.subr.bf16.mxu0 0
    %3260 = vmatpush1.bf16.msra.mxu0 %v3238
    %3261 = vmatprep.subr.bf16.mxu0 0
    %3262 = vmatpush1.bf16.msra.mxu0 %v3239
    %3263 = vmatprep.subr.bf16.mxu0 0
    %3264 = vmatpush1.bf16.msra.mxu0 %v3240
    %3265 = vmatprep.subr.bf16.mxu0 0
    %3266 = vmatpush1.bf16.msra.mxu0 0
    %3267 = vmatprep.subr.bf16.mxu0 0
    %3268 = vmatpush1.bf16.msra.mxu0 0
    %3269 = vmatprep.subr.bf16.mxu0 0
    %3270 = vmatpush1.bf16.msra.mxu0 0
    %3271 = vmatprep.subr.bf16.mxu0 0
    %3272 = vmatpush1.bf16.msra.mxu0 0
    %3273 = vmatprep.subr.bf16.mxu0 0
    %3274 = vmatpush1.bf16.msra.mxu0 0
    %3275 = vmatprep.subr.bf16.mxu0 0
    %3276 = vmatpush1.bf16.msra.mxu0 0
    %3277 = vmatprep.subr.bf16.mxu0 0
    %3278 = vmatpush1.bf16.msra.mxu0 0
    %3279 = vmatprep.subr.bf16.mxu0 0
    %3280 = vmatpush1.bf16.msra.mxu0 0
    %3281 = vmatprep.mubr.bf16.mxu0 0
    %3282 = vmatmul.mubr.bf16.gmra.mrb[0].mxu0 %v1303
    %v3283 = vpop.f32.mrb[0].mxu0
    %v3284 = vadd.f32 0.0, %v3283
    %v3285 = vpop.f32.mrb[0].mxu0
    %v3286 = vpop.f32.mrb[0].mxu0
    %v3287 = vadd.f32 0.0, %v3286
    %v3288 = vpop.f32.mrb[0].mxu0
    %3289 = vmatprep.mubr.bf16.mxu0 0
    %3290 = vmatmul.mubr.bf16.gmra.mrb[0].mxu0 %v1304
    %v3291 = vpop.f32.mrb[0].mxu0
    %v3292 = vadd.f32 0.0, %v3291
    %v3293 = vpop.f32.mrb[0].mxu0
    %v3294 = vpop.f32.mrb[0].mxu0
    %v3295 = vadd.f32 0.0, %v3294
    %v3296 = vpop.f32.mrb[0].mxu0
    %3297 = vmatprep.mubr.bf16.mxu0 0
    %3298 = vmatmul.mubr.bf16.gmra.mrb[0].mxu0 %v1305
    %v3299 = vpop.f32.mrb[0].mxu0
    %v3300 = vadd.f32 0.0, %v3299
    %v3301 = vpop.f32.mrb[0].mxu0
    %v3302 = vpop.f32.mrb[0].mxu0
    %v3303 = vadd.f32 0.0, %v3302
    %v3304 = vpop.f32.mrb[0].mxu0
    %3305 = vmatprep.mubr.bf16.mxu0 0
    %3306 = vmatmul.mubr.bf16.gmra.mrb[0].mxu0 %v1306
    %v3307 = vpop.f32.mrb[0].mxu0
    %v3308 = vadd.f32 0.0, %v3307
    %v3309 = vpop.f32.mrb[0].mxu0
    %v3310 = vpop.f32.mrb[0].mxu0
    %v3311 = vadd.f32 0.0, %v3310
    %v3312 = vpop.f32.mrb[0].mxu0
    %3313 = vmatprep.mubr.bf16.mxu0 0
    %3314 = vmatmul.mubr.bf16.gmra.mrb[0].mxu0 %v1307
    %v3315 = vpop.f32.mrb[0].mxu0
    %v3316 = vadd.f32 0.0, %v3315
    %v3317 = vpop.f32.mrb[0].mxu0
    %v3318 = vpop.f32.mrb[0].mxu0
    %v3319 = vadd.f32 0.0, %v3318
    %v3320 = vpop.f32.mrb[0].mxu0
    %3321 = vmatprep.mubr.bf16.mxu0 0
    %3322 = vmatmul.mubr.bf16.gmra.mrb[0].mxu0 %v1308
    %v3323 = vpop.f32.mrb[0].mxu0
    %v3324 = vpop.f32.mrb[0].mxu0
    %v3325 = vpop.f32.mrb[0].mxu0
    %v3326 = vpop.f32.mrb[0].mxu0
    %3327 = vmatprep.mubr.bf16.mxu0 0
    %3328 = vmatmul.mubr.bf16.gmra.mrb[0].mxu0 %v1309
    %v3329 = vpop.f32.mrb[0].mxu0
    %v3330 = vpop.f32.mrb[0].mxu0
    %v3331 = vpop.f32.mrb[0].mxu0
    %v3332 = vpop.f32.mrb[0].mxu0
    %3333 = vmatprep.mubr.bf16.mxu0 0
    %3334 = vmatmul.mubr.bf16.gmra.mrb[0].mxu0 %v1310
    %v3335 = vpop.f32.mrb[0].mxu0
    %v3336 = vadd.f32 0.0, %v3335
    %v3337 = vpop.f32.mrb[0].mxu0
    %v3338 = vpop.f32.mrb[0].mxu0
    %v3339 = vadd.f32 0.0, %v3338
    %v3340 = vpop.f32.mrb[0].mxu0
    %3341 = vmatprep.mubr.bf16.mxu0 0
    %3342 = vmatmul.mubr.bf16.gmra.mrb[0].mxu0 %v1311
    %v3343 = vpop.f32.mrb[0].mxu0
    %v3344 = vadd.f32 0.0, %v3343
    %v3345 = vpop.f32.mrb[0].mxu0
    %v3346 = vpop.f32.mrb[0].mxu0
    %v3347 = vadd.f32 0.0, %v3346
    %v3348 = vpop.f32.mrb[0].mxu0
    %3349 = vmatprep.mubr.bf16.mxu0 0
    %3350 = vmatmul.mubr.bf16.gmra.mrb[0].mxu0 %v1312
    %v3351 = vpop.f32.mrb[0].mxu0
    %v3352 = vadd.f32 0.0, %v3351
    %v3353 = vpop.f32.mrb[0].mxu0
    %v3354 = vpop.f32.mrb[0].mxu0
    %v3355 = vadd.f32 0.0, %v3354
    %v3356 = vpop.f32.mrb[0].mxu0
    %3357 = vmatprep.mubr.bf16.mxu0 0
    %3358 = vmatmul.mubr.bf16.gmra.mrb[0].mxu0 %v1313
    %v3359 = vpop.f32.mrb[0].mxu0
    %v3360 = vadd.f32 0.0, %v3359
    %v3361 = vpop.f32.mrb[0].mxu0
    %v3362 = vpop.f32.mrb[0].mxu0
    %v3363 = vadd.f32 0.0, %v3362
    %v3364 = vpop.f32.mrb[0].mxu0
    %3365 = vmatprep.mubr.bf16.mxu0 0
    %3366 = vmatmul.mubr.bf16.gmra.mrb[0].mxu0 %v1314
    %v3367 = vpop.f32.mrb[0].mxu0
    %v3368 = vadd.f32 0.0, %v3367
    %v3369 = vpop.f32.mrb[0].mxu0
    %v3370 = vpop.f32.mrb[0].mxu0
    %v3371 = vadd.f32 0.0, %v3370
    %v3372 = vpop.f32.mrb[0].mxu0
    %3373 = vmatprep.mubr.bf16.mxu0 0
    %3374 = vmatmul.mubr.bf16.gmra.mrb[0].mxu0 %v1315
    %v3375 = vpop.f32.mrb[0].mxu0
    %v3376 = vpop.f32.mrb[0].mxu0
    %v3377 = vpop.f32.mrb[0].mxu0
    %v3378 = vpop.f32.mrb[0].mxu0
    %3379 = vmatprep.mubr.bf16.mxu0 0
    %3380 = vmatmul.mubr.bf16.gmra.mrb[0].mxu0 %v1316
    %v3381 = vpop.f32.mrb[0].mxu0
    %v3382 = vpop.f32.mrb[0].mxu0
    %v3383 = vpop.f32.mrb[0].mxu0
    %v3384 = vpop.f32.mrb[0].mxu0
    %3385 = vmatprep.mubr.bf16.mxu0 0
    %3386 = vmatmul.mubr.bf16.gmra.mrb[0].mxu0 %v1317
    %v3387 = vpop.f32.mrb[0].mxu0
    %v3388 = vadd.f32 0.0, %v3387
    %v3389 = vpop.f32.mrb[0].mxu0
    %v3390 = vpop.f32.mrb[0].mxu0
    %v3391 = vadd.f32 0.0, %v3390
    %v3392 = vpop.f32.mrb[0].mxu0
    %3393 = vmatprep.mubr.bf16.mxu0 0
    %3394 = vmatmul.mubr.bf16.gmra.mrb[0].mxu0 %v1318
    %v3395 = vpop.f32.mrb[0].mxu0
    %v3396 = vadd.f32 0.0, %v3395
    %v3397 = vpop.f32.mrb[0].mxu0
    %v3398 = vpop.f32.mrb[0].mxu0
    %v3399 = vadd.f32 0.0, %v3398
    %v3400 = vpop.f32.mrb[0].mxu0
    %3401 = vmatprep.mubr.bf16.mxu0 0
    %3402 = vmatmul.mubr.bf16.gmra.mrb[0].mxu0 %v1319
    %v3403 = vpop.f32.mrb[0].mxu0
    %v3404 = vadd.f32 0.0, %v3403
    %v3405 = vpop.f32.mrb[0].mxu0
    %v3406 = vpop.f32.mrb[0].mxu0
    %v3407 = vadd.f32 0.0, %v3406
    %v3408 = vpop.f32.mrb[0].mxu0
    %3409 = vmatprep.mubr.bf16.mxu0 0
    %3410 = vmatmul.mubr.bf16.gmra.mrb[0].mxu0 %v1320
    %v3411 = vpop.f32.mrb[0].mxu0
    %v3412 = vadd.f32 0.0, %v3411
    %v3413 = vpop.f32.mrb[0].mxu0
    %v3414 = vpop.f32.mrb[0].mxu0
    %v3415 = vadd.f32 0.0, %v3414
    %v3416 = vpop.f32.mrb[0].mxu0
    %3417 = vmatprep.mubr.bf16.mxu0 0
    %3418 = vmatmul.mubr.bf16.gmra.mrb[0].mxu0 %v1321
    %v3419 = vpop.f32.mrb[0].mxu0
    %v3420 = vadd.f32 0.0, %v3419
    %v3421 = vpop.f32.mrb[0].mxu0
    %v3422 = vpop.f32.mrb[0].mxu0
    %v3423 = vadd.f32 0.0, %v3422
    %v3424 = vpop.f32.mrb[0].mxu0
    %3425 = vmatprep.mubr.bf16.mxu0 0
    %3426 = vmatmul.mubr.bf16.gmra.mrb[0].mxu0 %v1322
    %v3427 = vpop.f32.mrb[0].mxu0
    %v3428 = vpop.f32.mrb[0].mxu0
    %v3429 = vpop.f32.mrb[0].mxu0
    %v3430 = vpop.f32.mrb[0].mxu0
    %3431 = vmatprep.mubr.bf16.mxu0 0
    %3432 = vmatmul.mubr.bf16.gmra.mrb[0].mxu0 %v1323
    %v3433 = vpop.f32.mrb[0].mxu0
    %v3434 = vpop.f32.mrb[0].mxu0
    %v3435 = vpop.f32.mrb[0].mxu0
    %v3436 = vpop.f32.mrb[0].mxu0
    %3437 = vmatprep.mubr.bf16.mxu0 0
    %3438 = vmatmul.mubr.bf16.gmra.mrb[0].mxu0 %v1324
    %v3439 = vpop.f32.mrb[0].mxu0
    %v3440 = vadd.f32 0.0, %v3439
    %v3441 = vpop.f32.mrb[0].mxu0
    %v3442 = vpop.f32.mrb[0].mxu0
    %v3443 = vadd.f32 0.0, %v3442
    %v3444 = vpop.f32.mrb[0].mxu0
    %3445 = vmatprep.mubr.bf16.mxu0 0
    %3446 = vmatmul.mubr.bf16.gmra.mrb[0].mxu0 %v1325
    %v3447 = vpop.f32.mrb[0].mxu0
    %v3448 = vadd.f32 0.0, %v3447
    %v3449 = vpop.f32.mrb[0].mxu0
    %v3450 = vpop.f32.mrb[0].mxu0
    %v3451 = vadd.f32 0.0, %v3450
    %v3452 = vpop.f32.mrb[0].mxu0
    %3453 = vmatprep.mubr.bf16.mxu0 0
    %3454 = vmatmul.mubr.bf16.gmra.mrb[0].mxu0 %v1326
    %v3455 = vpop.f32.mrb[0].mxu0
    %v3456 = vadd.f32 0.0, %v3455
    %v3457 = vpop.f32.mrb[0].mxu0
    %v3458 = vpop.f32.mrb[0].mxu0
    %v3459 = vadd.f32 0.0, %v3458
    %v3460 = vpop.f32.mrb[0].mxu0
    %3461 = vmatprep.mubr.bf16.mxu0 0
    %3462 = vmatmul.mubr.bf16.gmra.mrb[0].mxu0 %v1327
    %v3463 = vpop.f32.mrb[0].mxu0
    %v3464 = vadd.f32 0.0, %v3463
    %v3465 = vpop.f32.mrb[0].mxu0
    %v3466 = vpop.f32.mrb[0].mxu0
    %v3467 = vadd.f32 0.0, %v3466
    %v3468 = vpop.f32.mrb[0].mxu0
    %3469 = vmatprep.mubr.bf16.mxu0 0
    %3470 = vmatmul.mubr.bf16.gmra.mrb[0].mxu0 %v1328
    %v3471 = vpop.f32.mrb[0].mxu0
    %v3472 = vadd.f32 0.0, %v3471
    %v3473 = vpop.f32.mrb[0].mxu0
    %v3474 = vpop.f32.mrb[0].mxu0
    %v3475 = vadd.f32 0.0, %v3474
    %v3476 = vpop.f32.mrb[0].mxu0
    %3477 = vmatprep.mubr.bf16.mxu0 0
    %3478 = vmatmul.mubr.bf16.gmra.mrb[0].mxu0 %v1329
    %v3479 = vpop.f32.mrb[0].mxu0
    %v3480 = vpop.f32.mrb[0].mxu0
    %v3481 = vpop.f32.mrb[0].mxu0
    %v3482 = vpop.f32.mrb[0].mxu0
    %3483 = vmatprep.mubr.bf16.mxu0 0
    %3484 = vmatmul.mubr.bf16.gmra.mrb[0].mxu0 %v1330
    %v3485 = vpop.f32.mrb[0].mxu0
    %v3486 = vpop.f32.mrb[0].mxu0
    %v3487 = vpop.f32.mrb[0].mxu0
    %v3488 = vpop.f32.mrb[0].mxu0
    %3489 = vmatprep.mubr.bf16.mxu0 0
    %3490 = vmatmul.mubr.bf16.gmra.mrb[0].mxu0 %v1331
    %v3491 = vpop.f32.mrb[0].mxu0
    %v3492 = vadd.f32 0.0, %v3491
    %v3493 = vpop.f32.mrb[0].mxu0
    %v3494 = vpop.f32.mrb[0].mxu0
    %v3495 = vadd.f32 0.0, %v3494
    %v3496 = vpop.f32.mrb[0].mxu0
    %3497 = vmatprep.mubr.bf16.mxu0 0
    %3498 = vmatmul.mubr.bf16.gmra.mrb[0].mxu0 %v1332
    %v3499 = vpop.f32.mrb[0].mxu0
    %v3500 = vadd.f32 0.0, %v3499
    %v3501 = vpop.f32.mrb[0].mxu0
    %v3502 = vpop.f32.mrb[0].mxu0
    %v3503 = vadd.f32 0.0, %v3502
    %v3504 = vpop.f32.mrb[0].mxu0
    %3505 = vmatprep.mubr.bf16.mxu0 0
    %3506 = vmatmul.mubr.bf16.gmra.mrb[0].mxu0 %v1333
    %v3507 = vpop.f32.mrb[0].mxu0
    %v3508 = vadd.f32 0.0, %v3507
    %v3509 = vpop.f32.mrb[0].mxu0
    %v3510 = vpop.f32.mrb[0].mxu0
    %v3511 = vadd.f32 0.0, %v3510
    %v3512 = vpop.f32.mrb[0].mxu0
    %3513 = vmatprep.mubr.bf16.mxu0 0
    %3514 = vmatmul.mubr.bf16.gmra.mrb[0].mxu0 %v1334
    %v3515 = vpop.f32.mrb[0].mxu0
    %v3516 = vadd.f32 0.0, %v3515
    %v3517 = vpop.f32.mrb[0].mxu0
    %v3518 = vpop.f32.mrb[0].mxu0
    %v3519 = vadd.f32 0.0, %v3518
    %v3520 = vpop.f32.mrb[0].mxu0
    %3521 = vmatprep.mubr.bf16.mxu0 0
    %3522 = vmatmul.mubr.bf16.gmra.mrb[0].mxu0 %v1335
    %v3523 = vpop.f32.mrb[0].mxu0
    %v3524 = vadd.f32 0.0, %v3523
    %v3525 = vpop.f32.mrb[0].mxu0
    %v3526 = vpop.f32.mrb[0].mxu0
    %v3527 = vadd.f32 0.0, %v3526
    %v3528 = vpop.f32.mrb[0].mxu0
    %3529 = vmatprep.mubr.bf16.mxu0 0
    %3530 = vmatmul.mubr.bf16.gmra.mrb[0].mxu0 %v1336
    %v3531 = vpop.f32.mrb[0].mxu0
    %v3532 = vpop.f32.mrb[0].mxu0
    %v3533 = vpop.f32.mrb[0].mxu0
    %v3534 = vpop.f32.mrb[0].mxu0
    %3535 = vmatprep.mubr.bf16.mxu0 0
    %3536 = vmatmul.mubr.bf16.gmra.mrb[0].mxu0 %v1337
    %v3537 = vpop.f32.mrb[0].mxu0
    %v3538 = vpop.f32.mrb[0].mxu0
    %v3539 = vpop.f32.mrb[0].mxu0
    %v3540 = vpop.f32.mrb[0].mxu0
    %3541 = vdwg.mxu0
    %v3542 = vadd.f32 %v2926, %v3284
    %v3543 = vadd.f32 %v2929, %v3287
    %v3544 = vadd.f32 %v2934, %v3292
    %v3545 = vadd.f32 %v2937, %v3295
    %v3546 = vadd.f32 %v2942, %v3300
    %v3547 = vadd.f32 %v2945, %v3303
    %v3548 = vadd.f32 %v2950, %v3308
    %v3549 = vadd.f32 %v2953, %v3311
    %v3550 = vadd.f32 %v2958, %v3316
    %v3551 = vadd.f32 %v2961, %v3319
    %v3552 = vadd.f32 %v2978, %v3336
    %v3553 = vadd.f32 %v2981, %v3339
    %v3554 = vadd.f32 %v2986, %v3344
    %v3555 = vadd.f32 %v2989, %v3347
    %v3556 = vadd.f32 %v2994, %v3352
    %v3557 = vadd.f32 %v2997, %v3355
    %v3558 = vadd.f32 %v3002, %v3360
    %v3559 = vadd.f32 %v3005, %v3363
    %v3560 = vadd.f32 %v3010, %v3368
    %v3561 = vadd.f32 %v3013, %v3371
    %v3562 = vadd.f32 %v3030, %v3388
    %v3563 = vadd.f32 %v3033, %v3391
    %v3564 = vadd.f32 %v3038, %v3396
    %v3565 = vadd.f32 %v3041, %v3399
    %v3566 = vadd.f32 %v3046, %v3404
    %v3567 = vadd.f32 %v3049, %v3407
    %v3568 = vadd.f32 %v3054, %v3412
    %v3569 = vadd.f32 %v3057, %v3415
    %v3570 = vadd.f32 %v3062, %v3420
    %v3571 = vadd.f32 %v3065, %v3423
    %v3572 = vadd.f32 %v3082, %v3440
    %v3573 = vadd.f32 %v3085, %v3443
    %v3574 = vadd.f32 %v3090, %v3448
    %v3575 = vadd.f32 %v3093, %v3451
    %v3576 = vadd.f32 %v3098, %v3456
    %v3577 = vadd.f32 %v3101, %v3459
    %v3578 = vadd.f32 %v3106, %v3464
    %v3579 = vadd.f32 %v3109, %v3467
    %v3580 = vadd.f32 %v3114, %v3472
    %v3581 = vadd.f32 %v3117, %v3475
    %v3582 = vadd.f32 %v3134, %v3492
    %v3583 = vadd.f32 %v3137, %v3495
    %v3584 = vadd.f32 %v3142, %v3500
    %v3585 = vadd.f32 %v3145, %v3503
    %v3586 = vadd.f32 %v3150, %v3508
    %v3587 = vadd.f32 %v3153, %v3511
    %v3588 = vadd.f32 %v3158, %v3516
    %v3589 = vadd.f32 %v3161, %v3519
    %v3590 = vadd.f32 %v3166, %v3524
    %v3591 = vadd.f32 %v3169, %v3527
    %s3592 = scalar_lea.vmem [#allocation11], 384
    %v3593 = vld [vmem:[%s3592] sm:$0xf]
    %v3594 = vld [vmem:[%s3592 + $0x4] sm:$0xf]
    %v3595 = vld [vmem:[%s3592 + $0x8] sm:$0xf]
    %v3596 = vld [vmem:[%s3592 + $0xc] sm:$0xf]
    %v3597 = vld [vmem:[%s3592 + $0x10] sm:$0xf]
    %v3598 = vld [vmem:[%s3592 + $0x14] sm:$0xf]
    %v3599 = vld [vmem:[%s3592 + $0x18] sm:$0xf]
    %v3600 = vld [vmem:[%s3592 + $0x1c] sm:$0xf]
    %v3601 = vld [vmem:[%s3592 + $0x20] sm:$0xf]
    %v3602 = vld [vmem:[%s3592 + $0x24] sm:$0xf]
    %v3603 = vld [vmem:[%s3592 + $0x28] sm:$0xf]
    %v3604 = vld [vmem:[%s3592 + $0x2c] sm:$0xf]
    %v3605 = vld [vmem:[%s3592 + $0x30] sm:$0xf]
    %v3606 = vld [vmem:[%s3592 + $0x34] sm:$0xf]
    %v3607 = vld [vmem:[%s3592 + $0x38] sm:$0xf]
    %v3608 = vld [vmem:[%s3592 + $0x3c] sm:$0xf]
    %s3609 = scalar_lea.vmem [#allocation11], 448
    %v3610 = vld [vmem:[%s3609] sm:$0xf]
    %v3611 = vld [vmem:[%s3609 + $0x4] sm:$0xf]
    %v3612 = vld [vmem:[%s3609 + $0x8] sm:$0xf]
    %v3613 = vld [vmem:[%s3609 + $0xc] sm:$0xf]
    %v3614 = vld [vmem:[%s3609 + $0x10] sm:$0xf]
    %v3615 = vld [vmem:[%s3609 + $0x14] sm:$0xf]
    %v3616 = vld [vmem:[%s3609 + $0x18] sm:$0xf]
    %v3617 = vld [vmem:[%s3609 + $0x1c] sm:$0xf]
    %v3618 = vld [vmem:[%s3609 + $0x20] sm:$0xf]
    %v3619 = vld [vmem:[%s3609 + $0x24] sm:$0xf]
    %v3620 = vld [vmem:[%s3609 + $0x28] sm:$0xf]
    %v3621 = vld [vmem:[%s3609 + $0x2c] sm:$0xf]
    %v3622 = vld [vmem:[%s3609 + $0x30] sm:$0xf]
    %v3623 = vld [vmem:[%s3609 + $0x34] sm:$0xf]
    %v3624 = vld [vmem:[%s3609 + $0x38] sm:$0xf]
    %v3625 = vld [vmem:[%s3609 + $0x3c] sm:$0xf]
    %v3642 = vunpack.c.l.b16 %v3610
    %v3643 = vunpack.c.l.b16 %v3611
    %v3644 = vunpack.c.l.b16 %v3612
    %v3645 = vunpack.c.l.b16 %v3613
    %v3646 = vunpack.c.l.b16 %v3614
    %v3647 = vunpack.c.l.b16 %v3615
    %v3648 = vunpack.c.l.b16 %v3616
    %v3649 = vunpack.c.l.b16 %v3617
    %v3650 = vunpack.c.l.b16 %v3618
    %v3651 = vunpack.c.l.b16 %v3619
    %v3652 = vunpack.c.l.b16 %v3620
    %v3653 = vunpack.c.l.b16 %v3621
    %v3654 = vunpack.c.l.b16 %v3622
    %v3655 = vunpack.c.l.b16 %v3623
    %v3656 = vunpack.c.l.b16 %v3624
    %v3657 = vunpack.c.l.b16 %v3625
    %v3658 = vpack.c.b16 %v3643, %v3642
    %v3659 = vpack.c.b16 %v3645, %v3644
    %v3660 = vpack.c.b16 %v3647, %v3646
    %v3661 = vpack.c.b16 %v3649, %v3648
    %v3662 = vpack.c.b16 %v3651, %v3650
    %v3663 = vpack.c.b16 %v3653, %v3652
    %v3664 = vpack.c.b16 %v3655, %v3654
    %v3665 = vpack.c.b16 %v3657, %v3656
    %3674 = vmatprep.subr.bf16.mxu0 0
    %3675 = vmatpush1.bf16.msra.mxu0 %v3658
    %3676 = vmatprep.subr.bf16.mxu0 0
    %3677 = vmatpush1.bf16.msra.mxu0 %v3659
    %3678 = vmatprep.subr.bf16.mxu0 0
    %3679 = vmatpush1.bf16.msra.mxu0 %v3660
    %3680 = vmatprep.subr.bf16.mxu0 0
    %3681 = vmatpush1.bf16.msra.mxu0 %v3661
    %3682 = vmatprep.subr.bf16.mxu0 0
    %3683 = vmatpush1.bf16.msra.mxu0 %v3662
    %3684 = vmatprep.subr.bf16.mxu0 0
    %3685 = vmatpush1.bf16.msra.mxu0 %v3663
    %3686 = vmatprep.subr.bf16.mxu0 0
    %3687 = vmatpush1.bf16.msra.mxu0 %v3664
    %3688 = vmatprep.subr.bf16.mxu0 0
    %3689 = vmatpush1.bf16.msra.mxu0 %v3665
    %3690 = vmatprep.subr.bf16.mxu0 0
    %3691 = vmatpush1.bf16.msra.mxu0 0
    %3692 = vmatprep.subr.bf16.mxu0 0
    %3693 = vmatpush1.bf16.msra.mxu0 0
    %3694 = vmatprep.subr.bf16.mxu0 0
    %3695 = vmatpush1.bf16.msra.mxu0 0
    %3696 = vmatprep.subr.bf16.mxu0 0
    %3697 = vmatpush1.bf16.msra.mxu0 0
    %3698 = vmatprep.subr.bf16.mxu0 0
    %3699 = vmatpush1.bf16.msra.mxu0 0
    %3700 = vmatprep.subr.bf16.mxu0 0
    %3701 = vmatpush1.bf16.msra.mxu0 0
    %3702 = vmatprep.subr.bf16.mxu0 0
    %3703 = vmatpush1.bf16.msra.mxu0 0
    %3704 = vmatprep.subr.bf16.mxu0 0
    %3705 = vmatpush1.bf16.msra.mxu0 0
    %3706 = vmatprep.mubr.bf16.mxu0 0
    %3707 = vmatmul.mubr.bf16.gmra.mrb[0].mxu0 %v1309
    %v3708 = vpop.f32.mrb[0].mxu0
    %v3709 = vadd.f32 0.0, %v3708
    %v3710 = vpop.f32.mrb[0].mxu0
    %v3711 = vpop.f32.mrb[0].mxu0
    %v3712 = vadd.f32 0.0, %v3711
    %v3713 = vpop.f32.mrb[0].mxu0
    %3714 = vmatprep.mubr.bf16.mxu0 0
    %3715 = vmatmul.mubr.bf16.gmra.mrb[0].mxu0 %v1310
    %v3716 = vpop.f32.mrb[0].mxu0
    %v3717 = vadd.f32 0.0, %v3716
    %v3718 = vpop.f32.mrb[0].mxu0
    %v3719 = vpop.f32.mrb[0].mxu0
    %v3720 = vadd.f32 0.0, %v3719
    %v3721 = vpop.f32.mrb[0].mxu0
    %3722 = vmatprep.mubr.bf16.mxu0 0
    %3723 = vmatmul.mubr.bf16.gmra.mrb[0].mxu0 %v1311
    %v3724 = vpop.f32.mrb[0].mxu0
    %v3725 = vadd.f32 0.0, %v3724
    %v3726 = vpop.f32.mrb[0].mxu0
    %v3727 = vpop.f32.mrb[0].mxu0
    %v3728 = vadd.f32 0.0, %v3727
    %v3729 = vpop.f32.mrb[0].mxu0
    %3730 = vmatprep.mubr.bf16.mxu0 0
    %3731 = vmatmul.mubr.bf16.gmra.mrb[0].mxu0 %v1312
    %v3732 = vpop.f32.mrb[0].mxu0
    %v3733 = vadd.f32 0.0, %v3732
    %v3734 = vpop.f32.mrb[0].mxu0
    %v3735 = vpop.f32.mrb[0].mxu0
    %v3736 = vadd.f32 0.0, %v3735
    %v3737 = vpop.f32.mrb[0].mxu0
    %3738 = vmatprep.mubr.bf16.mxu0 0
    %3739 = vmatmul.mubr.bf16.gmra.mrb[0].mxu0 %v1313
    %v3740 = vpop.f32.mrb[0].mxu0
    %v3741 = vadd.f32 0.0, %v3740
    %v3742 = vpop.f32.mrb[0].mxu0
    %v3743 = vpop.f32.mrb[0].mxu0
    %v3744 = vadd.f32 0.0, %v3743
    %v3745 = vpop.f32.mrb[0].mxu0
    %3746 = vmatprep.mubr.bf16.mxu0 0
    %3747 = vmatmul.mubr.bf16.gmra.mrb[0].mxu0 %v1314
    %v3748 = vpop.f32.mrb[0].mxu0
    %v3749 = vpop.f32.mrb[0].mxu0
    %v3750 = vpop.f32.mrb[0].mxu0
    %v3751 = vpop.f32.mrb[0].mxu0
    %3752 = vmatprep.mubr.bf16.mxu0 0
    %3753 = vmatmul.mubr.bf16.gmra.mrb[0].mxu0 %v1315
    %v3754 = vpop.f32.mrb[0].mxu0
    %v3755 = vpop.f32.mrb[0].mxu0
    %v3756 = vpop.f32.mrb[0].mxu0
    %v3757 = vpop.f32.mrb[0].mxu0
    %3758 = vmatprep.mubr.bf16.mxu0 0
    %3759 = vmatmul.mubr.bf16.gmra.mrb[0].mxu0 %v1316
    %v3760 = vpop.f32.mrb[0].mxu0
    %v3761 = vadd.f32 0.0, %v3760
    %v3762 = vpop.f32.mrb[0].mxu0
    %v3763 = vpop.f32.mrb[0].mxu0
    %v3764 = vadd.f32 0.0, %v3763
    %v3765 = vpop.f32.mrb[0].mxu0
    %3766 = vmatprep.mubr.bf16.mxu0 0
    %3767 = vmatmul.mubr.bf16.gmra.mrb[0].mxu0 %v1317
    %v3768 = vpop.f32.mrb[0].mxu0
    %v3769 = vadd.f32 0.0, %v3768
    %v3770 = vpop.f32.mrb[0].mxu0
    %v3771 = vpop.f32.mrb[0].mxu0
    %v3772 = vadd.f32 0.0, %v3771
    %v3773 = vpop.f32.mrb[0].mxu0
    %3774 = vmatprep.mubr.bf16.mxu0 0
    %3775 = vmatmul.mubr.bf16.gmra.mrb[0].mxu0 %v1318
    %v3776 = vpop.f32.mrb[0].mxu0
    %v3777 = vadd.f32 0.0, %v3776
    %v3778 = vpop.f32.mrb[0].mxu0
    %v3779 = vpop.f32.mrb[0].mxu0
    %v3780 = vadd.f32 0.0, %v3779
    %v3781 = vpop.f32.mrb[0].mxu0
    %3782 = vmatprep.mubr.bf16.mxu0 0
    %3783 = vmatmul.mubr.bf16.gmra.mrb[0].mxu0 %v1319
    %v3784 = vpop.f32.mrb[0].mxu0
    %v3785 = vadd.f32 0.0, %v3784
    %v3786 = vpop.f32.mrb[0].mxu0
    %v3787 = vpop.f32.mrb[0].mxu0
    %v3788 = vadd.f32 0.0, %v3787
    %v3789 = vpop.f32.mrb[0].mxu0
    %3790 = vmatprep.mubr.bf16.mxu0 0
    %3791 = vmatmul.mubr.bf16.gmra.mrb[0].mxu0 %v1320
    %v3792 = vpop.f32.mrb[0].mxu0
    %v3793 = vadd.f32 0.0, %v3792
    %v3794 = vpop.f32.mrb[0].mxu0
    %v3795 = vpop.f32.mrb[0].mxu0
    %v3796 = vadd.f32 0.0, %v3795
    %v3797 = vpop.f32.mrb[0].mxu0
    %3798 = vmatprep.mubr.bf16.mxu0 0
    %3799 = vmatmul.mubr.bf16.gmra.mrb[0].mxu0 %v1321
    %v3800 = vpop.f32.mrb[0].mxu0
    %v3801 = vpop.f32.mrb[0].mxu0
    %v3802 = vpop.f32.mrb[0].mxu0
    %v3803 = vpop.f32.mrb[0].mxu0
    %3804 = vmatprep.mubr.bf16.mxu0 0
    %3805 = vmatmul.mubr.bf16.gmra.mrb[0].mxu0 %v1322
    %v3806 = vpop.f32.mrb[0].mxu0
    %v3807 = vpop.f32.mrb[0].mxu0
    %v3808 = vpop.f32.mrb[0].mxu0
    %v3809 = vpop.f32.mrb[0].mxu0
    %3810 = vmatprep.mubr.bf16.mxu0 0
    %3811 = vmatmul.mubr.bf16.gmra.mrb[0].mxu0 %v1323
    %v3812 = vpop.f32.mrb[0].mxu0
    %v3813 = vadd.f32 0.0, %v3812
    %v3814 = vpop.f32.mrb[0].mxu0
    %v3815 = vpop.f32.mrb[0].mxu0
    %v3816 = vadd.f32 0.0, %v3815
    %v3817 = vpop.f32.mrb[0].mxu0
    %3818 = vmatprep.mubr.bf16.mxu0 0
    %3819 = vmatmul.mubr.bf16.gmra.mrb[0].mxu0 %v1324
    %v3820 = vpop.f32.mrb[0].mxu0
    %v3821 = vadd.f32 0.0, %v3820
    %v3822 = vpop.f32.mrb[0].mxu0
    %v3823 = vpop.f32.mrb[0].mxu0
    %v3824 = vadd.f32 0.0, %v3823
    %v3825 = vpop.f32.mrb[0].mxu0
    %3826 = vmatprep.mubr.bf16.mxu0 0
    %3827 = vmatmul.mubr.bf16.gmra.mrb[0].mxu0 %v1325
    %v3828 = vpop.f32.mrb[0].mxu0
    %v3829 = vadd.f32 0.0, %v3828
    %v3830 = vpop.f32.mrb[0].mxu0
    %v3831 = vpop.f32.mrb[0].mxu0
    %v3832 = vadd.f32 0.0, %v3831
    %v3833 = vpop.f32.mrb[0].mxu0
    %3834 = vmatprep.mubr.bf16.mxu0 0
    %3835 = vmatmul.mubr.bf16.gmra.mrb[0].mxu0 %v1326
    %v3836 = vpop.f32.mrb[0].mxu0
    %v3837 = vadd.f32 0.0, %v3836
    %v3838 = vpop.f32.mrb[0].mxu0
    %v3839 = vpop.f32.mrb[0].mxu0
    %v3840 = vadd.f32 0.0, %v3839
    %v3841 = vpop.f32.mrb[0].mxu0
    %3842 = vmatprep.mubr.bf16.mxu0 0
    %3843 = vmatmul.mubr.bf16.gmra.mrb[0].mxu0 %v1327
    %v3844 = vpop.f32.mrb[0].mxu0
    %v3845 = vadd.f32 0.0, %v3844
    %v3846 = vpop.f32.mrb[0].mxu0
    %v3847 = vpop.f32.mrb[0].mxu0
    %v3848 = vadd.f32 0.0, %v3847
    %v3849 = vpop.f32.mrb[0].mxu0
    %3850 = vmatprep.mubr.bf16.mxu0 0
    %3851 = vmatmul.mubr.bf16.gmra.mrb[0].mxu0 %v1328
    %v3852 = vpop.f32.mrb[0].mxu0
    %v3853 = vpop.f32.mrb[0].mxu0
    %v3854 = vpop.f32.mrb[0].mxu0
    %v3855 = vpop.f32.mrb[0].mxu0
    %3856 = vmatprep.mubr.bf16.mxu0 0
    %3857 = vmatmul.mubr.bf16.gmra.mrb[0].mxu0 %v1329
    %v3858 = vpop.f32.mrb[0].mxu0
    %v3859 = vpop.f32.mrb[0].mxu0
    %v3860 = vpop.f32.mrb[0].mxu0
    %v3861 = vpop.f32.mrb[0].mxu0
    %3862 = vmatprep.mubr.bf16.mxu0 0
    %3863 = vmatmul.mubr.bf16.gmra.mrb[0].mxu0 %v1330
    %v3864 = vpop.f32.mrb[0].mxu0
    %v3865 = vadd.f32 0.0, %v3864
    %v3866 = vpop.f32.mrb[0].mxu0
    %v3867 = vpop.f32.mrb[0].mxu0
    %v3868 = vadd.f32 0.0, %v3867
    %v3869 = vpop.f32.mrb[0].mxu0
    %3870 = vmatprep.mubr.bf16.mxu0 0
    %3871 = vmatmul.mubr.bf16.gmra.mrb[0].mxu0 %v1331
    %v3872 = vpop.f32.mrb[0].mxu0
    %v3873 = vadd.f32 0.0, %v3872
    %v3874 = vpop.f32.mrb[0].mxu0
    %v3875 = vpop.f32.mrb[0].mxu0
    %v3876 = vadd.f32 0.0, %v3875
    %v3877 = vpop.f32.mrb[0].mxu0
    %3878 = vmatprep.mubr.bf16.mxu0 0
    %3879 = vmatmul.mubr.bf16.gmra.mrb[0].mxu0 %v1332
    %v3880 = vpop.f32.mrb[0].mxu0
    %v3881 = vadd.f32 0.0, %v3880
    %v3882 = vpop.f32.mrb[0].mxu0
    %v3883 = vpop.f32.mrb[0].mxu0
    %v3884 = vadd.f32 0.0, %v3883
    %v3885 = vpop.f32.mrb[0].mxu0
    %3886 = vmatprep.mubr.bf16.mxu0 0
    %3887 = vmatmul.mubr.bf16.gmra.mrb[0].mxu0 %v1333
    %v3888 = vpop.f32.mrb[0].mxu0
    %v3889 = vadd.f32 0.0, %v3888
    %v3890 = vpop.f32.mrb[0].mxu0
    %v3891 = vpop.f32.mrb[0].mxu0
    %v3892 = vadd.f32 0.0, %v3891
    %v3893 = vpop.f32.mrb[0].mxu0
    %3894 = vmatprep.mubr.bf16.mxu0 0
    %3895 = vmatmul.mubr.bf16.gmra.mrb[0].mxu0 %v1334
    %v3896 = vpop.f32.mrb[0].mxu0
    %v3897 = vadd.f32 0.0, %v3896
    %v3898 = vpop.f32.mrb[0].mxu0
    %v3899 = vpop.f32.mrb[0].mxu0
    %v3900 = vadd.f32 0.0, %v3899
    %v3901 = vpop.f32.mrb[0].mxu0
    %3902 = vmatprep.mubr.bf16.mxu0 0
    %3903 = vmatmul.mubr.bf16.gmra.mrb[0].mxu0 %v1335
    %v3904 = vpop.f32.mrb[0].mxu0
    %v3905 = vpop.f32.mrb[0].mxu0
    %v3906 = vpop.f32.mrb[0].mxu0
    %v3907 = vpop.f32.mrb[0].mxu0
    %3908 = vmatprep.mubr.bf16.mxu0 0
    %3909 = vmatmul.mubr.bf16.gmra.mrb[0].mxu0 %v1336
    %v3910 = vpop.f32.mrb[0].mxu0
    %v3911 = vpop.f32.mrb[0].mxu0
    %v3912 = vpop.f32.mrb[0].mxu0
    %v3913 = vpop.f32.mrb[0].mxu0
    %3914 = vmatprep.mubr.bf16.mxu0 0
    %3915 = vmatmul.mubr.bf16.gmra.mrb[0].mxu0 %v1337
    %v3916 = vpop.f32.mrb[0].mxu0
    %v3917 = vadd.f32 0.0, %v3916
    %v3918 = vpop.f32.mrb[0].mxu0
    %v3919 = vpop.f32.mrb[0].mxu0
    %v3920 = vadd.f32 0.0, %v3919
    %v3921 = vpop.f32.mrb[0].mxu0
    %3922 = vmatprep.mubr.bf16.mxu0 0
    %3923 = vmatmul.mubr.bf16.gmra.mrb[0].mxu0 %v1338
    %v3924 = vpop.f32.mrb[0].mxu0
    %v3925 = vadd.f32 0.0, %v3924
    %v3926 = vpop.f32.mrb[0].mxu0
    %v3927 = vpop.f32.mrb[0].mxu0
    %v3928 = vadd.f32 0.0, %v3927
    %v3929 = vpop.f32.mrb[0].mxu0
    %3930 = vmatprep.mubr.bf16.mxu0 0
    %3931 = vmatmul.mubr.bf16.gmra.mrb[0].mxu0 %v1339
    %v3932 = vpop.f32.mrb[0].mxu0
    %v3933 = vadd.f32 0.0, %v3932
    %v3934 = vpop.f32.mrb[0].mxu0
    %v3935 = vpop.f32.mrb[0].mxu0
    %v3936 = vadd.f32 0.0, %v3935
    %v3937 = vpop.f32.mrb[0].mxu0
    %3938 = vmatprep.mubr.bf16.mxu0 0
    %3939 = vmatmul.mubr.bf16.gmra.mrb[0].mxu0 %v1340
    %v3940 = vpop.f32.mrb[0].mxu0
    %v3941 = vadd.f32 0.0, %v3940
    %v3942 = vpop.f32.mrb[0].mxu0
    %v3943 = vpop.f32.mrb[0].mxu0
    %v3944 = vadd.f32 0.0, %v3943
    %v3945 = vpop.f32.mrb[0].mxu0
    %3946 = vmatprep.mubr.bf16.mxu0 0
    %3947 = vmatmul.mubr.bf16.gmra.mrb[0].mxu0 %v1341
    %v3948 = vpop.f32.mrb[0].mxu0
    %v3949 = vadd.f32 0.0, %v3948
    %v3950 = vpop.f32.mrb[0].mxu0
    %v3951 = vpop.f32.mrb[0].mxu0
    %v3952 = vadd.f32 0.0, %v3951
    %v3953 = vpop.f32.mrb[0].mxu0
    %3954 = vmatprep.mubr.bf16.mxu0 0
    %3955 = vmatmul.mubr.bf16.gmra.mrb[0].mxu0 %v1342
    %v3956 = vpop.f32.mrb[0].mxu0
    %v3957 = vpop.f32.mrb[0].mxu0
    %v3958 = vpop.f32.mrb[0].mxu0
    %v3959 = vpop.f32.mrb[0].mxu0
    %3960 = vmatprep.mubr.bf16.mxu0 0
    %3961 = vmatmul.mubr.bf16.gmra.mrb[0].mxu0 %v1343
    %v3962 = vpop.f32.mrb[0].mxu0
    %v3963 = vpop.f32.mrb[0].mxu0
    %v3964 = vpop.f32.mrb[0].mxu0
    %v3965 = vpop.f32.mrb[0].mxu0
    %3966 = vdwg.mxu0
    %v3983 = vunpack.c.l.b16 %v3593
    %v3984 = vunpack.c.l.b16 %v3594
    %v3985 = vunpack.c.l.b16 %v3595
    %v3986 = vunpack.c.l.b16 %v3596
    %v3987 = vunpack.c.l.b16 %v3597
    %v3988 = vunpack.c.l.b16 %v3598
    %v3989 = vunpack.c.l.b16 %v3599
    %v3990 = vunpack.c.l.b16 %v3600
    %v3991 = vunpack.c.l.b16 %v3601
    %v3992 = vunpack.c.l.b16 %v3602
    %v3993 = vunpack.c.l.b16 %v3603
    %v3994 = vunpack.c.l.b16 %v3604
    %v3995 = vunpack.c.l.b16 %v3605
    %v3996 = vunpack.c.l.b16 %v3606
    %v3997 = vunpack.c.l.b16 %v3607
    %v3998 = vunpack.c.l.b16 %v3608
    %v3999 = vpack.c.b16 %v3984, %v3983
    %v4000 = vpack.c.b16 %v3986, %v3985
    %v4001 = vpack.c.b16 %v3988, %v3987
    %v4002 = vpack.c.b16 %v3990, %v3989
    %v4003 = vpack.c.b16 %v3992, %v3991
    %v4004 = vpack.c.b16 %v3994, %v3993
    %v4005 = vpack.c.b16 %v3996, %v3995
    %v4006 = vpack.c.b16 %v3998, %v3997
    %4015 = vmatprep.subr.bf16.mxu0 0
    %4016 = vmatpush1.bf16.msra.mxu0 %v3999
    %4017 = vmatprep.subr.bf16.mxu0 0
    %4018 = vmatpush1.bf16.msra.mxu0 %v4000
    %4019 = vmatprep.subr.bf16.mxu0 0
    %4020 = vmatpush1.bf16.msra.mxu0 %v4001
    %4021 = vmatprep.subr.bf16.mxu0 0
    %4022 = vmatpush1.bf16.msra.mxu0 %v4002
    %4023 = vmatprep.subr.bf16.mxu0 0
    %4024 = vmatpush1.bf16.msra.mxu0 %v4003
    %4025 = vmatprep.subr.bf16.mxu0 0
    %4026 = vmatpush1.bf16.msra.mxu0 %v4004
    %4027 = vmatprep.subr.bf16.mxu0 0
    %4028 = vmatpush1.bf16.msra.mxu0 %v4005
    %4029 = vmatprep.subr.bf16.mxu0 0
    %4030 = vmatpush1.bf16.msra.mxu0 %v4006
    %4031 = vmatprep.subr.bf16.mxu0 0
    %4032 = vmatpush1.bf16.msra.mxu0 0
    %4033 = vmatprep.subr.bf16.mxu0 0
    %4034 = vmatpush1.bf16.msra.mxu0 0
    %4035 = vmatprep.subr.bf16.mxu0 0
    %4036 = vmatpush1.bf16.msra.mxu0 0
    %4037 = vmatprep.subr.bf16.mxu0 0
    %4038 = vmatpush1.bf16.msra.mxu0 0
    %4039 = vmatprep.subr.bf16.mxu0 0
    %4040 = vmatpush1.bf16.msra.mxu0 0
    %4041 = vmatprep.subr.bf16.mxu0 0
    %4042 = vmatpush1.bf16.msra.mxu0 0
    %4043 = vmatprep.subr.bf16.mxu0 0
    %4044 = vmatpush1.bf16.msra.mxu0 0
    %4045 = vmatprep.subr.bf16.mxu0 0
    %4046 = vmatpush1.bf16.msra.mxu0 0
    %4047 = vmatprep.mubr.bf16.mxu0 0
    %4048 = vmatmul.mubr.bf16.gmra.mrb[0].mxu0 %v1308
    %v4049 = vpop.f32.mrb[0].mxu0
    %v4050 = vadd.f32 %v3709, %v4049
    %v4051 = vpop.f32.mrb[0].mxu0
    %v4052 = vpop.f32.mrb[0].mxu0
    %v4053 = vadd.f32 %v3712, %v4052
    %v4054 = vpop.f32.mrb[0].mxu0
    %4055 = vmatprep.mubr.bf16.mxu0 0
    %4056 = vmatmul.mubr.bf16.gmra.mrb[0].mxu0 %v1309
    %v4057 = vpop.f32.mrb[0].mxu0
    %v4058 = vadd.f32 %v3717, %v4057
    %v4059 = vpop.f32.mrb[0].mxu0
    %v4060 = vpop.f32.mrb[0].mxu0
    %v4061 = vadd.f32 %v3720, %v4060
    %v4062 = vpop.f32.mrb[0].mxu0
    %4063 = vmatprep.mubr.bf16.mxu0 0
    %4064 = vmatmul.mubr.bf16.gmra.mrb[0].mxu0 %v1310
    %v4065 = vpop.f32.mrb[0].mxu0
    %v4066 = vadd.f32 %v3725, %v4065
    %v4067 = vpop.f32.mrb[0].mxu0
    %v4068 = vpop.f32.mrb[0].mxu0
    %v4069 = vadd.f32 %v3728, %v4068
    %v4070 = vpop.f32.mrb[0].mxu0
    %4071 = vmatprep.mubr.bf16.mxu0 0
    %4072 = vmatmul.mubr.bf16.gmra.mrb[0].mxu0 %v1311
    %v4073 = vpop.f32.mrb[0].mxu0
    %v4074 = vadd.f32 %v3733, %v4073
    %v4075 = vpop.f32.mrb[0].mxu0
    %v4076 = vpop.f32.mrb[0].mxu0
    %v4077 = vadd.f32 %v3736, %v4076
    %v4078 = vpop.f32.mrb[0].mxu0
    %4079 = vmatprep.mubr.bf16.mxu0 0
    %4080 = vmatmul.mubr.bf16.gmra.mrb[0].mxu0 %v1312
    %v4081 = vpop.f32.mrb[0].mxu0
    %v4082 = vadd.f32 %v3741, %v4081
    %v4083 = vpop.f32.mrb[0].mxu0
    %v4084 = vpop.f32.mrb[0].mxu0
    %v4085 = vadd.f32 %v3744, %v4084
    %v4086 = vpop.f32.mrb[0].mxu0
    %4087 = vmatprep.mubr.bf16.mxu0 0
    %4088 = vmatmul.mubr.bf16.gmra.mrb[0].mxu0 %v1313
    %v4089 = vpop.f32.mrb[0].mxu0
    %v4090 = vpop.f32.mrb[0].mxu0
    %v4091 = vpop.f32.mrb[0].mxu0
    %v4092 = vpop.f32.mrb[0].mxu0
    %4093 = vmatprep.mubr.bf16.mxu0 0
    %4094 = vmatmul.mubr.bf16.gmra.mrb[0].mxu0 %v1314
    %v4095 = vpop.f32.mrb[0].mxu0
    %v4096 = vpop.f32.mrb[0].mxu0
    %v4097 = vpop.f32.mrb[0].mxu0
    %v4098 = vpop.f32.mrb[0].mxu0
    %4099 = vmatprep.mubr.bf16.mxu0 0
    %4100 = vmatmul.mubr.bf16.gmra.mrb[0].mxu0 %v1315
    %v4101 = vpop.f32.mrb[0].mxu0
    %v4102 = vadd.f32 %v3761, %v4101
    %v4103 = vpop.f32.mrb[0].mxu0
    %v4104 = vpop.f32.mrb[0].mxu0
    %v4105 = vadd.f32 %v3764, %v4104
    %v4106 = vpop.f32.mrb[0].mxu0
    %4107 = vmatprep.mubr.bf16.mxu0 0
    %4108 = vmatmul.mubr.bf16.gmra.mrb[0].mxu0 %v1316
    %v4109 = vpop.f32.mrb[0].mxu0
    %v4110 = vadd.f32 %v3769, %v4109
    %v4111 = vpop.f32.mrb[0].mxu0
    %v4112 = vpop.f32.mrb[0].mxu0
    %v4113 = vadd.f32 %v3772, %v4112
    %v4114 = vpop.f32.mrb[0].mxu0
    %4115 = vmatprep.mubr.bf16.mxu0 0
    %4116 = vmatmul.mubr.bf16.gmra.mrb[0].mxu0 %v1317
    %v4117 = vpop.f32.mrb[0].mxu0
    %v4118 = vadd.f32 %v3777, %v4117
    %v4119 = vpop.f32.mrb[0].mxu0
    %v4120 = vpop.f32.mrb[0].mxu0
    %v4121 = vadd.f32 %v3780, %v4120
    %v4122 = vpop.f32.mrb[0].mxu0
    %4123 = vmatprep.mubr.bf16.mxu0 0
    %4124 = vmatmul.mubr.bf16.gmra.mrb[0].mxu0 %v1318
    %v4125 = vpop.f32.mrb[0].mxu0
    %v4126 = vadd.f32 %v3785, %v4125
    %v4127 = vpop.f32.mrb[0].mxu0
    %v4128 = vpop.f32.mrb[0].mxu0
    %v4129 = vadd.f32 %v3788, %v4128
    %v4130 = vpop.f32.mrb[0].mxu0
    %4131 = vmatprep.mubr.bf16.mxu0 0
    %4132 = vmatmul.mubr.bf16.gmra.mrb[0].mxu0 %v1319
    %v4133 = vpop.f32.mrb[0].mxu0
    %v4134 = vadd.f32 %v3793, %v4133
    %v4135 = vpop.f32.mrb[0].mxu0
    %v4136 = vpop.f32.mrb[0].mxu0
    %v4137 = vadd.f32 %v3796, %v4136
    %v4138 = vpop.f32.mrb[0].mxu0
    %4139 = vmatprep.mubr.bf16.mxu0 0
    %4140 = vmatmul.mubr.bf16.gmra.mrb[0].mxu0 %v1320
    %v4141 = vpop.f32.mrb[0].mxu0
    %v4142 = vpop.f32.mrb[0].mxu0
    %v4143 = vpop.f32.mrb[0].mxu0
    %v4144 = vpop.f32.mrb[0].mxu0
    %4145 = vmatprep.mubr.bf16.mxu0 0
    %4146 = vmatmul.mubr.bf16.gmra.mrb[0].mxu0 %v1321
    %v4147 = vpop.f32.mrb[0].mxu0
    %v4148 = vpop.f32.mrb[0].mxu0
    %v4149 = vpop.f32.mrb[0].mxu0
    %v4150 = vpop.f32.mrb[0].mxu0
    %4151 = vmatprep.mubr.bf16.mxu0 0
    %4152 = vmatmul.mubr.bf16.gmra.mrb[0].mxu0 %v1322
    %v4153 = vpop.f32.mrb[0].mxu0
    %v4154 = vadd.f32 %v3813, %v4153
    %v4155 = vpop.f32.mrb[0].mxu0
    %v4156 = vpop.f32.mrb[0].mxu0
    %v4157 = vadd.f32 %v3816, %v4156
    %v4158 = vpop.f32.mrb[0].mxu0
    %4159 = vmatprep.mubr.bf16.mxu0 0
    %4160 = vmatmul.mubr.bf16.gmra.mrb[0].mxu0 %v1323
    %v4161 = vpop.f32.mrb[0].mxu0
    %v4162 = vadd.f32 %v3821, %v4161
    %v4163 = vpop.f32.mrb[0].mxu0
    %v4164 = vpop.f32.mrb[0].mxu0
    %v4165 = vadd.f32 %v3824, %v4164
    %v4166 = vpop.f32.mrb[0].mxu0
    %4167 = vmatprep.mubr.bf16.mxu0 0
    %4168 = vmatmul.mubr.bf16.gmra.mrb[0].mxu0 %v1324
    %v4169 = vpop.f32.mrb[0].mxu0
    %v4170 = vadd.f32 %v3829, %v4169
    %v4171 = vpop.f32.mrb[0].mxu0
    %v4172 = vpop.f32.mrb[0].mxu0
    %v4173 = vadd.f32 %v3832, %v4172
    %v4174 = vpop.f32.mrb[0].mxu0
    %4175 = vmatprep.mubr.bf16.mxu0 0
    %4176 = vmatmul.mubr.bf16.gmra.mrb[0].mxu0 %v1325
    %v4177 = vpop.f32.mrb[0].mxu0
    %v4178 = vadd.f32 %v3837, %v4177
    %v4179 = vpop.f32.mrb[0].mxu0
    %v4180 = vpop.f32.mrb[0].mxu0
    %v4181 = vadd.f32 %v3840, %v4180
    %v4182 = vpop.f32.mrb[0].mxu0
    %4183 = vmatprep.mubr.bf16.mxu0 0
    %4184 = vmatmul.mubr.bf16.gmra.mrb[0].mxu0 %v1326
    %v4185 = vpop.f32.mrb[0].mxu0
    %v4186 = vadd.f32 %v3845, %v4185
    %v4187 = vpop.f32.mrb[0].mxu0
    %v4188 = vpop.f32.mrb[0].mxu0
    %v4189 = vadd.f32 %v3848, %v4188
    %v4190 = vpop.f32.mrb[0].mxu0
    %4191 = vmatprep.mubr.bf16.mxu0 0
    %4192 = vmatmul.mubr.bf16.gmra.mrb[0].mxu0 %v1327
    %v4193 = vpop.f32.mrb[0].mxu0
    %v4194 = vpop.f32.mrb[0].mxu0
    %v4195 = vpop.f32.mrb[0].mxu0
    %v4196 = vpop.f32.mrb[0].mxu0
    %4197 = vmatprep.mubr.bf16.mxu0 0
    %4198 = vmatmul.mubr.bf16.gmra.mrb[0].mxu0 %v1328
    %v4199 = vpop.f32.mrb[0].mxu0
    %v4200 = vpop.f32.mrb[0].mxu0
    %v4201 = vpop.f32.mrb[0].mxu0
    %v4202 = vpop.f32.mrb[0].mxu0
    %4203 = vmatprep.mubr.bf16.mxu0 0
    %4204 = vmatmul.mubr.bf16.gmra.mrb[0].mxu0 %v1329
    %v4205 = vpop.f32.mrb[0].mxu0
    %v4206 = vadd.f32 %v3865, %v4205
    %v4207 = vpop.f32.mrb[0].mxu0
    %v4208 = vpop.f32.mrb[0].mxu0
    %v4209 = vadd.f32 %v3868, %v4208
    %v4210 = vpop.f32.mrb[0].mxu0
    %4211 = vmatprep.mubr.bf16.mxu0 0
    %4212 = vmatmul.mubr.bf16.gmra.mrb[0].mxu0 %v1330
    %v4213 = vpop.f32.mrb[0].mxu0
    %v4214 = vadd.f32 %v3873, %v4213
    %v4215 = vpop.f32.mrb[0].mxu0
    %v4216 = vpop.f32.mrb[0].mxu0
    %v4217 = vadd.f32 %v3876, %v4216
    %v4218 = vpop.f32.mrb[0].mxu0
    %4219 = vmatprep.mubr.bf16.mxu0 0
    %4220 = vmatmul.mubr.bf16.gmra.mrb[0].mxu0 %v1331
    %v4221 = vpop.f32.mrb[0].mxu0
    %v4222 = vadd.f32 %v3881, %v4221
    %v4223 = vpop.f32.mrb[0].mxu0
    %v4224 = vpop.f32.mrb[0].mxu0
    %v4225 = vadd.f32 %v3884, %v4224
    %v4226 = vpop.f32.mrb[0].mxu0
    %4227 = vmatprep.mubr.bf16.mxu0 0
    %4228 = vmatmul.mubr.bf16.gmra.mrb[0].mxu0 %v1332
    %v4229 = vpop.f32.mrb[0].mxu0
    %v4230 = vadd.f32 %v3889, %v4229
    %v4231 = vpop.f32.mrb[0].mxu0
    %v4232 = vpop.f32.mrb[0].mxu0
    %v4233 = vadd.f32 %v3892, %v4232
    %v4234 = vpop.f32.mrb[0].mxu0
    %4235 = vmatprep.mubr.bf16.mxu0 0
    %4236 = vmatmul.mubr.bf16.gmra.mrb[0].mxu0 %v1333
    %v4237 = vpop.f32.mrb[0].mxu0
    %v4238 = vadd.f32 %v3897, %v4237
    %v4239 = vpop.f32.mrb[0].mxu0
    %v4240 = vpop.f32.mrb[0].mxu0
    %v4241 = vadd.f32 %v3900, %v4240
    %v4242 = vpop.f32.mrb[0].mxu0
    %4243 = vmatprep.mubr.bf16.mxu0 0
    %4244 = vmatmul.mubr.bf16.gmra.mrb[0].mxu0 %v1334
    %v4245 = vpop.f32.mrb[0].mxu0
    %v4246 = vpop.f32.mrb[0].mxu0
    %v4247 = vpop.f32.mrb[0].mxu0
    %v4248 = vpop.f32.mrb[0].mxu0
    %4249 = vmatprep.mubr.bf16.mxu0 0
    %4250 = vmatmul.mubr.bf16.gmra.mrb[0].mxu0 %v1335
    %v4251 = vpop.f32.mrb[0].mxu0
    %v4252 = vpop.f32.mrb[0].mxu0
    %v4253 = vpop.f32.mrb[0].mxu0
    %v4254 = vpop.f32.mrb[0].mxu0
    %4255 = vmatprep.mubr.bf16.mxu0 0
    %4256 = vmatmul.mubr.bf16.gmra.mrb[0].mxu0 %v1336
    %v4257 = vpop.f32.mrb[0].mxu0
    %v4258 = vadd.f32 %v3917, %v4257
    %v4259 = vpop.f32.mrb[0].mxu0
    %v4260 = vpop.f32.mrb[0].mxu0
    %v4261 = vadd.f32 %v3920, %v4260
    %v4262 = vpop.f32.mrb[0].mxu0
    %4263 = vmatprep.mubr.bf16.mxu0 0
    %4264 = vmatmul.mubr.bf16.gmra.mrb[0].mxu0 %v1337
    %v4265 = vpop.f32.mrb[0].mxu0
    %v4266 = vadd.f32 %v3925, %v4265
    %v4267 = vpop.f32.mrb[0].mxu0
    %v4268 = vpop.f32.mrb[0].mxu0
    %v4269 = vadd.f32 %v3928, %v4268
    %v4270 = vpop.f32.mrb[0].mxu0
    %4271 = vmatprep.mubr.bf16.mxu0 0
    %4272 = vmatmul.mubr.bf16.gmra.mrb[0].mxu0 %v1338
    %v4273 = vpop.f32.mrb[0].mxu0
    %v4274 = vadd.f32 %v3933, %v4273
    %v4275 = vpop.f32.mrb[0].mxu0
    %v4276 = vpop.f32.mrb[0].mxu0
    %v4277 = vadd.f32 %v3936, %v4276
    %v4278 = vpop.f32.mrb[0].mxu0
    %4279 = vmatprep.mubr.bf16.mxu0 0
    %4280 = vmatmul.mubr.bf16.gmra.mrb[0].mxu0 %v1339
    %v4281 = vpop.f32.mrb[0].mxu0
    %v4282 = vadd.f32 %v3941, %v4281
    %v4283 = vpop.f32.mrb[0].mxu0
    %v4284 = vpop.f32.mrb[0].mxu0
    %v4285 = vadd.f32 %v3944, %v4284
    %v4286 = vpop.f32.mrb[0].mxu0
    %4287 = vmatprep.mubr.bf16.mxu0 0
    %4288 = vmatmul.mubr.bf16.gmra.mrb[0].mxu0 %v1340
    %v4289 = vpop.f32.mrb[0].mxu0
    %v4290 = vadd.f32 %v3949, %v4289
    %v4291 = vpop.f32.mrb[0].mxu0
    %v4292 = vpop.f32.mrb[0].mxu0
    %v4293 = vadd.f32 %v3952, %v4292
    %v4294 = vpop.f32.mrb[0].mxu0
    %4295 = vmatprep.mubr.bf16.mxu0 0
    %4296 = vmatmul.mubr.bf16.gmra.mrb[0].mxu0 %v1341
    %v4297 = vpop.f32.mrb[0].mxu0
    %v4298 = vpop.f32.mrb[0].mxu0
    %v4299 = vpop.f32.mrb[0].mxu0
    %v4300 = vpop.f32.mrb[0].mxu0
    %4301 = vmatprep.mubr.bf16.mxu0 0
    %4302 = vmatmul.mubr.bf16.gmra.mrb[0].mxu0 %v1342
    %v4303 = vpop.f32.mrb[0].mxu0
    %v4304 = vpop.f32.mrb[0].mxu0
    %v4305 = vpop.f32.mrb[0].mxu0
    %v4306 = vpop.f32.mrb[0].mxu0
    %4307 = vdwg.mxu0
    %s4308 = scalar_lea.vmem [#allocation11], 512
    %v4309 = vld [vmem:[%s4308] sm:$0xf]
    %v4310 = vld [vmem:[%s4308 + $0x4] sm:$0xf]
    %v4311 = vld [vmem:[%s4308 + $0x8] sm:$0xf]
    %v4312 = vld [vmem:[%s4308 + $0xc] sm:$0xf]
    %v4313 = vld [vmem:[%s4308 + $0x10] sm:$0xf]
    %v4314 = vld [vmem:[%s4308 + $0x14] sm:$0xf]
    %v4315 = vld [vmem:[%s4308 + $0x18] sm:$0xf]
    %v4316 = vld [vmem:[%s4308 + $0x1c] sm:$0xf]
    %v4317 = vld [vmem:[%s4308 + $0x20] sm:$0xf]
    %v4318 = vld [vmem:[%s4308 + $0x24] sm:$0xf]
    %v4319 = vld [vmem:[%s4308 + $0x28] sm:$0xf]
    %v4320 = vld [vmem:[%s4308 + $0x2c] sm:$0xf]
    %v4321 = vld [vmem:[%s4308 + $0x30] sm:$0xf]
    %v4322 = vld [vmem:[%s4308 + $0x34] sm:$0xf]
    %v4323 = vld [vmem:[%s4308 + $0x38] sm:$0xf]
    %v4324 = vld [vmem:[%s4308 + $0x3c] sm:$0xf]
    %v4341 = vunpack.c.l.b16 %v4309
    %v4342 = vunpack.c.l.b16 %v4310
    %v4343 = vunpack.c.l.b16 %v4311
    %v4344 = vunpack.c.l.b16 %v4312
    %v4345 = vunpack.c.l.b16 %v4313
    %v4346 = vunpack.c.l.b16 %v4314
    %v4347 = vunpack.c.l.b16 %v4315
    %v4348 = vunpack.c.l.b16 %v4316
    %v4349 = vunpack.c.l.b16 %v4317
    %v4350 = vunpack.c.l.b16 %v4318
    %v4351 = vunpack.c.l.b16 %v4319
    %v4352 = vunpack.c.l.b16 %v4320
    %v4353 = vunpack.c.l.b16 %v4321
    %v4354 = vunpack.c.l.b16 %v4322
    %v4355 = vunpack.c.l.b16 %v4323
    %v4356 = vunpack.c.l.b16 %v4324
    %v4357 = vpack.c.b16 %v4342, %v4341
    %v4358 = vpack.c.b16 %v4344, %v4343
    %v4359 = vpack.c.b16 %v4346, %v4345
    %v4360 = vpack.c.b16 %v4348, %v4347
    %v4361 = vpack.c.b16 %v4350, %v4349
    %v4362 = vpack.c.b16 %v4352, %v4351
    %v4363 = vpack.c.b16 %v4354, %v4353
    %v4364 = vpack.c.b16 %v4356, %v4355
    %4373 = vmatprep.subr.bf16.mxu0 0
    %4374 = vmatpush1.bf16.msra.mxu0 %v4357
    %4375 = vmatprep.subr.bf16.mxu0 0
    %4376 = vmatpush1.bf16.msra.mxu0 %v4358
    %4377 = vmatprep.subr.bf16.mxu0 0
    %4378 = vmatpush1.bf16.msra.mxu0 %v4359
    %4379 = vmatprep.subr.bf16.mxu0 0
    %4380 = vmatpush1.bf16.msra.mxu0 %v4360
    %4381 = vmatprep.subr.bf16.mxu0 0
    %4382 = vmatpush1.bf16.msra.mxu0 %v4361
    %4383 = vmatprep.subr.bf16.mxu0 0
    %4384 = vmatpush1.bf16.msra.mxu0 %v4362
    %4385 = vmatprep.subr.bf16.mxu0 0
    %4386 = vmatpush1.bf16.msra.mxu0 %v4363
    %4387 = vmatprep.subr.bf16.mxu0 0
    %4388 = vmatpush1.bf16.msra.mxu0 %v4364
    %4389 = vmatprep.subr.bf16.mxu0 0
    %4390 = vmatpush1.bf16.msra.mxu0 0
    %4391 = vmatprep.subr.bf16.mxu0 0
    %4392 = vmatpush1.bf16.msra.mxu0 0
    %4393 = vmatprep.subr.bf16.mxu0 0
    %4394 = vmatpush1.bf16.msra.mxu0 0
    %4395 = vmatprep.subr.bf16.mxu0 0
    %4396 = vmatpush1.bf16.msra.mxu0 0
    %4397 = vmatprep.subr.bf16.mxu0 0
    %4398 = vmatpush1.bf16.msra.mxu0 0
    %4399 = vmatprep.subr.bf16.mxu0 0
    %4400 = vmatpush1.bf16.msra.mxu0 0
    %4401 = vmatprep.subr.bf16.mxu0 0
    %4402 = vmatpush1.bf16.msra.mxu0 0
    %4403 = vmatprep.subr.bf16.mxu0 0
    %4404 = vmatpush1.bf16.msra.mxu0 0
    %4405 = vmatprep.mubr.bf16.mxu0 0
    %4406 = vmatmul.mubr.bf16.gmra.mrb[0].mxu0 %v1310
    %v4407 = vpop.f32.mrb[0].mxu0
    %v4408 = vadd.f32 0.0, %v4407
    %v4409 = vpop.f32.mrb[0].mxu0
    %v4410 = vpop.f32.mrb[0].mxu0
    %v4411 = vadd.f32 0.0, %v4410
    %v4412 = vpop.f32.mrb[0].mxu0
    %4413 = vmatprep.mubr.bf16.mxu0 0
    %4414 = vmatmul.mubr.bf16.gmra.mrb[0].mxu0 %v1311
    %v4415 = vpop.f32.mrb[0].mxu0
    %v4416 = vadd.f32 0.0, %v4415
    %v4417 = vpop.f32.mrb[0].mxu0
    %v4418 = vpop.f32.mrb[0].mxu0
    %v4419 = vadd.f32 0.0, %v4418
    %v4420 = vpop.f32.mrb[0].mxu0
    %4421 = vmatprep.mubr.bf16.mxu0 0
    %4422 = vmatmul.mubr.bf16.gmra.mrb[0].mxu0 %v1312
    %v4423 = vpop.f32.mrb[0].mxu0
    %v4424 = vadd.f32 0.0, %v4423
    %v4425 = vpop.f32.mrb[0].mxu0
    %v4426 = vpop.f32.mrb[0].mxu0
    %v4427 = vadd.f32 0.0, %v4426
    %v4428 = vpop.f32.mrb[0].mxu0
    %4429 = vmatprep.mubr.bf16.mxu0 0
    %4430 = vmatmul.mubr.bf16.gmra.mrb[0].mxu0 %v1313
    %v4431 = vpop.f32.mrb[0].mxu0
    %v4432 = vadd.f32 0.0, %v4431
    %v4433 = vpop.f32.mrb[0].mxu0
    %v4434 = vpop.f32.mrb[0].mxu0
    %v4435 = vadd.f32 0.0, %v4434
    %v4436 = vpop.f32.mrb[0].mxu0
    %4437 = vmatprep.mubr.bf16.mxu0 0
    %4438 = vmatmul.mubr.bf16.gmra.mrb[0].mxu0 %v1314
    %v4439 = vpop.f32.mrb[0].mxu0
    %v4440 = vadd.f32 0.0, %v4439
    %v4441 = vpop.f32.mrb[0].mxu0
    %v4442 = vpop.f32.mrb[0].mxu0
    %v4443 = vadd.f32 0.0, %v4442
    %v4444 = vpop.f32.mrb[0].mxu0
    %4445 = vmatprep.mubr.bf16.mxu0 0
    %4446 = vmatmul.mubr.bf16.gmra.mrb[0].mxu0 %v1315
    %v4447 = vpop.f32.mrb[0].mxu0
    %v4448 = vpop.f32.mrb[0].mxu0
    %v4449 = vpop.f32.mrb[0].mxu0
    %v4450 = vpop.f32.mrb[0].mxu0
    %4451 = vmatprep.mubr.bf16.mxu0 0
    %4452 = vmatmul.mubr.bf16.gmra.mrb[0].mxu0 %v1316
    %v4453 = vpop.f32.mrb[0].mxu0
    %v4454 = vpop.f32.mrb[0].mxu0
    %v4455 = vpop.f32.mrb[0].mxu0
    %v4456 = vpop.f32.mrb[0].mxu0
    %4457 = vmatprep.mubr.bf16.mxu0 0
    %4458 = vmatmul.mubr.bf16.gmra.mrb[0].mxu0 %v1317
    %v4459 = vpop.f32.mrb[0].mxu0
    %v4460 = vadd.f32 0.0, %v4459
    %v4461 = vpop.f32.mrb[0].mxu0
    %v4462 = vpop.f32.mrb[0].mxu0
    %v4463 = vadd.f32 0.0, %v4462
    %v4464 = vpop.f32.mrb[0].mxu0
    %4465 = vmatprep.mubr.bf16.mxu0 0
    %4466 = vmatmul.mubr.bf16.gmra.mrb[0].mxu0 %v1318
    %v4467 = vpop.f32.mrb[0].mxu0
    %v4468 = vadd.f32 0.0, %v4467
    %v4469 = vpop.f32.mrb[0].mxu0
    %v4470 = vpop.f32.mrb[0].mxu0
    %v4471 = vadd.f32 0.0, %v4470
    %v4472 = vpop.f32.mrb[0].mxu0
    %4473 = vmatprep.mubr.bf16.mxu0 0
    %4474 = vmatmul.mubr.bf16.gmra.mrb[0].mxu0 %v1319
    %v4475 = vpop.f32.mrb[0].mxu0
    %v4476 = vadd.f32 0.0, %v4475
    %v4477 = vpop.f32.mrb[0].mxu0
    %v4478 = vpop.f32.mrb[0].mxu0
    %v4479 = vadd.f32 0.0, %v4478
    %v4480 = vpop.f32.mrb[0].mxu0
    %4481 = vmatprep.mubr.bf16.mxu0 0
    %4482 = vmatmul.mubr.bf16.gmra.mrb[0].mxu0 %v1320
    %v4483 = vpop.f32.mrb[0].mxu0
    %v4484 = vadd.f32 0.0, %v4483
    %v4485 = vpop.f32.mrb[0].mxu0
    %v4486 = vpop.f32.mrb[0].mxu0
    %v4487 = vadd.f32 0.0, %v4486
    %v4488 = vpop.f32.mrb[0].mxu0
    %4489 = vmatprep.mubr.bf16.mxu0 0
    %4490 = vmatmul.mubr.bf16.gmra.mrb[0].mxu0 %v1321
    %v4491 = vpop.f32.mrb[0].mxu0
    %v4492 = vadd.f32 0.0, %v4491
    %v4493 = vpop.f32.mrb[0].mxu0
    %v4494 = vpop.f32.mrb[0].mxu0
    %v4495 = vadd.f32 0.0, %v4494
    %v4496 = vpop.f32.mrb[0].mxu0
    %4497 = vmatprep.mubr.bf16.mxu0 0
    %4498 = vmatmul.mubr.bf16.gmra.mrb[0].mxu0 %v1322
    %v4499 = vpop.f32.mrb[0].mxu0
    %v4500 = vpop.f32.mrb[0].mxu0
    %v4501 = vpop.f32.mrb[0].mxu0
    %v4502 = vpop.f32.mrb[0].mxu0
    %4503 = vmatprep.mubr.bf16.mxu0 0
    %4504 = vmatmul.mubr.bf16.gmra.mrb[0].mxu0 %v1323
    %v4505 = vpop.f32.mrb[0].mxu0
    %v4506 = vpop.f32.mrb[0].mxu0
    %v4507 = vpop.f32.mrb[0].mxu0
    %v4508 = vpop.f32.mrb[0].mxu0
    %4509 = vmatprep.mubr.bf16.mxu0 0
    %4510 = vmatmul.mubr.bf16.gmra.mrb[0].mxu0 %v1324
    %v4511 = vpop.f32.mrb[0].mxu0
    %v4512 = vadd.f32 0.0, %v4511
    %v4513 = vpop.f32.mrb[0].mxu0
    %v4514 = vpop.f32.mrb[0].mxu0
    %v4515 = vadd.f32 0.0, %v4514
    %v4516 = vpop.f32.mrb[0].mxu0
    %4517 = vmatprep.mubr.bf16.mxu0 0
    %4518 = vmatmul.mubr.bf16.gmra.mrb[0].mxu0 %v1325
    %v4519 = vpop.f32.mrb[0].mxu0
    %v4520 = vadd.f32 0.0, %v4519
    %v4521 = vpop.f32.mrb[0].mxu0
    %v4522 = vpop.f32.mrb[0].mxu0
    %v4523 = vadd.f32 0.0, %v4522
    %v4524 = vpop.f32.mrb[0].mxu0
    %4525 = vmatprep.mubr.bf16.mxu0 0
    %4526 = vmatmul.mubr.bf16.gmra.mrb[0].mxu0 %v1326
    %v4527 = vpop.f32.mrb[0].mxu0
    %v4528 = vadd.f32 0.0, %v4527
    %v4529 = vpop.f32.mrb[0].mxu0
    %v4530 = vpop.f32.mrb[0].mxu0
    %v4531 = vadd.f32 0.0, %v4530
    %v4532 = vpop.f32.mrb[0].mxu0
    %4533 = vmatprep.mubr.bf16.mxu0 0
    %4534 = vmatmul.mubr.bf16.gmra.mrb[0].mxu0 %v1327
    %v4535 = vpop.f32.mrb[0].mxu0
    %v4536 = vadd.f32 0.0, %v4535
    %v4537 = vpop.f32.mrb[0].mxu0
    %v4538 = vpop.f32.mrb[0].mxu0
    %v4539 = vadd.f32 0.0, %v4538
    %v4540 = vpop.f32.mrb[0].mxu0
    %4541 = vmatprep.mubr.bf16.mxu0 0
    %4542 = vmatmul.mubr.bf16.gmra.mrb[0].mxu0 %v1328
    %v4543 = vpop.f32.mrb[0].mxu0
    %v4544 = vadd.f32 0.0, %v4543
    %v4545 = vpop.f32.mrb[0].mxu0
    %v4546 = vpop.f32.mrb[0].mxu0
    %v4547 = vadd.f32 0.0, %v4546
    %v4548 = vpop.f32.mrb[0].mxu0
    %4549 = vmatprep.mubr.bf16.mxu0 0
    %4550 = vmatmul.mubr.bf16.gmra.mrb[0].mxu0 %v1329
    %v4551 = vpop.f32.mrb[0].mxu0
    %v4552 = vpop.f32.mrb[0].mxu0
    %v4553 = vpop.f32.mrb[0].mxu0
    %v4554 = vpop.f32.mrb[0].mxu0
    %4555 = vmatprep.mubr.bf16.mxu0 0
    %4556 = vmatmul.mubr.bf16.gmra.mrb[0].mxu0 %v1330
    %v4557 = vpop.f32.mrb[0].mxu0
    %v4558 = vpop.f32.mrb[0].mxu0
    %v4559 = vpop.f32.mrb[0].mxu0
    %v4560 = vpop.f32.mrb[0].mxu0
    %4561 = vmatprep.mubr.bf16.mxu0 0
    %4562 = vmatmul.mubr.bf16.gmra.mrb[0].mxu0 %v1331
    %v4563 = vpop.f32.mrb[0].mxu0
    %v4564 = vadd.f32 0.0, %v4563
    %v4565 = vpop.f32.mrb[0].mxu0
    %v4566 = vpop.f32.mrb[0].mxu0
    %v4567 = vadd.f32 0.0, %v4566
    %v4568 = vpop.f32.mrb[0].mxu0
    %4569 = vmatprep.mubr.bf16.mxu0 0
    %4570 = vmatmul.mubr.bf16.gmra.mrb[0].mxu0 %v1332
    %v4571 = vpop.f32.mrb[0].mxu0
    %v4572 = vadd.f32 0.0, %v4571
    %v4573 = vpop.f32.mrb[0].mxu0
    %v4574 = vpop.f32.mrb[0].mxu0
    %v4575 = vadd.f32 0.0, %v4574
    %v4576 = vpop.f32.mrb[0].mxu0
    %4577 = vmatprep.mubr.bf16.mxu0 0
    %4578 = vmatmul.mubr.bf16.gmra.mrb[0].mxu0 %v1333
    %v4579 = vpop.f32.mrb[0].mxu0
    %v4580 = vadd.f32 0.0, %v4579
    %v4581 = vpop.f32.mrb[0].mxu0
    %v4582 = vpop.f32.mrb[0].mxu0
    %v4583 = vadd.f32 0.0, %v4582
    %v4584 = vpop.f32.mrb[0].mxu0
    %4585 = vmatprep.mubr.bf16.mxu0 0
    %4586 = vmatmul.mubr.bf16.gmra.mrb[0].mxu0 %v1334
    %v4587 = vpop.f32.mrb[0].mxu0
    %v4588 = vadd.f32 0.0, %v4587
    %v4589 = vpop.f32.mrb[0].mxu0
    %v4590 = vpop.f32.mrb[0].mxu0
    %v4591 = vadd.f32 0.0, %v4590
    %v4592 = vpop.f32.mrb[0].mxu0
    %4593 = vmatprep.mubr.bf16.mxu0 0
    %4594 = vmatmul.mubr.bf16.gmra.mrb[0].mxu0 %v1335
    %v4595 = vpop.f32.mrb[0].mxu0
    %v4596 = vadd.f32 0.0, %v4595
    %v4597 = vpop.f32.mrb[0].mxu0
    %v4598 = vpop.f32.mrb[0].mxu0
    %v4599 = vadd.f32 0.0, %v4598
    %v4600 = vpop.f32.mrb[0].mxu0
    %4601 = vmatprep.mubr.bf16.mxu0 0
    %4602 = vmatmul.mubr.bf16.gmra.mrb[0].mxu0 %v1336
    %v4603 = vpop.f32.mrb[0].mxu0
    %v4604 = vpop.f32.mrb[0].mxu0
    %v4605 = vpop.f32.mrb[0].mxu0
    %v4606 = vpop.f32.mrb[0].mxu0
    %4607 = vmatprep.mubr.bf16.mxu0 0
    %4608 = vmatmul.mubr.bf16.gmra.mrb[0].mxu0 %v1337
    %v4609 = vpop.f32.mrb[0].mxu0
    %v4610 = vpop.f32.mrb[0].mxu0
    %v4611 = vpop.f32.mrb[0].mxu0
    %v4612 = vpop.f32.mrb[0].mxu0
    %4613 = vmatprep.mubr.bf16.mxu0 0
    %4614 = vmatmul.mubr.bf16.gmra.mrb[0].mxu0 %v1338
    %v4615 = vpop.f32.mrb[0].mxu0
    %v4616 = vadd.f32 0.0, %v4615
    %v4617 = vpop.f32.mrb[0].mxu0
    %v4618 = vpop.f32.mrb[0].mxu0
    %v4619 = vadd.f32 0.0, %v4618
    %v4620 = vpop.f32.mrb[0].mxu0
    %4621 = vmatprep.mubr.bf16.mxu0 0
    %4622 = vmatmul.mubr.bf16.gmra.mrb[0].mxu0 %v1339
    %v4623 = vpop.f32.mrb[0].mxu0
    %v4624 = vadd.f32 0.0, %v4623
    %v4625 = vpop.f32.mrb[0].mxu0
    %v4626 = vpop.f32.mrb[0].mxu0
    %v4627 = vadd.f32 0.0, %v4626
    %v4628 = vpop.f32.mrb[0].mxu0
    %4629 = vmatprep.mubr.bf16.mxu0 0
    %4630 = vmatmul.mubr.bf16.gmra.mrb[0].mxu0 %v1340
    %v4631 = vpop.f32.mrb[0].mxu0
    %v4632 = vadd.f32 0.0, %v4631
    %v4633 = vpop.f32.mrb[0].mxu0
    %v4634 = vpop.f32.mrb[0].mxu0
    %v4635 = vadd.f32 0.0, %v4634
    %v4636 = vpop.f32.mrb[0].mxu0
    %4637 = vmatprep.mubr.bf16.mxu0 0
    %4638 = vmatmul.mubr.bf16.gmra.mrb[0].mxu0 %v1341
    %v4639 = vpop.f32.mrb[0].mxu0
    %v4640 = vadd.f32 0.0, %v4639
    %v4641 = vpop.f32.mrb[0].mxu0
    %v4642 = vpop.f32.mrb[0].mxu0
    %v4643 = vadd.f32 0.0, %v4642
    %v4644 = vpop.f32.mrb[0].mxu0
    %4645 = vmatprep.mubr.bf16.mxu0 0
    %4646 = vmatmul.mubr.bf16.gmra.mrb[0].mxu0 %v1342
    %v4647 = vpop.f32.mrb[0].mxu0
    %v4648 = vadd.f32 0.0, %v4647
    %v4649 = vpop.f32.mrb[0].mxu0
    %v4650 = vpop.f32.mrb[0].mxu0
    %v4651 = vadd.f32 0.0, %v4650
    %v4652 = vpop.f32.mrb[0].mxu0
    %4653 = vmatprep.mubr.bf16.mxu0 0
    %4654 = vmatmul.mubr.bf16.gmra.mrb[0].mxu0 %v1343
    %v4655 = vpop.f32.mrb[0].mxu0
    %v4656 = vpop.f32.mrb[0].mxu0
    %v4657 = vpop.f32.mrb[0].mxu0
    %v4658 = vpop.f32.mrb[0].mxu0
    %4659 = vmatprep.mubr.bf16.mxu0 0
    %4660 = vmatmul.mubr.bf16.gmra.mrb[0].mxu0 %v1344
    %v4661 = vpop.f32.mrb[0].mxu0
    %v4662 = vpop.f32.mrb[0].mxu0
    %v4663 = vpop.f32.mrb[0].mxu0
    %v4664 = vpop.f32.mrb[0].mxu0
    %4665 = vdwg.mxu0
    %v4666 = vadd.f32 %v4050, %v4408
    %v4667 = vadd.f32 %v4053, %v4411
    %v4668 = vadd.f32 %v4058, %v4416
    %v4669 = vadd.f32 %v4061, %v4419
    %v4670 = vadd.f32 %v4066, %v4424
    %v4671 = vadd.f32 %v4069, %v4427
    %v4672 = vadd.f32 %v4074, %v4432
    %v4673 = vadd.f32 %v4077, %v4435
    %v4674 = vadd.f32 %v4082, %v4440
    %v4675 = vadd.f32 %v4085, %v4443
    %v4676 = vadd.f32 %v4102, %v4460
    %v4677 = vadd.f32 %v4105, %v4463
    %v4678 = vadd.f32 %v4110, %v4468
    %v4679 = vadd.f32 %v4113, %v4471
    %v4680 = vadd.f32 %v4118, %v4476
    %v4681 = vadd.f32 %v4121, %v4479
    %v4682 = vadd.f32 %v4126, %v4484
    %v4683 = vadd.f32 %v4129, %v4487
    %v4684 = vadd.f32 %v4134, %v4492
    %v4685 = vadd.f32 %v4137, %v4495
    %v4686 = vadd.f32 %v4154, %v4512
    %v4687 = vadd.f32 %v4157, %v4515
    %v4688 = vadd.f32 %v4162, %v4520
    %v4689 = vadd.f32 %v4165, %v4523
    %v4690 = vadd.f32 %v4170, %v4528
    %v4691 = vadd.f32 %v4173, %v4531
    %v4692 = vadd.f32 %v4178, %v4536
    %v4693 = vadd.f32 %v4181, %v4539
    %v4694 = vadd.f32 %v4186, %v4544
    %v4695 = vadd.f32 %v4189, %v4547
    %v4696 = vadd.f32 %v4206, %v4564
    %v4697 = vadd.f32 %v4209, %v4567
    %v4698 = vadd.f32 %v4214, %v4572
    %v4699 = vadd.f32 %v4217, %v4575
    %v4700 = vadd.f32 %v4222, %v4580
    %v4701 = vadd.f32 %v4225, %v4583
    %v4702 = vadd.f32 %v4230, %v4588
    %v4703 = vadd.f32 %v4233, %v4591
    %v4704 = vadd.f32 %v4238, %v4596
    %v4705 = vadd.f32 %v4241, %v4599
    %v4706 = vadd.f32 %v4258, %v4616
    %v4707 = vadd.f32 %v4261, %v4619
    %v4708 = vadd.f32 %v4266, %v4624
    %v4709 = vadd.f32 %v4269, %v4627
    %v4710 = vadd.f32 %v4274, %v4632
    %v4711 = vadd.f32 %v4277, %v4635
    %v4712 = vadd.f32 %v4282, %v4640
    %v4713 = vadd.f32 %v4285, %v4643
    %v4714 = vadd.f32 %v4290, %v4648
    %v4715 = vadd.f32 %v4293, %v4651
    %v4716 = vadd.f32 %v2418, %v3542
    %v4717 = vadd.f32 %v2419, %v3543
    %v4718 = vadd.f32 %v2420, %v3544
    %v4719 = vadd.f32 %v2421, %v3545
    %v4720 = vadd.f32 %v2422, %v3546
    %v4721 = vadd.f32 %v2423, %v3547
    %v4722 = vadd.f32 %v2424, %v3548
    %v4723 = vadd.f32 %v2425, %v3549
    %v4724 = vadd.f32 %v2426, %v3550
    %v4725 = vadd.f32 %v2427, %v3551
    %v4726 = vadd.f32 %v2428, %v3552
    %v4727 = vadd.f32 %v2429, %v3553
    %v4728 = vadd.f32 %v2430, %v3554
    %v4729 = vadd.f32 %v2431, %v3555
    %v4730 = vadd.f32 %v2432, %v3556
    %v4731 = vadd.f32 %v2433, %v3557
    %v4732 = vadd.f32 %v2434, %v3558
    %v4733 = vadd.f32 %v2435, %v3559
    %v4734 = vadd.f32 %v2436, %v3560
    %v4735 = vadd.f32 %v2437, %v3561
    %v4736 = vadd.f32 %v2438, %v3562
    %v4737 = vadd.f32 %v2439, %v3563
    %v4738 = vadd.f32 %v2440, %v3564
    %v4739 = vadd.f32 %v2441, %v3565
    %v4740 = vadd.f32 %v2442, %v3566
    %v4741 = vadd.f32 %v2443, %v3567
    %v4742 = vadd.f32 %v2444, %v3568
    %v4743 = vadd.f32 %v2445, %v3569
    %v4744 = vadd.f32 %v2446, %v3570
    %v4745 = vadd.f32 %v2447, %v3571
    %v4746 = vadd.f32 %v2448, %v3572
    %v4747 = vadd.f32 %v2449, %v3573
    %v4748 = vadd.f32 %v2450, %v3574
    %v4749 = vadd.f32 %v2451, %v3575
    %v4750 = vadd.f32 %v2452, %v3576
    %v4751 = vadd.f32 %v2453, %v3577
    %v4752 = vadd.f32 %v2454, %v3578
    %v4753 = vadd.f32 %v2455, %v3579
    %v4754 = vadd.f32 %v2456, %v3580
    %v4755 = vadd.f32 %v2457, %v3581
    %v4756 = vadd.f32 %v2458, %v3582
    %v4757 = vadd.f32 %v2459, %v3583
    %v4758 = vadd.f32 %v2460, %v3584
    %v4759 = vadd.f32 %v2461, %v3585
    %v4760 = vadd.f32 %v2462, %v3586
    %v4761 = vadd.f32 %v2463, %v3587
    %v4762 = vadd.f32 %v2464, %v3588
    %v4763 = vadd.f32 %v2465, %v3589
    %v4764 = vadd.f32 %v2466, %v3590
    %v4765 = vadd.f32 %v2467, %v3591
    %v4766 = vadd.f32 %v4716, %v4666
    %v4767 = vadd.f32 %v4717, %v4667
    %v4768 = vadd.f32 %v4718, %v4668
    %v4769 = vadd.f32 %v4719, %v4669
    %v4770 = vadd.f32 %v4720, %v4670
    %v4771 = vadd.f32 %v4721, %v4671
    %v4772 = vadd.f32 %v4722, %v4672
    %v4773 = vadd.f32 %v4723, %v4673
    %v4774 = vadd.f32 %v4724, %v4674
    %v4775 = vadd.f32 %v4725, %v4675
    %v4776 = vadd.f32 %v4726, %v4676
    %v4777 = vadd.f32 %v4727, %v4677
    %v4778 = vadd.f32 %v4728, %v4678
    %v4779 = vadd.f32 %v4729, %v4679
    %v4780 = vadd.f32 %v4730, %v4680
    %v4781 = vadd.f32 %v4731, %v4681
    %v4782 = vadd.f32 %v4732, %v4682
    %v4783 = vadd.f32 %v4733, %v4683
    %v4784 = vadd.f32 %v4734, %v4684
    %v4785 = vadd.f32 %v4735, %v4685
    %v4786 = vadd.f32 %v4736, %v4686
    %v4787 = vadd.f32 %v4737, %v4687
    %v4788 = vadd.f32 %v4738, %v4688
    %v4789 = vadd.f32 %v4739, %v4689
    %v4790 = vadd.f32 %v4740, %v4690
    %v4791 = vadd.f32 %v4741, %v4691
    %v4792 = vadd.f32 %v4742, %v4692
    %v4793 = vadd.f32 %v4743, %v4693
    %v4794 = vadd.f32 %v4744, %v4694
    %v4795 = vadd.f32 %v4745, %v4695
    %v4796 = vadd.f32 %v4746, %v4696
    %v4797 = vadd.f32 %v4747, %v4697
    %v4798 = vadd.f32 %v4748, %v4698
    %v4799 = vadd.f32 %v4749, %v4699
    %v4800 = vadd.f32 %v4750, %v4700
    %v4801 = vadd.f32 %v4751, %v4701
    %v4802 = vadd.f32 %v4752, %v4702
    %v4803 = vadd.f32 %v4753, %v4703
    %v4804 = vadd.f32 %v4754, %v4704
    %v4805 = vadd.f32 %v4755, %v4705
    %v4806 = vadd.f32 %v4756, %v4706
    %v4807 = vadd.f32 %v4757, %v4707
    %v4808 = vadd.f32 %v4758, %v4708
    %v4809 = vadd.f32 %v4759, %v4709
    %v4810 = vadd.f32 %v4760, %v4710
    %v4811 = vadd.f32 %v4761, %v4711
    %v4812 = vadd.f32 %v4762, %v4712
    %v4813 = vadd.f32 %v4763, %v4713
    %v4814 = vadd.f32 %v4764, %v4714
    %v4815 = vadd.f32 %v4765, %v4715
    %v4816 = vld [vmem:[#allocation12] sm:$0x1]
    %v4818 = vlaneseq
    %v4819 = vshrl.u32 %v4818, 7
    %v4820 = vsub.s32 0, %v4819
    %v4821 = vrot.slane %v4816, %v4820
    %v4823 = vadd.f32 %v4766, %v4821
    %v4824 = vadd.f32 %v4767, %v4821
    %v4825 = vadd.f32 %v4768, %v4821
    %v4826 = vadd.f32 %v4769, %v4821
    %v4827 = vadd.f32 %v4770, %v4821
    %v4828 = vadd.f32 %v4771, %v4821
    %v4829 = vadd.f32 %v4772, %v4821
    %v4830 = vadd.f32 %v4773, %v4821
    %v4831 = vadd.f32 %v4774, %v4821
    %v4832 = vadd.f32 %v4775, %v4821
    %v4833 = vadd.f32 %v4776, %v4821
    %v4834 = vadd.f32 %v4777, %v4821
    %v4835 = vadd.f32 %v4778, %v4821
    %v4836 = vadd.f32 %v4779, %v4821
    %v4837 = vadd.f32 %v4780, %v4821
    %v4838 = vadd.f32 %v4781, %v4821
    %v4839 = vadd.f32 %v4782, %v4821
    %v4840 = vadd.f32 %v4783, %v4821
    %v4841 = vadd.f32 %v4784, %v4821
    %v4842 = vadd.f32 %v4785, %v4821
    %v4843 = vadd.f32 %v4786, %v4821
    %v4844 = vadd.f32 %v4787, %v4821
    %v4845 = vadd.f32 %v4788, %v4821
    %v4846 = vadd.f32 %v4789, %v4821
    %v4847 = vadd.f32 %v4790, %v4821
    %v4848 = vadd.f32 %v4791, %v4821
    %v4849 = vadd.f32 %v4792, %v4821
    %v4850 = vadd.f32 %v4793, %v4821
    %v4851 = vadd.f32 %v4794, %v4821
    %v4852 = vadd.f32 %v4795, %v4821
    %v4853 = vadd.f32 %v4796, %v4821
    %v4854 = vadd.f32 %v4797, %v4821
    %v4855 = vadd.f32 %v4798, %v4821
    %v4856 = vadd.f32 %v4799, %v4821
    %v4857 = vadd.f32 %v4800, %v4821
    %v4858 = vadd.f32 %v4801, %v4821
    %v4859 = vadd.f32 %v4802, %v4821
    %v4860 = vadd.f32 %v4803, %v4821
    %v4861 = vadd.f32 %v4804, %v4821
    %v4862 = vadd.f32 %v4805, %v4821
    %v4863 = vadd.f32 %v4806, %v4821
    %v4864 = vadd.f32 %v4807, %v4821
    %v4865 = vadd.f32 %v4808, %v4821
    %v4866 = vadd.f32 %v4809, %v4821
    %v4867 = vadd.f32 %v4810, %v4821
    %v4868 = vadd.f32 %v4811, %v4821
    %v4869 = vadd.f32 %v4812, %v4821
    %v4870 = vadd.f32 %v4813, %v4821
    %v4871 = vadd.f32 %v4814, %v4821
    %v4872 = vadd.f32 %v4815, %v4821
    %v4873 = vmax.f32 %v4823, 0.0
    %v4874 = vmax.f32 %v4824, 0.0
    %v4875 = vmax.f32 %v4825, 0.0
    %v4876 = vmax.f32 %v4826, 0.0
    %v4877 = vmax.f32 %v4827, 0.0
    %v4878 = vmax.f32 %v4828, 0.0
    %v4879 = vmax.f32 %v4829, 0.0
    %v4880 = vmax.f32 %v4830, 0.0
    %v4881 = vmax.f32 %v4831, 0.0
    %v4882 = vmax.f32 %v4832, 0.0
    %v4883 = vmax.f32 %v4833, 0.0
    %v4884 = vmax.f32 %v4834, 0.0
    %v4885 = vmax.f32 %v4835, 0.0
    %v4886 = vmax.f32 %v4836, 0.0
    %v4887 = vmax.f32 %v4837, 0.0
    %v4888 = vmax.f32 %v4838, 0.0
    %v4889 = vmax.f32 %v4839, 0.0
    %v4890 = vmax.f32 %v4840, 0.0
    %v4891 = vmax.f32 %v4841, 0.0
    %v4892 = vmax.f32 %v4842, 0.0
    %v4893 = vmax.f32 %v4843, 0.0
    %v4894 = vmax.f32 %v4844, 0.0
    %v4895 = vmax.f32 %v4845, 0.0
    %v4896 = vmax.f32 %v4846, 0.0
    %v4897 = vmax.f32 %v4847, 0.0
    %v4898 = vmax.f32 %v4848, 0.0
    %v4899 = vmax.f32 %v4849, 0.0
    %v4900 = vmax.f32 %v4850, 0.0
    %v4901 = vmax.f32 %v4851, 0.0
    %v4902 = vmax.f32 %v4852, 0.0
    %v4903 = vmax.f32 %v4853, 0.0
    %v4904 = vmax.f32 %v4854, 0.0
    %v4905 = vmax.f32 %v4855, 0.0
    %v4906 = vmax.f32 %v4856, 0.0
    %v4907 = vmax.f32 %v4857, 0.0
    %v4908 = vmax.f32 %v4858, 0.0
    %v4909 = vmax.f32 %v4859, 0.0
    %v4910 = vmax.f32 %v4860, 0.0
    %v4911 = vmax.f32 %v4861, 0.0
    %v4912 = vmax.f32 %v4862, 0.0
    %v4913 = vmax.f32 %v4863, 0.0
    %v4914 = vmax.f32 %v4864, 0.0
    %v4915 = vmax.f32 %v4865, 0.0
    %v4916 = vmax.f32 %v4866, 0.0
    %v4917 = vmax.f32 %v4867, 0.0
    %v4918 = vmax.f32 %v4868, 0.0
    %v4919 = vmax.f32 %v4869, 0.0
    %v4920 = vmax.f32 %v4870, 0.0
    %v4921 = vmax.f32 %v4871, 0.0
    %v4922 = vmax.f32 %v4872, 0.0
    %v4923 = vpack.c.bf16 %v4874, %v4873
    %v4924 = vpack.c.bf16 %v4876, %v4875
    %v4925 = vpack.c.bf16 %v4878, %v4877
    %v4926 = vpack.c.bf16 %v4880, %v4879
    %v4927 = vpack.c.bf16 %v4882, %v4881
    %v4928 = vpack.c.bf16 %v4884, %v4883
    %v4929 = vpack.c.bf16 %v4886, %v4885
    %v4930 = vpack.c.bf16 %v4888, %v4887
    %v4931 = vpack.c.bf16 %v4890, %v4889
    %v4932 = vpack.c.bf16 %v4892, %v4891
    %v4933 = vpack.c.bf16 %v4894, %v4893
    %v4934 = vpack.c.bf16 %v4896, %v4895
    %v4935 = vpack.c.bf16 %v4898, %v4897
    %v4936 = vpack.c.bf16 %v4900, %v4899
    %v4937 = vpack.c.bf16 %v4902, %v4901
    %v4938 = vpack.c.bf16 %v4904, %v4903
    %v4939 = vpack.c.bf16 %v4906, %v4905
    %v4940 = vpack.c.bf16 %v4908, %v4907
    %v4941 = vpack.c.bf16 %v4910, %v4909
    %v4942 = vpack.c.bf16 %v4912, %v4911
    %v4943 = vpack.c.bf16 %v4914, %v4913
    %v4944 = vpack.c.bf16 %v4916, %v4915
    %v4945 = vpack.c.bf16 %v4918, %v4917
    %v4946 = vpack.c.bf16 %v4920, %v4919
    %v4947 = vpack.c.bf16 %v4922, %v4921
    %4948 = vst [vmem:[#allocation2] sm:$0xff] %v4923
    %4949 = vst [vmem:[#allocation2 + $0x8] sm:$0xff] %v4924
    %4950 = vst [vmem:[#allocation2 + $0x10] sm:$0xff] %v4925
    %4951 = vst [vmem:[#allocation2 + $0x18] sm:$0xff] %v4926
    %4952 = vst [vmem:[#allocation2 + $0x20] sm:$0xff] %v4927
    %4953 = vst [vmem:[#allocation2 + $0x28] sm:$0xff] %v4928
    %4954 = vst [vmem:[#allocation2 + $0x30] sm:$0xff] %v4929
    %4955 = vst [vmem:[#allocation2 + $0x38] sm:$0xff] %v4930
    %4956 = vst [vmem:[#allocation2 + $0x40] sm:$0xff] %v4931
    %4957 = vst [vmem:[#allocation2 + $0x48] sm:$0xff] %v4932
    %4958 = vst [vmem:[#allocation2 + $0x50] sm:$0xff] %v4933
    %4959 = vst [vmem:[#allocation2 + $0x58] sm:$0xff] %v4934
    %4960 = vst [vmem:[#allocation2 + $0x60] sm:$0xff] %v4935
    %4961 = vst [vmem:[#allocation2 + $0x68] sm:$0xff] %v4936
    %4962 = vst [vmem:[#allocation2 + $0x70] sm:$0xff] %v4937
    %4963 = vst [vmem:[#allocation2 + $0x78] sm:$0xff] %v4938
    %4964 = vst [vmem:[#allocation2 + $0x80] sm:$0xff] %v4939
    %4965 = vst [vmem:[#allocation2 + $0x88] sm:$0xff] %v4940
    %4966 = vst [vmem:[#allocation2 + $0x90] sm:$0xff] %v4941
    %4967 = vst [vmem:[#allocation2 + $0x98] sm:$0xff] %v4942
    %4968 = vst [vmem:[#allocation2 + $0xa0] sm:$0xff] %v4943
    %4969 = vst [vmem:[#allocation2 + $0xa8] sm:$0xff] %v4944
    %4970 = vst [vmem:[#allocation2 + $0xb0] sm:$0xff] %v4945
    %4971 = vst [vmem:[#allocation2 + $0xb8] sm:$0xff] %v4946
    %4972 = vst [vmem:[#allocation2 + $0xc0] sm:$0xff] %v4947
    %v4973 = vld [vmem:[#allocation2] sm:$0xff]
    %v4974 = vld [vmem:[#allocation2 + $0x8] sm:$0xff]
    %v4975 = vld [vmem:[#allocation2 + $0x10] sm:$0xff]
    %v4976 = vld [vmem:[#allocation2 + $0x18] sm:$0xff]
    %v4977 = vld [vmem:[#allocation2 + $0x20] sm:$0xff]
    %v4978 = vld [vmem:[#allocation2 + $0x28] sm:$0xff]
    %v4979 = vld [vmem:[#allocation2 + $0x30] sm:$0xff]
    %v4980 = vld [vmem:[#allocation2 + $0x38] sm:$0xff]
    %v4981 = vld [vmem:[#allocation2 + $0x40] sm:$0xff]
    %v4982 = vld [vmem:[#allocation2 + $0x48] sm:$0xff]
    %v4983 = vld [vmem:[#allocation2 + $0x50] sm:$0xff]
    %v4984 = vld [vmem:[#allocation2 + $0x58] sm:$0xff]
    %v4985 = vld [vmem:[#allocation2 + $0x60] sm:$0xff]
    %v4986 = vld [vmem:[#allocation2 + $0x68] sm:$0xff]
    %v4987 = vld [vmem:[#allocation2 + $0x70] sm:$0xff]
    %v4988 = vld [vmem:[#allocation2 + $0x78] sm:$0xff]
    %v4989 = vld [vmem:[#allocation2 + $0x80] sm:$0xff]
    %v4990 = vld [vmem:[#allocation2 + $0x88] sm:$0xff]
    %v4991 = vld [vmem:[#allocation2 + $0x90] sm:$0xff]
    %v4992 = vld [vmem:[#allocation2 + $0x98] sm:$0xff]
    %v4993 = vld [vmem:[#allocation2 + $0xa0] sm:$0xff]
    %v4994 = vld [vmem:[#allocation2 + $0xa8] sm:$0xff]
    %v4995 = vld [vmem:[#allocation2 + $0xb0] sm:$0xff]
    %v4996 = vld [vmem:[#allocation2 + $0xb8] sm:$0xff]
    %v4997 = vld [vmem:[#allocation2 + $0xc0] sm:$0xff]
    %v4998 = vld [vmem:[#allocation14] sm:$0xf]
    %v4999 = vld [vmem:[#allocation14 + $0x4] sm:$0xf]
    %v5000 = vld [vmem:[#allocation14 + $0x8] sm:$0xf]
    %v5001 = vld [vmem:[#allocation14 + $0xc] sm:$0xf]
    %v5002 = vld [vmem:[#allocation14 + $0x10] sm:$0xf]
    %v5003 = vld [vmem:[#allocation14 + $0x14] sm:$0xf]
    %v5004 = vld [vmem:[#allocation14 + $0x18] sm:$0xf]
    %v5005 = vld [vmem:[#allocation14 + $0x1c] sm:$0xf]
    %v5006 = vld [vmem:[#allocation14 + $0x20] sm:$0xf]
    %v5007 = vld [vmem:[#allocation14 + $0x24] sm:$0xf]
    %v5008 = vld [vmem:[#allocation14 + $0x28] sm:$0xf]
    %v5009 = vld [vmem:[#allocation14 + $0x2c] sm:$0xf]
    %v5010 = vld [vmem:[#allocation14 + $0x30] sm:$0xf]
    %v5011 = vld [vmem:[#allocation14 + $0x34] sm:$0xf]
    %v5012 = vld [vmem:[#allocation14 + $0x38] sm:$0xf]
    %v5013 = vld [vmem:[#allocation14 + $0x3c] sm:$0xf]
    %v5014 = vld [vmem:[#allocation14 + $0x40] sm:$0xf]
    %v5015 = vld [vmem:[#allocation14 + $0x44] sm:$0xf]
    %v5016 = vld [vmem:[#allocation14 + $0x48] sm:$0xf]
    %v5017 = vld [vmem:[#allocation14 + $0x4c] sm:$0xf]
    %v5018 = vld [vmem:[#allocation14 + $0x50] sm:$0xf]
    %v5019 = vld [vmem:[#allocation14 + $0x54] sm:$0xf]
    %v5020 = vld [vmem:[#allocation14 + $0x58] sm:$0xf]
    %v5021 = vld [vmem:[#allocation14 + $0x5c] sm:$0xf]
    %v5022 = vld [vmem:[#allocation14 + $0x60] sm:$0xf]
    %v5023 = vld [vmem:[#allocation14 + $0x64] sm:$0xf]
    %v5024 = vld [vmem:[#allocation14 + $0x68] sm:$0xf]
    %v5025 = vld [vmem:[#allocation14 + $0x6c] sm:$0xf]
    %v5026 = vld [vmem:[#allocation14 + $0x70] sm:$0xf]
    %v5027 = vld [vmem:[#allocation14 + $0x74] sm:$0xf]
    %v5028 = vld [vmem:[#allocation14 + $0x78] sm:$0xf]
    %v5029 = vld [vmem:[#allocation14 + $0x7c] sm:$0xf]
    %v5030 = vld [vmem:[#allocation14 + $0x80] sm:$0xf]
    %v5031 = vld [vmem:[#allocation14 + $0x84] sm:$0xf]
    %v5032 = vld [vmem:[#allocation14 + $0x88] sm:$0xf]
    %v5033 = vld [vmem:[#allocation14 + $0x8c] sm:$0xf]
    %v5034 = vld [vmem:[#allocation14 + $0x90] sm:$0xf]
    %v5035 = vld [vmem:[#allocation14 + $0x94] sm:$0xf]
    %v5036 = vld [vmem:[#allocation14 + $0x98] sm:$0xf]
    %v5037 = vld [vmem:[#allocation14 + $0x9c] sm:$0xf]
    %v5038 = vld [vmem:[#allocation14 + $0xa0] sm:$0xf]
    %v5039 = vld [vmem:[#allocation14 + $0xa4] sm:$0xf]
    %v5040 = vld [vmem:[#allocation14 + $0xa8] sm:$0xf]
    %v5041 = vld [vmem:[#allocation14 + $0xac] sm:$0xf]
    %v5042 = vld [vmem:[#allocation14 + $0xb0] sm:$0xf]
    %v5043 = vld [vmem:[#allocation14 + $0xb4] sm:$0xf]
    %v5044 = vld [vmem:[#allocation14 + $0xb8] sm:$0xf]
    %v5045 = vld [vmem:[#allocation14 + $0xbc] sm:$0xf]
    %v5046 = vld [vmem:[#allocation14 + $0xc0] sm:$0xf]
    %v5047 = vld [vmem:[#allocation14 + $0xc4] sm:$0xf]
    %v5048 = vld [vmem:[#allocation14 + $0xc8] sm:$0xf]
    %v5049 = vld [vmem:[#allocation14 + $0xcc] sm:$0xf]
    %v5050 = vld [vmem:[#allocation14 + $0xd0] sm:$0xf]
    %v5051 = vld [vmem:[#allocation14 + $0xd4] sm:$0xf]
    %v5052 = vld [vmem:[#allocation14 + $0xd8] sm:$0xf]
    %v5053 = vld [vmem:[#allocation14 + $0xdc] sm:$0xf]
    %v5054 = vld [vmem:[#allocation14 + $0xe0] sm:$0xf]
    %v5055 = vld [vmem:[#allocation14 + $0xe4] sm:$0xf]
    %v5056 = vld [vmem:[#allocation14 + $0xe8] sm:$0xf]
    %v5057 = vld [vmem:[#allocation14 + $0xec] sm:$0xf]
    %v5058 = vld [vmem:[#allocation14 + $0xf0] sm:$0xf]
    %v5059 = vld [vmem:[#allocation14 + $0xf4] sm:$0xf]
    %v5060 = vld [vmem:[#allocation14 + $0xf8] sm:$0xf]
    %v5061 = vld [vmem:[#allocation14 + $0xfc] sm:$0xf]
    %v5062 = vld [vmem:[#allocation14 + $0x100] sm:$0xf]
    %v5063 = vld [vmem:[#allocation14 + $0x104] sm:$0xf]
    %v5064 = vld [vmem:[#allocation14 + $0x108] sm:$0xf]
    %v5065 = vld [vmem:[#allocation14 + $0x10c] sm:$0xf]
    %v5066 = vld [vmem:[#allocation14 + $0x110] sm:$0xf]
    %v5067 = vld [vmem:[#allocation14 + $0x114] sm:$0xf]
    %v5068 = vld [vmem:[#allocation14 + $0x118] sm:$0xf]
    %v5069 = vld [vmem:[#allocation14 + $0x11c] sm:$0xf]
    %v5070 = vld [vmem:[#allocation14 + $0x120] sm:$0xf]
    %v5071 = vld [vmem:[#allocation14 + $0x124] sm:$0xf]
    %v5072 = vld [vmem:[#allocation14 + $0x128] sm:$0xf]
    %v5073 = vld [vmem:[#allocation14 + $0x12c] sm:$0xf]
    %v5074 = vld [vmem:[#allocation14 + $0x130] sm:$0xf]
    %v5075 = vld [vmem:[#allocation14 + $0x134] sm:$0xf]
    %v5076 = vld [vmem:[#allocation14 + $0x138] sm:$0xf]
    %v5077 = vld [vmem:[#allocation14 + $0x13c] sm:$0xf]
    %v5078 = vld [vmem:[#allocation14 + $0x140] sm:$0xf]
    %v5079 = vld [vmem:[#allocation14 + $0x144] sm:$0xf]
    %v5080 = vld [vmem:[#allocation14 + $0x148] sm:$0xf]
    %v5081 = vld [vmem:[#allocation14 + $0x14c] sm:$0xf]
    %v5082 = vld [vmem:[#allocation14 + $0x150] sm:$0xf]
    %v5083 = vld [vmem:[#allocation14 + $0x154] sm:$0xf]
    %v5084 = vld [vmem:[#allocation14 + $0x158] sm:$0xf]
    %v5085 = vld [vmem:[#allocation14 + $0x15c] sm:$0xf]
    %v5086 = vld [vmem:[#allocation14 + $0x160] sm:$0xf]
    %v5087 = vld [vmem:[#allocation14 + $0x164] sm:$0xf]
    %v5088 = vld [vmem:[#allocation14 + $0x168] sm:$0xf]
    %v5089 = vld [vmem:[#allocation14 + $0x16c] sm:$0xf]
    %v5090 = vld [vmem:[#allocation14 + $0x170] sm:$0xf]
    %v5091 = vld [vmem:[#allocation14 + $0x174] sm:$0xf]
    %v5092 = vld [vmem:[#allocation14 + $0x178] sm:$0xf]
    %v5093 = vld [vmem:[#allocation14 + $0x17c] sm:$0xf]
    %v5094 = vld [vmem:[#allocation14 + $0x180] sm:$0xf]
    %v5095 = vld [vmem:[#allocation14 + $0x184] sm:$0xf]
    %v5096 = vld [vmem:[#allocation14 + $0x188] sm:$0xf]
    %v5097 = vld [vmem:[#allocation14 + $0x18c] sm:$0xf]
    %v5098 = vld [vmem:[#allocation14 + $0x190] sm:$0xf]
    %v5099 = vld [vmem:[#allocation14 + $0x194] sm:$0xf]
    %v5100 = vld [vmem:[#allocation14 + $0x198] sm:$0xf]
    %v5101 = vld [vmem:[#allocation14 + $0x19c] sm:$0xf]
    %v5102 = vld [vmem:[#allocation14 + $0x1a0] sm:$0xf]
    %v5103 = vld [vmem:[#allocation14 + $0x1a4] sm:$0xf]
    %v5104 = vld [vmem:[#allocation14 + $0x1a8] sm:$0xf]
    %v5105 = vld [vmem:[#allocation14 + $0x1ac] sm:$0xf]
    %v5106 = vld [vmem:[#allocation14 + $0x1b0] sm:$0xf]
    %v5107 = vld [vmem:[#allocation14 + $0x1b4] sm:$0xf]
    %v5108 = vld [vmem:[#allocation14 + $0x1b8] sm:$0xf]
    %v5109 = vld [vmem:[#allocation14 + $0x1bc] sm:$0xf]
    %v5110 = vld [vmem:[#allocation14 + $0x1c0] sm:$0xf]
    %v5111 = vld [vmem:[#allocation14 + $0x1c4] sm:$0xf]
    %v5112 = vld [vmem:[#allocation14 + $0x1c8] sm:$0xf]
    %v5113 = vld [vmem:[#allocation14 + $0x1cc] sm:$0xf]
    %v5114 = vld [vmem:[#allocation14 + $0x1d0] sm:$0xf]
    %v5115 = vld [vmem:[#allocation14 + $0x1d4] sm:$0xf]
    %v5116 = vld [vmem:[#allocation14 + $0x1d8] sm:$0xf]
    %v5117 = vld [vmem:[#allocation14 + $0x1dc] sm:$0xf]
    %v5118 = vld [vmem:[#allocation14 + $0x1e0] sm:$0xf]
    %v5119 = vld [vmem:[#allocation14 + $0x1e4] sm:$0xf]
    %v5120 = vld [vmem:[#allocation14 + $0x1e8] sm:$0xf]
    %v5121 = vld [vmem:[#allocation14 + $0x1ec] sm:$0xf]
    %v5122 = vld [vmem:[#allocation14 + $0x1f0] sm:$0xf]
    %v5123 = vld [vmem:[#allocation14 + $0x1f4] sm:$0xf]
    %v5124 = vld [vmem:[#allocation14 + $0x1f8] sm:$0xf]
    %v5125 = vld [vmem:[#allocation14 + $0x1fc] sm:$0xf]
    %v5126 = vld [vmem:[#allocation14 + $0x200] sm:$0xf]
    %v5127 = vld [vmem:[#allocation14 + $0x204] sm:$0xf]
    %v5128 = vld [vmem:[#allocation14 + $0x208] sm:$0xf]
    %v5129 = vld [vmem:[#allocation14 + $0x20c] sm:$0xf]
    %v5130 = vld [vmem:[#allocation14 + $0x210] sm:$0xf]
    %v5131 = vld [vmem:[#allocation14 + $0x214] sm:$0xf]
    %v5132 = vld [vmem:[#allocation14 + $0x218] sm:$0xf]
    %v5133 = vld [vmem:[#allocation14 + $0x21c] sm:$0xf]
    %v5134 = vld [vmem:[#allocation14 + $0x220] sm:$0xf]
    %v5135 = vld [vmem:[#allocation14 + $0x224] sm:$0xf]
    %v5136 = vld [vmem:[#allocation14 + $0x228] sm:$0xf]
    %v5137 = vld [vmem:[#allocation14 + $0x22c] sm:$0xf]
    %v5138 = vld [vmem:[#allocation14 + $0x230] sm:$0xf]
    %v5139 = vld [vmem:[#allocation14 + $0x234] sm:$0xf]
    %v5140 = vld [vmem:[#allocation14 + $0x238] sm:$0xf]
    %v5141 = vld [vmem:[#allocation14 + $0x23c] sm:$0xf]
    %v5142 = vld [vmem:[#allocation14 + $0x240] sm:$0xf]
    %v5143 = vld [vmem:[#allocation14 + $0x244] sm:$0xf]
    %v5144 = vld [vmem:[#allocation14 + $0x248] sm:$0xf]
    %v5145 = vld [vmem:[#allocation14 + $0x24c] sm:$0xf]
    %v5146 = vld [vmem:[#allocation14 + $0x250] sm:$0xf]
    %v5147 = vld [vmem:[#allocation14 + $0x254] sm:$0xf]
    %v5148 = vld [vmem:[#allocation14 + $0x258] sm:$0xf]
    %v5149 = vld [vmem:[#allocation14 + $0x25c] sm:$0xf]
    %v5150 = vld [vmem:[#allocation14 + $0x260] sm:$0xf]
    %v5151 = vld [vmem:[#allocation14 + $0x264] sm:$0xf]
    %v5152 = vld [vmem:[#allocation14 + $0x268] sm:$0xf]
    %v5153 = vld [vmem:[#allocation14 + $0x26c] sm:$0xf]
    %v5154 = vld [vmem:[#allocation14 + $0x270] sm:$0xf]
    %v5155 = vld [vmem:[#allocation14 + $0x274] sm:$0xf]
    %v5156 = vld [vmem:[#allocation14 + $0x278] sm:$0xf]
    %v5157 = vld [vmem:[#allocation14 + $0x27c] sm:$0xf]
    %v5158 = vld [vmem:[#allocation14 + $0x280] sm:$0xf]
    %v5159 = vld [vmem:[#allocation14 + $0x284] sm:$0xf]
    %v5160 = vld [vmem:[#allocation14 + $0x288] sm:$0xf]
    %v5161 = vld [vmem:[#allocation14 + $0x28c] sm:$0xf]
    %v5162 = vld [vmem:[#allocation14 + $0x290] sm:$0xf]
    %v5163 = vld [vmem:[#allocation14 + $0x294] sm:$0xf]
    %v5164 = vld [vmem:[#allocation14 + $0x298] sm:$0xf]
    %v5165 = vld [vmem:[#allocation14 + $0x29c] sm:$0xf]
    %v5166 = vld [vmem:[#allocation14 + $0x2a0] sm:$0xf]
    %v5167 = vld [vmem:[#allocation14 + $0x2a4] sm:$0xf]
    %v5168 = vld [vmem:[#allocation14 + $0x2a8] sm:$0xf]
    %v5169 = vld [vmem:[#allocation14 + $0x2ac] sm:$0xf]
    %v5170 = vld [vmem:[#allocation14 + $0x2b0] sm:$0xf]
    %v5171 = vld [vmem:[#allocation14 + $0x2b4] sm:$0xf]
    %v5172 = vld [vmem:[#allocation14 + $0x2b8] sm:$0xf]
    %v5173 = vld [vmem:[#allocation14 + $0x2bc] sm:$0xf]
    %v5174 = vld [vmem:[#allocation14 + $0x2c0] sm:$0xf]
    %v5175 = vld [vmem:[#allocation14 + $0x2c4] sm:$0xf]
    %v5176 = vld [vmem:[#allocation14 + $0x2c8] sm:$0xf]
    %v5177 = vld [vmem:[#allocation14 + $0x2cc] sm:$0xf]
    %v5178 = vld [vmem:[#allocation14 + $0x2d0] sm:$0xf]
    %v5179 = vld [vmem:[#allocation14 + $0x2d4] sm:$0xf]
    %v5180 = vld [vmem:[#allocation14 + $0x2d8] sm:$0xf]
    %v5181 = vld [vmem:[#allocation14 + $0x2dc] sm:$0xf]
    %v5182 = vld [vmem:[#allocation14 + $0x2e0] sm:$0xf]
    %v5183 = vld [vmem:[#allocation14 + $0x2e4] sm:$0xf]
    %v5184 = vld [vmem:[#allocation14 + $0x2e8] sm:$0xf]
    %v5185 = vld [vmem:[#allocation14 + $0x2ec] sm:$0xf]
    %v5186 = vld [vmem:[#allocation14 + $0x2f0] sm:$0xf]
    %v5187 = vld [vmem:[#allocation14 + $0x2f4] sm:$0xf]
    %v5188 = vld [vmem:[#allocation14 + $0x2f8] sm:$0xf]
    %v5189 = vld [vmem:[#allocation14 + $0x2fc] sm:$0xf]
    %v5190 = vld [vmem:[#allocation14 + $0x300] sm:$0xf]
    %v5191 = vld [vmem:[#allocation14 + $0x304] sm:$0xf]
    %v5192 = vld [vmem:[#allocation14 + $0x308] sm:$0xf]
    %v5193 = vld [vmem:[#allocation14 + $0x30c] sm:$0xf]
    %v5194 = vld [vmem:[#allocation14 + $0x310] sm:$0xf]
    %v5195 = vld [vmem:[#allocation14 + $0x314] sm:$0xf]
    %v5196 = vld [vmem:[#allocation14 + $0x318] sm:$0xf]
    %v5197 = vld [vmem:[#allocation14 + $0x31c] sm:$0xf]
    %v5198 = vld [vmem:[#allocation14 + $0x320] sm:$0xf]
    %v5199 = vld [vmem:[#allocation14 + $0x324] sm:$0xf]
    %v5200 = vld [vmem:[#allocation14 + $0x328] sm:$0xf]
    %v5201 = vld [vmem:[#allocation14 + $0x32c] sm:$0xf]
    %v5202 = vld [vmem:[#allocation14 + $0x330] sm:$0xf]
    %v5203 = vld [vmem:[#allocation14 + $0x334] sm:$0xf]
    %v5204 = vld [vmem:[#allocation14 + $0x338] sm:$0xf]
    %v5205 = vld [vmem:[#allocation14 + $0x33c] sm:$0xf]
    %v5206 = vld [vmem:[#allocation14 + $0x340] sm:$0xf]
    %v5207 = vld [vmem:[#allocation14 + $0x344] sm:$0xf]
    %v5208 = vld [vmem:[#allocation14 + $0x348] sm:$0xf]
    %v5209 = vld [vmem:[#allocation14 + $0x34c] sm:$0xf]
    %v5210 = vld [vmem:[#allocation14 + $0x350] sm:$0xf]
    %v5211 = vld [vmem:[#allocation14 + $0x354] sm:$0xf]
    %v5212 = vld [vmem:[#allocation14 + $0x358] sm:$0xf]
    %v5213 = vld [vmem:[#allocation14 + $0x35c] sm:$0xf]
    %v5214 = vld [vmem:[#allocation14 + $0x360] sm:$0xf]
    %v5215 = vld [vmem:[#allocation14 + $0x364] sm:$0xf]
    %v5216 = vld [vmem:[#allocation14 + $0x368] sm:$0xf]
    %v5217 = vld [vmem:[#allocation14 + $0x36c] sm:$0xf]
    %v5218 = vld [vmem:[#allocation14 + $0x370] sm:$0xf]
    %v5219 = vld [vmem:[#allocation14 + $0x374] sm:$0xf]
    %v5220 = vld [vmem:[#allocation14 + $0x378] sm:$0xf]
    %v5221 = vld [vmem:[#allocation14 + $0x37c] sm:$0xf]
    %v5222 = vld [vmem:[#allocation14 + $0x380] sm:$0xf]
    %v5223 = vld [vmem:[#allocation14 + $0x384] sm:$0xf]
    %v5224 = vld [vmem:[#allocation14 + $0x388] sm:$0xf]
    %v5225 = vld [vmem:[#allocation14 + $0x38c] sm:$0xf]
    %v5226 = vld [vmem:[#allocation14 + $0x390] sm:$0xf]
    %v5227 = vld [vmem:[#allocation14 + $0x394] sm:$0xf]
    %v5228 = vld [vmem:[#allocation14 + $0x398] sm:$0xf]
    %v5229 = vld [vmem:[#allocation14 + $0x39c] sm:$0xf]
    %v5230 = vld [vmem:[#allocation14 + $0x3a0] sm:$0xf]
    %v5231 = vld [vmem:[#allocation14 + $0x3a4] sm:$0xf]
    %v5232 = vld [vmem:[#allocation14 + $0x3a8] sm:$0xf]
    %v5233 = vld [vmem:[#allocation14 + $0x3ac] sm:$0xf]
    %v5234 = vld [vmem:[#allocation14 + $0x3b0] sm:$0xf]
    %v5235 = vld [vmem:[#allocation14 + $0x3b4] sm:$0xf]
    %v5236 = vld [vmem:[#allocation14 + $0x3b8] sm:$0xf]
    %v5237 = vld [vmem:[#allocation14 + $0x3bc] sm:$0xf]
    %v5238 = vld [vmem:[#allocation14 + $0x3c0] sm:$0xf]
    %v5239 = vld [vmem:[#allocation14 + $0x3c4] sm:$0xf]
    %v5240 = vld [vmem:[#allocation14 + $0x3c8] sm:$0xf]
    %v5241 = vld [vmem:[#allocation14 + $0x3cc] sm:$0xf]
    %v5242 = vld [vmem:[#allocation14 + $0x3d0] sm:$0xf]
    %v5243 = vld [vmem:[#allocation14 + $0x3d4] sm:$0xf]
    %v5244 = vld [vmem:[#allocation14 + $0x3d8] sm:$0xf]
    %v5245 = vld [vmem:[#allocation14 + $0x3dc] sm:$0xf]
    %v5246 = vld [vmem:[#allocation14 + $0x3e0] sm:$0xf]
    %v5247 = vld [vmem:[#allocation14 + $0x3e4] sm:$0xf]
    %v5248 = vld [vmem:[#allocation14 + $0x3e8] sm:$0xf]
    %v5249 = vld [vmem:[#allocation14 + $0x3ec] sm:$0xf]
    %v5250 = vld [vmem:[#allocation14 + $0x3f0] sm:$0xf]
    %v5251 = vld [vmem:[#allocation14 + $0x3f4] sm:$0xf]
    %v5252 = vld [vmem:[#allocation14 + $0x3f8] sm:$0xf]
    %v5253 = vld [vmem:[#allocation14 + $0x3fc] sm:$0xf]
    %v5254 = vld [vmem:[#allocation14 + $0x400] sm:$0xf]
    %v5255 = vld [vmem:[#allocation14 + $0x404] sm:$0xf]
    %v5256 = vld [vmem:[#allocation14 + $0x408] sm:$0xf]
    %v5257 = vld [vmem:[#allocation14 + $0x40c] sm:$0xf]
    %v5258 = vld [vmem:[#allocation14 + $0x410] sm:$0xf]
    %v5259 = vld [vmem:[#allocation14 + $0x414] sm:$0xf]
    %v5260 = vld [vmem:[#allocation14 + $0x418] sm:$0xf]
    %v5261 = vld [vmem:[#allocation14 + $0x41c] sm:$0xf]
    %v5262 = vld [vmem:[#allocation14 + $0x420] sm:$0xf]
    %v5263 = vld [vmem:[#allocation14 + $0x424] sm:$0xf]
    %v5264 = vld [vmem:[#allocation14 + $0x428] sm:$0xf]
    %v5265 = vld [vmem:[#allocation14 + $0x42c] sm:$0xf]
    %v5266 = vld [vmem:[#allocation14 + $0x430] sm:$0xf]
    %v5267 = vld [vmem:[#allocation14 + $0x434] sm:$0xf]
    %v5268 = vld [vmem:[#allocation14 + $0x438] sm:$0xf]
    %v5269 = vld [vmem:[#allocation14 + $0x43c] sm:$0xf]
    %v5270 = vld [vmem:[#allocation14 + $0x440] sm:$0xf]
    %v5271 = vld [vmem:[#allocation14 + $0x444] sm:$0xf]
    %v5272 = vld [vmem:[#allocation14 + $0x448] sm:$0xf]
    %v5273 = vld [vmem:[#allocation14 + $0x44c] sm:$0xf]
    %v5274 = vld [vmem:[#allocation14 + $0x450] sm:$0xf]
    %v5275 = vld [vmem:[#allocation14 + $0x454] sm:$0xf]
    %v5276 = vld [vmem:[#allocation14 + $0x458] sm:$0xf]
    %v5277 = vld [vmem:[#allocation14 + $0x45c] sm:$0xf]
    %v5278 = vld [vmem:[#allocation14 + $0x460] sm:$0xf]
    %v5279 = vld [vmem:[#allocation14 + $0x464] sm:$0xf]
    %v5280 = vld [vmem:[#allocation14 + $0x468] sm:$0xf]
    %v5281 = vld [vmem:[#allocation14 + $0x46c] sm:$0xf]
    %v5282 = vld [vmem:[#allocation14 + $0x470] sm:$0xf]
    %v5283 = vld [vmem:[#allocation14 + $0x474] sm:$0xf]
    %v5284 = vld [vmem:[#allocation14 + $0x478] sm:$0xf]
    %v5285 = vld [vmem:[#allocation14 + $0x47c] sm:$0xf]
    %v5286 = vld [vmem:[#allocation14 + $0x480] sm:$0xf]
    %v5287 = vld [vmem:[#allocation14 + $0x484] sm:$0xf]
    %v5288 = vld [vmem:[#allocation14 + $0x488] sm:$0xf]
    %v5289 = vld [vmem:[#allocation14 + $0x48c] sm:$0xf]
    %v5290 = vld [vmem:[#allocation14 + $0x490] sm:$0xf]
    %v5291 = vld [vmem:[#allocation14 + $0x494] sm:$0xf]
    %v5292 = vld [vmem:[#allocation14 + $0x498] sm:$0xf]
    %v5293 = vld [vmem:[#allocation14 + $0x49c] sm:$0xf]
    %v5294 = vld [vmem:[#allocation14 + $0x4a0] sm:$0xf]
    %v5295 = vld [vmem:[#allocation14 + $0x4a4] sm:$0xf]
    %v5296 = vld [vmem:[#allocation14 + $0x4a8] sm:$0xf]
    %v5297 = vld [vmem:[#allocation14 + $0x4ac] sm:$0xf]
    %v5298 = vld [vmem:[#allocation14 + $0x4b0] sm:$0xf]
    %v5299 = vld [vmem:[#allocation14 + $0x4b4] sm:$0xf]
    %v5300 = vld [vmem:[#allocation14 + $0x4b8] sm:$0xf]
    %v5301 = vld [vmem:[#allocation14 + $0x4bc] sm:$0xf]
    %v5302 = vld [vmem:[#allocation14 + $0x4c0] sm:$0xf]
    %v5303 = vld [vmem:[#allocation14 + $0x4c4] sm:$0xf]
    %v5304 = vld [vmem:[#allocation14 + $0x4c8] sm:$0xf]
    %v5305 = vld [vmem:[#allocation14 + $0x4cc] sm:$0xf]
    %v5306 = vld [vmem:[#allocation14 + $0x4d0] sm:$0xf]
    %v5307 = vld [vmem:[#allocation14 + $0x4d4] sm:$0xf]
    %v5308 = vld [vmem:[#allocation14 + $0x4d8] sm:$0xf]
    %v5309 = vld [vmem:[#allocation14 + $0x4dc] sm:$0xf]
    %v5310 = vld [vmem:[#allocation14 + $0x4e0] sm:$0xf]
    %v5311 = vld [vmem:[#allocation14 + $0x4e4] sm:$0xf]
    %v5312 = vld [vmem:[#allocation14 + $0x4e8] sm:$0xf]
    %v5313 = vld [vmem:[#allocation14 + $0x4ec] sm:$0xf]
    %v5314 = vld [vmem:[#allocation14 + $0x4f0] sm:$0xf]
    %v5315 = vld [vmem:[#allocation14 + $0x4f4] sm:$0xf]
    %v5316 = vld [vmem:[#allocation14 + $0x4f8] sm:$0xf]
    %v5317 = vld [vmem:[#allocation14 + $0x4fc] sm:$0xf]
    %v5318 = vld [vmem:[#allocation14 + $0x500] sm:$0xf]
    %v5319 = vld [vmem:[#allocation14 + $0x504] sm:$0xf]
    %v5320 = vld [vmem:[#allocation14 + $0x508] sm:$0xf]
    %v5321 = vld [vmem:[#allocation14 + $0x50c] sm:$0xf]
    %v5322 = vld [vmem:[#allocation14 + $0x510] sm:$0xf]
    %v5323 = vld [vmem:[#allocation14 + $0x514] sm:$0xf]
    %v5324 = vld [vmem:[#allocation14 + $0x518] sm:$0xf]
    %v5325 = vld [vmem:[#allocation14 + $0x51c] sm:$0xf]
    %v5326 = vld [vmem:[#allocation14 + $0x520] sm:$0xf]
    %v5327 = vld [vmem:[#allocation14 + $0x524] sm:$0xf]
    %v5328 = vld [vmem:[#allocation14 + $0x528] sm:$0xf]
    %v5329 = vld [vmem:[#allocation14 + $0x52c] sm:$0xf]
    %v5330 = vld [vmem:[#allocation14 + $0x530] sm:$0xf]
    %v5331 = vld [vmem:[#allocation14 + $0x534] sm:$0xf]
    %v5332 = vld [vmem:[#allocation14 + $0x538] sm:$0xf]
    %v5333 = vld [vmem:[#allocation14 + $0x53c] sm:$0xf]
    %v5334 = vld [vmem:[#allocation14 + $0x540] sm:$0xf]
    %v5335 = vld [vmem:[#allocation14 + $0x544] sm:$0xf]
    %v5336 = vld [vmem:[#allocation14 + $0x548] sm:$0xf]
    %v5337 = vld [vmem:[#allocation14 + $0x54c] sm:$0xf]
    %v5338 = vld [vmem:[#allocation14 + $0x550] sm:$0xf]
    %v5339 = vld [vmem:[#allocation14 + $0x554] sm:$0xf]
    %v5340 = vld [vmem:[#allocation14 + $0x558] sm:$0xf]
    %v5341 = vld [vmem:[#allocation14 + $0x55c] sm:$0xf]
    %v5342 = vld [vmem:[#allocation14 + $0x560] sm:$0xf]
    %v5343 = vld [vmem:[#allocation14 + $0x564] sm:$0xf]
    %v5344 = vld [vmem:[#allocation14 + $0x568] sm:$0xf]
    %v5345 = vld [vmem:[#allocation14 + $0x56c] sm:$0xf]
    %v5346 = vld [vmem:[#allocation14 + $0x570] sm:$0xf]
    %v5347 = vld [vmem:[#allocation14 + $0x574] sm:$0xf]
    %v5348 = vld [vmem:[#allocation14 + $0x578] sm:$0xf]
    %v5349 = vld [vmem:[#allocation14 + $0x57c] sm:$0xf]
    %v5350 = vld [vmem:[#allocation14 + $0x580] sm:$0xf]
    %v5351 = vld [vmem:[#allocation14 + $0x584] sm:$0xf]
    %v5352 = vld [vmem:[#allocation14 + $0x588] sm:$0xf]
    %v5353 = vld [vmem:[#allocation14 + $0x58c] sm:$0xf]
    %v5354 = vld [vmem:[#allocation14 + $0x590] sm:$0xf]
    %v5355 = vld [vmem:[#allocation14 + $0x594] sm:$0xf]
    %v5356 = vld [vmem:[#allocation14 + $0x598] sm:$0xf]
    %v5357 = vld [vmem:[#allocation14 + $0x59c] sm:$0xf]
    %v5358 = vld [vmem:[#allocation14 + $0x5a0] sm:$0xf]
    %v5359 = vld [vmem:[#allocation14 + $0x5a4] sm:$0xf]
    %v5360 = vld [vmem:[#allocation14 + $0x5a8] sm:$0xf]
    %v5361 = vld [vmem:[#allocation14 + $0x5ac] sm:$0xf]
    %v5362 = vld [vmem:[#allocation14 + $0x5b0] sm:$0xf]
    %v5363 = vld [vmem:[#allocation14 + $0x5b4] sm:$0xf]
    %v5364 = vld [vmem:[#allocation14 + $0x5b8] sm:$0xf]
    %v5365 = vld [vmem:[#allocation14 + $0x5bc] sm:$0xf]
    %v5366 = vld [vmem:[#allocation14 + $0x5c0] sm:$0xf]
    %v5367 = vld [vmem:[#allocation14 + $0x5c4] sm:$0xf]
    %v5368 = vld [vmem:[#allocation14 + $0x5c8] sm:$0xf]
    %v5369 = vld [vmem:[#allocation14 + $0x5cc] sm:$0xf]
    %v5370 = vld [vmem:[#allocation14 + $0x5d0] sm:$0xf]
    %v5371 = vld [vmem:[#allocation14 + $0x5d4] sm:$0xf]
    %v5372 = vld [vmem:[#allocation14 + $0x5d8] sm:$0xf]
    %v5373 = vld [vmem:[#allocation14 + $0x5dc] sm:$0xf]
    %v5374 = vld [vmem:[#allocation14 + $0x5e0] sm:$0xf]
    %v5375 = vld [vmem:[#allocation14 + $0x5e4] sm:$0xf]
    %v5376 = vld [vmem:[#allocation14 + $0x5e8] sm:$0xf]
    %v5377 = vld [vmem:[#allocation14 + $0x5ec] sm:$0xf]
    %v5378 = vld [vmem:[#allocation14 + $0x5f0] sm:$0xf]
    %v5379 = vld [vmem:[#allocation14 + $0x5f4] sm:$0xf]
    %v5380 = vld [vmem:[#allocation14 + $0x5f8] sm:$0xf]
    %v5381 = vld [vmem:[#allocation14 + $0x5fc] sm:$0xf]
    %v5382 = vld [vmem:[#allocation14 + $0x600] sm:$0xf]
    %v5383 = vld [vmem:[#allocation14 + $0x604] sm:$0xf]
    %v5384 = vld [vmem:[#allocation14 + $0x608] sm:$0xf]
    %v5385 = vld [vmem:[#allocation14 + $0x60c] sm:$0xf]
    %v5386 = vld [vmem:[#allocation14 + $0x610] sm:$0xf]
    %v5387 = vld [vmem:[#allocation14 + $0x614] sm:$0xf]
    %v5388 = vld [vmem:[#allocation14 + $0x618] sm:$0xf]
    %v5389 = vld [vmem:[#allocation14 + $0x61c] sm:$0xf]
    %v5390 = vld [vmem:[#allocation14 + $0x620] sm:$0xf]
    %v5391 = vld [vmem:[#allocation14 + $0x624] sm:$0xf]
    %v5392 = vld [vmem:[#allocation14 + $0x628] sm:$0xf]
    %v5393 = vld [vmem:[#allocation14 + $0x62c] sm:$0xf]
    %v5394 = vld [vmem:[#allocation14 + $0x630] sm:$0xf]
    %v5395 = vld [vmem:[#allocation14 + $0x634] sm:$0xf]
    %v5396 = vld [vmem:[#allocation14 + $0x638] sm:$0xf]
    %v5397 = vld [vmem:[#allocation14 + $0x63c] sm:$0xf]
    %v5398 = vld [vmem:[#allocation15] sm:$0x1]
    %v5400 = vlaneseq
    %v5401 = vshrl.u32 %v5400, 7
    %v5402 = vsub.s32 0, %v5401
    %v5403 = vrot.slane %v5398, %v5402
    %v5805 = vunpack.c.l.b16 %v4998
    %v5806 = vunpack.c.l.b16 %v4999
    %v5807 = vunpack.c.l.b16 %v5000
    %v5808 = vunpack.c.l.b16 %v5001
    %v5809 = vunpack.c.l.b16 %v5002
    %v5810 = vunpack.c.l.b16 %v5003
    %v5811 = vunpack.c.l.b16 %v5004
    %v5812 = vunpack.c.l.b16 %v5005
    %v5813 = vunpack.c.l.b16 %v5006
    %v5814 = vunpack.c.l.b16 %v5007
    %v5815 = vunpack.c.l.b16 %v5008
    %v5816 = vunpack.c.l.b16 %v5009
    %v5817 = vunpack.c.l.b16 %v5010
    %v5818 = vunpack.c.l.b16 %v5011
    %v5819 = vunpack.c.l.b16 %v5012
    %v5820 = vunpack.c.l.b16 %v5013
    %v5821 = vunpack.c.l.b16 %v5014
    %v5822 = vunpack.c.l.b16 %v5015
    %v5823 = vunpack.c.l.b16 %v5016
    %v5824 = vunpack.c.l.b16 %v5017
    %v5825 = vunpack.c.l.b16 %v5018
    %v5826 = vunpack.c.l.b16 %v5019
    %v5827 = vunpack.c.l.b16 %v5020
    %v5828 = vunpack.c.l.b16 %v5021
    %v5829 = vunpack.c.l.b16 %v5022
    %v5830 = vunpack.c.l.b16 %v5023
    %v5831 = vunpack.c.l.b16 %v5024
    %v5832 = vunpack.c.l.b16 %v5025
    %v5833 = vunpack.c.l.b16 %v5026
    %v5834 = vunpack.c.l.b16 %v5027
    %v5835 = vunpack.c.l.b16 %v5028
    %v5836 = vunpack.c.l.b16 %v5029
    %v5837 = vunpack.c.l.b16 %v5030
    %v5838 = vunpack.c.l.b16 %v5031
    %v5839 = vunpack.c.l.b16 %v5032
    %v5840 = vunpack.c.l.b16 %v5033
    %v5841 = vunpack.c.l.b16 %v5034
    %v5842 = vunpack.c.l.b16 %v5035
    %v5843 = vunpack.c.l.b16 %v5036
    %v5844 = vunpack.c.l.b16 %v5037
    %v5845 = vunpack.c.l.b16 %v5038
    %v5846 = vunpack.c.l.b16 %v5039
    %v5847 = vunpack.c.l.b16 %v5040
    %v5848 = vunpack.c.l.b16 %v5041
    %v5849 = vunpack.c.l.b16 %v5042
    %v5850 = vunpack.c.l.b16 %v5043
    %v5851 = vunpack.c.l.b16 %v5044
    %v5852 = vunpack.c.l.b16 %v5045
    %v5853 = vunpack.c.l.b16 %v5046
    %v5854 = vunpack.c.l.b16 %v5047
    %v5855 = vunpack.c.l.b16 %v5048
    %v5856 = vunpack.c.l.b16 %v5049
    %v5857 = vunpack.c.l.b16 %v5050
    %v5858 = vunpack.c.l.b16 %v5051
    %v5859 = vunpack.c.l.b16 %v5052
    %v5860 = vunpack.c.l.b16 %v5053
    %v5861 = vunpack.c.l.b16 %v5054
    %v5862 = vunpack.c.l.b16 %v5055
    %v5863 = vunpack.c.l.b16 %v5056
    %v5864 = vunpack.c.l.b16 %v5057
    %v5865 = vunpack.c.l.b16 %v5058
    %v5866 = vunpack.c.l.b16 %v5059
    %v5867 = vunpack.c.l.b16 %v5060
    %v5868 = vunpack.c.l.b16 %v5061
    %v5869 = vunpack.c.l.b16 %v5062
    %v5870 = vunpack.c.l.b16 %v5063
    %v5871 = vunpack.c.l.b16 %v5064
    %v5872 = vunpack.c.l.b16 %v5065
    %v5873 = vunpack.c.l.b16 %v5066
    %v5874 = vunpack.c.l.b16 %v5067
    %v5875 = vunpack.c.l.b16 %v5068
    %v5876 = vunpack.c.l.b16 %v5069
    %v5877 = vunpack.c.l.b16 %v5070
    %v5878 = vunpack.c.l.b16 %v5071
    %v5879 = vunpack.c.l.b16 %v5072
    %v5880 = vunpack.c.l.b16 %v5073
    %v5881 = vunpack.c.l.b16 %v5074
    %v5882 = vunpack.c.l.b16 %v5075
    %v5883 = vunpack.c.l.b16 %v5076
    %v5884 = vunpack.c.l.b16 %v5077
    %v5885 = vunpack.c.l.b16 %v5078
    %v5886 = vunpack.c.l.b16 %v5079
    %v5887 = vunpack.c.l.b16 %v5080
    %v5888 = vunpack.c.l.b16 %v5081
    %v5889 = vunpack.c.l.b16 %v5082
    %v5890 = vunpack.c.l.b16 %v5083
    %v5891 = vunpack.c.l.b16 %v5084
    %v5892 = vunpack.c.l.b16 %v5085
    %v5893 = vunpack.c.l.b16 %v5086
    %v5894 = vunpack.c.l.b16 %v5087
    %v5895 = vunpack.c.l.b16 %v5088
    %v5896 = vunpack.c.l.b16 %v5089
    %v5897 = vunpack.c.l.b16 %v5090
    %v5898 = vunpack.c.l.b16 %v5091
    %v5899 = vunpack.c.l.b16 %v5092
    %v5900 = vunpack.c.l.b16 %v5093
    %v5901 = vunpack.c.l.b16 %v5094
    %v5902 = vunpack.c.l.b16 %v5095
    %v5903 = vunpack.c.l.b16 %v5096
    %v5904 = vunpack.c.l.b16 %v5097
    %v5905 = vunpack.c.l.b16 %v5098
    %v5906 = vunpack.c.l.b16 %v5099
    %v5907 = vunpack.c.l.b16 %v5100
    %v5908 = vunpack.c.l.b16 %v5101
    %v5909 = vunpack.c.l.b16 %v5102
    %v5910 = vunpack.c.l.b16 %v5103
    %v5911 = vunpack.c.l.b16 %v5104
    %v5912 = vunpack.c.l.b16 %v5105
    %v5913 = vunpack.c.l.b16 %v5106
    %v5914 = vunpack.c.l.b16 %v5107
    %v5915 = vunpack.c.l.b16 %v5108
    %v5916 = vunpack.c.l.b16 %v5109
    %v5917 = vunpack.c.l.b16 %v5110
    %v5918 = vunpack.c.l.b16 %v5111
    %v5919 = vunpack.c.l.b16 %v5112
    %v5920 = vunpack.c.l.b16 %v5113
    %v5921 = vunpack.c.l.b16 %v5114
    %v5922 = vunpack.c.l.b16 %v5115
    %v5923 = vunpack.c.l.b16 %v5116
    %v5924 = vunpack.c.l.b16 %v5117
    %v5925 = vunpack.c.l.b16 %v5118
    %v5926 = vunpack.c.l.b16 %v5119
    %v5927 = vunpack.c.l.b16 %v5120
    %v5928 = vunpack.c.l.b16 %v5121
    %v5929 = vunpack.c.l.b16 %v5122
    %v5930 = vunpack.c.l.b16 %v5123
    %v5931 = vunpack.c.l.b16 %v5124
    %v5932 = vunpack.c.l.b16 %v5125
    %v5933 = vunpack.c.l.b16 %v5126
    %v5934 = vunpack.c.l.b16 %v5127
    %v5935 = vunpack.c.l.b16 %v5128
    %v5936 = vunpack.c.l.b16 %v5129
    %v5937 = vunpack.c.l.b16 %v5130
    %v5938 = vunpack.c.l.b16 %v5131
    %v5939 = vunpack.c.l.b16 %v5132
    %v5940 = vunpack.c.l.b16 %v5133
    %v5941 = vunpack.c.l.b16 %v5134
    %v5942 = vunpack.c.l.b16 %v5135
    %v5943 = vunpack.c.l.b16 %v5136
    %v5944 = vunpack.c.l.b16 %v5137
    %v5945 = vunpack.c.l.b16 %v5138
    %v5946 = vunpack.c.l.b16 %v5139
    %v5947 = vunpack.c.l.b16 %v5140
    %v5948 = vunpack.c.l.b16 %v5141
    %v5949 = vunpack.c.l.b16 %v5142
    %v5950 = vunpack.c.l.b16 %v5143
    %v5951 = vunpack.c.l.b16 %v5144
    %v5952 = vunpack.c.l.b16 %v5145
    %v5953 = vunpack.c.l.b16 %v5146
    %v5954 = vunpack.c.l.b16 %v5147
    %v5955 = vunpack.c.l.b16 %v5148
    %v5956 = vunpack.c.l.b16 %v5149
    %v5957 = vunpack.c.l.b16 %v5150
    %v5958 = vunpack.c.l.b16 %v5151
    %v5959 = vunpack.c.l.b16 %v5152
    %v5960 = vunpack.c.l.b16 %v5153
    %v5961 = vunpack.c.l.b16 %v5154
    %v5962 = vunpack.c.l.b16 %v5155
    %v5963 = vunpack.c.l.b16 %v5156
    %v5964 = vunpack.c.l.b16 %v5157
    %v5965 = vunpack.c.l.b16 %v5158
    %v5966 = vunpack.c.l.b16 %v5159
    %v5967 = vunpack.c.l.b16 %v5160
    %v5968 = vunpack.c.l.b16 %v5161
    %v5969 = vunpack.c.l.b16 %v5162
    %v5970 = vunpack.c.l.b16 %v5163
    %v5971 = vunpack.c.l.b16 %v5164
    %v5972 = vunpack.c.l.b16 %v5165
    %v5973 = vunpack.c.l.b16 %v5166
    %v5974 = vunpack.c.l.b16 %v5167
    %v5975 = vunpack.c.l.b16 %v5168
    %v5976 = vunpack.c.l.b16 %v5169
    %v5977 = vunpack.c.l.b16 %v5170
    %v5978 = vunpack.c.l.b16 %v5171
    %v5979 = vunpack.c.l.b16 %v5172
    %v5980 = vunpack.c.l.b16 %v5173
    %v5981 = vunpack.c.l.b16 %v5174
    %v5982 = vunpack.c.l.b16 %v5175
    %v5983 = vunpack.c.l.b16 %v5176
    %v5984 = vunpack.c.l.b16 %v5177
    %v5985 = vunpack.c.l.b16 %v5178
    %v5986 = vunpack.c.l.b16 %v5179
    %v5987 = vunpack.c.l.b16 %v5180
    %v5988 = vunpack.c.l.b16 %v5181
    %v5989 = vunpack.c.l.b16 %v5182
    %v5990 = vunpack.c.l.b16 %v5183
    %v5991 = vunpack.c.l.b16 %v5184
    %v5992 = vunpack.c.l.b16 %v5185
    %v5993 = vunpack.c.l.b16 %v5186
    %v5994 = vunpack.c.l.b16 %v5187
    %v5995 = vunpack.c.l.b16 %v5188
    %v5996 = vunpack.c.l.b16 %v5189
    %v5997 = vunpack.c.l.b16 %v5190
    %v5998 = vunpack.c.l.b16 %v5191
    %v5999 = vunpack.c.l.b16 %v5192
    %v6000 = vunpack.c.l.b16 %v5193
    %v6001 = vunpack.c.l.b16 %v5194
    %v6002 = vunpack.c.l.b16 %v5195
    %v6003 = vunpack.c.l.b16 %v5196
    %v6004 = vunpack.c.l.b16 %v5197
    %v6005 = vunpack.c.l.b16 %v5198
    %v6006 = vunpack.c.l.b16 %v5199
    %v6007 = vunpack.c.l.b16 %v5200
    %v6008 = vunpack.c.l.b16 %v5201
    %v6009 = vunpack.c.l.b16 %v5202
    %v6010 = vunpack.c.l.b16 %v5203
    %v6011 = vunpack.c.l.b16 %v5204
    %v6012 = vunpack.c.l.b16 %v5205
    %v6013 = vunpack.c.l.b16 %v5206
    %v6014 = vunpack.c.l.b16 %v5207
    %v6015 = vunpack.c.l.b16 %v5208
    %v6016 = vunpack.c.l.b16 %v5209
    %v6017 = vunpack.c.l.b16 %v5210
    %v6018 = vunpack.c.l.b16 %v5211
    %v6019 = vunpack.c.l.b16 %v5212
    %v6020 = vunpack.c.l.b16 %v5213
    %v6021 = vunpack.c.l.b16 %v5214
    %v6022 = vunpack.c.l.b16 %v5215
    %v6023 = vunpack.c.l.b16 %v5216
    %v6024 = vunpack.c.l.b16 %v5217
    %v6025 = vunpack.c.l.b16 %v5218
    %v6026 = vunpack.c.l.b16 %v5219
    %v6027 = vunpack.c.l.b16 %v5220
    %v6028 = vunpack.c.l.b16 %v5221
    %v6029 = vunpack.c.l.b16 %v5222
    %v6030 = vunpack.c.l.b16 %v5223
    %v6031 = vunpack.c.l.b16 %v5224
    %v6032 = vunpack.c.l.b16 %v5225
    %v6033 = vunpack.c.l.b16 %v5226
    %v6034 = vunpack.c.l.b16 %v5227
    %v6035 = vunpack.c.l.b16 %v5228
    %v6036 = vunpack.c.l.b16 %v5229
    %v6037 = vunpack.c.l.b16 %v5230
    %v6038 = vunpack.c.l.b16 %v5231
    %v6039 = vunpack.c.l.b16 %v5232
    %v6040 = vunpack.c.l.b16 %v5233
    %v6041 = vunpack.c.l.b16 %v5234
    %v6042 = vunpack.c.l.b16 %v5235
    %v6043 = vunpack.c.l.b16 %v5236
    %v6044 = vunpack.c.l.b16 %v5237
    %v6045 = vunpack.c.l.b16 %v5238
    %v6046 = vunpack.c.l.b16 %v5239
    %v6047 = vunpack.c.l.b16 %v5240
    %v6048 = vunpack.c.l.b16 %v5241
    %v6049 = vunpack.c.l.b16 %v5242
    %v6050 = vunpack.c.l.b16 %v5243
    %v6051 = vunpack.c.l.b16 %v5244
    %v6052 = vunpack.c.l.b16 %v5245
    %v6053 = vunpack.c.l.b16 %v5246
    %v6054 = vunpack.c.l.b16 %v5247
    %v6055 = vunpack.c.l.b16 %v5248
    %v6056 = vunpack.c.l.b16 %v5249
    %v6057 = vunpack.c.l.b16 %v5250
    %v6058 = vunpack.c.l.b16 %v5251
    %v6059 = vunpack.c.l.b16 %v5252
    %v6060 = vunpack.c.l.b16 %v5253
    %v6061 = vunpack.c.l.b16 %v5254
    %v6062 = vunpack.c.l.b16 %v5255
    %v6063 = vunpack.c.l.b16 %v5256
    %v6064 = vunpack.c.l.b16 %v5257
    %v6065 = vunpack.c.l.b16 %v5258
    %v6066 = vunpack.c.l.b16 %v5259
    %v6067 = vunpack.c.l.b16 %v5260
    %v6068 = vunpack.c.l.b16 %v5261
    %v6069 = vunpack.c.l.b16 %v5262
    %v6070 = vunpack.c.l.b16 %v5263
    %v6071 = vunpack.c.l.b16 %v5264
    %v6072 = vunpack.c.l.b16 %v5265
    %v6073 = vunpack.c.l.b16 %v5266
    %v6074 = vunpack.c.l.b16 %v5267
    %v6075 = vunpack.c.l.b16 %v5268
    %v6076 = vunpack.c.l.b16 %v5269
    %v6077 = vunpack.c.l.b16 %v5270
    %v6078 = vunpack.c.l.b16 %v5271
    %v6079 = vunpack.c.l.b16 %v5272
    %v6080 = vunpack.c.l.b16 %v5273
    %v6081 = vunpack.c.l.b16 %v5274
    %v6082 = vunpack.c.l.b16 %v5275
    %v6083 = vunpack.c.l.b16 %v5276
    %v6084 = vunpack.c.l.b16 %v5277
    %v6085 = vunpack.c.l.b16 %v5278
    %v6086 = vunpack.c.l.b16 %v5279
    %v6087 = vunpack.c.l.b16 %v5280
    %v6088 = vunpack.c.l.b16 %v5281
    %v6089 = vunpack.c.l.b16 %v5282
    %v6090 = vunpack.c.l.b16 %v5283
    %v6091 = vunpack.c.l.b16 %v5284
    %v6092 = vunpack.c.l.b16 %v5285
    %v6093 = vunpack.c.l.b16 %v5286
    %v6094 = vunpack.c.l.b16 %v5287
    %v6095 = vunpack.c.l.b16 %v5288
    %v6096 = vunpack.c.l.b16 %v5289
    %v6097 = vunpack.c.l.b16 %v5290
    %v6098 = vunpack.c.l.b16 %v5291
    %v6099 = vunpack.c.l.b16 %v5292
    %v6100 = vunpack.c.l.b16 %v5293
    %v6101 = vunpack.c.l.b16 %v5294
    %v6102 = vunpack.c.l.b16 %v5295
    %v6103 = vunpack.c.l.b16 %v5296
    %v6104 = vunpack.c.l.b16 %v5297
    %v6105 = vunpack.c.l.b16 %v5298
    %v6106 = vunpack.c.l.b16 %v5299
    %v6107 = vunpack.c.l.b16 %v5300
    %v6108 = vunpack.c.l.b16 %v5301
    %v6109 = vunpack.c.l.b16 %v5302
    %v6110 = vunpack.c.l.b16 %v5303
    %v6111 = vunpack.c.l.b16 %v5304
    %v6112 = vunpack.c.l.b16 %v5305
    %v6113 = vunpack.c.l.b16 %v5306
    %v6114 = vunpack.c.l.b16 %v5307
    %v6115 = vunpack.c.l.b16 %v5308
    %v6116 = vunpack.c.l.b16 %v5309
    %v6117 = vunpack.c.l.b16 %v5310
    %v6118 = vunpack.c.l.b16 %v5311
    %v6119 = vunpack.c.l.b16 %v5312
    %v6120 = vunpack.c.l.b16 %v5313
    %v6121 = vunpack.c.l.b16 %v5314
    %v6122 = vunpack.c.l.b16 %v5315
    %v6123 = vunpack.c.l.b16 %v5316
    %v6124 = vunpack.c.l.b16 %v5317
    %v6125 = vunpack.c.l.b16 %v5318
    %v6126 = vunpack.c.l.b16 %v5319
    %v6127 = vunpack.c.l.b16 %v5320
    %v6128 = vunpack.c.l.b16 %v5321
    %v6129 = vunpack.c.l.b16 %v5322
    %v6130 = vunpack.c.l.b16 %v5323
    %v6131 = vunpack.c.l.b16 %v5324
    %v6132 = vunpack.c.l.b16 %v5325
    %v6133 = vunpack.c.l.b16 %v5326
    %v6134 = vunpack.c.l.b16 %v5327
    %v6135 = vunpack.c.l.b16 %v5328
    %v6136 = vunpack.c.l.b16 %v5329
    %v6137 = vunpack.c.l.b16 %v5330
    %v6138 = vunpack.c.l.b16 %v5331
    %v6139 = vunpack.c.l.b16 %v5332
    %v6140 = vunpack.c.l.b16 %v5333
    %v6141 = vunpack.c.l.b16 %v5334
    %v6142 = vunpack.c.l.b16 %v5335
    %v6143 = vunpack.c.l.b16 %v5336
    %v6144 = vunpack.c.l.b16 %v5337
    %v6145 = vunpack.c.l.b16 %v5338
    %v6146 = vunpack.c.l.b16 %v5339
    %v6147 = vunpack.c.l.b16 %v5340
    %v6148 = vunpack.c.l.b16 %v5341
    %v6149 = vunpack.c.l.b16 %v5342
    %v6150 = vunpack.c.l.b16 %v5343
    %v6151 = vunpack.c.l.b16 %v5344
    %v6152 = vunpack.c.l.b16 %v5345
    %v6153 = vunpack.c.l.b16 %v5346
    %v6154 = vunpack.c.l.b16 %v5347
    %v6155 = vunpack.c.l.b16 %v5348
    %v6156 = vunpack.c.l.b16 %v5349
    %v6157 = vunpack.c.l.b16 %v5350
    %v6158 = vunpack.c.l.b16 %v5351
    %v6159 = vunpack.c.l.b16 %v5352
    %v6160 = vunpack.c.l.b16 %v5353
    %v6161 = vunpack.c.l.b16 %v5354
    %v6162 = vunpack.c.l.b16 %v5355
    %v6163 = vunpack.c.l.b16 %v5356
    %v6164 = vunpack.c.l.b16 %v5357
    %v6165 = vunpack.c.l.b16 %v5358
    %v6166 = vunpack.c.l.b16 %v5359
    %v6167 = vunpack.c.l.b16 %v5360
    %v6168 = vunpack.c.l.b16 %v5361
    %v6169 = vunpack.c.l.b16 %v5362
    %v6170 = vunpack.c.l.b16 %v5363
    %v6171 = vunpack.c.l.b16 %v5364
    %v6172 = vunpack.c.l.b16 %v5365
    %v6173 = vunpack.c.l.b16 %v5366
    %v6174 = vunpack.c.l.b16 %v5367
    %v6175 = vunpack.c.l.b16 %v5368
    %v6176 = vunpack.c.l.b16 %v5369
    %v6177 = vunpack.c.l.b16 %v5370
    %v6178 = vunpack.c.l.b16 %v5371
    %v6179 = vunpack.c.l.b16 %v5372
    %v6180 = vunpack.c.l.b16 %v5373
    %v6181 = vunpack.c.l.b16 %v5374
    %v6182 = vunpack.c.l.b16 %v5375
    %v6183 = vunpack.c.l.b16 %v5376
    %v6184 = vunpack.c.l.b16 %v5377
    %v6185 = vunpack.c.l.b16 %v5378
    %v6186 = vunpack.c.l.b16 %v5379
    %v6187 = vunpack.c.l.b16 %v5380
    %v6188 = vunpack.c.l.b16 %v5381
    %v6189 = vunpack.c.l.b16 %v5382
    %v6190 = vunpack.c.l.b16 %v5383
    %v6191 = vunpack.c.l.b16 %v5384
    %v6192 = vunpack.c.l.b16 %v5385
    %v6193 = vunpack.c.l.b16 %v5386
    %v6194 = vunpack.c.l.b16 %v5387
    %v6195 = vunpack.c.l.b16 %v5388
    %v6196 = vunpack.c.l.b16 %v5389
    %v6197 = vunpack.c.l.b16 %v5390
    %v6198 = vunpack.c.l.b16 %v5391
    %v6199 = vunpack.c.l.b16 %v5392
    %v6200 = vunpack.c.l.b16 %v5393
    %v6201 = vunpack.c.l.b16 %v5394
    %v6202 = vunpack.c.l.b16 %v5395
    %v6203 = vunpack.c.l.b16 %v5396
    %v6204 = vunpack.c.l.b16 %v5397
    %v6205 = vpack.c.b16 %v5806, %v5805
    %v6206 = vpack.c.b16 %v5808, %v5807
    %v6207 = vpack.c.b16 %v5810, %v5809
    %v6208 = vpack.c.b16 %v5812, %v5811
    %v6209 = vpack.c.b16 %v5814, %v5813
    %v6210 = vpack.c.b16 %v5816, %v5815
    %v6211 = vpack.c.b16 %v5818, %v5817
    %v6212 = vpack.c.b16 %v5820, %v5819
    %v6213 = vpack.c.b16 %v5822, %v5821
    %v6214 = vpack.c.b16 %v5824, %v5823
    %v6215 = vpack.c.b16 %v5826, %v5825
    %v6216 = vpack.c.b16 %v5828, %v5827
    %v6217 = vpack.c.b16 %v5830, %v5829
    %v6218 = vpack.c.b16 %v5832, %v5831
    %v6219 = vpack.c.b16 %v5834, %v5833
    %v6220 = vpack.c.b16 %v5836, %v5835
    %v6221 = vpack.c.b16 %v5838, %v5837
    %v6222 = vpack.c.b16 %v5840, %v5839
    %v6223 = vpack.c.b16 %v5842, %v5841
    %v6224 = vpack.c.b16 %v5844, %v5843
    %v6225 = vpack.c.b16 %v5846, %v5845
    %v6226 = vpack.c.b16 %v5848, %v5847
    %v6227 = vpack.c.b16 %v5850, %v5849
    %v6228 = vpack.c.b16 %v5852, %v5851
    %v6229 = vpack.c.b16 %v5854, %v5853
    %v6230 = vpack.c.b16 %v5856, %v5855
    %v6231 = vpack.c.b16 %v5858, %v5857
    %v6232 = vpack.c.b16 %v5860, %v5859
    %v6233 = vpack.c.b16 %v5862, %v5861
    %v6234 = vpack.c.b16 %v5864, %v5863
    %v6235 = vpack.c.b16 %v5866, %v5865
    %v6236 = vpack.c.b16 %v5868, %v5867
    %v6237 = vpack.c.b16 %v5870, %v5869
    %v6238 = vpack.c.b16 %v5872, %v5871
    %v6239 = vpack.c.b16 %v5874, %v5873
    %v6240 = vpack.c.b16 %v5876, %v5875
    %v6241 = vpack.c.b16 %v5878, %v5877
    %v6242 = vpack.c.b16 %v5880, %v5879
    %v6243 = vpack.c.b16 %v5882, %v5881
    %v6244 = vpack.c.b16 %v5884, %v5883
    %v6245 = vpack.c.b16 %v5886, %v5885
    %v6246 = vpack.c.b16 %v5888, %v5887
    %v6247 = vpack.c.b16 %v5890, %v5889
    %v6248 = vpack.c.b16 %v5892, %v5891
    %v6249 = vpack.c.b16 %v5894, %v5893
    %v6250 = vpack.c.b16 %v5896, %v5895
    %v6251 = vpack.c.b16 %v5898, %v5897
    %v6252 = vpack.c.b16 %v5900, %v5899
    %v6253 = vpack.c.b16 %v5902, %v5901
    %v6254 = vpack.c.b16 %v5904, %v5903
    %v6255 = vpack.c.b16 %v5906, %v5905
    %v6256 = vpack.c.b16 %v5908, %v5907
    %v6257 = vpack.c.b16 %v5910, %v5909
    %v6258 = vpack.c.b16 %v5912, %v5911
    %v6259 = vpack.c.b16 %v5914, %v5913
    %v6260 = vpack.c.b16 %v5916, %v5915
    %v6261 = vpack.c.b16 %v5918, %v5917
    %v6262 = vpack.c.b16 %v5920, %v5919
    %v6263 = vpack.c.b16 %v5922, %v5921
    %v6264 = vpack.c.b16 %v5924, %v5923
    %v6265 = vpack.c.b16 %v5926, %v5925
    %v6266 = vpack.c.b16 %v5928, %v5927
    %v6267 = vpack.c.b16 %v5930, %v5929
    %v6268 = vpack.c.b16 %v5932, %v5931
    %v6269 = vpack.c.b16 %v5934, %v5933
    %v6270 = vpack.c.b16 %v5936, %v5935
    %v6271 = vpack.c.b16 %v5938, %v5937
    %v6272 = vpack.c.b16 %v5940, %v5939
    %v6273 = vpack.c.b16 %v5942, %v5941
    %v6274 = vpack.c.b16 %v5944, %v5943
    %v6275 = vpack.c.b16 %v5946, %v5945
    %v6276 = vpack.c.b16 %v5948, %v5947
    %v6277 = vpack.c.b16 %v5950, %v5949
    %v6278 = vpack.c.b16 %v5952, %v5951
    %v6279 = vpack.c.b16 %v5954, %v5953
    %v6280 = vpack.c.b16 %v5956, %v5955
    %v6281 = vpack.c.b16 %v5958, %v5957
    %v6282 = vpack.c.b16 %v5960, %v5959
    %v6283 = vpack.c.b16 %v5962, %v5961
    %v6284 = vpack.c.b16 %v5964, %v5963
    %v6285 = vpack.c.b16 %v5966, %v5965
    %v6286 = vpack.c.b16 %v5968, %v5967
    %v6287 = vpack.c.b16 %v5970, %v5969
    %v6288 = vpack.c.b16 %v5972, %v5971
    %v6289 = vpack.c.b16 %v5974, %v5973
    %v6290 = vpack.c.b16 %v5976, %v5975
    %v6291 = vpack.c.b16 %v5978, %v5977
    %v6292 = vpack.c.b16 %v5980, %v5979
    %v6293 = vpack.c.b16 %v5982, %v5981
    %v6294 = vpack.c.b16 %v5984, %v5983
    %v6295 = vpack.c.b16 %v5986, %v5985
    %v6296 = vpack.c.b16 %v5988, %v5987
    %v6297 = vpack.c.b16 %v5990, %v5989
    %v6298 = vpack.c.b16 %v5992, %v5991
    %v6299 = vpack.c.b16 %v5994, %v5993
    %v6300 = vpack.c.b16 %v5996, %v5995
    %v6301 = vpack.c.b16 %v5998, %v5997
    %v6302 = vpack.c.b16 %v6000, %v5999
    %v6303 = vpack.c.b16 %v6002, %v6001
    %v6304 = vpack.c.b16 %v6004, %v6003
    %v6305 = vpack.c.b16 %v6006, %v6005
    %v6306 = vpack.c.b16 %v6008, %v6007
    %v6307 = vpack.c.b16 %v6010, %v6009
    %v6308 = vpack.c.b16 %v6012, %v6011
    %v6309 = vpack.c.b16 %v6014, %v6013
    %v6310 = vpack.c.b16 %v6016, %v6015
    %v6311 = vpack.c.b16 %v6018, %v6017
    %v6312 = vpack.c.b16 %v6020, %v6019
    %v6313 = vpack.c.b16 %v6022, %v6021
    %v6314 = vpack.c.b16 %v6024, %v6023
    %v6315 = vpack.c.b16 %v6026, %v6025
    %v6316 = vpack.c.b16 %v6028, %v6027
    %v6317 = vpack.c.b16 %v6030, %v6029
    %v6318 = vpack.c.b16 %v6032, %v6031
    %v6319 = vpack.c.b16 %v6034, %v6033
    %v6320 = vpack.c.b16 %v6036, %v6035
    %v6321 = vpack.c.b16 %v6038, %v6037
    %v6322 = vpack.c.b16 %v6040, %v6039
    %v6323 = vpack.c.b16 %v6042, %v6041
    %v6324 = vpack.c.b16 %v6044, %v6043
    %v6325 = vpack.c.b16 %v6046, %v6045
    %v6326 = vpack.c.b16 %v6048, %v6047
    %v6327 = vpack.c.b16 %v6050, %v6049
    %v6328 = vpack.c.b16 %v6052, %v6051
    %v6329 = vpack.c.b16 %v6054, %v6053
    %v6330 = vpack.c.b16 %v6056, %v6055
    %v6331 = vpack.c.b16 %v6058, %v6057
    %v6332 = vpack.c.b16 %v6060, %v6059
    %v6333 = vpack.c.b16 %v6062, %v6061
    %v6334 = vpack.c.b16 %v6064, %v6063
    %v6335 = vpack.c.b16 %v6066, %v6065
    %v6336 = vpack.c.b16 %v6068, %v6067
    %v6337 = vpack.c.b16 %v6070, %v6069
    %v6338 = vpack.c.b16 %v6072, %v6071
    %v6339 = vpack.c.b16 %v6074, %v6073
    %v6340 = vpack.c.b16 %v6076, %v6075
    %v6341 = vpack.c.b16 %v6078, %v6077
    %v6342 = vpack.c.b16 %v6080, %v6079
    %v6343 = vpack.c.b16 %v6082, %v6081
    %v6344 = vpack.c.b16 %v6084, %v6083
    %v6345 = vpack.c.b16 %v6086, %v6085
    %v6346 = vpack.c.b16 %v6088, %v6087
    %v6347 = vpack.c.b16 %v6090, %v6089
    %v6348 = vpack.c.b16 %v6092, %v6091
    %v6349 = vpack.c.b16 %v6094, %v6093
    %v6350 = vpack.c.b16 %v6096, %v6095
    %v6351 = vpack.c.b16 %v6098, %v6097
    %v6352 = vpack.c.b16 %v6100, %v6099
    %v6353 = vpack.c.b16 %v6102, %v6101
    %v6354 = vpack.c.b16 %v6104, %v6103
    %v6355 = vpack.c.b16 %v6106, %v6105
    %v6356 = vpack.c.b16 %v6108, %v6107
    %v6357 = vpack.c.b16 %v6110, %v6109
    %v6358 = vpack.c.b16 %v6112, %v6111
    %v6359 = vpack.c.b16 %v6114, %v6113
    %v6360 = vpack.c.b16 %v6116, %v6115
    %v6361 = vpack.c.b16 %v6118, %v6117
    %v6362 = vpack.c.b16 %v6120, %v6119
    %v6363 = vpack.c.b16 %v6122, %v6121
    %v6364 = vpack.c.b16 %v6124, %v6123
    %v6365 = vpack.c.b16 %v6126, %v6125
    %v6366 = vpack.c.b16 %v6128, %v6127
    %v6367 = vpack.c.b16 %v6130, %v6129
    %v6368 = vpack.c.b16 %v6132, %v6131
    %v6369 = vpack.c.b16 %v6134, %v6133
    %v6370 = vpack.c.b16 %v6136, %v6135
    %v6371 = vpack.c.b16 %v6138, %v6137
    %v6372 = vpack.c.b16 %v6140, %v6139
    %v6373 = vpack.c.b16 %v6142, %v6141
    %v6374 = vpack.c.b16 %v6144, %v6143
    %v6375 = vpack.c.b16 %v6146, %v6145
    %v6376 = vpack.c.b16 %v6148, %v6147
    %v6377 = vpack.c.b16 %v6150, %v6149
    %v6378 = vpack.c.b16 %v6152, %v6151
    %v6379 = vpack.c.b16 %v6154, %v6153
    %v6380 = vpack.c.b16 %v6156, %v6155
    %v6381 = vpack.c.b16 %v6158, %v6157
    %v6382 = vpack.c.b16 %v6160, %v6159
    %v6383 = vpack.c.b16 %v6162, %v6161
    %v6384 = vpack.c.b16 %v6164, %v6163
    %v6385 = vpack.c.b16 %v6166, %v6165
    %v6386 = vpack.c.b16 %v6168, %v6167
    %v6387 = vpack.c.b16 %v6170, %v6169
    %v6388 = vpack.c.b16 %v6172, %v6171
    %v6389 = vpack.c.b16 %v6174, %v6173
    %v6390 = vpack.c.b16 %v6176, %v6175
    %v6391 = vpack.c.b16 %v6178, %v6177
    %v6392 = vpack.c.b16 %v6180, %v6179
    %v6393 = vpack.c.b16 %v6182, %v6181
    %v6394 = vpack.c.b16 %v6184, %v6183
    %v6395 = vpack.c.b16 %v6186, %v6185
    %v6396 = vpack.c.b16 %v6188, %v6187
    %v6397 = vpack.c.b16 %v6190, %v6189
    %v6398 = vpack.c.b16 %v6192, %v6191
    %v6399 = vpack.c.b16 %v6194, %v6193
    %v6400 = vpack.c.b16 %v6196, %v6195
    %v6401 = vpack.c.b16 %v6198, %v6197
    %v6402 = vpack.c.b16 %v6200, %v6199
    %v6403 = vpack.c.b16 %v6202, %v6201
    %v6404 = vpack.c.b16 %v6204, %v6203
    %6605 = vmatprep.subr.bf16.mxu0 0
    %6606 = vmatpush1.bf16.msra.mxu0 %v6205
    %6607 = vmatprep.subr.bf16.mxu0 0
    %6608 = vmatpush1.bf16.msra.mxu0 %v6206
    %6609 = vmatprep.subr.bf16.mxu0 0
    %6610 = vmatpush1.bf16.msra.mxu0 %v6207
    %6611 = vmatprep.subr.bf16.mxu0 0
    %6612 = vmatpush1.bf16.msra.mxu0 %v6208
    %6613 = vmatprep.subr.bf16.mxu0 0
    %6614 = vmatpush1.bf16.msra.mxu0 %v6209
    %6615 = vmatprep.subr.bf16.mxu0 0
    %6616 = vmatpush1.bf16.msra.mxu0 %v6210
    %6617 = vmatprep.subr.bf16.mxu0 0
    %6618 = vmatpush1.bf16.msra.mxu0 %v6211
    %6619 = vmatprep.subr.bf16.mxu0 0
    %6620 = vmatpush1.bf16.msra.mxu0 %v6212
    %6621 = vmatprep.subr.bf16.mxu0 0
    %6622 = vmatpush1.bf16.msra.mxu0 %v6213
    %6623 = vmatprep.subr.bf16.mxu0 0
    %6624 = vmatpush1.bf16.msra.mxu0 %v6214
    %6625 = vmatprep.subr.bf16.mxu0 0
    %6626 = vmatpush1.bf16.msra.mxu0 %v6215
    %6627 = vmatprep.subr.bf16.mxu0 0
    %6628 = vmatpush1.bf16.msra.mxu0 %v6216
    %6629 = vmatprep.subr.bf16.mxu0 0
    %6630 = vmatpush1.bf16.msra.mxu0 %v6217
    %6631 = vmatprep.subr.bf16.mxu0 0
    %6632 = vmatpush1.bf16.msra.mxu0 %v6218
    %6633 = vmatprep.subr.bf16.mxu0 0
    %6634 = vmatpush1.bf16.msra.mxu0 %v6219
    %6635 = vmatprep.subr.bf16.mxu0 0
    %6636 = vmatpush1.bf16.msra.mxu0 %v6220
    %6637 = vmatprep.mubr.bf16.mxu0 %v4974
    %6638 = vmatmul.mubr.bf16.gmra.mrb[0].mxu0 %v4973
    %v6639 = vpop.f32.mrb[0].mxu0
    %v6640 = vadd.f32 %v5403, %v6639
    %v6641 = vpop.f32.mrb[0].mxu0
    %v6642 = vpop.f32.mrb[0].mxu0
    %v6643 = vadd.f32 %v5403, %v6642
    %v6644 = vpop.f32.mrb[0].mxu0
    %6645 = vdwg.mxu0
    %6646 = vmatprep.subr.bf16.mxu0 0
    %6647 = vmatpush1.bf16.msra.mxu0 %v6221
    %6648 = vmatprep.subr.bf16.mxu0 0
    %6649 = vmatpush1.bf16.msra.mxu0 %v6222
    %6650 = vmatprep.subr.bf16.mxu0 0
    %6651 = vmatpush1.bf16.msra.mxu0 %v6223
    %6652 = vmatprep.subr.bf16.mxu0 0
    %6653 = vmatpush1.bf16.msra.mxu0 %v6224
    %6654 = vmatprep.subr.bf16.mxu0 0
    %6655 = vmatpush1.bf16.msra.mxu0 %v6225
    %6656 = vmatprep.subr.bf16.mxu0 0
    %6657 = vmatpush1.bf16.msra.mxu0 %v6226
    %6658 = vmatprep.subr.bf16.mxu0 0
    %6659 = vmatpush1.bf16.msra.mxu0 %v6227
    %6660 = vmatprep.subr.bf16.mxu0 0
    %6661 = vmatpush1.bf16.msra.mxu0 %v6228
    %6662 = vmatprep.subr.bf16.mxu0 0
    %6663 = vmatpush1.bf16.msra.mxu0 %v6229
    %6664 = vmatprep.subr.bf16.mxu0 0
    %6665 = vmatpush1.bf16.msra.mxu0 %v6230
    %6666 = vmatprep.subr.bf16.mxu0 0
    %6667 = vmatpush1.bf16.msra.mxu0 %v6231
    %6668 = vmatprep.subr.bf16.mxu0 0
    %6669 = vmatpush1.bf16.msra.mxu0 %v6232
    %6670 = vmatprep.subr.bf16.mxu0 0
    %6671 = vmatpush1.bf16.msra.mxu0 %v6233
    %6672 = vmatprep.subr.bf16.mxu0 0
    %6673 = vmatpush1.bf16.msra.mxu0 %v6234
    %6674 = vmatprep.subr.bf16.mxu0 0
    %6675 = vmatpush1.bf16.msra.mxu0 %v6235
    %6676 = vmatprep.subr.bf16.mxu0 0
    %6677 = vmatpush1.bf16.msra.mxu0 %v6236
    %6678 = vmatprep.mubr.bf16.mxu0 %v4976
    %6679 = vmatmul.mubr.bf16.gmra.mrb[0].mxu0 %v4975
    %v6680 = vpop.f32.mrb[0].mxu0
    %v6681 = vadd.f32 %v6640, %v6680
    %v6682 = vpop.f32.mrb[0].mxu0
    %v6683 = vpop.f32.mrb[0].mxu0
    %v6684 = vadd.f32 %v6643, %v6683
    %v6685 = vpop.f32.mrb[0].mxu0
    %6686 = vdwg.mxu0
    %6687 = vmatprep.subr.bf16.mxu0 0
    %6688 = vmatpush1.bf16.msra.mxu0 %v6237
    %6689 = vmatprep.subr.bf16.mxu0 0
    %6690 = vmatpush1.bf16.msra.mxu0 %v6238
    %6691 = vmatprep.subr.bf16.mxu0 0
    %6692 = vmatpush1.bf16.msra.mxu0 %v6239
    %6693 = vmatprep.subr.bf16.mxu0 0
    %6694 = vmatpush1.bf16.msra.mxu0 %v6240
    %6695 = vmatprep.subr.bf16.mxu0 0
    %6696 = vmatpush1.bf16.msra.mxu0 %v6241
    %6697 = vmatprep.subr.bf16.mxu0 0
    %6698 = vmatpush1.bf16.msra.mxu0 %v6242
    %6699 = vmatprep.subr.bf16.mxu0 0
    %6700 = vmatpush1.bf16.msra.mxu0 %v6243
    %6701 = vmatprep.subr.bf16.mxu0 0
    %6702 = vmatpush1.bf16.msra.mxu0 %v6244
    %6703 = vmatprep.subr.bf16.mxu0 0
    %6704 = vmatpush1.bf16.msra.mxu0 %v6245
    %6705 = vmatprep.subr.bf16.mxu0 0
    %6706 = vmatpush1.bf16.msra.mxu0 %v6246
    %6707 = vmatprep.subr.bf16.mxu0 0
    %6708 = vmatpush1.bf16.msra.mxu0 %v6247
    %6709 = vmatprep.subr.bf16.mxu0 0
    %6710 = vmatpush1.bf16.msra.mxu0 %v6248
    %6711 = vmatprep.subr.bf16.mxu0 0
    %6712 = vmatpush1.bf16.msra.mxu0 %v6249
    %6713 = vmatprep.subr.bf16.mxu0 0
    %6714 = vmatpush1.bf16.msra.mxu0 %v6250
    %6715 = vmatprep.subr.bf16.mxu0 0
    %6716 = vmatpush1.bf16.msra.mxu0 %v6251
    %6717 = vmatprep.subr.bf16.mxu0 0
    %6718 = vmatpush1.bf16.msra.mxu0 %v6252
    %6719 = vmatprep.mubr.bf16.mxu0 %v4978
    %6720 = vmatmul.mubr.bf16.gmra.mrb[0].mxu0 %v4977
    %v6721 = vpop.f32.mrb[0].mxu0
    %v6722 = vadd.f32 %v6681, %v6721
    %v6723 = vpop.f32.mrb[0].mxu0
    %v6724 = vpop.f32.mrb[0].mxu0
    %v6725 = vadd.f32 %v6684, %v6724
    %v6726 = vpop.f32.mrb[0].mxu0
    %6727 = vdwg.mxu0
    %6728 = vmatprep.subr.bf16.mxu0 0
    %6729 = vmatpush1.bf16.msra.mxu0 %v6253
    %6730 = vmatprep.subr.bf16.mxu0 0
    %6731 = vmatpush1.bf16.msra.mxu0 %v6254
    %6732 = vmatprep.subr.bf16.mxu0 0
    %6733 = vmatpush1.bf16.msra.mxu0 %v6255
    %6734 = vmatprep.subr.bf16.mxu0 0
    %6735 = vmatpush1.bf16.msra.mxu0 %v6256
    %6736 = vmatprep.subr.bf16.mxu0 0
    %6737 = vmatpush1.bf16.msra.mxu0 %v6257
    %6738 = vmatprep.subr.bf16.mxu0 0
    %6739 = vmatpush1.bf16.msra.mxu0 %v6258
    %6740 = vmatprep.subr.bf16.mxu0 0
    %6741 = vmatpush1.bf16.msra.mxu0 %v6259
    %6742 = vmatprep.subr.bf16.mxu0 0
    %6743 = vmatpush1.bf16.msra.mxu0 %v6260
    %6744 = vmatprep.subr.bf16.mxu0 0
    %6745 = vmatpush1.bf16.msra.mxu0 %v6261
    %6746 = vmatprep.subr.bf16.mxu0 0
    %6747 = vmatpush1.bf16.msra.mxu0 %v6262
    %6748 = vmatprep.subr.bf16.mxu0 0
    %6749 = vmatpush1.bf16.msra.mxu0 %v6263
    %6750 = vmatprep.subr.bf16.mxu0 0
    %6751 = vmatpush1.bf16.msra.mxu0 %v6264
    %6752 = vmatprep.subr.bf16.mxu0 0
    %6753 = vmatpush1.bf16.msra.mxu0 %v6265
    %6754 = vmatprep.subr.bf16.mxu0 0
    %6755 = vmatpush1.bf16.msra.mxu0 %v6266
    %6756 = vmatprep.subr.bf16.mxu0 0
    %6757 = vmatpush1.bf16.msra.mxu0 %v6267
    %6758 = vmatprep.subr.bf16.mxu0 0
    %6759 = vmatpush1.bf16.msra.mxu0 %v6268
    %6760 = vmatprep.mubr.bf16.mxu0 %v4980
    %6761 = vmatmul.mubr.bf16.gmra.mrb[0].mxu0 %v4979
    %v6762 = vpop.f32.mrb[0].mxu0
    %v6763 = vadd.f32 %v6722, %v6762
    %v6764 = vpop.f32.mrb[0].mxu0
    %v6765 = vpop.f32.mrb[0].mxu0
    %v6766 = vadd.f32 %v6725, %v6765
    %v6767 = vpop.f32.mrb[0].mxu0
    %6768 = vdwg.mxu0
    %6769 = vmatprep.subr.bf16.mxu0 0
    %6770 = vmatpush1.bf16.msra.mxu0 %v6269
    %6771 = vmatprep.subr.bf16.mxu0 0
    %6772 = vmatpush1.bf16.msra.mxu0 %v6270
    %6773 = vmatprep.subr.bf16.mxu0 0
    %6774 = vmatpush1.bf16.msra.mxu0 %v6271
    %6775 = vmatprep.subr.bf16.mxu0 0
    %6776 = vmatpush1.bf16.msra.mxu0 %v6272
    %6777 = vmatprep.subr.bf16.mxu0 0
    %6778 = vmatpush1.bf16.msra.mxu0 %v6273
    %6779 = vmatprep.subr.bf16.mxu0 0
    %6780 = vmatpush1.bf16.msra.mxu0 %v6274
    %6781 = vmatprep.subr.bf16.mxu0 0
    %6782 = vmatpush1.bf16.msra.mxu0 %v6275
    %6783 = vmatprep.subr.bf16.mxu0 0
    %6784 = vmatpush1.bf16.msra.mxu0 %v6276
    %6785 = vmatprep.subr.bf16.mxu0 0
    %6786 = vmatpush1.bf16.msra.mxu0 %v6277
    %6787 = vmatprep.subr.bf16.mxu0 0
    %6788 = vmatpush1.bf16.msra.mxu0 %v6278
    %6789 = vmatprep.subr.bf16.mxu0 0
    %6790 = vmatpush1.bf16.msra.mxu0 %v6279
    %6791 = vmatprep.subr.bf16.mxu0 0
    %6792 = vmatpush1.bf16.msra.mxu0 %v6280
    %6793 = vmatprep.subr.bf16.mxu0 0
    %6794 = vmatpush1.bf16.msra.mxu0 %v6281
    %6795 = vmatprep.subr.bf16.mxu0 0
    %6796 = vmatpush1.bf16.msra.mxu0 %v6282
    %6797 = vmatprep.subr.bf16.mxu0 0
    %6798 = vmatpush1.bf16.msra.mxu0 %v6283
    %6799 = vmatprep.subr.bf16.mxu0 0
    %6800 = vmatpush1.bf16.msra.mxu0 %v6284
    %6801 = vmatprep.mubr.bf16.mxu0 %v4982
    %6802 = vmatmul.mubr.bf16.gmra.mrb[0].mxu0 %v4981
    %v6803 = vpop.f32.mrb[0].mxu0
    %v6804 = vadd.f32 %v6763, %v6803
    %v6805 = vpop.f32.mrb[0].mxu0
    %v6806 = vpop.f32.mrb[0].mxu0
    %v6807 = vadd.f32 %v6766, %v6806
    %v6808 = vpop.f32.mrb[0].mxu0
    %6809 = vdwg.mxu0
    %6810 = vmatprep.subr.bf16.mxu0 0
    %6811 = vmatpush1.bf16.msra.mxu0 %v6285
    %6812 = vmatprep.subr.bf16.mxu0 0
    %6813 = vmatpush1.bf16.msra.mxu0 %v6286
    %6814 = vmatprep.subr.bf16.mxu0 0
    %6815 = vmatpush1.bf16.msra.mxu0 %v6287
    %6816 = vmatprep.subr.bf16.mxu0 0
    %6817 = vmatpush1.bf16.msra.mxu0 %v6288
    %6818 = vmatprep.subr.bf16.mxu0 0
    %6819 = vmatpush1.bf16.msra.mxu0 %v6289
    %6820 = vmatprep.subr.bf16.mxu0 0
    %6821 = vmatpush1.bf16.msra.mxu0 %v6290
    %6822 = vmatprep.subr.bf16.mxu0 0
    %6823 = vmatpush1.bf16.msra.mxu0 %v6291
    %6824 = vmatprep.subr.bf16.mxu0 0
    %6825 = vmatpush1.bf16.msra.mxu0 %v6292
    %6826 = vmatprep.subr.bf16.mxu0 0
    %6827 = vmatpush1.bf16.msra.mxu0 %v6293
    %6828 = vmatprep.subr.bf16.mxu0 0
    %6829 = vmatpush1.bf16.msra.mxu0 %v6294
    %6830 = vmatprep.subr.bf16.mxu0 0
    %6831 = vmatpush1.bf16.msra.mxu0 %v6295
    %6832 = vmatprep.subr.bf16.mxu0 0
    %6833 = vmatpush1.bf16.msra.mxu0 %v6296
    %6834 = vmatprep.subr.bf16.mxu0 0
    %6835 = vmatpush1.bf16.msra.mxu0 %v6297
    %6836 = vmatprep.subr.bf16.mxu0 0
    %6837 = vmatpush1.bf16.msra.mxu0 %v6298
    %6838 = vmatprep.subr.bf16.mxu0 0
    %6839 = vmatpush1.bf16.msra.mxu0 %v6299
    %6840 = vmatprep.subr.bf16.mxu0 0
    %6841 = vmatpush1.bf16.msra.mxu0 %v6300
    %6842 = vmatprep.mubr.bf16.mxu0 %v4984
    %6843 = vmatmul.mubr.bf16.gmra.mrb[0].mxu0 %v4983
    %v6844 = vpop.f32.mrb[0].mxu0
    %v6845 = vadd.f32 %v6804, %v6844
    %v6846 = vpop.f32.mrb[0].mxu0
    %v6847 = vpop.f32.mrb[0].mxu0
    %v6848 = vadd.f32 %v6807, %v6847
    %v6849 = vpop.f32.mrb[0].mxu0
    %6850 = vdwg.mxu0
    %6851 = vmatprep.subr.bf16.mxu0 0
    %6852 = vmatpush1.bf16.msra.mxu0 %v6301
    %6853 = vmatprep.subr.bf16.mxu0 0
    %6854 = vmatpush1.bf16.msra.mxu0 %v6302
    %6855 = vmatprep.subr.bf16.mxu0 0
    %6856 = vmatpush1.bf16.msra.mxu0 %v6303
    %6857 = vmatprep.subr.bf16.mxu0 0
    %6858 = vmatpush1.bf16.msra.mxu0 %v6304
    %6859 = vmatprep.subr.bf16.mxu0 0
    %6860 = vmatpush1.bf16.msra.mxu0 %v6305
    %6861 = vmatprep.subr.bf16.mxu0 0
    %6862 = vmatpush1.bf16.msra.mxu0 %v6306
    %6863 = vmatprep.subr.bf16.mxu0 0
    %6864 = vmatpush1.bf16.msra.mxu0 %v6307
    %6865 = vmatprep.subr.bf16.mxu0 0
    %6866 = vmatpush1.bf16.msra.mxu0 %v6308
    %6867 = vmatprep.subr.bf16.mxu0 0
    %6868 = vmatpush1.bf16.msra.mxu0 %v6309
    %6869 = vmatprep.subr.bf16.mxu0 0
    %6870 = vmatpush1.bf16.msra.mxu0 %v6310
    %6871 = vmatprep.subr.bf16.mxu0 0
    %6872 = vmatpush1.bf16.msra.mxu0 %v6311
    %6873 = vmatprep.subr.bf16.mxu0 0
    %6874 = vmatpush1.bf16.msra.mxu0 %v6312
    %6875 = vmatprep.subr.bf16.mxu0 0
    %6876 = vmatpush1.bf16.msra.mxu0 %v6313
    %6877 = vmatprep.subr.bf16.mxu0 0
    %6878 = vmatpush1.bf16.msra.mxu0 %v6314
    %6879 = vmatprep.subr.bf16.mxu0 0
    %6880 = vmatpush1.bf16.msra.mxu0 %v6315
    %6881 = vmatprep.subr.bf16.mxu0 0
    %6882 = vmatpush1.bf16.msra.mxu0 %v6316
    %6883 = vmatprep.mubr.bf16.mxu0 %v4986
    %6884 = vmatmul.mubr.bf16.gmra.mrb[0].mxu0 %v4985
    %v6885 = vpop.f32.mrb[0].mxu0
    %v6886 = vadd.f32 %v6845, %v6885
    %v6887 = vpop.f32.mrb[0].mxu0
    %v6888 = vpop.f32.mrb[0].mxu0
    %v6889 = vadd.f32 %v6848, %v6888
    %v6890 = vpop.f32.mrb[0].mxu0
    %6891 = vdwg.mxu0
    %6892 = vmatprep.subr.bf16.mxu0 0
    %6893 = vmatpush1.bf16.msra.mxu0 %v6317
    %6894 = vmatprep.subr.bf16.mxu0 0
    %6895 = vmatpush1.bf16.msra.mxu0 %v6318
    %6896 = vmatprep.subr.bf16.mxu0 0
    %6897 = vmatpush1.bf16.msra.mxu0 %v6319
    %6898 = vmatprep.subr.bf16.mxu0 0
    %6899 = vmatpush1.bf16.msra.mxu0 %v6320
    %6900 = vmatprep.subr.bf16.mxu0 0
    %6901 = vmatpush1.bf16.msra.mxu0 %v6321
    %6902 = vmatprep.subr.bf16.mxu0 0
    %6903 = vmatpush1.bf16.msra.mxu0 %v6322
    %6904 = vmatprep.subr.bf16.mxu0 0
    %6905 = vmatpush1.bf16.msra.mxu0 %v6323
    %6906 = vmatprep.subr.bf16.mxu0 0
    %6907 = vmatpush1.bf16.msra.mxu0 %v6324
    %6908 = vmatprep.subr.bf16.mxu0 0
    %6909 = vmatpush1.bf16.msra.mxu0 %v6325
    %6910 = vmatprep.subr.bf16.mxu0 0
    %6911 = vmatpush1.bf16.msra.mxu0 %v6326
    %6912 = vmatprep.subr.bf16.mxu0 0
    %6913 = vmatpush1.bf16.msra.mxu0 %v6327
    %6914 = vmatprep.subr.bf16.mxu0 0
    %6915 = vmatpush1.bf16.msra.mxu0 %v6328
    %6916 = vmatprep.subr.bf16.mxu0 0
    %6917 = vmatpush1.bf16.msra.mxu0 %v6329
    %6918 = vmatprep.subr.bf16.mxu0 0
    %6919 = vmatpush1.bf16.msra.mxu0 %v6330
    %6920 = vmatprep.subr.bf16.mxu0 0
    %6921 = vmatpush1.bf16.msra.mxu0 %v6331
    %6922 = vmatprep.subr.bf16.mxu0 0
    %6923 = vmatpush1.bf16.msra.mxu0 %v6332
    %6924 = vmatprep.mubr.bf16.mxu0 %v4988
    %6925 = vmatmul.mubr.bf16.gmra.mrb[0].mxu0 %v4987
    %v6926 = vpop.f32.mrb[0].mxu0
    %v6927 = vadd.f32 %v6886, %v6926
    %v6928 = vpop.f32.mrb[0].mxu0
    %v6929 = vpop.f32.mrb[0].mxu0
    %v6930 = vadd.f32 %v6889, %v6929
    %v6931 = vpop.f32.mrb[0].mxu0
    %6932 = vdwg.mxu0
    %6933 = vmatprep.subr.bf16.mxu0 0
    %6934 = vmatpush1.bf16.msra.mxu0 %v6333
    %6935 = vmatprep.subr.bf16.mxu0 0
    %6936 = vmatpush1.bf16.msra.mxu0 %v6334
    %6937 = vmatprep.subr.bf16.mxu0 0
    %6938 = vmatpush1.bf16.msra.mxu0 %v6335
    %6939 = vmatprep.subr.bf16.mxu0 0
    %6940 = vmatpush1.bf16.msra.mxu0 %v6336
    %6941 = vmatprep.subr.bf16.mxu0 0
    %6942 = vmatpush1.bf16.msra.mxu0 %v6337
    %6943 = vmatprep.subr.bf16.mxu0 0
    %6944 = vmatpush1.bf16.msra.mxu0 %v6338
    %6945 = vmatprep.subr.bf16.mxu0 0
    %6946 = vmatpush1.bf16.msra.mxu0 %v6339
    %6947 = vmatprep.subr.bf16.mxu0 0
    %6948 = vmatpush1.bf16.msra.mxu0 %v6340
    %6949 = vmatprep.subr.bf16.mxu0 0
    %6950 = vmatpush1.bf16.msra.mxu0 %v6341
    %6951 = vmatprep.subr.bf16.mxu0 0
    %6952 = vmatpush1.bf16.msra.mxu0 %v6342
    %6953 = vmatprep.subr.bf16.mxu0 0
    %6954 = vmatpush1.bf16.msra.mxu0 %v6343
    %6955 = vmatprep.subr.bf16.mxu0 0
    %6956 = vmatpush1.bf16.msra.mxu0 %v6344
    %6957 = vmatprep.subr.bf16.mxu0 0
    %6958 = vmatpush1.bf16.msra.mxu0 %v6345
    %6959 = vmatprep.subr.bf16.mxu0 0
    %6960 = vmatpush1.bf16.msra.mxu0 %v6346
    %6961 = vmatprep.subr.bf16.mxu0 0
    %6962 = vmatpush1.bf16.msra.mxu0 %v6347
    %6963 = vmatprep.subr.bf16.mxu0 0
    %6964 = vmatpush1.bf16.msra.mxu0 %v6348
    %6965 = vmatprep.mubr.bf16.mxu0 %v4990
    %6966 = vmatmul.mubr.bf16.gmra.mrb[0].mxu0 %v4989
    %v6967 = vpop.f32.mrb[0].mxu0
    %v6968 = vadd.f32 %v6927, %v6967
    %v6969 = vpop.f32.mrb[0].mxu0
    %v6970 = vpop.f32.mrb[0].mxu0
    %v6971 = vadd.f32 %v6930, %v6970
    %v6972 = vpop.f32.mrb[0].mxu0
    %6973 = vdwg.mxu0
    %6974 = vmatprep.subr.bf16.mxu0 0
    %6975 = vmatpush1.bf16.msra.mxu0 %v6349
    %6976 = vmatprep.subr.bf16.mxu0 0
    %6977 = vmatpush1.bf16.msra.mxu0 %v6350
    %6978 = vmatprep.subr.bf16.mxu0 0
    %6979 = vmatpush1.bf16.msra.mxu0 %v6351
    %6980 = vmatprep.subr.bf16.mxu0 0
    %6981 = vmatpush1.bf16.msra.mxu0 %v6352
    %6982 = vmatprep.subr.bf16.mxu0 0
    %6983 = vmatpush1.bf16.msra.mxu0 %v6353
    %6984 = vmatprep.subr.bf16.mxu0 0
    %6985 = vmatpush1.bf16.msra.mxu0 %v6354
    %6986 = vmatprep.subr.bf16.mxu0 0
    %6987 = vmatpush1.bf16.msra.mxu0 %v6355
    %6988 = vmatprep.subr.bf16.mxu0 0
    %6989 = vmatpush1.bf16.msra.mxu0 %v6356
    %6990 = vmatprep.subr.bf16.mxu0 0
    %6991 = vmatpush1.bf16.msra.mxu0 %v6357
    %6992 = vmatprep.subr.bf16.mxu0 0
    %6993 = vmatpush1.bf16.msra.mxu0 %v6358
    %6994 = vmatprep.subr.bf16.mxu0 0
    %6995 = vmatpush1.bf16.msra.mxu0 %v6359
    %6996 = vmatprep.subr.bf16.mxu0 0
    %6997 = vmatpush1.bf16.msra.mxu0 %v6360
    %6998 = vmatprep.subr.bf16.mxu0 0
    %6999 = vmatpush1.bf16.msra.mxu0 %v6361
    %7000 = vmatprep.subr.bf16.mxu0 0
    %7001 = vmatpush1.bf16.msra.mxu0 %v6362
    %7002 = vmatprep.subr.bf16.mxu0 0
    %7003 = vmatpush1.bf16.msra.mxu0 %v6363
    %7004 = vmatprep.subr.bf16.mxu0 0
    %7005 = vmatpush1.bf16.msra.mxu0 %v6364
    %7006 = vmatprep.mubr.bf16.mxu0 %v4992
    %7007 = vmatmul.mubr.bf16.gmra.mrb[0].mxu0 %v4991
    %v7008 = vpop.f32.mrb[0].mxu0
    %v7009 = vadd.f32 %v6968, %v7008
    %v7010 = vpop.f32.mrb[0].mxu0
    %v7011 = vpop.f32.mrb[0].mxu0
    %v7012 = vadd.f32 %v6971, %v7011
    %v7013 = vpop.f32.mrb[0].mxu0
    %7014 = vdwg.mxu0
    %7015 = vmatprep.subr.bf16.mxu0 0
    %7016 = vmatpush1.bf16.msra.mxu0 %v6365
    %7017 = vmatprep.subr.bf16.mxu0 0
    %7018 = vmatpush1.bf16.msra.mxu0 %v6366
    %7019 = vmatprep.subr.bf16.mxu0 0
    %7020 = vmatpush1.bf16.msra.mxu0 %v6367
    %7021 = vmatprep.subr.bf16.mxu0 0
    %7022 = vmatpush1.bf16.msra.mxu0 %v6368
    %7023 = vmatprep.subr.bf16.mxu0 0
    %7024 = vmatpush1.bf16.msra.mxu0 %v6369
    %7025 = vmatprep.subr.bf16.mxu0 0
    %7026 = vmatpush1.bf16.msra.mxu0 %v6370
    %7027 = vmatprep.subr.bf16.mxu0 0
    %7028 = vmatpush1.bf16.msra.mxu0 %v6371
    %7029 = vmatprep.subr.bf16.mxu0 0
    %7030 = vmatpush1.bf16.msra.mxu0 %v6372
    %7031 = vmatprep.subr.bf16.mxu0 0
    %7032 = vmatpush1.bf16.msra.mxu0 %v6373
    %7033 = vmatprep.subr.bf16.mxu0 0
    %7034 = vmatpush1.bf16.msra.mxu0 %v6374
    %7035 = vmatprep.subr.bf16.mxu0 0
    %7036 = vmatpush1.bf16.msra.mxu0 %v6375
    %7037 = vmatprep.subr.bf16.mxu0 0
    %7038 = vmatpush1.bf16.msra.mxu0 %v6376
    %7039 = vmatprep.subr.bf16.mxu0 0
    %7040 = vmatpush1.bf16.msra.mxu0 %v6377
    %7041 = vmatprep.subr.bf16.mxu0 0
    %7042 = vmatpush1.bf16.msra.mxu0 %v6378
    %7043 = vmatprep.subr.bf16.mxu0 0
    %7044 = vmatpush1.bf16.msra.mxu0 %v6379
    %7045 = vmatprep.subr.bf16.mxu0 0
    %7046 = vmatpush1.bf16.msra.mxu0 %v6380
    %7047 = vmatprep.mubr.bf16.mxu0 %v4994
    %7048 = vmatmul.mubr.bf16.gmra.mrb[0].mxu0 %v4993
    %v7049 = vpop.f32.mrb[0].mxu0
    %v7050 = vadd.f32 %v7009, %v7049
    %v7051 = vpop.f32.mrb[0].mxu0
    %v7052 = vpop.f32.mrb[0].mxu0
    %v7053 = vadd.f32 %v7012, %v7052
    %v7054 = vpop.f32.mrb[0].mxu0
    %7055 = vdwg.mxu0
    %7056 = vmatprep.subr.bf16.mxu0 0
    %7057 = vmatpush1.bf16.msra.mxu0 %v6381
    %7058 = vmatprep.subr.bf16.mxu0 0
    %7059 = vmatpush1.bf16.msra.mxu0 %v6382
    %7060 = vmatprep.subr.bf16.mxu0 0
    %7061 = vmatpush1.bf16.msra.mxu0 %v6383
    %7062 = vmatprep.subr.bf16.mxu0 0
    %7063 = vmatpush1.bf16.msra.mxu0 %v6384
    %7064 = vmatprep.subr.bf16.mxu0 0
    %7065 = vmatpush1.bf16.msra.mxu0 %v6385
    %7066 = vmatprep.subr.bf16.mxu0 0
    %7067 = vmatpush1.bf16.msra.mxu0 %v6386
    %7068 = vmatprep.subr.bf16.mxu0 0
    %7069 = vmatpush1.bf16.msra.mxu0 %v6387
    %7070 = vmatprep.subr.bf16.mxu0 0
    %7071 = vmatpush1.bf16.msra.mxu0 %v6388
    %7072 = vmatprep.subr.bf16.mxu0 0
    %7073 = vmatpush1.bf16.msra.mxu0 %v6389
    %7074 = vmatprep.subr.bf16.mxu0 0
    %7075 = vmatpush1.bf16.msra.mxu0 %v6390
    %7076 = vmatprep.subr.bf16.mxu0 0
    %7077 = vmatpush1.bf16.msra.mxu0 %v6391
    %7078 = vmatprep.subr.bf16.mxu0 0
    %7079 = vmatpush1.bf16.msra.mxu0 %v6392
    %7080 = vmatprep.subr.bf16.mxu0 0
    %7081 = vmatpush1.bf16.msra.mxu0 %v6393
    %7082 = vmatprep.subr.bf16.mxu0 0
    %7083 = vmatpush1.bf16.msra.mxu0 %v6394
    %7084 = vmatprep.subr.bf16.mxu0 0
    %7085 = vmatpush1.bf16.msra.mxu0 %v6395
    %7086 = vmatprep.subr.bf16.mxu0 0
    %7087 = vmatpush1.bf16.msra.mxu0 %v6396
    %7088 = vmatprep.mubr.bf16.mxu0 %v4996
    %7089 = vmatmul.mubr.bf16.gmra.mrb[0].mxu0 %v4995
    %v7090 = vpop.f32.mrb[0].mxu0
    %v7091 = vadd.f32 %v7050, %v7090
    %v7092 = vpop.f32.mrb[0].mxu0
    %v7093 = vpop.f32.mrb[0].mxu0
    %v7094 = vadd.f32 %v7053, %v7093
    %v7095 = vpop.f32.mrb[0].mxu0
    %7096 = vdwg.mxu0
    %7097 = vmatprep.subr.bf16.mxu0 0
    %7098 = vmatpush1.bf16.msra.mxu0 %v6397
    %7099 = vmatprep.subr.bf16.mxu0 0
    %7100 = vmatpush1.bf16.msra.mxu0 %v6398
    %7101 = vmatprep.subr.bf16.mxu0 0
    %7102 = vmatpush1.bf16.msra.mxu0 %v6399
    %7103 = vmatprep.subr.bf16.mxu0 0
    %7104 = vmatpush1.bf16.msra.mxu0 %v6400
    %7105 = vmatprep.subr.bf16.mxu0 0
    %7106 = vmatpush1.bf16.msra.mxu0 %v6401
    %7107 = vmatprep.subr.bf16.mxu0 0
    %7108 = vmatpush1.bf16.msra.mxu0 %v6402
    %7109 = vmatprep.subr.bf16.mxu0 0
    %7110 = vmatpush1.bf16.msra.mxu0 %v6403
    %7111 = vmatprep.subr.bf16.mxu0 0
    %7112 = vmatpush1.bf16.msra.mxu0 %v6404
    %7113 = vmatprep.subr.bf16.mxu0 0
    %7114 = vmatpush1.bf16.msra.mxu0 0
    %7115 = vmatprep.subr.bf16.mxu0 0
    %7116 = vmatpush1.bf16.msra.mxu0 0
    %7117 = vmatprep.subr.bf16.mxu0 0
    %7118 = vmatpush1.bf16.msra.mxu0 0
    %7119 = vmatprep.subr.bf16.mxu0 0
    %7120 = vmatpush1.bf16.msra.mxu0 0
    %7121 = vmatprep.subr.bf16.mxu0 0
    %7122 = vmatpush1.bf16.msra.mxu0 0
    %7123 = vmatprep.subr.bf16.mxu0 0
    %7124 = vmatpush1.bf16.msra.mxu0 0
    %7125 = vmatprep.subr.bf16.mxu0 0
    %7126 = vmatpush1.bf16.msra.mxu0 0
    %7127 = vmatprep.subr.bf16.mxu0 0
    %7128 = vmatpush1.bf16.msra.mxu0 0
    %7129 = vmatprep.mubr.bf16.mxu0 0
    %7130 = vmatmul.mubr.bf16.gmra.mrb[0].mxu0 %v4997
    %v7131 = vpop.f32.mrb[0].mxu0
    %v7132 = vadd.f32 %v7091, %v7131
    %v7133 = vpop.f32.mrb[0].mxu0
    %v7134 = vpop.f32.mrb[0].mxu0
    %v7135 = vadd.f32 %v7094, %v7134
    %v7136 = vpop.f32.mrb[0].mxu0
    %7137 = vdwg.mxu0
    %v7138 = vlaneseq
    %v7139 = vand.u32 %v7138, 127
    %vm7140 = vcmp.lt.s32.totalorder %v7139, 32
    %7141 = vadd.xlane.f32.xlu0 %v7132
    %v7142 = vpop.xlane.xlu0 %7141
    %7143 = vadd.xlane.f32.xlu0 %v7135
    %v7144 = vpop.xlane.xlu0 %7143
    %v7145 = vrcp.pop 32.0
    %v7146 = vmul.f32 %v7142, %v7145
    %v7147 = vmul.f32 %v7144, %v7145
    %v7148 = vsub.f32 %v7132, %v7146
    %v7149 = vsub.f32 %v7135, %v7147
    %v7150 = vsel %vm7140, %v7148, 0.0
    %v7151 = vsel %vm7140, %v7149, 0.0
    %v7152 = vmul.f32 %v7150, %v7150
    %v7153 = vmul.f32 %v7151, %v7151
    %7154 = vadd.xlane.f32.xlu0 %v7152
    %v7155 = vpop.xlane.xlu0 %7154
    %7156 = vadd.xlane.f32.xlu0 %v7153
    %v7157 = vpop.xlane.xlu0 %7156
    %v7158 = vmul.f32 %v7155, %v7145
    %v7159 = vmul.f32 %v7157, %v7145
    %v7160 = vadd.f32 %v7158, 1e-05
    %v7161 = vadd.f32 %v7159, 1e-05
    %v7162 = vrsqrt.pop %v7160
    %v7163 = vrsqrt.pop %v7161
    %v7164 = vmul.f32 %v7150, %v7162
    %v7165 = vmul.f32 %v7151, %v7163
    %v7166 = vld [vmem:[#allocation17] sm:$0x1]
    %v7168 = vlaneseq
    %v7169 = vshrl.u32 %v7168, 7
    %v7170 = vsub.s32 0, %v7169
    %v7171 = vrot.slane %v7166, %v7170
    %v7173 = vmul.f32 %v7164, %v7171
    %v7174 = vmul.f32 %v7165, %v7171
    %v7175 = vld [vmem:[#allocation18] sm:$0x1]
    %v7177 = vlaneseq
    %v7178 = vshrl.u32 %v7177, 7
    %v7179 = vsub.s32 0, %v7178
    %v7180 = vrot.slane %v7175, %v7179
    %v7182 = vadd.f32 %v7173, %v7180
    %v7183 = vadd.f32 %v7174, %v7180
    %v7184 = vtanh.pop %v7182
    %v7185 = vtanh.pop %v7183
    %v7186 = vpack.c.bf16 %v7185, %v7184
    %v7187 = vld [vmem:[#allocation20] sm:$0xf]
    %v7188 = vld [vmem:[#allocation20 + $0x4] sm:$0xf]
    %v7189 = vld [vmem:[#allocation20 + $0x8] sm:$0xf]
    %v7190 = vld [vmem:[#allocation20 + $0xc] sm:$0xf]
    %v7191 = vld [vmem:[#allocation20 + $0x10] sm:$0xf]
    %v7192 = vld [vmem:[#allocation20 + $0x14] sm:$0xf]
    %v7193 = vld [vmem:[#allocation20 + $0x18] sm:$0xf]
    %v7194 = vld [vmem:[#allocation20 + $0x1c] sm:$0xf]
    %v7195 = vld [vmem:[#allocation20 + $0x20] sm:$0xf]
    %v7196 = vld [vmem:[#allocation20 + $0x24] sm:$0xf]
    %v7197 = vld [vmem:[#allocation20 + $0x28] sm:$0xf]
    %v7198 = vld [vmem:[#allocation20 + $0x2c] sm:$0xf]
    %v7199 = vld [vmem:[#allocation20 + $0x30] sm:$0xf]
    %v7200 = vld [vmem:[#allocation20 + $0x34] sm:$0xf]
    %v7201 = vld [vmem:[#allocation20 + $0x38] sm:$0xf]
    %v7202 = vld [vmem:[#allocation20 + $0x3c] sm:$0xf]
    %v7203 = vld [vmem:[#allocation6] sm:$0xf]
    %v7204 = vld [vmem:[#allocation6 + $0x4] sm:$0xf]
    %v7205 = vld [vmem:[#allocation21] sm:$0xf]
    %v7206 = vld [vmem:[#allocation21 + $0x4] sm:$0xf]
    %v7207 = vld [vmem:[#allocation21 + $0x8] sm:$0xf]
    %v7208 = vld [vmem:[#allocation21 + $0xc] sm:$0xf]
    %v7209 = vld [vmem:[#allocation21 + $0x10] sm:$0xf]
    %v7210 = vld [vmem:[#allocation21 + $0x14] sm:$0xf]
    %v7211 = vld [vmem:[#allocation21 + $0x18] sm:$0xf]
    %v7212 = vld [vmem:[#allocation21 + $0x1c] sm:$0xf]
    %v7213 = vld [vmem:[#allocation21 + $0x20] sm:$0xf]
    %v7214 = vld [vmem:[#allocation21 + $0x24] sm:$0xf]
    %v7215 = vld [vmem:[#allocation21 + $0x28] sm:$0xf]
    %v7216 = vld [vmem:[#allocation21 + $0x2c] sm:$0xf]
    %v7217 = vld [vmem:[#allocation21 + $0x30] sm:$0xf]
    %v7218 = vld [vmem:[#allocation21 + $0x34] sm:$0xf]
    %v7219 = vld [vmem:[#allocation21 + $0x38] sm:$0xf]
    %v7220 = vld [vmem:[#allocation21 + $0x3c] sm:$0xf]
    %v7223 = vunpack.c.l.b16 %v7203
    %v7224 = vunpack.c.l.b16 %v7204
    %v7225 = vpack.c.b16 %v7224, %v7223
    %v7243 = vunpack.c.l.b16 %v7205
    %v7244 = vunpack.c.l.b16 %v7206
    %v7245 = vunpack.c.l.b16 %v7207
    %v7246 = vunpack.c.l.b16 %v7208
    %v7247 = vunpack.c.l.b16 %v7209
    %v7248 = vunpack.c.l.b16 %v7210
    %v7249 = vunpack.c.l.b16 %v7211
    %v7250 = vunpack.c.l.b16 %v7212
    %v7251 = vunpack.c.l.b16 %v7213
    %v7252 = vunpack.c.l.b16 %v7214
    %v7253 = vunpack.c.l.b16 %v7215
    %v7254 = vunpack.c.l.b16 %v7216
    %v7255 = vunpack.c.l.b16 %v7217
    %v7256 = vunpack.c.l.b16 %v7218
    %v7257 = vunpack.c.l.b16 %v7219
    %v7258 = vunpack.c.l.b16 %v7220
    %v7259 = vpack.c.b16 %v7244, %v7243
    %v7260 = vpack.c.b16 %v7246, %v7245
    %v7261 = vpack.c.b16 %v7248, %v7247
    %v7262 = vpack.c.b16 %v7250, %v7249
    %v7263 = vpack.c.b16 %v7252, %v7251
    %v7264 = vpack.c.b16 %v7254, %v7253
    %v7265 = vpack.c.b16 %v7256, %v7255
    %v7266 = vpack.c.b16 %v7258, %v7257
    %7275 = vmatprep.subr.bf16.mxu0 0
    %7276 = vmatpush1.bf16.msra.mxu0 %v7259
    %7277 = vmatprep.subr.bf16.mxu0 0
    %7278 = vmatpush1.bf16.msra.mxu0 %v7260
    %7279 = vmatprep.subr.bf16.mxu0 0
    %7280 = vmatpush1.bf16.msra.mxu0 %v7261
    %7281 = vmatprep.subr.bf16.mxu0 0
    %7282 = vmatpush1.bf16.msra.mxu0 %v7262
    %7283 = vmatprep.subr.bf16.mxu0 0
    %7284 = vmatpush1.bf16.msra.mxu0 %v7263
    %7285 = vmatprep.subr.bf16.mxu0 0
    %7286 = vmatpush1.bf16.msra.mxu0 %v7264
    %7287 = vmatprep.subr.bf16.mxu0 0
    %7288 = vmatpush1.bf16.msra.mxu0 %v7265
    %7289 = vmatprep.subr.bf16.mxu0 0
    %7290 = vmatpush1.bf16.msra.mxu0 %v7266
    %7291 = vmatprep.subr.bf16.mxu0 0
    %7292 = vmatpush1.bf16.msra.mxu0 0
    %7293 = vmatprep.subr.bf16.mxu0 0
    %7294 = vmatpush1.bf16.msra.mxu0 0
    %7295 = vmatprep.subr.bf16.mxu0 0
    %7296 = vmatpush1.bf16.msra.mxu0 0
    %7297 = vmatprep.subr.bf16.mxu0 0
    %7298 = vmatpush1.bf16.msra.mxu0 0
    %7299 = vmatprep.subr.bf16.mxu0 0
    %7300 = vmatpush1.bf16.msra.mxu0 0
    %7301 = vmatprep.subr.bf16.mxu0 0
    %7302 = vmatpush1.bf16.msra.mxu0 0
    %7303 = vmatprep.subr.bf16.mxu0 0
    %7304 = vmatpush1.bf16.msra.mxu0 0
    %7305 = vmatprep.subr.bf16.mxu0 0
    %7306 = vmatpush1.bf16.msra.mxu0 0
    %7307 = vmatprep.mubr.bf16.mxu0 0
    %7308 = vmatmul.mubr.bf16.gmra.mrb[0].mxu0 %v7225
    %v7309 = vpop.f32.mrb[0].mxu0
    %v7310 = vadd.f32 0.0, %v7309
    %v7311 = vpop.f32.mrb[0].mxu0
    %v7312 = vpop.f32.mrb[0].mxu0
    %v7313 = vadd.f32 0.0, %v7312
    %v7314 = vpop.f32.mrb[0].mxu0
    %7315 = vdwg.mxu0
    %v7332 = vunpack.c.l.b16 %v7187
    %v7333 = vunpack.c.l.b16 %v7188
    %v7334 = vunpack.c.l.b16 %v7189
    %v7335 = vunpack.c.l.b16 %v7190
    %v7336 = vunpack.c.l.b16 %v7191
    %v7337 = vunpack.c.l.b16 %v7192
    %v7338 = vunpack.c.l.b16 %v7193
    %v7339 = vunpack.c.l.b16 %v7194
    %v7340 = vunpack.c.l.b16 %v7195
    %v7341 = vunpack.c.l.b16 %v7196
    %v7342 = vunpack.c.l.b16 %v7197
    %v7343 = vunpack.c.l.b16 %v7198
    %v7344 = vunpack.c.l.b16 %v7199
    %v7345 = vunpack.c.l.b16 %v7200
    %v7346 = vunpack.c.l.b16 %v7201
    %v7347 = vunpack.c.l.b16 %v7202
    %v7348 = vpack.c.b16 %v7333, %v7332
    %v7349 = vpack.c.b16 %v7335, %v7334
    %v7350 = vpack.c.b16 %v7337, %v7336
    %v7351 = vpack.c.b16 %v7339, %v7338
    %v7352 = vpack.c.b16 %v7341, %v7340
    %v7353 = vpack.c.b16 %v7343, %v7342
    %v7354 = vpack.c.b16 %v7345, %v7344
    %v7355 = vpack.c.b16 %v7347, %v7346
    %7364 = vmatprep.subr.bf16.mxu0 0
    %7365 = vmatpush1.bf16.msra.mxu0 %v7348
    %7366 = vmatprep.subr.bf16.mxu0 0
    %7367 = vmatpush1.bf16.msra.mxu0 %v7349
    %7368 = vmatprep.subr.bf16.mxu0 0
    %7369 = vmatpush1.bf16.msra.mxu0 %v7350
    %7370 = vmatprep.subr.bf16.mxu0 0
    %7371 = vmatpush1.bf16.msra.mxu0 %v7351
    %7372 = vmatprep.subr.bf16.mxu0 0
    %7373 = vmatpush1.bf16.msra.mxu0 %v7352
    %7374 = vmatprep.subr.bf16.mxu0 0
    %7375 = vmatpush1.bf16.msra.mxu0 %v7353
    %7376 = vmatprep.subr.bf16.mxu0 0
    %7377 = vmatpush1.bf16.msra.mxu0 %v7354
    %7378 = vmatprep.subr.bf16.mxu0 0
    %7379 = vmatpush1.bf16.msra.mxu0 %v7355
    %7380 = vmatprep.subr.bf16.mxu0 0
    %7381 = vmatpush1.bf16.msra.mxu0 0
    %7382 = vmatprep.subr.bf16.mxu0 0
    %7383 = vmatpush1.bf16.msra.mxu0 0
    %7384 = vmatprep.subr.bf16.mxu0 0
    %7385 = vmatpush1.bf16.msra.mxu0 0
    %7386 = vmatprep.subr.bf16.mxu0 0
    %7387 = vmatpush1.bf16.msra.mxu0 0
    %7388 = vmatprep.subr.bf16.mxu0 0
    %7389 = vmatpush1.bf16.msra.mxu0 0
    %7390 = vmatprep.subr.bf16.mxu0 0
    %7391 = vmatpush1.bf16.msra.mxu0 0
    %7392 = vmatprep.subr.bf16.mxu0 0
    %7393 = vmatpush1.bf16.msra.mxu0 0
    %7394 = vmatprep.subr.bf16.mxu0 0
    %7395 = vmatpush1.bf16.msra.mxu0 0
    %7396 = vmatprep.mubr.bf16.mxu0 0
    %7397 = vmatmul.mubr.bf16.gmra.mrb[0].mxu0 %v7186
    %v7398 = vpop.f32.mrb[0].mxu0
    %v7399 = vadd.f32 %v7310, %v7398
    %v7400 = vpop.f32.mrb[0].mxu0
    %v7401 = vpop.f32.mrb[0].mxu0
    %v7402 = vadd.f32 %v7313, %v7401
    %v7403 = vpop.f32.mrb[0].mxu0
    %7404 = vdwg.mxu0
    %v7405 = vld [vmem:[#allocation23] sm:$0x1]
    %v7407 = vlaneseq
    %v7408 = vshrl.u32 %v7407, 7
    %v7409 = vsub.s32 0, %v7408
    %v7410 = vrot.slane %v7405, %v7409
    %v7412 = vadd.f32 %v7399, %v7410
    %v7413 = vadd.f32 %v7402, %v7410
    %v7414 = vmax.f32 %v7412, 0.0
    %v7415 = vmax.f32 %v7413, 0.0
    %v7416 = vpack.c.bf16 %v7415, %v7414
    %v7417 = vld [vmem:[#allocation24] sm:$0xf]
    %v7418 = vld [vmem:[#allocation24 + $0x4] sm:$0xf]
    %v7419 = vld [vmem:[#allocation24 + $0x8] sm:$0xf]
    %v7420 = vld [vmem:[#allocation24 + $0xc] sm:$0xf]
    %v7421 = vld [vmem:[#allocation24 + $0x10] sm:$0xf]
    %v7422 = vld [vmem:[#allocation24 + $0x14] sm:$0xf]
    %v7423 = vld [vmem:[#allocation24 + $0x18] sm:$0xf]
    %v7424 = vld [vmem:[#allocation24 + $0x1c] sm:$0xf]
    %v7425 = vld [vmem:[#allocation24 + $0x20] sm:$0xf]
    %v7426 = vld [vmem:[#allocation24 + $0x24] sm:$0xf]
    %v7427 = vld [vmem:[#allocation24 + $0x28] sm:$0xf]
    %v7428 = vld [vmem:[#allocation24 + $0x2c] sm:$0xf]
    %v7429 = vld [vmem:[#allocation24 + $0x30] sm:$0xf]
    %v7430 = vld [vmem:[#allocation24 + $0x34] sm:$0xf]
    %v7431 = vld [vmem:[#allocation24 + $0x38] sm:$0xf]
    %v7432 = vld [vmem:[#allocation24 + $0x3c] sm:$0xf]
    %v7433 = vld [vmem:[#allocation26] sm:$0x1]
    %v7435 = vlaneseq
    %v7436 = vshrl.u32 %v7435, 7
    %v7437 = vsub.s32 0, %v7436
    %v7438 = vrot.slane %v7433, %v7437
    %v7456 = vunpack.c.l.b16 %v7417
    %v7457 = vunpack.c.l.b16 %v7418
    %v7458 = vunpack.c.l.b16 %v7419
    %v7459 = vunpack.c.l.b16 %v7420
    %v7460 = vunpack.c.l.b16 %v7421
    %v7461 = vunpack.c.l.b16 %v7422
    %v7462 = vunpack.c.l.b16 %v7423
    %v7463 = vunpack.c.l.b16 %v7424
    %v7464 = vunpack.c.l.b16 %v7425
    %v7465 = vunpack.c.l.b16 %v7426
    %v7466 = vunpack.c.l.b16 %v7427
    %v7467 = vunpack.c.l.b16 %v7428
    %v7468 = vunpack.c.l.b16 %v7429
    %v7469 = vunpack.c.l.b16 %v7430
    %v7470 = vunpack.c.l.b16 %v7431
    %v7471 = vunpack.c.l.b16 %v7432
    %v7472 = vpack.c.b16 %v7457, %v7456
    %v7473 = vpack.c.b16 %v7459, %v7458
    %v7474 = vpack.c.b16 %v7461, %v7460
    %v7475 = vpack.c.b16 %v7463, %v7462
    %v7476 = vpack.c.b16 %v7465, %v7464
    %v7477 = vpack.c.b16 %v7467, %v7466
    %v7478 = vpack.c.b16 %v7469, %v7468
    %v7479 = vpack.c.b16 %v7471, %v7470
    %7488 = vmatprep.subr.bf16.mxu0 0
    %7489 = vmatpush1.bf16.msra.mxu0 %v7472
    %7490 = vmatprep.subr.bf16.mxu0 0
    %7491 = vmatpush1.bf16.msra.mxu0 %v7473
    %7492 = vmatprep.subr.bf16.mxu0 0
    %7493 = vmatpush1.bf16.msra.mxu0 %v7474
    %7494 = vmatprep.subr.bf16.mxu0 0
    %7495 = vmatpush1.bf16.msra.mxu0 %v7475
    %7496 = vmatprep.subr.bf16.mxu0 0
    %7497 = vmatpush1.bf16.msra.mxu0 %v7476
    %7498 = vmatprep.subr.bf16.mxu0 0
    %7499 = vmatpush1.bf16.msra.mxu0 %v7477
    %7500 = vmatprep.subr.bf16.mxu0 0
    %7501 = vmatpush1.bf16.msra.mxu0 %v7478
    %7502 = vmatprep.subr.bf16.mxu0 0
    %7503 = vmatpush1.bf16.msra.mxu0 %v7479
    %7504 = vmatprep.subr.bf16.mxu0 0
    %7505 = vmatpush1.bf16.msra.mxu0 0
    %7506 = vmatprep.subr.bf16.mxu0 0
    %7507 = vmatpush1.bf16.msra.mxu0 0
    %7508 = vmatprep.subr.bf16.mxu0 0
    %7509 = vmatpush1.bf16.msra.mxu0 0
    %7510 = vmatprep.subr.bf16.mxu0 0
    %7511 = vmatpush1.bf16.msra.mxu0 0
    %7512 = vmatprep.subr.bf16.mxu0 0
    %7513 = vmatpush1.bf16.msra.mxu0 0
    %7514 = vmatprep.subr.bf16.mxu0 0
    %7515 = vmatpush1.bf16.msra.mxu0 0
    %7516 = vmatprep.subr.bf16.mxu0 0
    %7517 = vmatpush1.bf16.msra.mxu0 0
    %7518 = vmatprep.subr.bf16.mxu0 0
    %7519 = vmatpush1.bf16.msra.mxu0 0
    %7520 = vmatprep.mubr.bf16.mxu0 0
    %7521 = vmatmul.mubr.bf16.gmra.mrb[0].mxu0 %v7416
    %v7522 = vpop.f32.mrb[0].mxu0
    %v7523 = vadd.f32 %v7438, %v7522
    %v7524 = vpop.f32.mrb[0].mxu0
    %v7525 = vpop.f32.mrb[0].mxu0
    %v7526 = vadd.f32 %v7438, %v7525
    %v7527 = vpop.f32.mrb[0].mxu0
    %7528 = vdwg.mxu0
    %v7529 = vmax.f32 %v7523, 0.0
    %v7530 = vmax.f32 %v7526, 0.0
    %v7531 = vpack.c.bf16 %v7530, %v7529
    %v7532 = vld [vmem:[#allocation27] sm:$0xf]
    %v7533 = vld [vmem:[#allocation27 + $0x4] sm:$0xf]
    %v7534 = vld [vmem:[#allocation27 + $0x8] sm:$0xf]
    %v7535 = vld [vmem:[#allocation27 + $0xc] sm:$0xf]
    %v7536 = vld [vmem:[#allocation27 + $0x10] sm:$0xf]
    %v7537 = vld [vmem:[#allocation27 + $0x14] sm:$0xf]
    %v7538 = vld [vmem:[#allocation27 + $0x18] sm:$0xf]
    %v7539 = vld [vmem:[#allocation27 + $0x1c] sm:$0xf]
    %v7540 = vld [vmem:[#allocation27 + $0x20] sm:$0xf]
    %v7541 = vld [vmem:[#allocation27 + $0x24] sm:$0xf]
    %v7542 = vld [vmem:[#allocation27 + $0x28] sm:$0xf]
    %v7543 = vld [vmem:[#allocation27 + $0x2c] sm:$0xf]
    %v7544 = vld [vmem:[#allocation27 + $0x30] sm:$0xf]
    %v7545 = vld [vmem:[#allocation27 + $0x34] sm:$0xf]
    %v7546 = vld [vmem:[#allocation27 + $0x38] sm:$0xf]
    %v7547 = vld [vmem:[#allocation27 + $0x3c] sm:$0xf]
    %v7548 = vld [vmem:[#allocation29] sm:$0x1]
    %v7550 = vlaneseq
    %v7551 = vshrl.u32 %v7550, 7
    %v7552 = vsub.s32 0, %v7551
    %v7553 = vrot.slane %v7548, %v7552
    %v7571 = vunpack.c.l.b16 %v7532
    %v7572 = vunpack.c.l.b16 %v7533
    %v7573 = vunpack.c.l.b16 %v7534
    %v7574 = vunpack.c.l.b16 %v7535
    %v7575 = vunpack.c.l.b16 %v7536
    %v7576 = vunpack.c.l.b16 %v7537
    %v7577 = vunpack.c.l.b16 %v7538
    %v7578 = vunpack.c.l.b16 %v7539
    %v7579 = vunpack.c.l.b16 %v7540
    %v7580 = vunpack.c.l.b16 %v7541
    %v7581 = vunpack.c.l.b16 %v7542
    %v7582 = vunpack.c.l.b16 %v7543
    %v7583 = vunpack.c.l.b16 %v7544
    %v7584 = vunpack.c.l.b16 %v7545
    %v7585 = vunpack.c.l.b16 %v7546
    %v7586 = vunpack.c.l.b16 %v7547
    %v7587 = vpack.c.b16 %v7572, %v7571
    %v7588 = vpack.c.b16 %v7574, %v7573
    %v7589 = vpack.c.b16 %v7576, %v7575
    %v7590 = vpack.c.b16 %v7578, %v7577
    %v7591 = vpack.c.b16 %v7580, %v7579
    %v7592 = vpack.c.b16 %v7582, %v7581
    %v7593 = vpack.c.b16 %v7584, %v7583
    %v7594 = vpack.c.b16 %v7586, %v7585
    %7603 = vmatprep.subr.bf16.mxu0 0
    %7604 = vmatpush1.bf16.msra.mxu0 %v7587
    %7605 = vmatprep.subr.bf16.mxu0 0
    %7606 = vmatpush1.bf16.msra.mxu0 %v7588
    %7607 = vmatprep.subr.bf16.mxu0 0
    %7608 = vmatpush1.bf16.msra.mxu0 %v7589
    %7609 = vmatprep.subr.bf16.mxu0 0
    %7610 = vmatpush1.bf16.msra.mxu0 %v7590
    %7611 = vmatprep.subr.bf16.mxu0 0
    %7612 = vmatpush1.bf16.msra.mxu0 %v7591
    %7613 = vmatprep.subr.bf16.mxu0 0
    %7614 = vmatpush1.bf16.msra.mxu0 %v7592
    %7615 = vmatprep.subr.bf16.mxu0 0
    %7616 = vmatpush1.bf16.msra.mxu0 %v7593
    %7617 = vmatprep.subr.bf16.mxu0 0
    %7618 = vmatpush1.bf16.msra.mxu0 %v7594
    %7619 = vmatprep.subr.bf16.mxu0 0
    %7620 = vmatpush1.bf16.msra.mxu0 0
    %7621 = vmatprep.subr.bf16.mxu0 0
    %7622 = vmatpush1.bf16.msra.mxu0 0
    %7623 = vmatprep.subr.bf16.mxu0 0
    %7624 = vmatpush1.bf16.msra.mxu0 0
    %7625 = vmatprep.subr.bf16.mxu0 0
    %7626 = vmatpush1.bf16.msra.mxu0 0
    %7627 = vmatprep.subr.bf16.mxu0 0
    %7628 = vmatpush1.bf16.msra.mxu0 0
    %7629 = vmatprep.subr.bf16.mxu0 0
    %7630 = vmatpush1.bf16.msra.mxu0 0
    %7631 = vmatprep.subr.bf16.mxu0 0
    %7632 = vmatpush1.bf16.msra.mxu0 0
    %7633 = vmatprep.subr.bf16.mxu0 0
    %7634 = vmatpush1.bf16.msra.mxu0 0
    %7635 = vmatprep.mubr.bf16.mxu0 0
    %7636 = vmatmul.mubr.bf16.gmra.mrb[0].mxu0 %v7531
    %v7637 = vpop.f32.mrb[0].mxu0
    %v7638 = vadd.f32 %v7553, %v7637
    %v7639 = vpop.f32.mrb[0].mxu0
    %v7640 = vpop.f32.mrb[0].mxu0
    %v7641 = vadd.f32 %v7553, %v7640
    %v7642 = vpop.f32.mrb[0].mxu0
    %7643 = vdwg.mxu0
    %v7644 = vtanh.pop %v7638
    %v7645 = vtanh.pop %v7641
    %7646 = vst [vmem:[#allocation30] sm:$0xff] %v7644
    %7647 = vst [vmem:[#allocation30 + $0x8] sm:$0xff] %v7645
    // Predicated region
    $region138: #{actor_forward.1} parent=1 // pred_check
      _
    $region139: #{actor_forward.1} parent=1 // pred_check_branch
      %7649 = sbr.rel (0) target = $region141
    $region140: #{actor_forward.1} parent=1 // pred_region
      %s7651 = ssub.s32 256, 256
      %7652 = vsyncadd [#allocation5], %s7651
      %s7653 = sshll.u32 [#allocation30], 4
      %s7654 = int_to_ptr.vmem [resolvable:$true] %s7653
      %7659 = dma.vmem_to_hbm [thread:$0]  %s7654, 256, %s17, [#allocation5], 128, 128, 8
    $region141: #{actor_forward.1} parent=1 // pred_fallthru
      _
    // Predicated region
    $region142: #{actor_forward.1} parent=1 // pred_check
      _
    $region143: #{actor_forward.1} parent=1 // pred_check_branch
      %7661 = sbr.rel (0) target = $region145
    $region144: #{actor_forward.1} parent=1 // pred_region
      %7662 = dma.done [#allocation5], 256
    $region145: #{actor_forward.1} parent=1 // pred_fallthru
      _
    %7663 = vsyncpa [#allocation4], 1
    %7664 = vsyncpa [#allocation7], 1
    %7665 = vsyncpa [#allocation10], 1
    %7666 = vsyncpa [#allocation13], 1
    %7667 = vsyncpa [#allocation16], 1
    %7668 = vsyncpa [#allocation19], 1
    %7669 = vsyncpa [#allocation22], 1
    %7670 = vsyncpa [#allocation25], 1
    %7671 = vsyncpa [#allocation28], 1
    %7672 = vsyncpa [#allocation5], 1

</llo_original>
